<compile_context>
chip_gen: v7x
topology: tpu7x:2x2x1
jax: 0.10.0
libtpu: 0.0.40
codegen_flags: <defaults>
</compile_context>

<pallas_src>
import numpy as np
import jax
import jax.numpy as jnp
from jax.experimental import pallas as pl
from jax.experimental.pallas import tpu as pltpu

LANES = 128          # lane width for all matmul operands / the output slab
EMB_DIM = 16         # real embedding width (lanes 0:EMB_DIM of the output slab)
F_PAD = 8            # node features padded to 8 lanes (sublane multiple)
NUM_MATS = 5         # w1, w2, w3, w_embed, w_classifier (packed together)
NUM_BIAS_ROWS = 8    # 5 used, padded up to a sublane multiple


# ---------------------------------------------------------------------------
# Shared per-block math: used by BOTH the Pallas kernel body and the reference
# ---------------------------------------------------------------------------
def _unrolled_contract(lhs, rhs):
    """out[..., m, n] = sum_k lhs[..., m, k] * rhs[..., k, n], f32 accumulation.

    The contraction dim K is small and static (8), so it is fully unrolled into
    broadcast-multiply-adds that lower to plain VPU ops — no tiny MXU matmuls,
    no dense zero-padded K, and the (idle) VPU slots carry the work.
    """
    k = lhs.shape[-1]
    acc = None
    for j in range(k):
        term = (lhs[..., j:j + 1].astype(jnp.float32) *
                rhs[..., j:j + 1, :].astype(jnp.float32))
        acc = term if acc is None else acc + term
    return acc


def _block_forward(a, x, wfn, bfn):
    """One block of stacked graphs.

    a   : (Gb, ng, ng) f32  per-graph normalized adjacency D^-1/2 (A+I) D^-1/2
    x   : (Gb*ng, F_PAD) bf16 node features (narrow, zero-padded to 8 lanes)
    wfn : i -> (128, 128) bf16 padded weight i   (loaded at point of use)
    bfn : i -> (1, 128)   f32  padded bias i
    Returns a (Gb, 128) f32 slab: embedding in lanes 0:16, logits in 16:16+C.
    """
    f32, bf16 = jnp.float32, jnp.bfloat16
    gb, ng, _ = a.shape
    nb = gb * ng

    # ---- GCNConv 1: project (small-K VPU contraction) -> aggregate -> +b -> ReLU
    p = _unrolled_contract(x, wfn(0)[:F_PAD, :])                 # (Nb, 128) f32
    h = _unrolled_contract(a, p.reshape(gb, ng, LANES))          # (Gb, ng, 128) f32
    h = jnp.maximum(h + bfn(0), 0.0)

    # ---- GCNConv 2 & 3: project on the MXU -> aggregate (VPU) -> +b -> ReLU
    for layer in (1, 2):
        p = jnp.dot(h.reshape(nb, LANES).astype(bf16), wfn(layer),
                    preferred_element_type=f32)                  # (Nb, 128) f32
        h = _unrolled_contract(a, p.reshape(gb, ng, LANES))      # (Gb, ng, 128) f32
        h = jnp.maximum(h + bfn(layer), 0.0)

    # ---- global_add_pool: fixed-size segment sum over each graph's ng nodes
    hp = jnp.sum(h, axis=1)                                      # (Gb, 128) f32

    # ---- embedding Linear (lanes 0:16); classifier Linear (lanes 16:16+C).
    # wc/bc are pre-shifted, so both results pack into one lane-dense slab via
    # a plain add over disjoint lanes.
    emb = jnp.dot(hp.astype(bf16), wfn(3), preferred_element_type=f32) + bfn(3)
    logits = jnp.dot(jnp.maximum(emb, 0.0).astype(bf16), wfn(4),
                     preferred_element_type=f32) + bfn(4)
    return emb + logits


def gcn_block_kernel(a_ref, x_ref, w_ref, b_ref, out_ref):
    b_all = b_ref[...]                                   # (8,128) f32, 4 vregs
    out_ref[...] = _block_forward(
        a_ref[...], x_ref[...],
        lambda i: w_ref[i],                              # load each tile at use
        lambda i: b_all[i:i + 1, :])


def gcn_forward(a_blocks, x_blocks, w_packed, b_packed):
    nb, gb, ng, _ = a_blocks.shape
    n_blk = x_blocks.shape[1]
    out_shape = jax.ShapeDtypeStruct((nb, gb, LANES), jnp.float32)
    return pl.pallas_call(
        gcn_block_kernel,
        out_shape=out_shape,
        grid_spec=pltpu.PrefetchScalarGridSpec(
            num_scalar_prefetch=0,
            grid=(nb,),
            in_specs=[
                # per-block graph data streams with the grid
                pl.BlockSpec((None, gb, ng, ng), lambda i: (i, 0, 0, 0)),
                pl.BlockSpec((None, n_blk, F_PAD), lambda i: (i, 0, 0)),
                # packed weights / biases: constant index_map -> VMEM-resident
                pl.BlockSpec((NUM_MATS, LANES, LANES), lambda i: (0, 0, 0)),
                pl.BlockSpec((NUM_BIAS_ROWS, LANES), lambda i: (0, 0)),
            ],
            out_specs=pl.BlockSpec((None, gb, LANES), lambda i: (i, 0, 0)),
        ),
        compiler_params=pltpu.CompilerParams(
            dimension_semantics=("parallel",)),   # shard blocks across TCs (v7x)
    )(a_blocks, x_blocks, w_packed, b_packed)


# ---------------------------------------------------------------------------
# JAX glue: build compact per-graph adjacency and pack operands
# ---------------------------------------------------------------------------
def build_compact_adjacency(edge_index, num_graphs, nodes_per_graph):
    """Per-graph dense normalized adjacency, shape (G, ng, ng) f32.

    Assumes node ids are contiguous per graph (graph g owns nodes
    [g*ng, (g+1)*ng)) and no edge crosses a graph boundary (checked by caller).
    Follows torch_geometric's gcn_norm: D^-1/2 (A + I) D^-1/2.
    """
    src, dst = edge_index[0], edge_index[1]
    g = dst // nodes_per_graph
    ls = src % nodes_per_graph
    ld = dst % nodes_per_graph
    adj = jnp.zeros((num_graphs, nodes_per_graph, nodes_per_graph), jnp.float32)
    adj = adj.at[g, ld, ls].add(1.0)                    # A[i, j] = 1 for edge j->i
    adj = adj + jnp.eye(nodes_per_graph, dtype=jnp.float32)[None]
    deg = adj.sum(axis=2)
    dinv = jnp.where(deg > 0, jax.lax.rsqrt(deg), 0.0)
    return dinv[:, :, None] * adj * dinv[:, None, :]


def build_block_operands(a_graphs, x, num_blocks, graphs_per_block,
                         nodes_per_graph):
    """Pack per-graph adjacency and narrow node features into per-block slabs."""
    num_nodes, f_in = x.shape
    assert f_in <= F_PAD
    assert a_graphs.shape[0] == num_blocks * graphs_per_block
    assert num_nodes == num_blocks * graphs_per_block * nodes_per_graph
    n_blk = graphs_per_block * nodes_per_graph
    x_pad = jnp.zeros((num_nodes, F_PAD), jnp.float32).at[:, :f_in].set(x)
    a_blocks = a_graphs.reshape(num_blocks, graphs_per_block,
                                nodes_per_graph, nodes_per_graph)
    x_blocks = x_pad.reshape(num_blocks, n_blk, F_PAD).astype(jnp.bfloat16)
    return a_blocks.astype(jnp.float32), x_blocks


def init_params(key, num_features=3, num_classes=1):
    def glorot(k, shape):
        lim = np.sqrt(6.0 / (shape[0] + shape[1]))
        return jax.random.uniform(k, shape, jnp.float32, -lim, lim)

    ks = jax.random.split(key, 7)
    w1 = glorot(ks[0], (num_features, 32)); b1 = jnp.zeros((32,), jnp.float32)
    w2 = glorot(ks[1], (32, 16));           b2 = jnp.zeros((16,), jnp.float32)
    w3 = glorot(ks[2], (16, 16));           b3 = jnp.zeros((16,), jnp.float32)
    we = glorot(ks[3], (16, 16))
    be = jax.random.uniform(ks[4], (16,), jnp.float32, -0.25, 0.25)
    wc = glorot(ks[5], (16, num_classes))
    bc = jax.random.uniform(ks[6], (num_classes,), jnp.float32, -0.25, 0.25)
    return (w1, b1, w2, b2, w3, b3, we, be, wc, bc)


def pack_params(params, num_classes):
    """Pack 10 tiny tensors into one (5,128,128) bf16 weight slab and one
    (8,128) f32 bias slab. Classifier weight/bias are shifted to lanes 16:16+C
    so emb and logits share one lane-dense output slab."""
    (w1, b1, w2, b2, w3, b3, we, be, wc, bc) = params
    cls_off = EMB_DIM
    assert cls_off + num_classes <= LANES
    assert np.asarray(w1).shape[0] <= F_PAD

    def pad_w(w, col_off=0):
        out = np.zeros((LANES, LANES), np.float32)
        w = np.asarray(w)
        out[:w.shape[0], col_off:col_off + w.shape[1]] = w
        return out

    def pad_b(b, col_off=0):
        out = np.zeros((LANES,), np.float32)
        b = np.asarray(b).reshape(-1)
        out[col_off:col_off + b.shape[0]] = b
        return out

    w_packed = np.stack(
        [pad_w(w1), pad_w(w2), pad_w(w3), pad_w(we), pad_w(wc, cls_off)], axis=0)
    b_packed = np.zeros((NUM_BIAS_ROWS, LANES), np.float32)
    for i, (b, off) in enumerate([(b1, 0), (b2, 0), (b3, 0), (be, 0),
                                  (bc, cls_off)]):
        b_packed[i] = pad_b(b, off)
    return jnp.asarray(w_packed, jnp.bfloat16), jnp.asarray(b_packed, jnp.float32)


# ---------------------------------------------------------------------------
# References
# ---------------------------------------------------------------------------
def _reference_blocks(a_blocks, x_blocks, w_packed, b_packed):
    """Plain-JAX reference using the exact same math as the kernel."""
    outs = []
    for b in range(a_blocks.shape[0]):
        outs.append(_block_forward(a_blocks[b], x_blocks[b],
                                   lambda i: w_packed[i],
                                   lambda i: b_packed[i:i + 1, :]))
    return jnp.stack(outs, axis=0)


def build_normalized_adjacency(edge_index, num_nodes):
    """Dense D^-1/2 (A + I) D^-1/2 for the pure-f32 sanity reference only."""
    src, dst = edge_index[0], edge_index[1]
    adj = jnp.zeros((num_nodes, num_nodes), jnp.float32)
    adj = adj.at[dst, src].add(1.0)
    adj = adj + jnp.eye(num_nodes, dtype=jnp.float32)
    deg = adj.sum(axis=1)
    dinv = jnp.where(deg > 0, jax.lax.rsqrt(deg), 0.0)
    return dinv[:, None] * adj * dinv[None, :]


def build_pool_matrix(batch, num_graphs):
    return (batch[None, :] == jnp.arange(num_graphs)[:, None]).astype(jnp.float32)


def _reference_f32(a_hat, pool_m, x, params):
    """Pure-f32 reference of the original module (sanity check)."""
    (w1, b1, w2, b2, w3, b3, we, be, wc, bc) = params
    h = jnp.maximum(a_hat @ (x @ w1) + b1, 0.0)
    h = jnp.maximum(a_hat @ (h @ w2) + b2, 0.0)
    h = jnp.maximum(a_hat @ (h @ w3) + b3, 0.0)
    hp = pool_m @ h
    emb = hp @ we + be
    out = jnp.maximum(emb, 0.0) @ wc + bc
    return emb, out


if __name__ == "__main__":
    key = jax.random.PRNGKey(0)
    k_x, k_params = jax.random.split(key)

    num_features, num_classes = 3, 1
    nodes_per_graph = 8
    graphs_per_block = 32                                  # 32 graphs per grid step
    num_blocks = 16                                        # grid = (16,)
    num_graphs = graphs_per_block * num_blocks             # 512 graphs per call
    nodes_per_block = graphs_per_block * nodes_per_graph   # 256 (sublane-dense)
    num_nodes = num_graphs * nodes_per_graph               # 4096

    # node features
    x = jax.random.normal(k_x, (num_nodes, num_features), jnp.float32)
    batch = jnp.repeat(jnp.arange(num_graphs, dtype=jnp.int32), nodes_per_graph)

    # undirected ring within each graph (no cross-graph edges)
    edges = []
    for g in range(num_graphs):
        base = g * nodes_per_graph
        for i in range(nodes_per_graph):
            u, v = base + i, base + (i + 1) % nodes_per_graph
            edges.append((u, v))
            edges.append((v, u))
    edge_index = np.array(edges, dtype=np.int32).T          # (2, E)

    # runtime check: the compact representation assumes node ids are contiguous
    # per graph and no edge crosses a graph boundary.
    assert np.all(edge_index[0] // nodes_per_graph
                  == edge_index[1] // nodes_per_graph), "edge crosses a graph"

    a_graphs = build_compact_adjacency(jnp.asarray(edge_index), num_graphs,
                                       nodes_per_graph)
    a_blocks, x_blocks = build_block_operands(a_graphs, x, num_blocks,
                                              graphs_per_block, nodes_per_graph)

    params = init_params(k_params, num_features, num_classes)
    w_packed, b_packed = pack_params(params, num_classes)

    slab = gcn_forward(a_blocks, x_blocks, w_packed, b_packed)
    jax.block_until_ready(slab)

    flat = np.asarray(slab).reshape(num_graphs, LANES)
    emb = flat[:, :EMB_DIM]                            # (G, 16) embedding
    out = flat[:, EMB_DIM:EMB_DIM + num_classes]       # (G, C)  classifier output

    # tight check: identical math on the same packed operands (kernel vs XLA)
    slab_ref = np.asarray(_reference_blocks(a_blocks, x_blocks,
                                            w_packed, b_packed))
    assert np.allclose(np.asarray(slab), slab_ref, atol=2e-3, rtol=2e-3), \
        float(np.abs(np.asarray(slab) - slab_ref).max())

    # loose sanity check against the dense pure-f32 semantics of the original
    # module (bf16 weights/activations in the kernel -> scale-relative bound).
    a_hat = build_normalized_adjacency(jnp.asarray(edge_index), num_nodes)
    pool_m = build_pool_matrix(batch, num_graphs)
    emb_f32, out_f32 = _reference_f32(a_hat, pool_m, x, params)
    emb_f32, out_f32 = np.asarray(emb_f32), np.asarray(out_f32)
    emb_tol = 0.1 * max(1.0, float(np.abs(emb_f32).max()))
    out_tol = 0.1 * max(1.0, float(np.abs(out_f32).max()))
    assert np.abs(emb - emb_f32).max() <= emb_tol, float(np.abs(emb - emb_f32).max())
    assert np.abs(out - out_f32).max() <= out_tol, float(np.abs(out - out_f32).max())

    print("KERNEL_OK")
</pallas_src>

<mosaic_0001>
module attributes {stable_mosaic.version = 11 : i64} {
  func.func @gcn_block_kernel(%arg0: i32, %arg1: memref<1x32x8x8xf32, #tpu.memory_space<vmem>>, %arg2: memref<1x256x8xbf16, #tpu.memory_space<vmem>>, %arg3: memref<5x128x128xbf16, #tpu.memory_space<vmem>>, %arg4: memref<8x128xf32, #tpu.memory_space<vmem>>, %arg5: memref<1x32x128xf32, #tpu.memory_space<vmem>>) attributes {dimension_semantics = [#tpu.dimension_semantics<parallel>], iteration_bounds = array<i64: 16>, scalar_prefetch = 0 : i64, scratch_operands = 0 : i64, tpu.core_type = #tpu.core_type<tc>, window_params = [{transform_indices = @transform_0, window_bounds = array<i64: 1, 32, 8, 8>}, {transform_indices = @transform_1, window_bounds = array<i64: 1, 256, 8>}, {pipeline_mode = #tpu.pipeline_mode<synchronous>, transform_indices = @transform_2, window_bounds = array<i64: 5, 128, 128>}, {pipeline_mode = #tpu.pipeline_mode<synchronous>, transform_indices = @transform_3, window_bounds = array<i64: 8, 128>}, {transform_indices = @transform_4, window_bounds = array<i64: 1, 32, 128>}]} {
    %c0 = arith.constant 0 : index
    %c0_0 = arith.constant 0 : index
    %0 = vector.load %arg4[%c0, %c0_0] : memref<8x128xf32, #tpu.memory_space<vmem>>, vector<8x128xf32>
    %c0_1 = arith.constant 0 : index
    %c0_2 = arith.constant 0 : index
    %c0_3 = arith.constant 0 : index
    %c0_4 = arith.constant 0 : index
    %1 = vector.load %arg1[%c0_1, %c0_2, %c0_3, %c0_4] : memref<1x32x8x8xf32, #tpu.memory_space<vmem>>, vector<1x32x8x8xf32>
    %2 = vector.shape_cast %1 : vector<1x32x8x8xf32> to vector<32x8x8xf32>
    %c0_5 = arith.constant 0 : index
    %c0_6 = arith.constant 0 : index
    %c0_7 = arith.constant 0 : index
    %3 = vector.load %arg2[%c0_5, %c0_6, %c0_7] : memref<1x256x8xbf16, #tpu.memory_space<vmem>>, vector<1x256x8xbf16>
    %4 = vector.shape_cast %3 : vector<1x256x8xbf16> to vector<256x8xbf16>
    %c0_8 = arith.constant 0 : index
    %c0_9 = arith.constant 0 : index
    %c0_10 = arith.constant 0 : index
    %5 = vector.load %arg3[%c0_8, %c0_9, %c0_10] : memref<5x128x128xbf16, #tpu.memory_space<vmem>>, vector<1x128x128xbf16>
    %6 = vector.shape_cast %5 : vector<1x128x128xbf16> to vector<128x128xbf16>
    %7 = vector.extract_strided_slice %6 {offsets = [0, 0], sizes = [8, 128], strides = [1, 1]} : vector<128x128xbf16> to vector<8x128xbf16>
    %8 = vector.extract_strided_slice %4 {offsets = [0, 0], sizes = [256, 1], strides = [1, 1]} : vector<256x8xbf16> to vector<256x1xbf16>
    %9 = arith.extf %8 : vector<256x1xbf16> to vector<256x1xf32>
    %10 = vector.extract_strided_slice %7 {offsets = [0, 0], sizes = [1, 128], strides = [1, 1]} : vector<8x128xbf16> to vector<1x128xbf16>
    %11 = arith.extf %10 : vector<1x128xbf16> to vector<1x128xf32>
    %12 = vector.broadcast %9 : vector<256x1xf32> to vector<256x128xf32>
    %13 = vector.broadcast %11 : vector<1x128xf32> to vector<256x128xf32>
    %14 = arith.mulf %12, %13 : vector<256x128xf32>
    %15 = vector.extract_strided_slice %4 {offsets = [0, 1], sizes = [256, 1], strides = [1, 1]} : vector<256x8xbf16> to vector<256x1xbf16>
    %16 = arith.extf %15 : vector<256x1xbf16> to vector<256x1xf32>
    %17 = vector.extract_strided_slice %7 {offsets = [1, 0], sizes = [1, 128], strides = [1, 1]} : vector<8x128xbf16> to vector<1x128xbf16>
    %18 = arith.extf %17 : vector<1x128xbf16> to vector<1x128xf32>
    %19 = vector.broadcast %16 : vector<256x1xf32> to vector<256x128xf32>
    %20 = vector.broadcast %18 : vector<1x128xf32> to vector<256x128xf32>
    %21 = arith.mulf %19, %20 : vector<256x128xf32>
    %22 = arith.addf %14, %21 : vector<256x128xf32>
    %23 = vector.extract_strided_slice %4 {offsets = [0, 2], sizes = [256, 1], strides = [1, 1]} : vector<256x8xbf16> to vector<256x1xbf16>
    %24 = arith.extf %23 : vector<256x1xbf16> to vector<256x1xf32>
    %25 = vector.extract_strided_slice %7 {offsets = [2, 0], sizes = [1, 128], strides = [1, 1]} : vector<8x128xbf16> to vector<1x128xbf16>
    %26 = arith.extf %25 : vector<1x128xbf16> to vector<1x128xf32>
    %27 = vector.broadcast %24 : vector<256x1xf32> to vector<256x128xf32>
    %28 = vector.broadcast %26 : vector<1x128xf32> to vector<256x128xf32>
    %29 = arith.mulf %27, %28 : vector<256x128xf32>
    %30 = arith.addf %22, %29 : vector<256x128xf32>
    %31 = vector.extract_strided_slice %4 {offsets = [0, 3], sizes = [256, 1], strides = [1, 1]} : vector<256x8xbf16> to vector<256x1xbf16>
    %32 = arith.extf %31 : vector<256x1xbf16> to vector<256x1xf32>
    %33 = vector.extract_strided_slice %7 {offsets = [3, 0], sizes = [1, 128], strides = [1, 1]} : vector<8x128xbf16> to vector<1x128xbf16>
    %34 = arith.extf %33 : vector<1x128xbf16> to vector<1x128xf32>
    %35 = vector.broadcast %32 : vector<256x1xf32> to vector<256x128xf32>
    %36 = vector.broadcast %34 : vector<1x128xf32> to vector<256x128xf32>
    %37 = arith.mulf %35, %36 : vector<256x128xf32>
    %38 = arith.addf %30, %37 : vector<256x128xf32>
    %39 = vector.extract_strided_slice %4 {offsets = [0, 4], sizes = [256, 1], strides = [1, 1]} : vector<256x8xbf16> to vector<256x1xbf16>
    %40 = arith.extf %39 : vector<256x1xbf16> to vector<256x1xf32>
    %41 = vector.extract_strided_slice %7 {offsets = [4, 0], sizes = [1, 128], strides = [1, 1]} : vector<8x128xbf16> to vector<1x128xbf16>
    %42 = arith.extf %41 : vector<1x128xbf16> to vector<1x128xf32>
    %43 = vector.broadcast %40 : vector<256x1xf32> to vector<256x128xf32>
    %44 = vector.broadcast %42 : vector<1x128xf32> to vector<256x128xf32>
    %45 = arith.mulf %43, %44 : vector<256x128xf32>
    %46 = arith.addf %38, %45 : vector<256x128xf32>
    %47 = vector.extract_strided_slice %4 {offsets = [0, 5], sizes = [256, 1], strides = [1, 1]} : vector<256x8xbf16> to vector<256x1xbf16>
    %48 = arith.extf %47 : vector<256x1xbf16> to vector<256x1xf32>
    %49 = vector.extract_strided_slice %7 {offsets = [5, 0], sizes = [1, 128], strides = [1, 1]} : vector<8x128xbf16> to vector<1x128xbf16>
    %50 = arith.extf %49 : vector<1x128xbf16> to vector<1x128xf32>
    %51 = vector.broadcast %48 : vector<256x1xf32> to vector<256x128xf32>
    %52 = vector.broadcast %50 : vector<1x128xf32> to vector<256x128xf32>
    %53 = arith.mulf %51, %52 : vector<256x128xf32>
    %54 = arith.addf %46, %53 : vector<256x128xf32>
    %55 = vector.extract_strided_slice %4 {offsets = [0, 6], sizes = [256, 1], strides = [1, 1]} : vector<256x8xbf16> to vector<256x1xbf16>
    %56 = arith.extf %55 : vector<256x1xbf16> to vector<256x1xf32>
    %57 = vector.extract_strided_slice %7 {offsets = [6, 0], sizes = [1, 128], strides = [1, 1]} : vector<8x128xbf16> to vector<1x128xbf16>
    %58 = arith.extf %57 : vector<1x128xbf16> to vector<1x128xf32>
    %59 = vector.broadcast %56 : vector<256x1xf32> to vector<256x128xf32>
    %60 = vector.broadcast %58 : vector<1x128xf32> to vector<256x128xf32>
    %61 = arith.mulf %59, %60 : vector<256x128xf32>
    %62 = arith.addf %54, %61 : vector<256x128xf32>
    %63 = vector.extract_strided_slice %4 {offsets = [0, 7], sizes = [256, 1], strides = [1, 1]} : vector<256x8xbf16> to vector<256x1xbf16>
    %64 = arith.extf %63 : vector<256x1xbf16> to vector<256x1xf32>
    %65 = vector.extract_strided_slice %7 {offsets = [7, 0], sizes = [1, 128], strides = [1, 1]} : vector<8x128xbf16> to vector<1x128xbf16>
    %66 = arith.extf %65 : vector<1x128xbf16> to vector<1x128xf32>
    %67 = vector.broadcast %64 : vector<256x1xf32> to vector<256x128xf32>
    %68 = vector.broadcast %66 : vector<1x128xf32> to vector<256x128xf32>
    %69 = arith.mulf %67, %68 : vector<256x128xf32>
    %70 = arith.addf %62, %69 : vector<256x128xf32>
    %71 = vector.shape_cast %70 : vector<256x128xf32> to vector<32x8x128xf32>
    %72 = vector.extract_strided_slice %2 {offsets = [0, 0, 0], sizes = [32, 8, 1], strides = [1, 1, 1]} : vector<32x8x8xf32> to vector<32x8x1xf32>
    %73 = vector.extract_strided_slice %71 {offsets = [0, 0, 0], sizes = [32, 1, 128], strides = [1, 1, 1]} : vector<32x8x128xf32> to vector<32x1x128xf32>
    %74 = vector.broadcast %72 : vector<32x8x1xf32> to vector<32x8x128xf32>
    %75 = vector.broadcast %73 : vector<32x1x128xf32> to vector<32x8x128xf32>
    %76 = arith.mulf %74, %75 : vector<32x8x128xf32>
    %77 = vector.extract_strided_slice %2 {offsets = [0, 0, 1], sizes = [32, 8, 1], strides = [1, 1, 1]} : vector<32x8x8xf32> to vector<32x8x1xf32>
    %78 = vector.extract_strided_slice %71 {offsets = [0, 1, 0], sizes = [32, 1, 128], strides = [1, 1, 1]} : vector<32x8x128xf32> to vector<32x1x128xf32>
    %79 = vector.broadcast %77 : vector<32x8x1xf32> to vector<32x8x128xf32>
    %80 = vector.broadcast %78 : vector<32x1x128xf32> to vector<32x8x128xf32>
    %81 = arith.mulf %79, %80 : vector<32x8x128xf32>
    %82 = arith.addf %76, %81 : vector<32x8x128xf32>
    %83 = vector.extract_strided_slice %2 {offsets = [0, 0, 2], sizes = [32, 8, 1], strides = [1, 1, 1]} : vector<32x8x8xf32> to vector<32x8x1xf32>
    %84 = vector.extract_strided_slice %71 {offsets = [0, 2, 0], sizes = [32, 1, 128], strides = [1, 1, 1]} : vector<32x8x128xf32> to vector<32x1x128xf32>
    %85 = vector.broadcast %83 : vector<32x8x1xf32> to vector<32x8x128xf32>
    %86 = vector.broadcast %84 : vector<32x1x128xf32> to vector<32x8x128xf32>
    %87 = arith.mulf %85, %86 : vector<32x8x128xf32>
    %88 = arith.addf %82, %87 : vector<32x8x128xf32>
    %89 = vector.extract_strided_slice %2 {offsets = [0, 0, 3], sizes = [32, 8, 1], strides = [1, 1, 1]} : vector<32x8x8xf32> to vector<32x8x1xf32>
    %90 = vector.extract_strided_slice %71 {offsets = [0, 3, 0], sizes = [32, 1, 128], strides = [1, 1, 1]} : vector<32x8x128xf32> to vector<32x1x128xf32>
    %91 = vector.broadcast %89 : vector<32x8x1xf32> to vector<32x8x128xf32>
    %92 = vector.broadcast %90 : vector<32x1x128xf32> to vector<32x8x128xf32>
    %93 = arith.mulf %91, %92 : vector<32x8x128xf32>
    %94 = arith.addf %88, %93 : vector<32x8x128xf32>
    %95 = vector.extract_strided_slice %2 {offsets = [0, 0, 4], sizes = [32, 8, 1], strides = [1, 1, 1]} : vector<32x8x8xf32> to vector<32x8x1xf32>
    %96 = vector.extract_strided_slice %71 {offsets = [0, 4, 0], sizes = [32, 1, 128], strides = [1, 1, 1]} : vector<32x8x128xf32> to vector<32x1x128xf32>
    %97 = vector.broadcast %95 : vector<32x8x1xf32> to vector<32x8x128xf32>
    %98 = vector.broadcast %96 : vector<32x1x128xf32> to vector<32x8x128xf32>
    %99 = arith.mulf %97, %98 : vector<32x8x128xf32>
    %100 = arith.addf %94, %99 : vector<32x8x128xf32>
    %101 = vector.extract_strided_slice %2 {offsets = [0, 0, 5], sizes = [32, 8, 1], strides = [1, 1, 1]} : vector<32x8x8xf32> to vector<32x8x1xf32>
    %102 = vector.extract_strided_slice %71 {offsets = [0, 5, 0], sizes = [32, 1, 128], strides = [1, 1, 1]} : vector<32x8x128xf32> to vector<32x1x128xf32>
    %103 = vector.broadcast %101 : vector<32x8x1xf32> to vector<32x8x128xf32>
    %104 = vector.broadcast %102 : vector<32x1x128xf32> to vector<32x8x128xf32>
    %105 = arith.mulf %103, %104 : vector<32x8x128xf32>
    %106 = arith.addf %100, %105 : vector<32x8x128xf32>
    %107 = vector.extract_strided_slice %2 {offsets = [0, 0, 6], sizes = [32, 8, 1], strides = [1, 1, 1]} : vector<32x8x8xf32> to vector<32x8x1xf32>
    %108 = vector.extract_strided_slice %71 {offsets = [0, 6, 0], sizes = [32, 1, 128], strides = [1, 1, 1]} : vector<32x8x128xf32> to vector<32x1x128xf32>
    %109 = vector.broadcast %107 : vector<32x8x1xf32> to vector<32x8x128xf32>
    %110 = vector.broadcast %108 : vector<32x1x128xf32> to vector<32x8x128xf32>
    %111 = arith.mulf %109, %110 : vector<32x8x128xf32>
    %112 = arith.addf %106, %111 : vector<32x8x128xf32>
    %113 = vector.extract_strided_slice %2 {offsets = [0, 0, 7], sizes = [32, 8, 1], strides = [1, 1, 1]} : vector<32x8x8xf32> to vector<32x8x1xf32>
    %114 = vector.extract_strided_slice %71 {offsets = [0, 7, 0], sizes = [32, 1, 128], strides = [1, 1, 1]} : vector<32x8x128xf32> to vector<32x1x128xf32>
    %115 = vector.broadcast %113 : vector<32x8x1xf32> to vector<32x8x128xf32>
    %116 = vector.broadcast %114 : vector<32x1x128xf32> to vector<32x8x128xf32>
    %117 = arith.mulf %115, %116 : vector<32x8x128xf32>
    %118 = arith.addf %112, %117 : vector<32x8x128xf32>
    %119 = vector.extract_strided_slice %0 {offsets = [0, 0], sizes = [1, 128], strides = [1, 1]} : vector<8x128xf32> to vector<1x128xf32>
    %120 = vector.shape_cast %119 : vector<1x128xf32> to vector<1x1x128xf32>
    %121 = vector.broadcast %120 : vector<1x1x128xf32> to vector<32x8x128xf32>
    %122 = arith.addf %118, %121 : vector<32x8x128xf32>
    %cst = arith.constant 0.000000e+00 : f32
    %123 = vector.broadcast %cst : f32 to vector<32x8x128xf32>
    %124 = arith.maximumf %122, %123 : vector<32x8x128xf32>
    %125 = vector.shape_cast %124 : vector<32x8x128xf32> to vector<256x128xf32>
    %126 = arith.truncf %125 : vector<256x128xf32> to vector<256x128xbf16>
    %c1 = arith.constant 1 : index
    %c0_11 = arith.constant 0 : index
    %c0_12 = arith.constant 0 : index
    %127 = vector.load %arg3[%c1, %c0_11, %c0_12] : memref<5x128x128xbf16, #tpu.memory_space<vmem>>, vector<1x128x128xbf16>
    %128 = vector.shape_cast %127 : vector<1x128x128xbf16> to vector<128x128xbf16>
    %cst_13 = arith.constant dense<0.000000e+00> : vector<256x128xf32>
    %129 = tpu.matmul %126, %128, %cst_13 {dimension_numbers = #tpu.dot_dimension_numbers<[1], [0], [0], [1], [0, 0, 1, 1], [], []>} : vector<256x128xbf16>, vector<128x128xbf16>, vector<256x128xf32> -> vector<256x128xf32>
    %130 = vector.shape_cast %129 : vector<256x128xf32> to vector<32x8x128xf32>
    %131 = vector.extract_strided_slice %2 {offsets = [0, 0, 0], sizes = [32, 8, 1], strides = [1, 1, 1]} : vector<32x8x8xf32> to vector<32x8x1xf32>
    %132 = vector.extract_strided_slice %130 {offsets = [0, 0, 0], sizes = [32, 1, 128], strides = [1, 1, 1]} : vector<32x8x128xf32> to vector<32x1x128xf32>
    %133 = vector.broadcast %131 : vector<32x8x1xf32> to vector<32x8x128xf32>
    %134 = vector.broadcast %132 : vector<32x1x128xf32> to vector<32x8x128xf32>
    %135 = arith.mulf %133, %134 : vector<32x8x128xf32>
    %136 = vector.extract_strided_slice %2 {offsets = [0, 0, 1], sizes = [32, 8, 1], strides = [1, 1, 1]} : vector<32x8x8xf32> to vector<32x8x1xf32>
    %137 = vector.extract_strided_slice %130 {offsets = [0, 1, 0], sizes = [32, 1, 128], strides = [1, 1, 1]} : vector<32x8x128xf32> to vector<32x1x128xf32>
    %138 = vector.broadcast %136 : vector<32x8x1xf32> to vector<32x8x128xf32>
    %139 = vector.broadcast %137 : vector<32x1x128xf32> to vector<32x8x128xf32>
    %140 = arith.mulf %138, %139 : vector<32x8x128xf32>
    %141 = arith.addf %135, %140 : vector<32x8x128xf32>
    %142 = vector.extract_strided_slice %2 {offsets = [0, 0, 2], sizes = [32, 8, 1], strides = [1, 1, 1]} : vector<32x8x8xf32> to vector<32x8x1xf32>
    %143 = vector.extract_strided_slice %130 {offsets = [0, 2, 0], sizes = [32, 1, 128], strides = [1, 1, 1]} : vector<32x8x128xf32> to vector<32x1x128xf32>
    %144 = vector.broadcast %142 : vector<32x8x1xf32> to vector<32x8x128xf32>
    %145 = vector.broadcast %143 : vector<32x1x128xf32> to vector<32x8x128xf32>
    %146 = arith.mulf %144, %145 : vector<32x8x128xf32>
    %147 = arith.addf %141, %146 : vector<32x8x128xf32>
    %148 = vector.extract_strided_slice %2 {offsets = [0, 0, 3], sizes = [32, 8, 1], strides = [1, 1, 1]} : vector<32x8x8xf32> to vector<32x8x1xf32>
    %149 = vector.extract_strided_slice %130 {offsets = [0, 3, 0], sizes = [32, 1, 128], strides = [1, 1, 1]} : vector<32x8x128xf32> to vector<32x1x128xf32>
    %150 = vector.broadcast %148 : vector<32x8x1xf32> to vector<32x8x128xf32>
    %151 = vector.broadcast %149 : vector<32x1x128xf32> to vector<32x8x128xf32>
    %152 = arith.mulf %150, %151 : vector<32x8x128xf32>
    %153 = arith.addf %147, %152 : vector<32x8x128xf32>
    %154 = vector.extract_strided_slice %2 {offsets = [0, 0, 4], sizes = [32, 8, 1], strides = [1, 1, 1]} : vector<32x8x8xf32> to vector<32x8x1xf32>
    %155 = vector.extract_strided_slice %130 {offsets = [0, 4, 0], sizes = [32, 1, 128], strides = [1, 1, 1]} : vector<32x8x128xf32> to vector<32x1x128xf32>
    %156 = vector.broadcast %154 : vector<32x8x1xf32> to vector<32x8x128xf32>
    %157 = vector.broadcast %155 : vector<32x1x128xf32> to vector<32x8x128xf32>
    %158 = arith.mulf %156, %157 : vector<32x8x128xf32>
    %159 = arith.addf %153, %158 : vector<32x8x128xf32>
    %160 = vector.extract_strided_slice %2 {offsets = [0, 0, 5], sizes = [32, 8, 1], strides = [1, 1, 1]} : vector<32x8x8xf32> to vector<32x8x1xf32>
    %161 = vector.extract_strided_slice %130 {offsets = [0, 5, 0], sizes = [32, 1, 128], strides = [1, 1, 1]} : vector<32x8x128xf32> to vector<32x1x128xf32>
    %162 = vector.broadcast %160 : vector<32x8x1xf32> to vector<32x8x128xf32>
    %163 = vector.broadcast %161 : vector<32x1x128xf32> to vector<32x8x128xf32>
    %164 = arith.mulf %162, %163 : vector<32x8x128xf32>
    %165 = arith.addf %159, %164 : vector<32x8x128xf32>
    %166 = vector.extract_strided_slice %2 {offsets = [0, 0, 6], sizes = [32, 8, 1], strides = [1, 1, 1]} : vector<32x8x8xf32> to vector<32x8x1xf32>
    %167 = vector.extract_strided_slice %130 {offsets = [0, 6, 0], sizes = [32, 1, 128], strides = [1, 1, 1]} : vector<32x8x128xf32> to vector<32x1x128xf32>
    %168 = vector.broadcast %166 : vector<32x8x1xf32> to vector<32x8x128xf32>
    %169 = vector.broadcast %167 : vector<32x1x128xf32> to vector<32x8x128xf32>
    %170 = arith.mulf %168, %169 : vector<32x8x128xf32>
    %171 = arith.addf %165, %170 : vector<32x8x128xf32>
    %172 = vector.extract_strided_slice %2 {offsets = [0, 0, 7], sizes = [32, 8, 1], strides = [1, 1, 1]} : vector<32x8x8xf32> to vector<32x8x1xf32>
    %173 = vector.extract_strided_slice %130 {offsets = [0, 7, 0], sizes = [32, 1, 128], strides = [1, 1, 1]} : vector<32x8x128xf32> to vector<32x1x128xf32>
    %174 = vector.broadcast %172 : vector<32x8x1xf32> to vector<32x8x128xf32>
    %175 = vector.broadcast %173 : vector<32x1x128xf32> to vector<32x8x128xf32>
    %176 = arith.mulf %174, %175 : vector<32x8x128xf32>
    %177 = arith.addf %171, %176 : vector<32x8x128xf32>
    %178 = vector.extract_strided_slice %0 {offsets = [1, 0], sizes = [1, 128], strides = [1, 1]} : vector<8x128xf32> to vector<1x128xf32>
    %179 = vector.shape_cast %178 : vector<1x128xf32> to vector<1x1x128xf32>
    %180 = vector.broadcast %179 : vector<1x1x128xf32> to vector<32x8x128xf32>
    %181 = arith.addf %177, %180 : vector<32x8x128xf32>
    %cst_14 = arith.constant 0.000000e+00 : f32
    %182 = vector.broadcast %cst_14 : f32 to vector<32x8x128xf32>
    %183 = arith.maximumf %181, %182 : vector<32x8x128xf32>
    %184 = vector.shape_cast %183 : vector<32x8x128xf32> to vector<256x128xf32>
    %185 = arith.truncf %184 : vector<256x128xf32> to vector<256x128xbf16>
    %c2 = arith.constant 2 : index
    %c0_15 = arith.constant 0 : index
    %c0_16 = arith.constant 0 : index
    %186 = vector.load %arg3[%c2, %c0_15, %c0_16] : memref<5x128x128xbf16, #tpu.memory_space<vmem>>, vector<1x128x128xbf16>
    %187 = vector.shape_cast %186 : vector<1x128x128xbf16> to vector<128x128xbf16>
    %cst_17 = arith.constant dense<0.000000e+00> : vector<256x128xf32>
    %188 = tpu.matmul %185, %187, %cst_17 {dimension_numbers = #tpu.dot_dimension_numbers<[1], [0], [0], [1], [0, 0, 1, 1], [], []>} : vector<256x128xbf16>, vector<128x128xbf16>, vector<256x128xf32> -> vector<256x128xf32>
    %189 = vector.shape_cast %188 : vector<256x128xf32> to vector<32x8x128xf32>
    %190 = vector.extract_strided_slice %2 {offsets = [0, 0, 0], sizes = [32, 8, 1], strides = [1, 1, 1]} : vector<32x8x8xf32> to vector<32x8x1xf32>
    %191 = vector.extract_strided_slice %189 {offsets = [0, 0, 0], sizes = [32, 1, 128], strides = [1, 1, 1]} : vector<32x8x128xf32> to vector<32x1x128xf32>
    %192 = vector.broadcast %190 : vector<32x8x1xf32> to vector<32x8x128xf32>
    %193 = vector.broadcast %191 : vector<32x1x128xf32> to vector<32x8x128xf32>
    %194 = arith.mulf %192, %193 : vector<32x8x128xf32>
    %195 = vector.extract_strided_slice %2 {offsets = [0, 0, 1], sizes = [32, 8, 1], strides = [1, 1, 1]} : vector<32x8x8xf32> to vector<32x8x1xf32>
    %196 = vector.extract_strided_slice %189 {offsets = [0, 1, 0], sizes = [32, 1, 128], strides = [1, 1, 1]} : vector<32x8x128xf32> to vector<32x1x128xf32>
    %197 = vector.broadcast %195 : vector<32x8x1xf32> to vector<32x8x128xf32>
    %198 = vector.broadcast %196 : vector<32x1x128xf32> to vector<32x8x128xf32>
    %199 = arith.mulf %197, %198 : vector<32x8x128xf32>
    %200 = arith.addf %194, %199 : vector<32x8x128xf32>
    %201 = vector.extract_strided_slice %2 {offsets = [0, 0, 2], sizes = [32, 8, 1], strides = [1, 1, 1]} : vector<32x8x8xf32> to vector<32x8x1xf32>
    %202 = vector.extract_strided_slice %189 {offsets = [0, 2, 0], sizes = [32, 1, 128], strides = [1, 1, 1]} : vector<32x8x128xf32> to vector<32x1x128xf32>
    %203 = vector.broadcast %201 : vector<32x8x1xf32> to vector<32x8x128xf32>
    %204 = vector.broadcast %202 : vector<32x1x128xf32> to vector<32x8x128xf32>
    %205 = arith.mulf %203, %204 : vector<32x8x128xf32>
    %206 = arith.addf %200, %205 : vector<32x8x128xf32>
    %207 = vector.extract_strided_slice %2 {offsets = [0, 0, 3], sizes = [32, 8, 1], strides = [1, 1, 1]} : vector<32x8x8xf32> to vector<32x8x1xf32>
    %208 = vector.extract_strided_slice %189 {offsets = [0, 3, 0], sizes = [32, 1, 128], strides = [1, 1, 1]} : vector<32x8x128xf32> to vector<32x1x128xf32>
    %209 = vector.broadcast %207 : vector<32x8x1xf32> to vector<32x8x128xf32>
    %210 = vector.broadcast %208 : vector<32x1x128xf32> to vector<32x8x128xf32>
    %211 = arith.mulf %209, %210 : vector<32x8x128xf32>
    %212 = arith.addf %206, %211 : vector<32x8x128xf32>
    %213 = vector.extract_strided_slice %2 {offsets = [0, 0, 4], sizes = [32, 8, 1], strides = [1, 1, 1]} : vector<32x8x8xf32> to vector<32x8x1xf32>
    %214 = vector.extract_strided_slice %189 {offsets = [0, 4, 0], sizes = [32, 1, 128], strides = [1, 1, 1]} : vector<32x8x128xf32> to vector<32x1x128xf32>
    %215 = vector.broadcast %213 : vector<32x8x1xf32> to vector<32x8x128xf32>
    %216 = vector.broadcast %214 : vector<32x1x128xf32> to vector<32x8x128xf32>
    %217 = arith.mulf %215, %216 : vector<32x8x128xf32>
    %218 = arith.addf %212, %217 : vector<32x8x128xf32>
    %219 = vector.extract_strided_slice %2 {offsets = [0, 0, 5], sizes = [32, 8, 1], strides = [1, 1, 1]} : vector<32x8x8xf32> to vector<32x8x1xf32>
    %220 = vector.extract_strided_slice %189 {offsets = [0, 5, 0], sizes = [32, 1, 128], strides = [1, 1, 1]} : vector<32x8x128xf32> to vector<32x1x128xf32>
    %221 = vector.broadcast %219 : vector<32x8x1xf32> to vector<32x8x128xf32>
    %222 = vector.broadcast %220 : vector<32x1x128xf32> to vector<32x8x128xf32>
    %223 = arith.mulf %221, %222 : vector<32x8x128xf32>
    %224 = arith.addf %218, %223 : vector<32x8x128xf32>
    %225 = vector.extract_strided_slice %2 {offsets = [0, 0, 6], sizes = [32, 8, 1], strides = [1, 1, 1]} : vector<32x8x8xf32> to vector<32x8x1xf32>
    %226 = vector.extract_strided_slice %189 {offsets = [0, 6, 0], sizes = [32, 1, 128], strides = [1, 1, 1]} : vector<32x8x128xf32> to vector<32x1x128xf32>
    %227 = vector.broadcast %225 : vector<32x8x1xf32> to vector<32x8x128xf32>
    %228 = vector.broadcast %226 : vector<32x1x128xf32> to vector<32x8x128xf32>
    %229 = arith.mulf %227, %228 : vector<32x8x128xf32>
    %230 = arith.addf %224, %229 : vector<32x8x128xf32>
    %231 = vector.extract_strided_slice %2 {offsets = [0, 0, 7], sizes = [32, 8, 1], strides = [1, 1, 1]} : vector<32x8x8xf32> to vector<32x8x1xf32>
    %232 = vector.extract_strided_slice %189 {offsets = [0, 7, 0], sizes = [32, 1, 128], strides = [1, 1, 1]} : vector<32x8x128xf32> to vector<32x1x128xf32>
    %233 = vector.broadcast %231 : vector<32x8x1xf32> to vector<32x8x128xf32>
    %234 = vector.broadcast %232 : vector<32x1x128xf32> to vector<32x8x128xf32>
    %235 = arith.mulf %233, %234 : vector<32x8x128xf32>
    %236 = arith.addf %230, %235 : vector<32x8x128xf32>
    %237 = vector.extract_strided_slice %0 {offsets = [2, 0], sizes = [1, 128], strides = [1, 1]} : vector<8x128xf32> to vector<1x128xf32>
    %238 = vector.shape_cast %237 : vector<1x128xf32> to vector<1x1x128xf32>
    %239 = vector.broadcast %238 : vector<1x1x128xf32> to vector<32x8x128xf32>
    %240 = arith.addf %236, %239 : vector<32x8x128xf32>
    %cst_18 = arith.constant 0.000000e+00 : f32
    %241 = vector.broadcast %cst_18 : f32 to vector<32x8x128xf32>
    %242 = arith.maximumf %240, %241 : vector<32x8x128xf32>
    %cst_19 = arith.constant dense<0.000000e+00> : vector<32x128xf32>
    %243 = vector.multi_reduction <add>, %242, %cst_19 [1] : vector<32x8x128xf32> to vector<32x128xf32>
    %244 = arith.truncf %243 : vector<32x128xf32> to vector<32x128xbf16>
    %c3 = arith.constant 3 : index
    %c0_20 = arith.constant 0 : index
    %c0_21 = arith.constant 0 : index
    %245 = vector.load %arg3[%c3, %c0_20, %c0_21] : memref<5x128x128xbf16, #tpu.memory_space<vmem>>, vector<1x128x128xbf16>
    %246 = vector.shape_cast %245 : vector<1x128x128xbf16> to vector<128x128xbf16>
    %cst_22 = arith.constant dense<0.000000e+00> : vector<32x128xf32>
    %247 = tpu.matmul %244, %246, %cst_22 {dimension_numbers = #tpu.dot_dimension_numbers<[1], [0], [0], [1], [0, 0, 1, 1], [], []>} : vector<32x128xbf16>, vector<128x128xbf16>, vector<32x128xf32> -> vector<32x128xf32>
    %248 = vector.extract_strided_slice %0 {offsets = [3, 0], sizes = [1, 128], strides = [1, 1]} : vector<8x128xf32> to vector<1x128xf32>
    %249 = vector.broadcast %248 : vector<1x128xf32> to vector<32x128xf32>
    %250 = arith.addf %247, %249 : vector<32x128xf32>
    %cst_23 = arith.constant 0.000000e+00 : f32
    %251 = vector.broadcast %cst_23 : f32 to vector<32x128xf32>
    %252 = arith.maximumf %250, %251 : vector<32x128xf32>
    %253 = arith.truncf %252 : vector<32x128xf32> to vector<32x128xbf16>
    %c4 = arith.constant 4 : index
    %c0_24 = arith.constant 0 : index
    %c0_25 = arith.constant 0 : index
    %254 = vector.load %arg3[%c4, %c0_24, %c0_25] : memref<5x128x128xbf16, #tpu.memory_space<vmem>>, vector<1x128x128xbf16>
    %255 = vector.shape_cast %254 : vector<1x128x128xbf16> to vector<128x128xbf16>
    %cst_26 = arith.constant dense<0.000000e+00> : vector<32x128xf32>
    %256 = tpu.matmul %253, %255, %cst_26 {dimension_numbers = #tpu.dot_dimension_numbers<[1], [0], [0], [1], [0, 0, 1, 1], [], []>} : vector<32x128xbf16>, vector<128x128xbf16>, vector<32x128xf32> -> vector<32x128xf32>
    %257 = vector.extract_strided_slice %0 {offsets = [4, 0], sizes = [1, 128], strides = [1, 1]} : vector<8x128xf32> to vector<1x128xf32>
    %258 = vector.broadcast %257 : vector<1x128xf32> to vector<32x128xf32>
    %259 = arith.addf %256, %258 : vector<32x128xf32>
    %260 = arith.addf %250, %259 : vector<32x128xf32>
    %c0_27 = arith.constant 0 : index
    %c0_28 = arith.constant 0 : index
    %c0_29 = arith.constant 0 : index
    %261 = vector.load %arg5[%c0_27, %c0_28, %c0_29] : memref<1x32x128xf32, #tpu.memory_space<vmem>>, vector<1x32x128xf32>
    %262 = vector.shape_cast %261 : vector<1x32x128xf32> to vector<32x128xf32>
    %263 = vector.shape_cast %260 : vector<32x128xf32> to vector<1x32x128xf32>
    tpu.vector_store %arg5[%c0_27, %c0_28, %c0_29], %263 {strides = array<i32>} : memref<1x32x128xf32, #tpu.memory_space<vmem>>, vector<1x32x128xf32>,
    return
  }
  func.func @transform_0(%arg0: i32) -> (i32, i32, i32, i32) {
    %c0_i32 = arith.constant 0 : i32
    %c0_i32_0 = arith.constant 0 : i32
    %c0_i32_1 = arith.constant 0 : i32
    %c0_i32_2 = arith.constant 0 : i32
    return %arg0, %c0_i32, %c0_i32_0, %c0_i32_1 : i32, i32, i32, i32
  }
  func.func @transform_1(%arg0: i32) -> (i32, i32, i32) {
    %c0_i32 = arith.constant 0 : i32
    %c0_i32_0 = arith.constant 0 : i32
    %c0_i32_1 = arith.constant 0 : i32
    return %arg0, %c0_i32, %c0_i32_0 : i32, i32, i32
  }
  func.func @transform_2(%arg0: i32) -> (i32, i32, i32) {
    %c0_i32 = arith.constant 0 : i32
    %c0_i32_0 = arith.constant 0 : i32
    %c0_i32_1 = arith.constant 0 : i32
    %c0_i32_2 = arith.constant 0 : i32
    return %c0_i32, %c0_i32_0, %c0_i32_1 : i32, i32, i32
  }
  func.func @transform_3(%arg0: i32) -> (i32, i32) {
    %c0_i32 = arith.constant 0 : i32
    %c0_i32_0 = arith.constant 0 : i32
    %c0_i32_1 = arith.constant 0 : i32
    return %c0_i32, %c0_i32_0 : i32, i32
  }
  func.func @transform_4(%arg0: i32) -> (i32, i32, i32) {
    %c0_i32 = arith.constant 0 : i32
    %c0_i32_0 = arith.constant 0 : i32
    %c0_i32_1 = arith.constant 0 : i32
    return %arg0, %c0_i32, %c0_i32_0 : i32, i32, i32
  }
}

</mosaic_0001>

<llo_original>
// kernel: tpu_custom_call.1
$region0: #{tpu_custom_call.1}
  #allocation0 [shape = 'u32[]', space=smem, size = 0x4, offset = 0x4, fixed_abs, tag = 'smem constant byte address 0x4 - core index']
  #allocation1 [shape = 'u32[144,128]{1,0:T(1,128)}', space=vmem, size = 0x12000, scoped, tag = 'internal scratch']
  %s0 = inlined_call_operand.vmem [shape: f32[16,32,8,8], index: 0, kind: input, shape index: {}]
  %s1 = inlined_call_operand.vmem [shape: bf16[16,256,8], index: 1, kind: input, shape index: {}]
  %s2 = inlined_call_operand.vmem [shape: bf16[5,128,128], index: 2, kind: input, shape index: {}]
  %s3 = inlined_call_operand.vmem [shape: f32[8,128], index: 3, kind: input, shape index: {}]
  %s4 = inlined_call_operand.hbm [shape: f32[16,32,128], index: 4, kind: output, shape index: {}]
  %s5 = sld [smem:[#allocation0]]
  $region49: #{tpu_custom_call.1} parent=0
    _
  %s7 = ssub.s32 1, %s5
  %s8 = scalar_select 0, %s7, %s5
  $region1: #{tpu_custom_call.1} parent=0
    #allocation2 [shape = 'u8[32768]{0}', space=vmem, size = 0x8000, scoped, tag = 'output window, operand 0']
    #allocation3 [shape = 's32[2]{0}', space=sflag, size = 0x8, scoped, tag = 'scoped memory for tpu_custom_call.1']
    %9 = vsyncpa [#allocation3], 0
    %s10 = scalar_lea.sflag [#allocation3], 1
    %11 = vsyncpa %s10, 0
    loop: start=0, step=1, limit=18
    $region2: #{tpu_custom_call.1} parent=1 // loop_pre_header
      _
    $region3: #{tpu_custom_call.1} parent=1 // loop_header
      %s13 = sphi 0, %s17
      %p14 = scmp.ge.s32.totalorder %s13, 18
      %s23 = sphi 0, %s25
      %s26 = sphi 0, %s23
      %s27 = sphi 0, %s26
      %s43 = sphi 0, %s27
      %s49 = sphi 0, %s51
      %s52 = sphi 0, %s49
      %s53 = sphi 0, %s52
      %s69 = sphi 0, %s53
      %s73 = sphi 0, %s73
      %s75 = sphi 0, %s73
      %s76 = sphi 0, %s75
      %s90 = sphi 0, %s76
      %s94 = sphi 0, %s94
      %s96 = sphi 0, %s94
      %s97 = sphi 0, %s96
      %s111 = sphi 0, %s97
      %s117 = sphi 0, %s119
      %s120 = sphi 0, %s117
      %s121 = sphi 0, %s120
      %s137 = sphi 0, %s121
    $region4: #{tpu_custom_call.1} parent=1 // loop_header_branch
      %16 = sbr.rel (%p14) target = $region8
    $region5: #{tpu_custom_call.1} parent=1 // loop_body
      %s18 = ssub.s32 %s13, 1
      %s19 = ssub.s32 %s13, 2
      %s20 = sadd.s32 %s13, 1
      %s21 = ssub.s32 %s13, %s20
      %p22 = scmp.eq.s32.totalorder %s21, 0
      %s24 = sadd.s32 %s23, 1
      %s25 = scalar_select %p22, %s23, %s24
      %p28 = pneg %p22
      %p29 = scmp.eq.s32.totalorder %s13, 15
      %p30 = por %p28, %p29
      %p31 = scmp.ne.s32.totalorder %s23, %s26
      %p32 = scmp.eq.s32.totalorder %s13, 0
      %p33 = por %p31, %p32
      %p34 = scmp.ne.s32.totalorder %s23, %s26
      %p35 = scmp.eq.s32.totalorder %s18, 15
      %p36 = por %p34, %p35
      %p37 = scmp.ne.s32.totalorder %s26, %s27
      %p38 = scmp.eq.s32.totalorder %s18, 0
      %p39 = por %p37, %p38
      %p40 = scmp.ne.s32.totalorder %s26, %s27
      %p41 = scmp.eq.s32.totalorder %s19, 15
      %p42 = por %p40, %p41
      %p44 = scmp.ne.s32.totalorder %s27, %s43
      %p45 = scmp.eq.s32.totalorder %s19, 0
      %p46 = por %p44, %p45
      %s47 = ssub.s32 %s13, %s20
      %p48 = scmp.eq.s32.totalorder %s47, 0
      %s50 = sadd.s32 %s49, 1
      %s51 = scalar_select %p48, %s49, %s50
      %p54 = pneg %p48
      %p55 = scmp.eq.s32.totalorder %s13, 15
      %p56 = por %p54, %p55
      %p57 = scmp.ne.s32.totalorder %s49, %s52
      %p58 = scmp.eq.s32.totalorder %s13, 0
      %p59 = por %p57, %p58
      %p60 = scmp.ne.s32.totalorder %s49, %s52
      %p61 = scmp.eq.s32.totalorder %s18, 15
      %p62 = por %p60, %p61
      %p63 = scmp.ne.s32.totalorder %s52, %s53
      %p64 = scmp.eq.s32.totalorder %s18, 0
      %p65 = por %p63, %p64
      %p66 = scmp.ne.s32.totalorder %s52, %s53
      %p67 = scmp.eq.s32.totalorder %s19, 15
      %p68 = por %p66, %p67
      %p70 = scmp.ne.s32.totalorder %s53, %s69
      %p71 = scmp.eq.s32.totalorder %s19, 0
      %p72 = por %p70, %p71
      %s74 = sadd.s32 %s73, 1
      %p77 = scmp.eq.s32.totalorder %s13, 15
      %p78 = scmp.ne.s32.totalorder %s73, %s75
      %p79 = scmp.eq.s32.totalorder %s13, 0
      %p80 = por %p78, %p79
      %p81 = scmp.ne.s32.totalorder %s73, %s75
      %p82 = scmp.eq.s32.totalorder %s18, 15
      %p83 = por %p81, %p82
      %p84 = scmp.ne.s32.totalorder %s75, %s76
      %p85 = scmp.eq.s32.totalorder %s18, 0
      %p86 = por %p84, %p85
      %p87 = scmp.ne.s32.totalorder %s75, %s76
      %p88 = scmp.eq.s32.totalorder %s19, 15
      %p89 = por %p87, %p88
      %p91 = scmp.ne.s32.totalorder %s76, %s90
      %p92 = scmp.eq.s32.totalorder %s19, 0
      %p93 = por %p91, %p92
      %s95 = sadd.s32 %s94, 1
      %p98 = scmp.eq.s32.totalorder %s13, 15
      %p99 = scmp.ne.s32.totalorder %s94, %s96
      %p100 = scmp.eq.s32.totalorder %s13, 0
      %p101 = por %p99, %p100
      %p102 = scmp.ne.s32.totalorder %s94, %s96
      %p103 = scmp.eq.s32.totalorder %s18, 15
      %p104 = por %p102, %p103
      %p105 = scmp.ne.s32.totalorder %s96, %s97
      %p106 = scmp.eq.s32.totalorder %s18, 0
      %p107 = por %p105, %p106
      %p108 = scmp.ne.s32.totalorder %s96, %s97
      %p109 = scmp.eq.s32.totalorder %s19, 15
      %p110 = por %p108, %p109
      %p112 = scmp.ne.s32.totalorder %s97, %s111
      %p113 = scmp.eq.s32.totalorder %s19, 0
      %p114 = por %p112, %p113
      %s115 = ssub.s32 %s13, %s20
      %p116 = scmp.eq.s32.totalorder %s115, 0
      %s118 = sadd.s32 %s117, 1
      %s119 = scalar_select %p116, %s117, %s118
      %p122 = pneg %p116
      %p123 = scmp.eq.s32.totalorder %s13, 15
      %p124 = por %p122, %p123
      %p125 = scmp.ne.s32.totalorder %s117, %s120
      %p126 = scmp.eq.s32.totalorder %s13, 0
      %p127 = por %p125, %p126
      %p128 = scmp.ne.s32.totalorder %s117, %s120
      %p129 = scmp.eq.s32.totalorder %s18, 15
      %p130 = por %p128, %p129
      %p131 = scmp.ne.s32.totalorder %s120, %s121
      %p132 = scmp.eq.s32.totalorder %s18, 0
      %p133 = por %p131, %p132
      %p134 = scmp.ne.s32.totalorder %s120, %s121
      %p135 = scmp.eq.s32.totalorder %s19, 15
      %p136 = por %p134, %p135
      %p138 = scmp.ne.s32.totalorder %s121, %s137
      %p139 = scmp.eq.s32.totalorder %s19, 0
      %p140 = por %p138, %p139
      %p141 = scmp.le.s32.totalorder 1, %s13
      %p142 = scmp.lt.s32.totalorder %s13, 17
      %p143 = pnand %p141, %p142
      %p144 = pneg %p143
      // Predicated region
      $region9: #{tpu_custom_call.1} parent=5 // pred_check
        _
      $region10: #{tpu_custom_call.1} parent=5 // pred_check_branch
        %146 = sbr.rel (%p143) target = $region12
      $region11: #{tpu_custom_call.1} parent=5 // pred_region
        %s147 = ssub.s32 %s13, 1
        // Predicated region
        $region13: #{tpu_custom_call.1} parent=11 // pred_check
          %p148 = pneg %p86
        $region14: #{tpu_custom_call.1} parent=11 // pred_check_branch
          %150 = sbr.rel (%p148) target = $region16
        $region15: #{tpu_custom_call.1} parent=11 // pred_region
          _
        $region16: #{tpu_custom_call.1} parent=11 // pred_fallthru
          _
        // Predicated region
        $region17: #{tpu_custom_call.1} parent=11 // pred_check
          %p151 = pneg %p107
        $region18: #{tpu_custom_call.1} parent=11 // pred_check_branch
          %153 = sbr.rel (%p151) target = $region20
        $region19: #{tpu_custom_call.1} parent=11 // pred_region
          _
        $region20: #{tpu_custom_call.1} parent=11 // pred_fallthru
          _
      $region12: #{tpu_custom_call.1} parent=5 // pred_fallthru
        _
      %p154 = scmp.lt.s32.totalorder %s13, 16
      // Predicated region
      $region21: #{tpu_custom_call.1} parent=5 // pred_check
        %p155 = pneg %p154
      $region22: #{tpu_custom_call.1} parent=5 // pred_check_branch
        %157 = sbr.rel (%p155) target = $region24
      $region23: #{tpu_custom_call.1} parent=5 // pred_region
        // Predicated region
        $region25: #{tpu_custom_call.1} parent=23 // pred_check
          %p158 = pneg %p33
        $region26: #{tpu_custom_call.1} parent=23 // pred_check_branch
          %160 = sbr.rel (%p158) target = $region28
        $region27: #{tpu_custom_call.1} parent=23 // pred_region
          %p161 = scmp.lt.s32.totalorder %s13, 15
          %s162 = scalar_select %p161, %s13, 15
          %s163 = smul.addr %s162, 32
          %s164 = smul.addr %s163, 8
          %s165 = scalar_lea.vmem %s0, %s164
        $region28: #{tpu_custom_call.1} parent=23 // pred_fallthru
          _
        // Predicated region
        $region29: #{tpu_custom_call.1} parent=23 // pred_check
          %p166 = pneg %p59
        $region30: #{tpu_custom_call.1} parent=23 // pred_check_branch
          %168 = sbr.rel (%p166) target = $region32
        $region31: #{tpu_custom_call.1} parent=23 // pred_region
          %p169 = scmp.lt.s32.totalorder %s13, 15
          %s170 = scalar_select %p169, %s13, 15
          %s171 = smul.addr %s170, 32
          %s172 = smul.addr %s171, 4
          %s173 = scalar_lea.vmem %s1, %s172
        $region32: #{tpu_custom_call.1} parent=23 // pred_fallthru
          _
      $region24: #{tpu_custom_call.1} parent=5 // pred_fallthru
        _
      %p174 = scmp.le.s32.totalorder 1, %s13
      %p175 = scmp.lt.s32.totalorder %s13, 17
      %p176 = pnand %p174, %p175
      %p177 = pneg %p176
      // Predicated region
      $region33: #{tpu_custom_call.1} parent=5 // pred_check
        _
      $region34: #{tpu_custom_call.1} parent=5 // pred_check_branch
        %179 = sbr.rel (%p176) target = $region36
      $region35: #{tpu_custom_call.1} parent=5 // pred_region
        %s180 = ssub.s32 %s13, 1
        %p181 = scmp.lt.s32.totalorder %s18, 15
        %s182 = scalar_select %p181, %s18, 15
        %s183 = smul.addr %s182, 32
        %s184 = smul.addr %s183, 8
        %s185 = scalar_lea.vmem %s0, %s184
        %p186 = pneg %p39
        %p187 = pneg %p36
        %p188 = scmp.lt.s32.totalorder %s18, 15
        %s189 = scalar_select %p188, %s18, 15
        %s190 = smul.addr %s189, 32
        %s191 = smul.addr %s190, 4
        %s192 = scalar_lea.vmem %s1, %s191
        %p193 = pneg %p65
        %p194 = pneg %p62
        %p195 = pneg %p86
        %p196 = pneg %p83
        %p197 = pneg %p107
        %p198 = pneg %p104
        %p199 = pneg %p133
        %p200 = pneg %p130
        %s201 = sand.u32 %s120, 1
        %s202 = scalar_lea.sflag [#allocation3], %s201
        %s203 = sand.u32 %s120, 1
        %s204 = smul.addr %s203, 32
        %s205 = scalar_lea.vmem [#allocation2], %s204
        %p206 = scmp.lt.s32.totalorder %s18, 15
        %s207 = scalar_select %p206, %s18, 15
        %s208 = smul.addr %s207, 32
        %s209 = smul.addr %s208, 8
        %s210 = scalar_lea.vmem %s0, %s209
        %p211 = scmp.lt.s32.totalorder %s18, 15
        %s212 = scalar_select %p211, %s18, 15
        %s213 = smul.addr %s212, 32
        %s214 = smul.addr %s213, 4
        %s215 = scalar_lea.vmem %s1, %s214
        %v217 = vld [vmem:[%s3] sm:$0xff]
        %v218 = vld [vmem:[%s210] sm:$0xff]
        %v219 = vld [vmem:[%s210 + $0x8] sm:$0xff]
        %v220 = vld [vmem:[%s210 + $0x10] sm:$0xff]
        %v221 = vld [vmem:[%s210 + $0x18] sm:$0xff]
        %v222 = vld [vmem:[%s210 + $0x20] sm:$0xff]
        %v223 = vld [vmem:[%s210 + $0x28] sm:$0xff]
        %v224 = vld [vmem:[%s210 + $0x30] sm:$0xff]
        %v225 = vld [vmem:[%s210 + $0x38] sm:$0xff]
        %v226 = vld [vmem:[%s210 + $0x40] sm:$0xff]
        %v227 = vld [vmem:[%s210 + $0x48] sm:$0xff]
        %v228 = vld [vmem:[%s210 + $0x50] sm:$0xff]
        %v229 = vld [vmem:[%s210 + $0x58] sm:$0xff]
        %v230 = vld [vmem:[%s210 + $0x60] sm:$0xff]
        %v231 = vld [vmem:[%s210 + $0x68] sm:$0xff]
        %v232 = vld [vmem:[%s210 + $0x70] sm:$0xff]
        %v233 = vld [vmem:[%s210 + $0x78] sm:$0xff]
        %v234 = vld [vmem:[%s210 + $0x80] sm:$0xff]
        %v235 = vld [vmem:[%s210 + $0x88] sm:$0xff]
        %v236 = vld [vmem:[%s210 + $0x90] sm:$0xff]
        %v237 = vld [vmem:[%s210 + $0x98] sm:$0xff]
        %v238 = vld [vmem:[%s210 + $0xa0] sm:$0xff]
        %v239 = vld [vmem:[%s210 + $0xa8] sm:$0xff]
        %v240 = vld [vmem:[%s210 + $0xb0] sm:$0xff]
        %v241 = vld [vmem:[%s210 + $0xb8] sm:$0xff]
        %v242 = vld [vmem:[%s210 + $0xc0] sm:$0xff]
        %v243 = vld [vmem:[%s210 + $0xc8] sm:$0xff]
        %v244 = vld [vmem:[%s210 + $0xd0] sm:$0xff]
        %v245 = vld [vmem:[%s210 + $0xd8] sm:$0xff]
        %v246 = vld [vmem:[%s210 + $0xe0] sm:$0xff]
        %v247 = vld [vmem:[%s210 + $0xe8] sm:$0xff]
        %v248 = vld [vmem:[%s210 + $0xf0] sm:$0xff]
        %v249 = vld [vmem:[%s210 + $0xf8] sm:$0xff]
        %v250 = vld [vmem:[%s215] sm:$0xf]
        %v251 = vld [vmem:[%s215 + $0x4] sm:$0xf]
        %v252 = vld [vmem:[%s215 + $0x8] sm:$0xf]
        %v253 = vld [vmem:[%s215 + $0xc] sm:$0xf]
        %v254 = vld [vmem:[%s215 + $0x10] sm:$0xf]
        %v255 = vld [vmem:[%s215 + $0x14] sm:$0xf]
        %v256 = vld [vmem:[%s215 + $0x18] sm:$0xf]
        %v257 = vld [vmem:[%s215 + $0x1c] sm:$0xf]
        %v258 = vld [vmem:[%s215 + $0x20] sm:$0xf]
        %v259 = vld [vmem:[%s215 + $0x24] sm:$0xf]
        %v260 = vld [vmem:[%s215 + $0x28] sm:$0xf]
        %v261 = vld [vmem:[%s215 + $0x2c] sm:$0xf]
        %v262 = vld [vmem:[%s215 + $0x30] sm:$0xf]
        %v263 = vld [vmem:[%s215 + $0x34] sm:$0xf]
        %v264 = vld [vmem:[%s215 + $0x38] sm:$0xf]
        %v265 = vld [vmem:[%s215 + $0x3c] sm:$0xf]
        %v266 = vld [vmem:[%s215 + $0x40] sm:$0xf]
        %v267 = vld [vmem:[%s215 + $0x44] sm:$0xf]
        %v268 = vld [vmem:[%s215 + $0x48] sm:$0xf]
        %v269 = vld [vmem:[%s215 + $0x4c] sm:$0xf]
        %v270 = vld [vmem:[%s215 + $0x50] sm:$0xf]
        %v271 = vld [vmem:[%s215 + $0x54] sm:$0xf]
        %v272 = vld [vmem:[%s215 + $0x58] sm:$0xf]
        %v273 = vld [vmem:[%s215 + $0x5c] sm:$0xf]
        %v274 = vld [vmem:[%s215 + $0x60] sm:$0xf]
        %v275 = vld [vmem:[%s215 + $0x64] sm:$0xf]
        %v276 = vld [vmem:[%s215 + $0x68] sm:$0xf]
        %v277 = vld [vmem:[%s215 + $0x6c] sm:$0xf]
        %v278 = vld [vmem:[%s215 + $0x70] sm:$0xf]
        %v279 = vld [vmem:[%s215 + $0x74] sm:$0xf]
        %v280 = vld [vmem:[%s215 + $0x78] sm:$0xf]
        %v281 = vld [vmem:[%s215 + $0x7c] sm:$0xf]
        %v282 = vld [vmem:[%s2] sm:$0xf]
        %v283 = vunpack.c.l.bf16 %v250
        %v284 = vunpack.c.l.bf16 %v251
        %v285 = vunpack.c.l.bf16 %v252
        %v286 = vunpack.c.l.bf16 %v253
        %v287 = vunpack.c.l.bf16 %v254
        %v288 = vunpack.c.l.bf16 %v255
        %v289 = vunpack.c.l.bf16 %v256
        %v290 = vunpack.c.l.bf16 %v257
        %v291 = vunpack.c.l.bf16 %v258
        %v292 = vunpack.c.l.bf16 %v259
        %v293 = vunpack.c.l.bf16 %v260
        %v294 = vunpack.c.l.bf16 %v261
        %v295 = vunpack.c.l.bf16 %v262
        %v296 = vunpack.c.l.bf16 %v263
        %v297 = vunpack.c.l.bf16 %v264
        %v298 = vunpack.c.l.bf16 %v265
        %v299 = vunpack.c.l.bf16 %v266
        %v300 = vunpack.c.l.bf16 %v267
        %v301 = vunpack.c.l.bf16 %v268
        %v302 = vunpack.c.l.bf16 %v269
        %v303 = vunpack.c.l.bf16 %v270
        %v304 = vunpack.c.l.bf16 %v271
        %v305 = vunpack.c.l.bf16 %v272
        %v306 = vunpack.c.l.bf16 %v273
        %v307 = vunpack.c.l.bf16 %v274
        %v308 = vunpack.c.l.bf16 %v275
        %v309 = vunpack.c.l.bf16 %v276
        %v310 = vunpack.c.l.bf16 %v277
        %v311 = vunpack.c.l.bf16 %v278
        %v312 = vunpack.c.l.bf16 %v279
        %v313 = vunpack.c.l.bf16 %v280
        %v314 = vunpack.c.l.bf16 %v281
        %v315 = vunpack.c.l.bf16 %v282
        %317 = vset.pattern.permute.xlu0 0
        %318 = vperm.xlu0 %317, %v283
        %v319 = vpop.permute.xlu0 %318
        %322 = vset.pattern.permute.xlu0 0
        %323 = vperm.xlu0 %322, %v284
        %v324 = vpop.permute.xlu0 %323
        %327 = vset.pattern.permute.xlu0 0
        %328 = vperm.xlu0 %327, %v285
        %v329 = vpop.permute.xlu0 %328
        %332 = vset.pattern.permute.xlu0 0
        %333 = vperm.xlu0 %332, %v286
        %v334 = vpop.permute.xlu0 %333
        %337 = vset.pattern.permute.xlu0 0
        %338 = vperm.xlu0 %337, %v287
        %v339 = vpop.permute.xlu0 %338
        %342 = vset.pattern.permute.xlu0 0
        %343 = vperm.xlu0 %342, %v288
        %v344 = vpop.permute.xlu0 %343
        %347 = vset.pattern.permute.xlu0 0
        %348 = vperm.xlu0 %347, %v289
        %v349 = vpop.permute.xlu0 %348
        %352 = vset.pattern.permute.xlu0 0
        %353 = vperm.xlu0 %352, %v290
        %v354 = vpop.permute.xlu0 %353
        %357 = vset.pattern.permute.xlu0 0
        %358 = vperm.xlu0 %357, %v291
        %v359 = vpop.permute.xlu0 %358
        %362 = vset.pattern.permute.xlu0 0
        %363 = vperm.xlu0 %362, %v292
        %v364 = vpop.permute.xlu0 %363
        %367 = vset.pattern.permute.xlu0 0
        %368 = vperm.xlu0 %367, %v293
        %v369 = vpop.permute.xlu0 %368
        %372 = vset.pattern.permute.xlu0 0
        %373 = vperm.xlu0 %372, %v294
        %v374 = vpop.permute.xlu0 %373
        %377 = vset.pattern.permute.xlu0 0
        %378 = vperm.xlu0 %377, %v295
        %v379 = vpop.permute.xlu0 %378
        %382 = vset.pattern.permute.xlu0 0
        %383 = vperm.xlu0 %382, %v296
        %v384 = vpop.permute.xlu0 %383
        %387 = vset.pattern.permute.xlu0 0
        %388 = vperm.xlu0 %387, %v297
        %v389 = vpop.permute.xlu0 %388
        %392 = vset.pattern.permute.xlu0 0
        %393 = vperm.xlu0 %392, %v298
        %v394 = vpop.permute.xlu0 %393
        %397 = vset.pattern.permute.xlu0 0
        %398 = vperm.xlu0 %397, %v299
        %v399 = vpop.permute.xlu0 %398
        %402 = vset.pattern.permute.xlu0 0
        %403 = vperm.xlu0 %402, %v300
        %v404 = vpop.permute.xlu0 %403
        %407 = vset.pattern.permute.xlu0 0
        %408 = vperm.xlu0 %407, %v301
        %v409 = vpop.permute.xlu0 %408
        %412 = vset.pattern.permute.xlu0 0
        %413 = vperm.xlu0 %412, %v302
        %v414 = vpop.permute.xlu0 %413
        %417 = vset.pattern.permute.xlu0 0
        %418 = vperm.xlu0 %417, %v303
        %v419 = vpop.permute.xlu0 %418
        %422 = vset.pattern.permute.xlu0 0
        %423 = vperm.xlu0 %422, %v304
        %v424 = vpop.permute.xlu0 %423
        %427 = vset.pattern.permute.xlu0 0
        %428 = vperm.xlu0 %427, %v305
        %v429 = vpop.permute.xlu0 %428
        %432 = vset.pattern.permute.xlu0 0
        %433 = vperm.xlu0 %432, %v306
        %v434 = vpop.permute.xlu0 %433
        %437 = vset.pattern.permute.xlu0 0
        %438 = vperm.xlu0 %437, %v307
        %v439 = vpop.permute.xlu0 %438
        %442 = vset.pattern.permute.xlu0 0
        %443 = vperm.xlu0 %442, %v308
        %v444 = vpop.permute.xlu0 %443
        %447 = vset.pattern.permute.xlu0 0
        %448 = vperm.xlu0 %447, %v309
        %v449 = vpop.permute.xlu0 %448
        %452 = vset.pattern.permute.xlu0 0
        %453 = vperm.xlu0 %452, %v310
        %v454 = vpop.permute.xlu0 %453
        %457 = vset.pattern.permute.xlu0 0
        %458 = vperm.xlu0 %457, %v311
        %v459 = vpop.permute.xlu0 %458
        %462 = vset.pattern.permute.xlu0 0
        %463 = vperm.xlu0 %462, %v312
        %v464 = vpop.permute.xlu0 %463
        %467 = vset.pattern.permute.xlu0 0
        %468 = vperm.xlu0 %467, %v313
        %v469 = vpop.permute.xlu0 %468
        %472 = vset.pattern.permute.xlu0 0
        %473 = vperm.xlu0 %472, %v314
        %v474 = vpop.permute.xlu0 %473
        %v476 = vlaneseq
        %v477 = vshrl.u32 %v476, 7
        %v478 = vsub.s32 0, %v477
        %v479 = vrot.slane %v315, %v478
        %v480 = vmul.f32 %v319, %v479
        %v481 = vmul.f32 %v324, %v479
        %v482 = vmul.f32 %v329, %v479
        %v483 = vmul.f32 %v334, %v479
        %v484 = vmul.f32 %v339, %v479
        %v485 = vmul.f32 %v344, %v479
        %v486 = vmul.f32 %v349, %v479
        %v487 = vmul.f32 %v354, %v479
        %v488 = vmul.f32 %v359, %v479
        %v489 = vmul.f32 %v364, %v479
        %v490 = vmul.f32 %v369, %v479
        %v491 = vmul.f32 %v374, %v479
        %v492 = vmul.f32 %v379, %v479
        %v493 = vmul.f32 %v384, %v479
        %v494 = vmul.f32 %v389, %v479
        %v495 = vmul.f32 %v394, %v479
        %v496 = vmul.f32 %v399, %v479
        %v497 = vmul.f32 %v404, %v479
        %v498 = vmul.f32 %v409, %v479
        %v499 = vmul.f32 %v414, %v479
        %v500 = vmul.f32 %v419, %v479
        %v501 = vmul.f32 %v424, %v479
        %v502 = vmul.f32 %v429, %v479
        %v503 = vmul.f32 %v434, %v479
        %v504 = vmul.f32 %v439, %v479
        %v505 = vmul.f32 %v444, %v479
        %v506 = vmul.f32 %v449, %v479
        %v507 = vmul.f32 %v454, %v479
        %v508 = vmul.f32 %v459, %v479
        %v509 = vmul.f32 %v464, %v479
        %v510 = vmul.f32 %v469, %v479
        %v511 = vmul.f32 %v474, %v479
        %512 = vset.pattern.permute.xlu0 1
        %513 = vperm.xlu0 %512, %v283
        %v514 = vpop.permute.xlu0 %513
        %516 = vset.pattern.permute.xlu0 1
        %517 = vperm.xlu0 %516, %v284
        %v518 = vpop.permute.xlu0 %517
        %520 = vset.pattern.permute.xlu0 1
        %521 = vperm.xlu0 %520, %v285
        %v522 = vpop.permute.xlu0 %521
        %524 = vset.pattern.permute.xlu0 1
        %525 = vperm.xlu0 %524, %v286
        %v526 = vpop.permute.xlu0 %525
        %528 = vset.pattern.permute.xlu0 1
        %529 = vperm.xlu0 %528, %v287
        %v530 = vpop.permute.xlu0 %529
        %532 = vset.pattern.permute.xlu0 1
        %533 = vperm.xlu0 %532, %v288
        %v534 = vpop.permute.xlu0 %533
        %536 = vset.pattern.permute.xlu0 1
        %537 = vperm.xlu0 %536, %v289
        %v538 = vpop.permute.xlu0 %537
        %540 = vset.pattern.permute.xlu0 1
        %541 = vperm.xlu0 %540, %v290
        %v542 = vpop.permute.xlu0 %541
        %544 = vset.pattern.permute.xlu0 1
        %545 = vperm.xlu0 %544, %v291
        %v546 = vpop.permute.xlu0 %545
        %548 = vset.pattern.permute.xlu0 1
        %549 = vperm.xlu0 %548, %v292
        %v550 = vpop.permute.xlu0 %549
        %552 = vset.pattern.permute.xlu0 1
        %553 = vperm.xlu0 %552, %v293
        %v554 = vpop.permute.xlu0 %553
        %556 = vset.pattern.permute.xlu0 1
        %557 = vperm.xlu0 %556, %v294
        %v558 = vpop.permute.xlu0 %557
        %560 = vset.pattern.permute.xlu0 1
        %561 = vperm.xlu0 %560, %v295
        %v562 = vpop.permute.xlu0 %561
        %564 = vset.pattern.permute.xlu0 1
        %565 = vperm.xlu0 %564, %v296
        %v566 = vpop.permute.xlu0 %565
        %568 = vset.pattern.permute.xlu0 1
        %569 = vperm.xlu0 %568, %v297
        %v570 = vpop.permute.xlu0 %569
        %572 = vset.pattern.permute.xlu0 1
        %573 = vperm.xlu0 %572, %v298
        %v574 = vpop.permute.xlu0 %573
        %576 = vset.pattern.permute.xlu0 1
        %577 = vperm.xlu0 %576, %v299
        %v578 = vpop.permute.xlu0 %577
        %580 = vset.pattern.permute.xlu0 1
        %581 = vperm.xlu0 %580, %v300
        %v582 = vpop.permute.xlu0 %581
        %584 = vset.pattern.permute.xlu0 1
        %585 = vperm.xlu0 %584, %v301
        %v586 = vpop.permute.xlu0 %585
        %588 = vset.pattern.permute.xlu0 1
        %589 = vperm.xlu0 %588, %v302
        %v590 = vpop.permute.xlu0 %589
        %592 = vset.pattern.permute.xlu0 1
        %593 = vperm.xlu0 %592, %v303
        %v594 = vpop.permute.xlu0 %593
        %596 = vset.pattern.permute.xlu0 1
        %597 = vperm.xlu0 %596, %v304
        %v598 = vpop.permute.xlu0 %597
        %600 = vset.pattern.permute.xlu0 1
        %601 = vperm.xlu0 %600, %v305
        %v602 = vpop.permute.xlu0 %601
        %604 = vset.pattern.permute.xlu0 1
        %605 = vperm.xlu0 %604, %v306
        %v606 = vpop.permute.xlu0 %605
        %608 = vset.pattern.permute.xlu0 1
        %609 = vperm.xlu0 %608, %v307
        %v610 = vpop.permute.xlu0 %609
        %612 = vset.pattern.permute.xlu0 1
        %613 = vperm.xlu0 %612, %v308
        %v614 = vpop.permute.xlu0 %613
        %616 = vset.pattern.permute.xlu0 1
        %617 = vperm.xlu0 %616, %v309
        %v618 = vpop.permute.xlu0 %617
        %620 = vset.pattern.permute.xlu0 1
        %621 = vperm.xlu0 %620, %v310
        %v622 = vpop.permute.xlu0 %621
        %624 = vset.pattern.permute.xlu0 1
        %625 = vperm.xlu0 %624, %v311
        %v626 = vpop.permute.xlu0 %625
        %628 = vset.pattern.permute.xlu0 1
        %629 = vperm.xlu0 %628, %v312
        %v630 = vpop.permute.xlu0 %629
        %632 = vset.pattern.permute.xlu0 1
        %633 = vperm.xlu0 %632, %v313
        %v634 = vpop.permute.xlu0 %633
        %636 = vset.pattern.permute.xlu0 1
        %637 = vperm.xlu0 %636, %v314
        %v638 = vpop.permute.xlu0 %637
        %v640 = vlaneseq
        %v641 = vshrl.u32 %v640, 7
        %v642 = vsub.s32 1, %v641
        %v643 = vrot.slane %v315, %v642
        %v644 = vmul.f32 %v514, %v643
        %v645 = vmul.f32 %v518, %v643
        %v646 = vmul.f32 %v522, %v643
        %v647 = vmul.f32 %v526, %v643
        %v648 = vmul.f32 %v530, %v643
        %v649 = vmul.f32 %v534, %v643
        %v650 = vmul.f32 %v538, %v643
        %v651 = vmul.f32 %v542, %v643
        %v652 = vmul.f32 %v546, %v643
        %v653 = vmul.f32 %v550, %v643
        %v654 = vmul.f32 %v554, %v643
        %v655 = vmul.f32 %v558, %v643
        %v656 = vmul.f32 %v562, %v643
        %v657 = vmul.f32 %v566, %v643
        %v658 = vmul.f32 %v570, %v643
        %v659 = vmul.f32 %v574, %v643
        %v660 = vmul.f32 %v578, %v643
        %v661 = vmul.f32 %v582, %v643
        %v662 = vmul.f32 %v586, %v643
        %v663 = vmul.f32 %v590, %v643
        %v664 = vmul.f32 %v594, %v643
        %v665 = vmul.f32 %v598, %v643
        %v666 = vmul.f32 %v602, %v643
        %v667 = vmul.f32 %v606, %v643
        %v668 = vmul.f32 %v610, %v643
        %v669 = vmul.f32 %v614, %v643
        %v670 = vmul.f32 %v618, %v643
        %v671 = vmul.f32 %v622, %v643
        %v672 = vmul.f32 %v626, %v643
        %v673 = vmul.f32 %v630, %v643
        %v674 = vmul.f32 %v634, %v643
        %v675 = vmul.f32 %v638, %v643
        %v676 = vadd.f32 %v480, %v644
        %v677 = vadd.f32 %v481, %v645
        %v678 = vadd.f32 %v482, %v646
        %v679 = vadd.f32 %v483, %v647
        %v680 = vadd.f32 %v484, %v648
        %v681 = vadd.f32 %v485, %v649
        %v682 = vadd.f32 %v486, %v650
        %v683 = vadd.f32 %v487, %v651
        %v684 = vadd.f32 %v488, %v652
        %v685 = vadd.f32 %v489, %v653
        %v686 = vadd.f32 %v490, %v654
        %v687 = vadd.f32 %v491, %v655
        %v688 = vadd.f32 %v492, %v656
        %v689 = vadd.f32 %v493, %v657
        %v690 = vadd.f32 %v494, %v658
        %v691 = vadd.f32 %v495, %v659
        %v692 = vadd.f32 %v496, %v660
        %v693 = vadd.f32 %v497, %v661
        %v694 = vadd.f32 %v498, %v662
        %v695 = vadd.f32 %v499, %v663
        %v696 = vadd.f32 %v500, %v664
        %v697 = vadd.f32 %v501, %v665
        %v698 = vadd.f32 %v502, %v666
        %v699 = vadd.f32 %v503, %v667
        %v700 = vadd.f32 %v504, %v668
        %v701 = vadd.f32 %v505, %v669
        %v702 = vadd.f32 %v506, %v670
        %v703 = vadd.f32 %v507, %v671
        %v704 = vadd.f32 %v508, %v672
        %v705 = vadd.f32 %v509, %v673
        %v706 = vadd.f32 %v510, %v674
        %v707 = vadd.f32 %v511, %v675
        %708 = vset.pattern.permute.xlu0 2
        %709 = vperm.xlu0 %708, %v283
        %v710 = vpop.permute.xlu0 %709
        %712 = vset.pattern.permute.xlu0 2
        %713 = vperm.xlu0 %712, %v284
        %v714 = vpop.permute.xlu0 %713
        %716 = vset.pattern.permute.xlu0 2
        %717 = vperm.xlu0 %716, %v285
        %v718 = vpop.permute.xlu0 %717
        %720 = vset.pattern.permute.xlu0 2
        %721 = vperm.xlu0 %720, %v286
        %v722 = vpop.permute.xlu0 %721
        %724 = vset.pattern.permute.xlu0 2
        %725 = vperm.xlu0 %724, %v287
        %v726 = vpop.permute.xlu0 %725
        %728 = vset.pattern.permute.xlu0 2
        %729 = vperm.xlu0 %728, %v288
        %v730 = vpop.permute.xlu0 %729
        %732 = vset.pattern.permute.xlu0 2
        %733 = vperm.xlu0 %732, %v289
        %v734 = vpop.permute.xlu0 %733
        %736 = vset.pattern.permute.xlu0 2
        %737 = vperm.xlu0 %736, %v290
        %v738 = vpop.permute.xlu0 %737
        %740 = vset.pattern.permute.xlu0 2
        %741 = vperm.xlu0 %740, %v291
        %v742 = vpop.permute.xlu0 %741
        %744 = vset.pattern.permute.xlu0 2
        %745 = vperm.xlu0 %744, %v292
        %v746 = vpop.permute.xlu0 %745
        %748 = vset.pattern.permute.xlu0 2
        %749 = vperm.xlu0 %748, %v293
        %v750 = vpop.permute.xlu0 %749
        %752 = vset.pattern.permute.xlu0 2
        %753 = vperm.xlu0 %752, %v294
        %v754 = vpop.permute.xlu0 %753
        %756 = vset.pattern.permute.xlu0 2
        %757 = vperm.xlu0 %756, %v295
        %v758 = vpop.permute.xlu0 %757
        %760 = vset.pattern.permute.xlu0 2
        %761 = vperm.xlu0 %760, %v296
        %v762 = vpop.permute.xlu0 %761
        %764 = vset.pattern.permute.xlu0 2
        %765 = vperm.xlu0 %764, %v297
        %v766 = vpop.permute.xlu0 %765
        %768 = vset.pattern.permute.xlu0 2
        %769 = vperm.xlu0 %768, %v298
        %v770 = vpop.permute.xlu0 %769
        %772 = vset.pattern.permute.xlu0 2
        %773 = vperm.xlu0 %772, %v299
        %v774 = vpop.permute.xlu0 %773
        %776 = vset.pattern.permute.xlu0 2
        %777 = vperm.xlu0 %776, %v300
        %v778 = vpop.permute.xlu0 %777
        %780 = vset.pattern.permute.xlu0 2
        %781 = vperm.xlu0 %780, %v301
        %v782 = vpop.permute.xlu0 %781
        %784 = vset.pattern.permute.xlu0 2
        %785 = vperm.xlu0 %784, %v302
        %v786 = vpop.permute.xlu0 %785
        %788 = vset.pattern.permute.xlu0 2
        %789 = vperm.xlu0 %788, %v303
        %v790 = vpop.permute.xlu0 %789
        %792 = vset.pattern.permute.xlu0 2
        %793 = vperm.xlu0 %792, %v304
        %v794 = vpop.permute.xlu0 %793
        %796 = vset.pattern.permute.xlu0 2
        %797 = vperm.xlu0 %796, %v305
        %v798 = vpop.permute.xlu0 %797
        %800 = vset.pattern.permute.xlu0 2
        %801 = vperm.xlu0 %800, %v306
        %v802 = vpop.permute.xlu0 %801
        %804 = vset.pattern.permute.xlu0 2
        %805 = vperm.xlu0 %804, %v307
        %v806 = vpop.permute.xlu0 %805
        %808 = vset.pattern.permute.xlu0 2
        %809 = vperm.xlu0 %808, %v308
        %v810 = vpop.permute.xlu0 %809
        %812 = vset.pattern.permute.xlu0 2
        %813 = vperm.xlu0 %812, %v309
        %v814 = vpop.permute.xlu0 %813
        %816 = vset.pattern.permute.xlu0 2
        %817 = vperm.xlu0 %816, %v310
        %v818 = vpop.permute.xlu0 %817
        %820 = vset.pattern.permute.xlu0 2
        %821 = vperm.xlu0 %820, %v311
        %v822 = vpop.permute.xlu0 %821
        %824 = vset.pattern.permute.xlu0 2
        %825 = vperm.xlu0 %824, %v312
        %v826 = vpop.permute.xlu0 %825
        %828 = vset.pattern.permute.xlu0 2
        %829 = vperm.xlu0 %828, %v313
        %v830 = vpop.permute.xlu0 %829
        %832 = vset.pattern.permute.xlu0 2
        %833 = vperm.xlu0 %832, %v314
        %v834 = vpop.permute.xlu0 %833
        %v836 = vlaneseq
        %v837 = vshrl.u32 %v836, 7
        %v838 = vsub.s32 2, %v837
        %v839 = vrot.slane %v315, %v838
        %v840 = vmul.f32 %v710, %v839
        %v841 = vmul.f32 %v714, %v839
        %v842 = vmul.f32 %v718, %v839
        %v843 = vmul.f32 %v722, %v839
        %v844 = vmul.f32 %v726, %v839
        %v845 = vmul.f32 %v730, %v839
        %v846 = vmul.f32 %v734, %v839
        %v847 = vmul.f32 %v738, %v839
        %v848 = vmul.f32 %v742, %v839
        %v849 = vmul.f32 %v746, %v839
        %v850 = vmul.f32 %v750, %v839
        %v851 = vmul.f32 %v754, %v839
        %v852 = vmul.f32 %v758, %v839
        %v853 = vmul.f32 %v762, %v839
        %v854 = vmul.f32 %v766, %v839
        %v855 = vmul.f32 %v770, %v839
        %v856 = vmul.f32 %v774, %v839
        %v857 = vmul.f32 %v778, %v839
        %v858 = vmul.f32 %v782, %v839
        %v859 = vmul.f32 %v786, %v839
        %v860 = vmul.f32 %v790, %v839
        %v861 = vmul.f32 %v794, %v839
        %v862 = vmul.f32 %v798, %v839
        %v863 = vmul.f32 %v802, %v839
        %v864 = vmul.f32 %v806, %v839
        %v865 = vmul.f32 %v810, %v839
        %v866 = vmul.f32 %v814, %v839
        %v867 = vmul.f32 %v818, %v839
        %v868 = vmul.f32 %v822, %v839
        %v869 = vmul.f32 %v826, %v839
        %v870 = vmul.f32 %v830, %v839
        %v871 = vmul.f32 %v834, %v839
        %v872 = vadd.f32 %v676, %v840
        %v873 = vadd.f32 %v677, %v841
        %v874 = vadd.f32 %v678, %v842
        %v875 = vadd.f32 %v679, %v843
        %v876 = vadd.f32 %v680, %v844
        %v877 = vadd.f32 %v681, %v845
        %v878 = vadd.f32 %v682, %v846
        %v879 = vadd.f32 %v683, %v847
        %v880 = vadd.f32 %v684, %v848
        %v881 = vadd.f32 %v685, %v849
        %v882 = vadd.f32 %v686, %v850
        %v883 = vadd.f32 %v687, %v851
        %v884 = vadd.f32 %v688, %v852
        %v885 = vadd.f32 %v689, %v853
        %v886 = vadd.f32 %v690, %v854
        %v887 = vadd.f32 %v691, %v855
        %v888 = vadd.f32 %v692, %v856
        %v889 = vadd.f32 %v693, %v857
        %v890 = vadd.f32 %v694, %v858
        %v891 = vadd.f32 %v695, %v859
        %v892 = vadd.f32 %v696, %v860
        %v893 = vadd.f32 %v697, %v861
        %v894 = vadd.f32 %v698, %v862
        %v895 = vadd.f32 %v699, %v863
        %v896 = vadd.f32 %v700, %v864
        %v897 = vadd.f32 %v701, %v865
        %v898 = vadd.f32 %v702, %v866
        %v899 = vadd.f32 %v703, %v867
        %v900 = vadd.f32 %v704, %v868
        %v901 = vadd.f32 %v705, %v869
        %v902 = vadd.f32 %v706, %v870
        %v903 = vadd.f32 %v707, %v871
        %904 = vset.pattern.permute.xlu0 3
        %905 = vperm.xlu0 %904, %v283
        %v906 = vpop.permute.xlu0 %905
        %908 = vset.pattern.permute.xlu0 3
        %909 = vperm.xlu0 %908, %v284
        %v910 = vpop.permute.xlu0 %909
        %912 = vset.pattern.permute.xlu0 3
        %913 = vperm.xlu0 %912, %v285
        %v914 = vpop.permute.xlu0 %913
        %916 = vset.pattern.permute.xlu0 3
        %917 = vperm.xlu0 %916, %v286
        %v918 = vpop.permute.xlu0 %917
        %920 = vset.pattern.permute.xlu0 3
        %921 = vperm.xlu0 %920, %v287
        %v922 = vpop.permute.xlu0 %921
        %924 = vset.pattern.permute.xlu0 3
        %925 = vperm.xlu0 %924, %v288
        %v926 = vpop.permute.xlu0 %925
        %928 = vset.pattern.permute.xlu0 3
        %929 = vperm.xlu0 %928, %v289
        %v930 = vpop.permute.xlu0 %929
        %932 = vset.pattern.permute.xlu0 3
        %933 = vperm.xlu0 %932, %v290
        %v934 = vpop.permute.xlu0 %933
        %936 = vset.pattern.permute.xlu0 3
        %937 = vperm.xlu0 %936, %v291
        %v938 = vpop.permute.xlu0 %937
        %940 = vset.pattern.permute.xlu0 3
        %941 = vperm.xlu0 %940, %v292
        %v942 = vpop.permute.xlu0 %941
        %944 = vset.pattern.permute.xlu0 3
        %945 = vperm.xlu0 %944, %v293
        %v946 = vpop.permute.xlu0 %945
        %948 = vset.pattern.permute.xlu0 3
        %949 = vperm.xlu0 %948, %v294
        %v950 = vpop.permute.xlu0 %949
        %952 = vset.pattern.permute.xlu0 3
        %953 = vperm.xlu0 %952, %v295
        %v954 = vpop.permute.xlu0 %953
        %956 = vset.pattern.permute.xlu0 3
        %957 = vperm.xlu0 %956, %v296
        %v958 = vpop.permute.xlu0 %957
        %960 = vset.pattern.permute.xlu0 3
        %961 = vperm.xlu0 %960, %v297
        %v962 = vpop.permute.xlu0 %961
        %964 = vset.pattern.permute.xlu0 3
        %965 = vperm.xlu0 %964, %v298
        %v966 = vpop.permute.xlu0 %965
        %968 = vset.pattern.permute.xlu0 3
        %969 = vperm.xlu0 %968, %v299
        %v970 = vpop.permute.xlu0 %969
        %972 = vset.pattern.permute.xlu0 3
        %973 = vperm.xlu0 %972, %v300
        %v974 = vpop.permute.xlu0 %973
        %976 = vset.pattern.permute.xlu0 3
        %977 = vperm.xlu0 %976, %v301
        %v978 = vpop.permute.xlu0 %977
        %980 = vset.pattern.permute.xlu0 3
        %981 = vperm.xlu0 %980, %v302
        %v982 = vpop.permute.xlu0 %981
        %984 = vset.pattern.permute.xlu0 3
        %985 = vperm.xlu0 %984, %v303
        %v986 = vpop.permute.xlu0 %985
        %988 = vset.pattern.permute.xlu0 3
        %989 = vperm.xlu0 %988, %v304
        %v990 = vpop.permute.xlu0 %989
        %992 = vset.pattern.permute.xlu0 3
        %993 = vperm.xlu0 %992, %v305
        %v994 = vpop.permute.xlu0 %993
        %996 = vset.pattern.permute.xlu0 3
        %997 = vperm.xlu0 %996, %v306
        %v998 = vpop.permute.xlu0 %997
        %1000 = vset.pattern.permute.xlu0 3
        %1001 = vperm.xlu0 %1000, %v307
        %v1002 = vpop.permute.xlu0 %1001
        %1004 = vset.pattern.permute.xlu0 3
        %1005 = vperm.xlu0 %1004, %v308
        %v1006 = vpop.permute.xlu0 %1005
        %1008 = vset.pattern.permute.xlu0 3
        %1009 = vperm.xlu0 %1008, %v309
        %v1010 = vpop.permute.xlu0 %1009
        %1012 = vset.pattern.permute.xlu0 3
        %1013 = vperm.xlu0 %1012, %v310
        %v1014 = vpop.permute.xlu0 %1013
        %1016 = vset.pattern.permute.xlu0 3
        %1017 = vperm.xlu0 %1016, %v311
        %v1018 = vpop.permute.xlu0 %1017
        %1020 = vset.pattern.permute.xlu0 3
        %1021 = vperm.xlu0 %1020, %v312
        %v1022 = vpop.permute.xlu0 %1021
        %1024 = vset.pattern.permute.xlu0 3
        %1025 = vperm.xlu0 %1024, %v313
        %v1026 = vpop.permute.xlu0 %1025
        %1028 = vset.pattern.permute.xlu0 3
        %1029 = vperm.xlu0 %1028, %v314
        %v1030 = vpop.permute.xlu0 %1029
        %v1032 = vlaneseq
        %v1033 = vshrl.u32 %v1032, 7
        %v1034 = vsub.s32 3, %v1033
        %v1035 = vrot.slane %v315, %v1034
        %v1036 = vmul.f32 %v906, %v1035
        %v1037 = vmul.f32 %v910, %v1035
        %v1038 = vmul.f32 %v914, %v1035
        %v1039 = vmul.f32 %v918, %v1035
        %v1040 = vmul.f32 %v922, %v1035
        %v1041 = vmul.f32 %v926, %v1035
        %v1042 = vmul.f32 %v930, %v1035
        %v1043 = vmul.f32 %v934, %v1035
        %v1044 = vmul.f32 %v938, %v1035
        %v1045 = vmul.f32 %v942, %v1035
        %v1046 = vmul.f32 %v946, %v1035
        %v1047 = vmul.f32 %v950, %v1035
        %v1048 = vmul.f32 %v954, %v1035
        %v1049 = vmul.f32 %v958, %v1035
        %v1050 = vmul.f32 %v962, %v1035
        %v1051 = vmul.f32 %v966, %v1035
        %v1052 = vmul.f32 %v970, %v1035
        %v1053 = vmul.f32 %v974, %v1035
        %v1054 = vmul.f32 %v978, %v1035
        %v1055 = vmul.f32 %v982, %v1035
        %v1056 = vmul.f32 %v986, %v1035
        %v1057 = vmul.f32 %v990, %v1035
        %v1058 = vmul.f32 %v994, %v1035
        %v1059 = vmul.f32 %v998, %v1035
        %v1060 = vmul.f32 %v1002, %v1035
        %v1061 = vmul.f32 %v1006, %v1035
        %v1062 = vmul.f32 %v1010, %v1035
        %v1063 = vmul.f32 %v1014, %v1035
        %v1064 = vmul.f32 %v1018, %v1035
        %v1065 = vmul.f32 %v1022, %v1035
        %v1066 = vmul.f32 %v1026, %v1035
        %v1067 = vmul.f32 %v1030, %v1035
        %v1068 = vadd.f32 %v872, %v1036
        %v1069 = vadd.f32 %v873, %v1037
        %v1070 = vadd.f32 %v874, %v1038
        %v1071 = vadd.f32 %v875, %v1039
        %v1072 = vadd.f32 %v876, %v1040
        %v1073 = vadd.f32 %v877, %v1041
        %v1074 = vadd.f32 %v878, %v1042
        %v1075 = vadd.f32 %v879, %v1043
        %v1076 = vadd.f32 %v880, %v1044
        %v1077 = vadd.f32 %v881, %v1045
        %v1078 = vadd.f32 %v882, %v1046
        %v1079 = vadd.f32 %v883, %v1047
        %v1080 = vadd.f32 %v884, %v1048
        %v1081 = vadd.f32 %v885, %v1049
        %v1082 = vadd.f32 %v886, %v1050
        %v1083 = vadd.f32 %v887, %v1051
        %v1084 = vadd.f32 %v888, %v1052
        %v1085 = vadd.f32 %v889, %v1053
        %v1086 = vadd.f32 %v890, %v1054
        %v1087 = vadd.f32 %v891, %v1055
        %v1088 = vadd.f32 %v892, %v1056
        %v1089 = vadd.f32 %v893, %v1057
        %v1090 = vadd.f32 %v894, %v1058
        %v1091 = vadd.f32 %v895, %v1059
        %v1092 = vadd.f32 %v896, %v1060
        %v1093 = vadd.f32 %v897, %v1061
        %v1094 = vadd.f32 %v898, %v1062
        %v1095 = vadd.f32 %v899, %v1063
        %v1096 = vadd.f32 %v900, %v1064
        %v1097 = vadd.f32 %v901, %v1065
        %v1098 = vadd.f32 %v902, %v1066
        %v1099 = vadd.f32 %v903, %v1067
        %1100 = vset.pattern.permute.xlu0 4
        %1101 = vperm.xlu0 %1100, %v283
        %v1102 = vpop.permute.xlu0 %1101
        %1104 = vset.pattern.permute.xlu0 4
        %1105 = vperm.xlu0 %1104, %v284
        %v1106 = vpop.permute.xlu0 %1105
        %1108 = vset.pattern.permute.xlu0 4
        %1109 = vperm.xlu0 %1108, %v285
        %v1110 = vpop.permute.xlu0 %1109
        %1112 = vset.pattern.permute.xlu0 4
        %1113 = vperm.xlu0 %1112, %v286
        %v1114 = vpop.permute.xlu0 %1113
        %1116 = vset.pattern.permute.xlu0 4
        %1117 = vperm.xlu0 %1116, %v287
        %v1118 = vpop.permute.xlu0 %1117
        %1120 = vset.pattern.permute.xlu0 4
        %1121 = vperm.xlu0 %1120, %v288
        %v1122 = vpop.permute.xlu0 %1121
        %1124 = vset.pattern.permute.xlu0 4
        %1125 = vperm.xlu0 %1124, %v289
        %v1126 = vpop.permute.xlu0 %1125
        %1128 = vset.pattern.permute.xlu0 4
        %1129 = vperm.xlu0 %1128, %v290
        %v1130 = vpop.permute.xlu0 %1129
        %1132 = vset.pattern.permute.xlu0 4
        %1133 = vperm.xlu0 %1132, %v291
        %v1134 = vpop.permute.xlu0 %1133
        %1136 = vset.pattern.permute.xlu0 4
        %1137 = vperm.xlu0 %1136, %v292
        %v1138 = vpop.permute.xlu0 %1137
        %1140 = vset.pattern.permute.xlu0 4
        %1141 = vperm.xlu0 %1140, %v293
        %v1142 = vpop.permute.xlu0 %1141
        %1144 = vset.pattern.permute.xlu0 4
        %1145 = vperm.xlu0 %1144, %v294
        %v1146 = vpop.permute.xlu0 %1145
        %1148 = vset.pattern.permute.xlu0 4
        %1149 = vperm.xlu0 %1148, %v295
        %v1150 = vpop.permute.xlu0 %1149
        %1152 = vset.pattern.permute.xlu0 4
        %1153 = vperm.xlu0 %1152, %v296
        %v1154 = vpop.permute.xlu0 %1153
        %1156 = vset.pattern.permute.xlu0 4
        %1157 = vperm.xlu0 %1156, %v297
        %v1158 = vpop.permute.xlu0 %1157
        %1160 = vset.pattern.permute.xlu0 4
        %1161 = vperm.xlu0 %1160, %v298
        %v1162 = vpop.permute.xlu0 %1161
        %1164 = vset.pattern.permute.xlu0 4
        %1165 = vperm.xlu0 %1164, %v299
        %v1166 = vpop.permute.xlu0 %1165
        %1168 = vset.pattern.permute.xlu0 4
        %1169 = vperm.xlu0 %1168, %v300
        %v1170 = vpop.permute.xlu0 %1169
        %1172 = vset.pattern.permute.xlu0 4
        %1173 = vperm.xlu0 %1172, %v301
        %v1174 = vpop.permute.xlu0 %1173
        %1176 = vset.pattern.permute.xlu0 4
        %1177 = vperm.xlu0 %1176, %v302
        %v1178 = vpop.permute.xlu0 %1177
        %1180 = vset.pattern.permute.xlu0 4
        %1181 = vperm.xlu0 %1180, %v303
        %v1182 = vpop.permute.xlu0 %1181
        %1184 = vset.pattern.permute.xlu0 4
        %1185 = vperm.xlu0 %1184, %v304
        %v1186 = vpop.permute.xlu0 %1185
        %1188 = vset.pattern.permute.xlu0 4
        %1189 = vperm.xlu0 %1188, %v305
        %v1190 = vpop.permute.xlu0 %1189
        %1192 = vset.pattern.permute.xlu0 4
        %1193 = vperm.xlu0 %1192, %v306
        %v1194 = vpop.permute.xlu0 %1193
        %1196 = vset.pattern.permute.xlu0 4
        %1197 = vperm.xlu0 %1196, %v307
        %v1198 = vpop.permute.xlu0 %1197
        %1200 = vset.pattern.permute.xlu0 4
        %1201 = vperm.xlu0 %1200, %v308
        %v1202 = vpop.permute.xlu0 %1201
        %1204 = vset.pattern.permute.xlu0 4
        %1205 = vperm.xlu0 %1204, %v309
        %v1206 = vpop.permute.xlu0 %1205
        %1208 = vset.pattern.permute.xlu0 4
        %1209 = vperm.xlu0 %1208, %v310
        %v1210 = vpop.permute.xlu0 %1209
        %1212 = vset.pattern.permute.xlu0 4
        %1213 = vperm.xlu0 %1212, %v311
        %v1214 = vpop.permute.xlu0 %1213
        %1216 = vset.pattern.permute.xlu0 4
        %1217 = vperm.xlu0 %1216, %v312
        %v1218 = vpop.permute.xlu0 %1217
        %1220 = vset.pattern.permute.xlu0 4
        %1221 = vperm.xlu0 %1220, %v313
        %v1222 = vpop.permute.xlu0 %1221
        %1224 = vset.pattern.permute.xlu0 4
        %1225 = vperm.xlu0 %1224, %v314
        %v1226 = vpop.permute.xlu0 %1225
        %v1228 = vlaneseq
        %v1229 = vshrl.u32 %v1228, 7
        %v1230 = vsub.s32 4, %v1229
        %v1231 = vrot.slane %v315, %v1230
        %v1232 = vmul.f32 %v1102, %v1231
        %v1233 = vmul.f32 %v1106, %v1231
        %v1234 = vmul.f32 %v1110, %v1231
        %v1235 = vmul.f32 %v1114, %v1231
        %v1236 = vmul.f32 %v1118, %v1231
        %v1237 = vmul.f32 %v1122, %v1231
        %v1238 = vmul.f32 %v1126, %v1231
        %v1239 = vmul.f32 %v1130, %v1231
        %v1240 = vmul.f32 %v1134, %v1231
        %v1241 = vmul.f32 %v1138, %v1231
        %v1242 = vmul.f32 %v1142, %v1231
        %v1243 = vmul.f32 %v1146, %v1231
        %v1244 = vmul.f32 %v1150, %v1231
        %v1245 = vmul.f32 %v1154, %v1231
        %v1246 = vmul.f32 %v1158, %v1231
        %v1247 = vmul.f32 %v1162, %v1231
        %v1248 = vmul.f32 %v1166, %v1231
        %v1249 = vmul.f32 %v1170, %v1231
        %v1250 = vmul.f32 %v1174, %v1231
        %v1251 = vmul.f32 %v1178, %v1231
        %v1252 = vmul.f32 %v1182, %v1231
        %v1253 = vmul.f32 %v1186, %v1231
        %v1254 = vmul.f32 %v1190, %v1231
        %v1255 = vmul.f32 %v1194, %v1231
        %v1256 = vmul.f32 %v1198, %v1231
        %v1257 = vmul.f32 %v1202, %v1231
        %v1258 = vmul.f32 %v1206, %v1231
        %v1259 = vmul.f32 %v1210, %v1231
        %v1260 = vmul.f32 %v1214, %v1231
        %v1261 = vmul.f32 %v1218, %v1231
        %v1262 = vmul.f32 %v1222, %v1231
        %v1263 = vmul.f32 %v1226, %v1231
        %v1264 = vadd.f32 %v1068, %v1232
        %v1265 = vadd.f32 %v1069, %v1233
        %v1266 = vadd.f32 %v1070, %v1234
        %v1267 = vadd.f32 %v1071, %v1235
        %v1268 = vadd.f32 %v1072, %v1236
        %v1269 = vadd.f32 %v1073, %v1237
        %v1270 = vadd.f32 %v1074, %v1238
        %v1271 = vadd.f32 %v1075, %v1239
        %v1272 = vadd.f32 %v1076, %v1240
        %v1273 = vadd.f32 %v1077, %v1241
        %v1274 = vadd.f32 %v1078, %v1242
        %v1275 = vadd.f32 %v1079, %v1243
        %v1276 = vadd.f32 %v1080, %v1244
        %v1277 = vadd.f32 %v1081, %v1245
        %v1278 = vadd.f32 %v1082, %v1246
        %v1279 = vadd.f32 %v1083, %v1247
        %v1280 = vadd.f32 %v1084, %v1248
        %v1281 = vadd.f32 %v1085, %v1249
        %v1282 = vadd.f32 %v1086, %v1250
        %v1283 = vadd.f32 %v1087, %v1251
        %v1284 = vadd.f32 %v1088, %v1252
        %v1285 = vadd.f32 %v1089, %v1253
        %v1286 = vadd.f32 %v1090, %v1254
        %v1287 = vadd.f32 %v1091, %v1255
        %v1288 = vadd.f32 %v1092, %v1256
        %v1289 = vadd.f32 %v1093, %v1257
        %v1290 = vadd.f32 %v1094, %v1258
        %v1291 = vadd.f32 %v1095, %v1259
        %v1292 = vadd.f32 %v1096, %v1260
        %v1293 = vadd.f32 %v1097, %v1261
        %v1294 = vadd.f32 %v1098, %v1262
        %v1295 = vadd.f32 %v1099, %v1263
        %1296 = vset.pattern.permute.xlu0 5
        %1297 = vperm.xlu0 %1296, %v283
        %v1298 = vpop.permute.xlu0 %1297
        %1300 = vset.pattern.permute.xlu0 5
        %1301 = vperm.xlu0 %1300, %v284
        %v1302 = vpop.permute.xlu0 %1301
        %1304 = vset.pattern.permute.xlu0 5
        %1305 = vperm.xlu0 %1304, %v285
        %v1306 = vpop.permute.xlu0 %1305
        %1308 = vset.pattern.permute.xlu0 5
        %1309 = vperm.xlu0 %1308, %v286
        %v1310 = vpop.permute.xlu0 %1309
        %1312 = vset.pattern.permute.xlu0 5
        %1313 = vperm.xlu0 %1312, %v287
        %v1314 = vpop.permute.xlu0 %1313
        %1316 = vset.pattern.permute.xlu0 5
        %1317 = vperm.xlu0 %1316, %v288
        %v1318 = vpop.permute.xlu0 %1317
        %1320 = vset.pattern.permute.xlu0 5
        %1321 = vperm.xlu0 %1320, %v289
        %v1322 = vpop.permute.xlu0 %1321
        %1324 = vset.pattern.permute.xlu0 5
        %1325 = vperm.xlu0 %1324, %v290
        %v1326 = vpop.permute.xlu0 %1325
        %1328 = vset.pattern.permute.xlu0 5
        %1329 = vperm.xlu0 %1328, %v291
        %v1330 = vpop.permute.xlu0 %1329
        %1332 = vset.pattern.permute.xlu0 5
        %1333 = vperm.xlu0 %1332, %v292
        %v1334 = vpop.permute.xlu0 %1333
        %1336 = vset.pattern.permute.xlu0 5
        %1337 = vperm.xlu0 %1336, %v293
        %v1338 = vpop.permute.xlu0 %1337
        %1340 = vset.pattern.permute.xlu0 5
        %1341 = vperm.xlu0 %1340, %v294
        %v1342 = vpop.permute.xlu0 %1341
        %1344 = vset.pattern.permute.xlu0 5
        %1345 = vperm.xlu0 %1344, %v295
        %v1346 = vpop.permute.xlu0 %1345
        %1348 = vset.pattern.permute.xlu0 5
        %1349 = vperm.xlu0 %1348, %v296
        %v1350 = vpop.permute.xlu0 %1349
        %1352 = vset.pattern.permute.xlu0 5
        %1353 = vperm.xlu0 %1352, %v297
        %v1354 = vpop.permute.xlu0 %1353
        %1356 = vset.pattern.permute.xlu0 5
        %1357 = vperm.xlu0 %1356, %v298
        %v1358 = vpop.permute.xlu0 %1357
        %1360 = vset.pattern.permute.xlu0 5
        %1361 = vperm.xlu0 %1360, %v299
        %v1362 = vpop.permute.xlu0 %1361
        %1364 = vset.pattern.permute.xlu0 5
        %1365 = vperm.xlu0 %1364, %v300
        %v1366 = vpop.permute.xlu0 %1365
        %1368 = vset.pattern.permute.xlu0 5
        %1369 = vperm.xlu0 %1368, %v301
        %v1370 = vpop.permute.xlu0 %1369
        %1372 = vset.pattern.permute.xlu0 5
        %1373 = vperm.xlu0 %1372, %v302
        %v1374 = vpop.permute.xlu0 %1373
        %1376 = vset.pattern.permute.xlu0 5
        %1377 = vperm.xlu0 %1376, %v303
        %v1378 = vpop.permute.xlu0 %1377
        %1380 = vset.pattern.permute.xlu0 5
        %1381 = vperm.xlu0 %1380, %v304
        %v1382 = vpop.permute.xlu0 %1381
        %1384 = vset.pattern.permute.xlu0 5
        %1385 = vperm.xlu0 %1384, %v305
        %v1386 = vpop.permute.xlu0 %1385
        %1388 = vset.pattern.permute.xlu0 5
        %1389 = vperm.xlu0 %1388, %v306
        %v1390 = vpop.permute.xlu0 %1389
        %1392 = vset.pattern.permute.xlu0 5
        %1393 = vperm.xlu0 %1392, %v307
        %v1394 = vpop.permute.xlu0 %1393
        %1396 = vset.pattern.permute.xlu0 5
        %1397 = vperm.xlu0 %1396, %v308
        %v1398 = vpop.permute.xlu0 %1397
        %1400 = vset.pattern.permute.xlu0 5
        %1401 = vperm.xlu0 %1400, %v309
        %v1402 = vpop.permute.xlu0 %1401
        %1404 = vset.pattern.permute.xlu0 5
        %1405 = vperm.xlu0 %1404, %v310
        %v1406 = vpop.permute.xlu0 %1405
        %1408 = vset.pattern.permute.xlu0 5
        %1409 = vperm.xlu0 %1408, %v311
        %v1410 = vpop.permute.xlu0 %1409
        %1412 = vset.pattern.permute.xlu0 5
        %1413 = vperm.xlu0 %1412, %v312
        %v1414 = vpop.permute.xlu0 %1413
        %1416 = vset.pattern.permute.xlu0 5
        %1417 = vperm.xlu0 %1416, %v313
        %v1418 = vpop.permute.xlu0 %1417
        %1420 = vset.pattern.permute.xlu0 5
        %1421 = vperm.xlu0 %1420, %v314
        %v1422 = vpop.permute.xlu0 %1421
        %v1424 = vlaneseq
        %v1425 = vshrl.u32 %v1424, 7
        %v1426 = vsub.s32 5, %v1425
        %v1427 = vrot.slane %v315, %v1426
        %v1428 = vmul.f32 %v1298, %v1427
        %v1429 = vmul.f32 %v1302, %v1427
        %v1430 = vmul.f32 %v1306, %v1427
        %v1431 = vmul.f32 %v1310, %v1427
        %v1432 = vmul.f32 %v1314, %v1427
        %v1433 = vmul.f32 %v1318, %v1427
        %v1434 = vmul.f32 %v1322, %v1427
        %v1435 = vmul.f32 %v1326, %v1427
        %v1436 = vmul.f32 %v1330, %v1427
        %v1437 = vmul.f32 %v1334, %v1427
        %v1438 = vmul.f32 %v1338, %v1427
        %v1439 = vmul.f32 %v1342, %v1427
        %v1440 = vmul.f32 %v1346, %v1427
        %v1441 = vmul.f32 %v1350, %v1427
        %v1442 = vmul.f32 %v1354, %v1427
        %v1443 = vmul.f32 %v1358, %v1427
        %v1444 = vmul.f32 %v1362, %v1427
        %v1445 = vmul.f32 %v1366, %v1427
        %v1446 = vmul.f32 %v1370, %v1427
        %v1447 = vmul.f32 %v1374, %v1427
        %v1448 = vmul.f32 %v1378, %v1427
        %v1449 = vmul.f32 %v1382, %v1427
        %v1450 = vmul.f32 %v1386, %v1427
        %v1451 = vmul.f32 %v1390, %v1427
        %v1452 = vmul.f32 %v1394, %v1427
        %v1453 = vmul.f32 %v1398, %v1427
        %v1454 = vmul.f32 %v1402, %v1427
        %v1455 = vmul.f32 %v1406, %v1427
        %v1456 = vmul.f32 %v1410, %v1427
        %v1457 = vmul.f32 %v1414, %v1427
        %v1458 = vmul.f32 %v1418, %v1427
        %v1459 = vmul.f32 %v1422, %v1427
        %v1460 = vadd.f32 %v1264, %v1428
        %v1461 = vadd.f32 %v1265, %v1429
        %v1462 = vadd.f32 %v1266, %v1430
        %v1463 = vadd.f32 %v1267, %v1431
        %v1464 = vadd.f32 %v1268, %v1432
        %v1465 = vadd.f32 %v1269, %v1433
        %v1466 = vadd.f32 %v1270, %v1434
        %v1467 = vadd.f32 %v1271, %v1435
        %v1468 = vadd.f32 %v1272, %v1436
        %v1469 = vadd.f32 %v1273, %v1437
        %v1470 = vadd.f32 %v1274, %v1438
        %v1471 = vadd.f32 %v1275, %v1439
        %v1472 = vadd.f32 %v1276, %v1440
        %v1473 = vadd.f32 %v1277, %v1441
        %v1474 = vadd.f32 %v1278, %v1442
        %v1475 = vadd.f32 %v1279, %v1443
        %v1476 = vadd.f32 %v1280, %v1444
        %v1477 = vadd.f32 %v1281, %v1445
        %v1478 = vadd.f32 %v1282, %v1446
        %v1479 = vadd.f32 %v1283, %v1447
        %v1480 = vadd.f32 %v1284, %v1448
        %v1481 = vadd.f32 %v1285, %v1449
        %v1482 = vadd.f32 %v1286, %v1450
        %v1483 = vadd.f32 %v1287, %v1451
        %v1484 = vadd.f32 %v1288, %v1452
        %v1485 = vadd.f32 %v1289, %v1453
        %v1486 = vadd.f32 %v1290, %v1454
        %v1487 = vadd.f32 %v1291, %v1455
        %v1488 = vadd.f32 %v1292, %v1456
        %v1489 = vadd.f32 %v1293, %v1457
        %v1490 = vadd.f32 %v1294, %v1458
        %v1491 = vadd.f32 %v1295, %v1459
        %1492 = vset.pattern.permute.xlu0 6
        %1493 = vperm.xlu0 %1492, %v283
        %v1494 = vpop.permute.xlu0 %1493
        %1496 = vset.pattern.permute.xlu0 6
        %1497 = vperm.xlu0 %1496, %v284
        %v1498 = vpop.permute.xlu0 %1497
        %1500 = vset.pattern.permute.xlu0 6
        %1501 = vperm.xlu0 %1500, %v285
        %v1502 = vpop.permute.xlu0 %1501
        %1504 = vset.pattern.permute.xlu0 6
        %1505 = vperm.xlu0 %1504, %v286
        %v1506 = vpop.permute.xlu0 %1505
        %1508 = vset.pattern.permute.xlu0 6
        %1509 = vperm.xlu0 %1508, %v287
        %v1510 = vpop.permute.xlu0 %1509
        %1512 = vset.pattern.permute.xlu0 6
        %1513 = vperm.xlu0 %1512, %v288
        %v1514 = vpop.permute.xlu0 %1513
        %1516 = vset.pattern.permute.xlu0 6
        %1517 = vperm.xlu0 %1516, %v289
        %v1518 = vpop.permute.xlu0 %1517
        %1520 = vset.pattern.permute.xlu0 6
        %1521 = vperm.xlu0 %1520, %v290
        %v1522 = vpop.permute.xlu0 %1521
        %1524 = vset.pattern.permute.xlu0 6
        %1525 = vperm.xlu0 %1524, %v291
        %v1526 = vpop.permute.xlu0 %1525
        %1528 = vset.pattern.permute.xlu0 6
        %1529 = vperm.xlu0 %1528, %v292
        %v1530 = vpop.permute.xlu0 %1529
        %1532 = vset.pattern.permute.xlu0 6
        %1533 = vperm.xlu0 %1532, %v293
        %v1534 = vpop.permute.xlu0 %1533
        %1536 = vset.pattern.permute.xlu0 6
        %1537 = vperm.xlu0 %1536, %v294
        %v1538 = vpop.permute.xlu0 %1537
        %1540 = vset.pattern.permute.xlu0 6
        %1541 = vperm.xlu0 %1540, %v295
        %v1542 = vpop.permute.xlu0 %1541
        %1544 = vset.pattern.permute.xlu0 6
        %1545 = vperm.xlu0 %1544, %v296
        %v1546 = vpop.permute.xlu0 %1545
        %1548 = vset.pattern.permute.xlu0 6
        %1549 = vperm.xlu0 %1548, %v297
        %v1550 = vpop.permute.xlu0 %1549
        %1552 = vset.pattern.permute.xlu0 6
        %1553 = vperm.xlu0 %1552, %v298
        %v1554 = vpop.permute.xlu0 %1553
        %1556 = vset.pattern.permute.xlu0 6
        %1557 = vperm.xlu0 %1556, %v299
        %v1558 = vpop.permute.xlu0 %1557
        %1560 = vset.pattern.permute.xlu0 6
        %1561 = vperm.xlu0 %1560, %v300
        %v1562 = vpop.permute.xlu0 %1561
        %1564 = vset.pattern.permute.xlu0 6
        %1565 = vperm.xlu0 %1564, %v301
        %v1566 = vpop.permute.xlu0 %1565
        %1568 = vset.pattern.permute.xlu0 6
        %1569 = vperm.xlu0 %1568, %v302
        %v1570 = vpop.permute.xlu0 %1569
        %1572 = vset.pattern.permute.xlu0 6
        %1573 = vperm.xlu0 %1572, %v303
        %v1574 = vpop.permute.xlu0 %1573
        %1576 = vset.pattern.permute.xlu0 6
        %1577 = vperm.xlu0 %1576, %v304
        %v1578 = vpop.permute.xlu0 %1577
        %1580 = vset.pattern.permute.xlu0 6
        %1581 = vperm.xlu0 %1580, %v305
        %v1582 = vpop.permute.xlu0 %1581
        %1584 = vset.pattern.permute.xlu0 6
        %1585 = vperm.xlu0 %1584, %v306
        %v1586 = vpop.permute.xlu0 %1585
        %1588 = vset.pattern.permute.xlu0 6
        %1589 = vperm.xlu0 %1588, %v307
        %v1590 = vpop.permute.xlu0 %1589
        %1592 = vset.pattern.permute.xlu0 6
        %1593 = vperm.xlu0 %1592, %v308
        %v1594 = vpop.permute.xlu0 %1593
        %1596 = vset.pattern.permute.xlu0 6
        %1597 = vperm.xlu0 %1596, %v309
        %v1598 = vpop.permute.xlu0 %1597
        %1600 = vset.pattern.permute.xlu0 6
        %1601 = vperm.xlu0 %1600, %v310
        %v1602 = vpop.permute.xlu0 %1601
        %1604 = vset.pattern.permute.xlu0 6
        %1605 = vperm.xlu0 %1604, %v311
        %v1606 = vpop.permute.xlu0 %1605
        %1608 = vset.pattern.permute.xlu0 6
        %1609 = vperm.xlu0 %1608, %v312
        %v1610 = vpop.permute.xlu0 %1609
        %1612 = vset.pattern.permute.xlu0 6
        %1613 = vperm.xlu0 %1612, %v313
        %v1614 = vpop.permute.xlu0 %1613
        %1616 = vset.pattern.permute.xlu0 6
        %1617 = vperm.xlu0 %1616, %v314
        %v1618 = vpop.permute.xlu0 %1617
        %v1620 = vlaneseq
        %v1621 = vshrl.u32 %v1620, 7
        %v1622 = vsub.s32 6, %v1621
        %v1623 = vrot.slane %v315, %v1622
        %v1624 = vmul.f32 %v1494, %v1623
        %v1625 = vmul.f32 %v1498, %v1623
        %v1626 = vmul.f32 %v1502, %v1623
        %v1627 = vmul.f32 %v1506, %v1623
        %v1628 = vmul.f32 %v1510, %v1623
        %v1629 = vmul.f32 %v1514, %v1623
        %v1630 = vmul.f32 %v1518, %v1623
        %v1631 = vmul.f32 %v1522, %v1623
        %v1632 = vmul.f32 %v1526, %v1623
        %v1633 = vmul.f32 %v1530, %v1623
        %v1634 = vmul.f32 %v1534, %v1623
        %v1635 = vmul.f32 %v1538, %v1623
        %v1636 = vmul.f32 %v1542, %v1623
        %v1637 = vmul.f32 %v1546, %v1623
        %v1638 = vmul.f32 %v1550, %v1623
        %v1639 = vmul.f32 %v1554, %v1623
        %v1640 = vmul.f32 %v1558, %v1623
        %v1641 = vmul.f32 %v1562, %v1623
        %v1642 = vmul.f32 %v1566, %v1623
        %v1643 = vmul.f32 %v1570, %v1623
        %v1644 = vmul.f32 %v1574, %v1623
        %v1645 = vmul.f32 %v1578, %v1623
        %v1646 = vmul.f32 %v1582, %v1623
        %v1647 = vmul.f32 %v1586, %v1623
        %v1648 = vmul.f32 %v1590, %v1623
        %v1649 = vmul.f32 %v1594, %v1623
        %v1650 = vmul.f32 %v1598, %v1623
        %v1651 = vmul.f32 %v1602, %v1623
        %v1652 = vmul.f32 %v1606, %v1623
        %v1653 = vmul.f32 %v1610, %v1623
        %v1654 = vmul.f32 %v1614, %v1623
        %v1655 = vmul.f32 %v1618, %v1623
        %v1656 = vadd.f32 %v1460, %v1624
        %v1657 = vadd.f32 %v1461, %v1625
        %v1658 = vadd.f32 %v1462, %v1626
        %v1659 = vadd.f32 %v1463, %v1627
        %v1660 = vadd.f32 %v1464, %v1628
        %v1661 = vadd.f32 %v1465, %v1629
        %v1662 = vadd.f32 %v1466, %v1630
        %v1663 = vadd.f32 %v1467, %v1631
        %v1664 = vadd.f32 %v1468, %v1632
        %v1665 = vadd.f32 %v1469, %v1633
        %v1666 = vadd.f32 %v1470, %v1634
        %v1667 = vadd.f32 %v1471, %v1635
        %v1668 = vadd.f32 %v1472, %v1636
        %v1669 = vadd.f32 %v1473, %v1637
        %v1670 = vadd.f32 %v1474, %v1638
        %v1671 = vadd.f32 %v1475, %v1639
        %v1672 = vadd.f32 %v1476, %v1640
        %v1673 = vadd.f32 %v1477, %v1641
        %v1674 = vadd.f32 %v1478, %v1642
        %v1675 = vadd.f32 %v1479, %v1643
        %v1676 = vadd.f32 %v1480, %v1644
        %v1677 = vadd.f32 %v1481, %v1645
        %v1678 = vadd.f32 %v1482, %v1646
        %v1679 = vadd.f32 %v1483, %v1647
        %v1680 = vadd.f32 %v1484, %v1648
        %v1681 = vadd.f32 %v1485, %v1649
        %v1682 = vadd.f32 %v1486, %v1650
        %v1683 = vadd.f32 %v1487, %v1651
        %v1684 = vadd.f32 %v1488, %v1652
        %v1685 = vadd.f32 %v1489, %v1653
        %v1686 = vadd.f32 %v1490, %v1654
        %v1687 = vadd.f32 %v1491, %v1655
        %1688 = vset.pattern.permute.xlu0 7
        %1689 = vperm.xlu0 %1688, %v283
        %v1690 = vpop.permute.xlu0 %1689
        %1692 = vset.pattern.permute.xlu0 7
        %1693 = vperm.xlu0 %1692, %v284
        %v1694 = vpop.permute.xlu0 %1693
        %1696 = vset.pattern.permute.xlu0 7
        %1697 = vperm.xlu0 %1696, %v285
        %v1698 = vpop.permute.xlu0 %1697
        %1700 = vset.pattern.permute.xlu0 7
        %1701 = vperm.xlu0 %1700, %v286
        %v1702 = vpop.permute.xlu0 %1701
        %1704 = vset.pattern.permute.xlu0 7
        %1705 = vperm.xlu0 %1704, %v287
        %v1706 = vpop.permute.xlu0 %1705
        %1708 = vset.pattern.permute.xlu0 7
        %1709 = vperm.xlu0 %1708, %v288
        %v1710 = vpop.permute.xlu0 %1709
        %1712 = vset.pattern.permute.xlu0 7
        %1713 = vperm.xlu0 %1712, %v289
        %v1714 = vpop.permute.xlu0 %1713
        %1716 = vset.pattern.permute.xlu0 7
        %1717 = vperm.xlu0 %1716, %v290
        %v1718 = vpop.permute.xlu0 %1717
        %1720 = vset.pattern.permute.xlu0 7
        %1721 = vperm.xlu0 %1720, %v291
        %v1722 = vpop.permute.xlu0 %1721
        %1724 = vset.pattern.permute.xlu0 7
        %1725 = vperm.xlu0 %1724, %v292
        %v1726 = vpop.permute.xlu0 %1725
        %1728 = vset.pattern.permute.xlu0 7
        %1729 = vperm.xlu0 %1728, %v293
        %v1730 = vpop.permute.xlu0 %1729
        %1732 = vset.pattern.permute.xlu0 7
        %1733 = vperm.xlu0 %1732, %v294
        %v1734 = vpop.permute.xlu0 %1733
        %1736 = vset.pattern.permute.xlu0 7
        %1737 = vperm.xlu0 %1736, %v295
        %v1738 = vpop.permute.xlu0 %1737
        %1740 = vset.pattern.permute.xlu0 7
        %1741 = vperm.xlu0 %1740, %v296
        %v1742 = vpop.permute.xlu0 %1741
        %1744 = vset.pattern.permute.xlu0 7
        %1745 = vperm.xlu0 %1744, %v297
        %v1746 = vpop.permute.xlu0 %1745
        %1748 = vset.pattern.permute.xlu0 7
        %1749 = vperm.xlu0 %1748, %v298
        %v1750 = vpop.permute.xlu0 %1749
        %1752 = vset.pattern.permute.xlu0 7
        %1753 = vperm.xlu0 %1752, %v299
        %v1754 = vpop.permute.xlu0 %1753
        %1756 = vset.pattern.permute.xlu0 7
        %1757 = vperm.xlu0 %1756, %v300
        %v1758 = vpop.permute.xlu0 %1757
        %1760 = vset.pattern.permute.xlu0 7
        %1761 = vperm.xlu0 %1760, %v301
        %v1762 = vpop.permute.xlu0 %1761
        %1764 = vset.pattern.permute.xlu0 7
        %1765 = vperm.xlu0 %1764, %v302
        %v1766 = vpop.permute.xlu0 %1765
        %1768 = vset.pattern.permute.xlu0 7
        %1769 = vperm.xlu0 %1768, %v303
        %v1770 = vpop.permute.xlu0 %1769
        %1772 = vset.pattern.permute.xlu0 7
        %1773 = vperm.xlu0 %1772, %v304
        %v1774 = vpop.permute.xlu0 %1773
        %1776 = vset.pattern.permute.xlu0 7
        %1777 = vperm.xlu0 %1776, %v305
        %v1778 = vpop.permute.xlu0 %1777
        %1780 = vset.pattern.permute.xlu0 7
        %1781 = vperm.xlu0 %1780, %v306
        %v1782 = vpop.permute.xlu0 %1781
        %1784 = vset.pattern.permute.xlu0 7
        %1785 = vperm.xlu0 %1784, %v307
        %v1786 = vpop.permute.xlu0 %1785
        %1788 = vset.pattern.permute.xlu0 7
        %1789 = vperm.xlu0 %1788, %v308
        %v1790 = vpop.permute.xlu0 %1789
        %1792 = vset.pattern.permute.xlu0 7
        %1793 = vperm.xlu0 %1792, %v309
        %v1794 = vpop.permute.xlu0 %1793
        %1796 = vset.pattern.permute.xlu0 7
        %1797 = vperm.xlu0 %1796, %v310
        %v1798 = vpop.permute.xlu0 %1797
        %1800 = vset.pattern.permute.xlu0 7
        %1801 = vperm.xlu0 %1800, %v311
        %v1802 = vpop.permute.xlu0 %1801
        %1804 = vset.pattern.permute.xlu0 7
        %1805 = vperm.xlu0 %1804, %v312
        %v1806 = vpop.permute.xlu0 %1805
        %1808 = vset.pattern.permute.xlu0 7
        %1809 = vperm.xlu0 %1808, %v313
        %v1810 = vpop.permute.xlu0 %1809
        %1812 = vset.pattern.permute.xlu0 7
        %1813 = vperm.xlu0 %1812, %v314
        %v1814 = vpop.permute.xlu0 %1813
        %v1816 = vlaneseq
        %v1817 = vshrl.u32 %v1816, 7
        %v1818 = vsub.s32 7, %v1817
        %v1819 = vrot.slane %v315, %v1818
        %v1820 = vmul.f32 %v1690, %v1819
        %v1821 = vmul.f32 %v1694, %v1819
        %v1822 = vmul.f32 %v1698, %v1819
        %v1823 = vmul.f32 %v1702, %v1819
        %v1824 = vmul.f32 %v1706, %v1819
        %v1825 = vmul.f32 %v1710, %v1819
        %v1826 = vmul.f32 %v1714, %v1819
        %v1827 = vmul.f32 %v1718, %v1819
        %v1828 = vmul.f32 %v1722, %v1819
        %v1829 = vmul.f32 %v1726, %v1819
        %v1830 = vmul.f32 %v1730, %v1819
        %v1831 = vmul.f32 %v1734, %v1819
        %v1832 = vmul.f32 %v1738, %v1819
        %v1833 = vmul.f32 %v1742, %v1819
        %v1834 = vmul.f32 %v1746, %v1819
        %v1835 = vmul.f32 %v1750, %v1819
        %v1836 = vmul.f32 %v1754, %v1819
        %v1837 = vmul.f32 %v1758, %v1819
        %v1838 = vmul.f32 %v1762, %v1819
        %v1839 = vmul.f32 %v1766, %v1819
        %v1840 = vmul.f32 %v1770, %v1819
        %v1841 = vmul.f32 %v1774, %v1819
        %v1842 = vmul.f32 %v1778, %v1819
        %v1843 = vmul.f32 %v1782, %v1819
        %v1844 = vmul.f32 %v1786, %v1819
        %v1845 = vmul.f32 %v1790, %v1819
        %v1846 = vmul.f32 %v1794, %v1819
        %v1847 = vmul.f32 %v1798, %v1819
        %v1848 = vmul.f32 %v1802, %v1819
        %v1849 = vmul.f32 %v1806, %v1819
        %v1850 = vmul.f32 %v1810, %v1819
        %v1851 = vmul.f32 %v1814, %v1819
        %v1852 = vadd.f32 %v1656, %v1820
        %v1853 = vadd.f32 %v1657, %v1821
        %v1854 = vadd.f32 %v1658, %v1822
        %v1855 = vadd.f32 %v1659, %v1823
        %v1856 = vadd.f32 %v1660, %v1824
        %v1857 = vadd.f32 %v1661, %v1825
        %v1858 = vadd.f32 %v1662, %v1826
        %v1859 = vadd.f32 %v1663, %v1827
        %v1860 = vadd.f32 %v1664, %v1828
        %v1861 = vadd.f32 %v1665, %v1829
        %v1862 = vadd.f32 %v1666, %v1830
        %v1863 = vadd.f32 %v1667, %v1831
        %v1864 = vadd.f32 %v1668, %v1832
        %v1865 = vadd.f32 %v1669, %v1833
        %v1866 = vadd.f32 %v1670, %v1834
        %v1867 = vadd.f32 %v1671, %v1835
        %v1868 = vadd.f32 %v1672, %v1836
        %v1869 = vadd.f32 %v1673, %v1837
        %v1870 = vadd.f32 %v1674, %v1838
        %v1871 = vadd.f32 %v1675, %v1839
        %v1872 = vadd.f32 %v1676, %v1840
        %v1873 = vadd.f32 %v1677, %v1841
        %v1874 = vadd.f32 %v1678, %v1842
        %v1875 = vadd.f32 %v1679, %v1843
        %v1876 = vadd.f32 %v1680, %v1844
        %v1877 = vadd.f32 %v1681, %v1845
        %v1878 = vadd.f32 %v1682, %v1846
        %v1879 = vadd.f32 %v1683, %v1847
        %v1880 = vadd.f32 %v1684, %v1848
        %v1881 = vadd.f32 %v1685, %v1849
        %v1882 = vadd.f32 %v1686, %v1850
        %v1883 = vadd.f32 %v1687, %v1851
        %1885 = vset.pattern.permute.xlu0 0
        %1886 = vperm.xlu0 %1885, %v218
        %v1887 = vpop.permute.xlu0 %1886
        %1890 = vset.pattern.permute.xlu0 0
        %1891 = vperm.xlu0 %1890, %v219
        %v1892 = vpop.permute.xlu0 %1891
        %1895 = vset.pattern.permute.xlu0 0
        %1896 = vperm.xlu0 %1895, %v220
        %v1897 = vpop.permute.xlu0 %1896
        %1900 = vset.pattern.permute.xlu0 0
        %1901 = vperm.xlu0 %1900, %v221
        %v1902 = vpop.permute.xlu0 %1901
        %1905 = vset.pattern.permute.xlu0 0
        %1906 = vperm.xlu0 %1905, %v222
        %v1907 = vpop.permute.xlu0 %1906
        %1910 = vset.pattern.permute.xlu0 0
        %1911 = vperm.xlu0 %1910, %v223
        %v1912 = vpop.permute.xlu0 %1911
        %1915 = vset.pattern.permute.xlu0 0
        %1916 = vperm.xlu0 %1915, %v224
        %v1917 = vpop.permute.xlu0 %1916
        %1920 = vset.pattern.permute.xlu0 0
        %1921 = vperm.xlu0 %1920, %v225
        %v1922 = vpop.permute.xlu0 %1921
        %1925 = vset.pattern.permute.xlu0 0
        %1926 = vperm.xlu0 %1925, %v226
        %v1927 = vpop.permute.xlu0 %1926
        %1930 = vset.pattern.permute.xlu0 0
        %1931 = vperm.xlu0 %1930, %v227
        %v1932 = vpop.permute.xlu0 %1931
        %1935 = vset.pattern.permute.xlu0 0
        %1936 = vperm.xlu0 %1935, %v228
        %v1937 = vpop.permute.xlu0 %1936
        %1940 = vset.pattern.permute.xlu0 0
        %1941 = vperm.xlu0 %1940, %v229
        %v1942 = vpop.permute.xlu0 %1941
        %1945 = vset.pattern.permute.xlu0 0
        %1946 = vperm.xlu0 %1945, %v230
        %v1947 = vpop.permute.xlu0 %1946
        %1950 = vset.pattern.permute.xlu0 0
        %1951 = vperm.xlu0 %1950, %v231
        %v1952 = vpop.permute.xlu0 %1951
        %1955 = vset.pattern.permute.xlu0 0
        %1956 = vperm.xlu0 %1955, %v232
        %v1957 = vpop.permute.xlu0 %1956
        %1960 = vset.pattern.permute.xlu0 0
        %1961 = vperm.xlu0 %1960, %v233
        %v1962 = vpop.permute.xlu0 %1961
        %1965 = vset.pattern.permute.xlu0 0
        %1966 = vperm.xlu0 %1965, %v234
        %v1967 = vpop.permute.xlu0 %1966
        %1970 = vset.pattern.permute.xlu0 0
        %1971 = vperm.xlu0 %1970, %v235
        %v1972 = vpop.permute.xlu0 %1971
        %1975 = vset.pattern.permute.xlu0 0
        %1976 = vperm.xlu0 %1975, %v236
        %v1977 = vpop.permute.xlu0 %1976
        %1980 = vset.pattern.permute.xlu0 0
        %1981 = vperm.xlu0 %1980, %v237
        %v1982 = vpop.permute.xlu0 %1981
        %1985 = vset.pattern.permute.xlu0 0
        %1986 = vperm.xlu0 %1985, %v238
        %v1987 = vpop.permute.xlu0 %1986
        %1990 = vset.pattern.permute.xlu0 0
        %1991 = vperm.xlu0 %1990, %v239
        %v1992 = vpop.permute.xlu0 %1991
        %1995 = vset.pattern.permute.xlu0 0
        %1996 = vperm.xlu0 %1995, %v240
        %v1997 = vpop.permute.xlu0 %1996
        %2000 = vset.pattern.permute.xlu0 0
        %2001 = vperm.xlu0 %2000, %v241
        %v2002 = vpop.permute.xlu0 %2001
        %2005 = vset.pattern.permute.xlu0 0
        %2006 = vperm.xlu0 %2005, %v242
        %v2007 = vpop.permute.xlu0 %2006
        %2010 = vset.pattern.permute.xlu0 0
        %2011 = vperm.xlu0 %2010, %v243
        %v2012 = vpop.permute.xlu0 %2011
        %2015 = vset.pattern.permute.xlu0 0
        %2016 = vperm.xlu0 %2015, %v244
        %v2017 = vpop.permute.xlu0 %2016
        %2020 = vset.pattern.permute.xlu0 0
        %2021 = vperm.xlu0 %2020, %v245
        %v2022 = vpop.permute.xlu0 %2021
        %2025 = vset.pattern.permute.xlu0 0
        %2026 = vperm.xlu0 %2025, %v246
        %v2027 = vpop.permute.xlu0 %2026
        %2030 = vset.pattern.permute.xlu0 0
        %2031 = vperm.xlu0 %2030, %v247
        %v2032 = vpop.permute.xlu0 %2031
        %2035 = vset.pattern.permute.xlu0 0
        %2036 = vperm.xlu0 %2035, %v248
        %v2037 = vpop.permute.xlu0 %2036
        %2040 = vset.pattern.permute.xlu0 0
        %2041 = vperm.xlu0 %2040, %v249
        %v2042 = vpop.permute.xlu0 %2041
        %v2044 = vlaneseq
        %v2045 = vshrl.u32 %v2044, 7
        %v2046 = vsub.s32 0, %v2045
        %v2047 = vrot.slane %v1852, %v2046
        %v2048 = vlaneseq
        %v2049 = vshrl.u32 %v2048, 7
        %v2050 = vsub.s32 0, %v2049
        %v2051 = vrot.slane %v1853, %v2050
        %v2052 = vlaneseq
        %v2053 = vshrl.u32 %v2052, 7
        %v2054 = vsub.s32 0, %v2053
        %v2055 = vrot.slane %v1854, %v2054
        %v2056 = vlaneseq
        %v2057 = vshrl.u32 %v2056, 7
        %v2058 = vsub.s32 0, %v2057
        %v2059 = vrot.slane %v1855, %v2058
        %v2060 = vlaneseq
        %v2061 = vshrl.u32 %v2060, 7
        %v2062 = vsub.s32 0, %v2061
        %v2063 = vrot.slane %v1856, %v2062
        %v2064 = vlaneseq
        %v2065 = vshrl.u32 %v2064, 7
        %v2066 = vsub.s32 0, %v2065
        %v2067 = vrot.slane %v1857, %v2066
        %v2068 = vlaneseq
        %v2069 = vshrl.u32 %v2068, 7
        %v2070 = vsub.s32 0, %v2069
        %v2071 = vrot.slane %v1858, %v2070
        %v2072 = vlaneseq
        %v2073 = vshrl.u32 %v2072, 7
        %v2074 = vsub.s32 0, %v2073
        %v2075 = vrot.slane %v1859, %v2074
        %v2076 = vlaneseq
        %v2077 = vshrl.u32 %v2076, 7
        %v2078 = vsub.s32 0, %v2077
        %v2079 = vrot.slane %v1860, %v2078
        %v2080 = vlaneseq
        %v2081 = vshrl.u32 %v2080, 7
        %v2082 = vsub.s32 0, %v2081
        %v2083 = vrot.slane %v1861, %v2082
        %v2084 = vlaneseq
        %v2085 = vshrl.u32 %v2084, 7
        %v2086 = vsub.s32 0, %v2085
        %v2087 = vrot.slane %v1862, %v2086
        %v2088 = vlaneseq
        %v2089 = vshrl.u32 %v2088, 7
        %v2090 = vsub.s32 0, %v2089
        %v2091 = vrot.slane %v1863, %v2090
        %v2092 = vlaneseq
        %v2093 = vshrl.u32 %v2092, 7
        %v2094 = vsub.s32 0, %v2093
        %v2095 = vrot.slane %v1864, %v2094
        %v2096 = vlaneseq
        %v2097 = vshrl.u32 %v2096, 7
        %v2098 = vsub.s32 0, %v2097
        %v2099 = vrot.slane %v1865, %v2098
        %v2100 = vlaneseq
        %v2101 = vshrl.u32 %v2100, 7
        %v2102 = vsub.s32 0, %v2101
        %v2103 = vrot.slane %v1866, %v2102
        %v2104 = vlaneseq
        %v2105 = vshrl.u32 %v2104, 7
        %v2106 = vsub.s32 0, %v2105
        %v2107 = vrot.slane %v1867, %v2106
        %v2108 = vlaneseq
        %v2109 = vshrl.u32 %v2108, 7
        %v2110 = vsub.s32 0, %v2109
        %v2111 = vrot.slane %v1868, %v2110
        %v2112 = vlaneseq
        %v2113 = vshrl.u32 %v2112, 7
        %v2114 = vsub.s32 0, %v2113
        %v2115 = vrot.slane %v1869, %v2114
        %v2116 = vlaneseq
        %v2117 = vshrl.u32 %v2116, 7
        %v2118 = vsub.s32 0, %v2117
        %v2119 = vrot.slane %v1870, %v2118
        %v2120 = vlaneseq
        %v2121 = vshrl.u32 %v2120, 7
        %v2122 = vsub.s32 0, %v2121
        %v2123 = vrot.slane %v1871, %v2122
        %v2124 = vlaneseq
        %v2125 = vshrl.u32 %v2124, 7
        %v2126 = vsub.s32 0, %v2125
        %v2127 = vrot.slane %v1872, %v2126
        %v2128 = vlaneseq
        %v2129 = vshrl.u32 %v2128, 7
        %v2130 = vsub.s32 0, %v2129
        %v2131 = vrot.slane %v1873, %v2130
        %v2132 = vlaneseq
        %v2133 = vshrl.u32 %v2132, 7
        %v2134 = vsub.s32 0, %v2133
        %v2135 = vrot.slane %v1874, %v2134
        %v2136 = vlaneseq
        %v2137 = vshrl.u32 %v2136, 7
        %v2138 = vsub.s32 0, %v2137
        %v2139 = vrot.slane %v1875, %v2138
        %v2140 = vlaneseq
        %v2141 = vshrl.u32 %v2140, 7
        %v2142 = vsub.s32 0, %v2141
        %v2143 = vrot.slane %v1876, %v2142
        %v2144 = vlaneseq
        %v2145 = vshrl.u32 %v2144, 7
        %v2146 = vsub.s32 0, %v2145
        %v2147 = vrot.slane %v1877, %v2146
        %v2148 = vlaneseq
        %v2149 = vshrl.u32 %v2148, 7
        %v2150 = vsub.s32 0, %v2149
        %v2151 = vrot.slane %v1878, %v2150
        %v2152 = vlaneseq
        %v2153 = vshrl.u32 %v2152, 7
        %v2154 = vsub.s32 0, %v2153
        %v2155 = vrot.slane %v1879, %v2154
        %v2156 = vlaneseq
        %v2157 = vshrl.u32 %v2156, 7
        %v2158 = vsub.s32 0, %v2157
        %v2159 = vrot.slane %v1880, %v2158
        %v2160 = vlaneseq
        %v2161 = vshrl.u32 %v2160, 7
        %v2162 = vsub.s32 0, %v2161
        %v2163 = vrot.slane %v1881, %v2162
        %v2164 = vlaneseq
        %v2165 = vshrl.u32 %v2164, 7
        %v2166 = vsub.s32 0, %v2165
        %v2167 = vrot.slane %v1882, %v2166
        %v2168 = vlaneseq
        %v2169 = vshrl.u32 %v2168, 7
        %v2170 = vsub.s32 0, %v2169
        %v2171 = vrot.slane %v1883, %v2170
        %v2172 = vmul.f32 %v1887, %v2047
        %v2173 = vmul.f32 %v1892, %v2051
        %v2174 = vmul.f32 %v1897, %v2055
        %v2175 = vmul.f32 %v1902, %v2059
        %v2176 = vmul.f32 %v1907, %v2063
        %v2177 = vmul.f32 %v1912, %v2067
        %v2178 = vmul.f32 %v1917, %v2071
        %v2179 = vmul.f32 %v1922, %v2075
        %v2180 = vmul.f32 %v1927, %v2079
        %v2181 = vmul.f32 %v1932, %v2083
        %v2182 = vmul.f32 %v1937, %v2087
        %v2183 = vmul.f32 %v1942, %v2091
        %v2184 = vmul.f32 %v1947, %v2095
        %v2185 = vmul.f32 %v1952, %v2099
        %v2186 = vmul.f32 %v1957, %v2103
        %v2187 = vmul.f32 %v1962, %v2107
        %v2188 = vmul.f32 %v1967, %v2111
        %v2189 = vmul.f32 %v1972, %v2115
        %v2190 = vmul.f32 %v1977, %v2119
        %v2191 = vmul.f32 %v1982, %v2123
        %v2192 = vmul.f32 %v1987, %v2127
        %v2193 = vmul.f32 %v1992, %v2131
        %v2194 = vmul.f32 %v1997, %v2135
        %v2195 = vmul.f32 %v2002, %v2139
        %v2196 = vmul.f32 %v2007, %v2143
        %v2197 = vmul.f32 %v2012, %v2147
        %v2198 = vmul.f32 %v2017, %v2151
        %v2199 = vmul.f32 %v2022, %v2155
        %v2200 = vmul.f32 %v2027, %v2159
        %v2201 = vmul.f32 %v2032, %v2163
        %v2202 = vmul.f32 %v2037, %v2167
        %v2203 = vmul.f32 %v2042, %v2171
        %2204 = vset.pattern.permute.xlu0 1
        %2205 = vperm.xlu0 %2204, %v218
        %v2206 = vpop.permute.xlu0 %2205
        %2208 = vset.pattern.permute.xlu0 1
        %2209 = vperm.xlu0 %2208, %v219
        %v2210 = vpop.permute.xlu0 %2209
        %2212 = vset.pattern.permute.xlu0 1
        %2213 = vperm.xlu0 %2212, %v220
        %v2214 = vpop.permute.xlu0 %2213
        %2216 = vset.pattern.permute.xlu0 1
        %2217 = vperm.xlu0 %2216, %v221
        %v2218 = vpop.permute.xlu0 %2217
        %2220 = vset.pattern.permute.xlu0 1
        %2221 = vperm.xlu0 %2220, %v222
        %v2222 = vpop.permute.xlu0 %2221
        %2224 = vset.pattern.permute.xlu0 1
        %2225 = vperm.xlu0 %2224, %v223
        %v2226 = vpop.permute.xlu0 %2225
        %2228 = vset.pattern.permute.xlu0 1
        %2229 = vperm.xlu0 %2228, %v224
        %v2230 = vpop.permute.xlu0 %2229
        %2232 = vset.pattern.permute.xlu0 1
        %2233 = vperm.xlu0 %2232, %v225
        %v2234 = vpop.permute.xlu0 %2233
        %2236 = vset.pattern.permute.xlu0 1
        %2237 = vperm.xlu0 %2236, %v226
        %v2238 = vpop.permute.xlu0 %2237
        %2240 = vset.pattern.permute.xlu0 1
        %2241 = vperm.xlu0 %2240, %v227
        %v2242 = vpop.permute.xlu0 %2241
        %2244 = vset.pattern.permute.xlu0 1
        %2245 = vperm.xlu0 %2244, %v228
        %v2246 = vpop.permute.xlu0 %2245
        %2248 = vset.pattern.permute.xlu0 1
        %2249 = vperm.xlu0 %2248, %v229
        %v2250 = vpop.permute.xlu0 %2249
        %2252 = vset.pattern.permute.xlu0 1
        %2253 = vperm.xlu0 %2252, %v230
        %v2254 = vpop.permute.xlu0 %2253
        %2256 = vset.pattern.permute.xlu0 1
        %2257 = vperm.xlu0 %2256, %v231
        %v2258 = vpop.permute.xlu0 %2257
        %2260 = vset.pattern.permute.xlu0 1
        %2261 = vperm.xlu0 %2260, %v232
        %v2262 = vpop.permute.xlu0 %2261
        %2264 = vset.pattern.permute.xlu0 1
        %2265 = vperm.xlu0 %2264, %v233
        %v2266 = vpop.permute.xlu0 %2265
        %2268 = vset.pattern.permute.xlu0 1
        %2269 = vperm.xlu0 %2268, %v234
        %v2270 = vpop.permute.xlu0 %2269
        %2272 = vset.pattern.permute.xlu0 1
        %2273 = vperm.xlu0 %2272, %v235
        %v2274 = vpop.permute.xlu0 %2273
        %2276 = vset.pattern.permute.xlu0 1
        %2277 = vperm.xlu0 %2276, %v236
        %v2278 = vpop.permute.xlu0 %2277
        %2280 = vset.pattern.permute.xlu0 1
        %2281 = vperm.xlu0 %2280, %v237
        %v2282 = vpop.permute.xlu0 %2281
        %2284 = vset.pattern.permute.xlu0 1
        %2285 = vperm.xlu0 %2284, %v238
        %v2286 = vpop.permute.xlu0 %2285
        %2288 = vset.pattern.permute.xlu0 1
        %2289 = vperm.xlu0 %2288, %v239
        %v2290 = vpop.permute.xlu0 %2289
        %2292 = vset.pattern.permute.xlu0 1
        %2293 = vperm.xlu0 %2292, %v240
        %v2294 = vpop.permute.xlu0 %2293
        %2296 = vset.pattern.permute.xlu0 1
        %2297 = vperm.xlu0 %2296, %v241
        %v2298 = vpop.permute.xlu0 %2297
        %2300 = vset.pattern.permute.xlu0 1
        %2301 = vperm.xlu0 %2300, %v242
        %v2302 = vpop.permute.xlu0 %2301
        %2304 = vset.pattern.permute.xlu0 1
        %2305 = vperm.xlu0 %2304, %v243
        %v2306 = vpop.permute.xlu0 %2305
        %2308 = vset.pattern.permute.xlu0 1
        %2309 = vperm.xlu0 %2308, %v244
        %v2310 = vpop.permute.xlu0 %2309
        %2312 = vset.pattern.permute.xlu0 1
        %2313 = vperm.xlu0 %2312, %v245
        %v2314 = vpop.permute.xlu0 %2313
        %2316 = vset.pattern.permute.xlu0 1
        %2317 = vperm.xlu0 %2316, %v246
        %v2318 = vpop.permute.xlu0 %2317
        %2320 = vset.pattern.permute.xlu0 1
        %2321 = vperm.xlu0 %2320, %v247
        %v2322 = vpop.permute.xlu0 %2321
        %2324 = vset.pattern.permute.xlu0 1
        %2325 = vperm.xlu0 %2324, %v248
        %v2326 = vpop.permute.xlu0 %2325
        %2328 = vset.pattern.permute.xlu0 1
        %2329 = vperm.xlu0 %2328, %v249
        %v2330 = vpop.permute.xlu0 %2329
        %v2332 = vlaneseq
        %v2333 = vshrl.u32 %v2332, 7
        %v2334 = vsub.s32 1, %v2333
        %v2335 = vrot.slane %v1852, %v2334
        %v2336 = vlaneseq
        %v2337 = vshrl.u32 %v2336, 7
        %v2338 = vsub.s32 1, %v2337
        %v2339 = vrot.slane %v1853, %v2338
        %v2340 = vlaneseq
        %v2341 = vshrl.u32 %v2340, 7
        %v2342 = vsub.s32 1, %v2341
        %v2343 = vrot.slane %v1854, %v2342
        %v2344 = vlaneseq
        %v2345 = vshrl.u32 %v2344, 7
        %v2346 = vsub.s32 1, %v2345
        %v2347 = vrot.slane %v1855, %v2346
        %v2348 = vlaneseq
        %v2349 = vshrl.u32 %v2348, 7
        %v2350 = vsub.s32 1, %v2349
        %v2351 = vrot.slane %v1856, %v2350
        %v2352 = vlaneseq
        %v2353 = vshrl.u32 %v2352, 7
        %v2354 = vsub.s32 1, %v2353
        %v2355 = vrot.slane %v1857, %v2354
        %v2356 = vlaneseq
        %v2357 = vshrl.u32 %v2356, 7
        %v2358 = vsub.s32 1, %v2357
        %v2359 = vrot.slane %v1858, %v2358
        %v2360 = vlaneseq
        %v2361 = vshrl.u32 %v2360, 7
        %v2362 = vsub.s32 1, %v2361
        %v2363 = vrot.slane %v1859, %v2362
        %v2364 = vlaneseq
        %v2365 = vshrl.u32 %v2364, 7
        %v2366 = vsub.s32 1, %v2365
        %v2367 = vrot.slane %v1860, %v2366
        %v2368 = vlaneseq
        %v2369 = vshrl.u32 %v2368, 7
        %v2370 = vsub.s32 1, %v2369
        %v2371 = vrot.slane %v1861, %v2370
        %v2372 = vlaneseq
        %v2373 = vshrl.u32 %v2372, 7
        %v2374 = vsub.s32 1, %v2373
        %v2375 = vrot.slane %v1862, %v2374
        %v2376 = vlaneseq
        %v2377 = vshrl.u32 %v2376, 7
        %v2378 = vsub.s32 1, %v2377
        %v2379 = vrot.slane %v1863, %v2378
        %v2380 = vlaneseq
        %v2381 = vshrl.u32 %v2380, 7
        %v2382 = vsub.s32 1, %v2381
        %v2383 = vrot.slane %v1864, %v2382
        %v2384 = vlaneseq
        %v2385 = vshrl.u32 %v2384, 7
        %v2386 = vsub.s32 1, %v2385
        %v2387 = vrot.slane %v1865, %v2386
        %v2388 = vlaneseq
        %v2389 = vshrl.u32 %v2388, 7
        %v2390 = vsub.s32 1, %v2389
        %v2391 = vrot.slane %v1866, %v2390
        %v2392 = vlaneseq
        %v2393 = vshrl.u32 %v2392, 7
        %v2394 = vsub.s32 1, %v2393
        %v2395 = vrot.slane %v1867, %v2394
        %v2396 = vlaneseq
        %v2397 = vshrl.u32 %v2396, 7
        %v2398 = vsub.s32 1, %v2397
        %v2399 = vrot.slane %v1868, %v2398
        %v2400 = vlaneseq
        %v2401 = vshrl.u32 %v2400, 7
        %v2402 = vsub.s32 1, %v2401
        %v2403 = vrot.slane %v1869, %v2402
        %v2404 = vlaneseq
        %v2405 = vshrl.u32 %v2404, 7
        %v2406 = vsub.s32 1, %v2405
        %v2407 = vrot.slane %v1870, %v2406
        %v2408 = vlaneseq
        %v2409 = vshrl.u32 %v2408, 7
        %v2410 = vsub.s32 1, %v2409
        %v2411 = vrot.slane %v1871, %v2410
        %v2412 = vlaneseq
        %v2413 = vshrl.u32 %v2412, 7
        %v2414 = vsub.s32 1, %v2413
        %v2415 = vrot.slane %v1872, %v2414
        %v2416 = vlaneseq
        %v2417 = vshrl.u32 %v2416, 7
        %v2418 = vsub.s32 1, %v2417
        %v2419 = vrot.slane %v1873, %v2418
        %v2420 = vlaneseq
        %v2421 = vshrl.u32 %v2420, 7
        %v2422 = vsub.s32 1, %v2421
        %v2423 = vrot.slane %v1874, %v2422
        %v2424 = vlaneseq
        %v2425 = vshrl.u32 %v2424, 7
        %v2426 = vsub.s32 1, %v2425
        %v2427 = vrot.slane %v1875, %v2426
        %v2428 = vlaneseq
        %v2429 = vshrl.u32 %v2428, 7
        %v2430 = vsub.s32 1, %v2429
        %v2431 = vrot.slane %v1876, %v2430
        %v2432 = vlaneseq
        %v2433 = vshrl.u32 %v2432, 7
        %v2434 = vsub.s32 1, %v2433
        %v2435 = vrot.slane %v1877, %v2434
        %v2436 = vlaneseq
        %v2437 = vshrl.u32 %v2436, 7
        %v2438 = vsub.s32 1, %v2437
        %v2439 = vrot.slane %v1878, %v2438
        %v2440 = vlaneseq
        %v2441 = vshrl.u32 %v2440, 7
        %v2442 = vsub.s32 1, %v2441
        %v2443 = vrot.slane %v1879, %v2442
        %v2444 = vlaneseq
        %v2445 = vshrl.u32 %v2444, 7
        %v2446 = vsub.s32 1, %v2445
        %v2447 = vrot.slane %v1880, %v2446
        %v2448 = vlaneseq
        %v2449 = vshrl.u32 %v2448, 7
        %v2450 = vsub.s32 1, %v2449
        %v2451 = vrot.slane %v1881, %v2450
        %v2452 = vlaneseq
        %v2453 = vshrl.u32 %v2452, 7
        %v2454 = vsub.s32 1, %v2453
        %v2455 = vrot.slane %v1882, %v2454
        %v2456 = vlaneseq
        %v2457 = vshrl.u32 %v2456, 7
        %v2458 = vsub.s32 1, %v2457
        %v2459 = vrot.slane %v1883, %v2458
        %v2460 = vmul.f32 %v2206, %v2335
        %v2461 = vmul.f32 %v2210, %v2339
        %v2462 = vmul.f32 %v2214, %v2343
        %v2463 = vmul.f32 %v2218, %v2347
        %v2464 = vmul.f32 %v2222, %v2351
        %v2465 = vmul.f32 %v2226, %v2355
        %v2466 = vmul.f32 %v2230, %v2359
        %v2467 = vmul.f32 %v2234, %v2363
        %v2468 = vmul.f32 %v2238, %v2367
        %v2469 = vmul.f32 %v2242, %v2371
        %v2470 = vmul.f32 %v2246, %v2375
        %v2471 = vmul.f32 %v2250, %v2379
        %v2472 = vmul.f32 %v2254, %v2383
        %v2473 = vmul.f32 %v2258, %v2387
        %v2474 = vmul.f32 %v2262, %v2391
        %v2475 = vmul.f32 %v2266, %v2395
        %v2476 = vmul.f32 %v2270, %v2399
        %v2477 = vmul.f32 %v2274, %v2403
        %v2478 = vmul.f32 %v2278, %v2407
        %v2479 = vmul.f32 %v2282, %v2411
        %v2480 = vmul.f32 %v2286, %v2415
        %v2481 = vmul.f32 %v2290, %v2419
        %v2482 = vmul.f32 %v2294, %v2423
        %v2483 = vmul.f32 %v2298, %v2427
        %v2484 = vmul.f32 %v2302, %v2431
        %v2485 = vmul.f32 %v2306, %v2435
        %v2486 = vmul.f32 %v2310, %v2439
        %v2487 = vmul.f32 %v2314, %v2443
        %v2488 = vmul.f32 %v2318, %v2447
        %v2489 = vmul.f32 %v2322, %v2451
        %v2490 = vmul.f32 %v2326, %v2455
        %v2491 = vmul.f32 %v2330, %v2459
        %v2492 = vadd.f32 %v2172, %v2460
        %v2493 = vadd.f32 %v2173, %v2461
        %v2494 = vadd.f32 %v2174, %v2462
        %v2495 = vadd.f32 %v2175, %v2463
        %v2496 = vadd.f32 %v2176, %v2464
        %v2497 = vadd.f32 %v2177, %v2465
        %v2498 = vadd.f32 %v2178, %v2466
        %v2499 = vadd.f32 %v2179, %v2467
        %v2500 = vadd.f32 %v2180, %v2468
        %v2501 = vadd.f32 %v2181, %v2469
        %v2502 = vadd.f32 %v2182, %v2470
        %v2503 = vadd.f32 %v2183, %v2471
        %v2504 = vadd.f32 %v2184, %v2472
        %v2505 = vadd.f32 %v2185, %v2473
        %v2506 = vadd.f32 %v2186, %v2474
        %v2507 = vadd.f32 %v2187, %v2475
        %v2508 = vadd.f32 %v2188, %v2476
        %v2509 = vadd.f32 %v2189, %v2477
        %v2510 = vadd.f32 %v2190, %v2478
        %v2511 = vadd.f32 %v2191, %v2479
        %v2512 = vadd.f32 %v2192, %v2480
        %v2513 = vadd.f32 %v2193, %v2481
        %v2514 = vadd.f32 %v2194, %v2482
        %v2515 = vadd.f32 %v2195, %v2483
        %v2516 = vadd.f32 %v2196, %v2484
        %v2517 = vadd.f32 %v2197, %v2485
        %v2518 = vadd.f32 %v2198, %v2486
        %v2519 = vadd.f32 %v2199, %v2487
        %v2520 = vadd.f32 %v2200, %v2488
        %v2521 = vadd.f32 %v2201, %v2489
        %v2522 = vadd.f32 %v2202, %v2490
        %v2523 = vadd.f32 %v2203, %v2491
        %2524 = vset.pattern.permute.xlu0 2
        %2525 = vperm.xlu0 %2524, %v218
        %v2526 = vpop.permute.xlu0 %2525
        %2528 = vset.pattern.permute.xlu0 2
        %2529 = vperm.xlu0 %2528, %v219
        %v2530 = vpop.permute.xlu0 %2529
        %2532 = vset.pattern.permute.xlu0 2
        %2533 = vperm.xlu0 %2532, %v220
        %v2534 = vpop.permute.xlu0 %2533
        %2536 = vset.pattern.permute.xlu0 2
        %2537 = vperm.xlu0 %2536, %v221
        %v2538 = vpop.permute.xlu0 %2537
        %2540 = vset.pattern.permute.xlu0 2
        %2541 = vperm.xlu0 %2540, %v222
        %v2542 = vpop.permute.xlu0 %2541
        %2544 = vset.pattern.permute.xlu0 2
        %2545 = vperm.xlu0 %2544, %v223
        %v2546 = vpop.permute.xlu0 %2545
        %2548 = vset.pattern.permute.xlu0 2
        %2549 = vperm.xlu0 %2548, %v224
        %v2550 = vpop.permute.xlu0 %2549
        %2552 = vset.pattern.permute.xlu0 2
        %2553 = vperm.xlu0 %2552, %v225
        %v2554 = vpop.permute.xlu0 %2553
        %2556 = vset.pattern.permute.xlu0 2
        %2557 = vperm.xlu0 %2556, %v226
        %v2558 = vpop.permute.xlu0 %2557
        %2560 = vset.pattern.permute.xlu0 2
        %2561 = vperm.xlu0 %2560, %v227
        %v2562 = vpop.permute.xlu0 %2561
        %2564 = vset.pattern.permute.xlu0 2
        %2565 = vperm.xlu0 %2564, %v228
        %v2566 = vpop.permute.xlu0 %2565
        %2568 = vset.pattern.permute.xlu0 2
        %2569 = vperm.xlu0 %2568, %v229
        %v2570 = vpop.permute.xlu0 %2569
        %2572 = vset.pattern.permute.xlu0 2
        %2573 = vperm.xlu0 %2572, %v230
        %v2574 = vpop.permute.xlu0 %2573
        %2576 = vset.pattern.permute.xlu0 2
        %2577 = vperm.xlu0 %2576, %v231
        %v2578 = vpop.permute.xlu0 %2577
        %2580 = vset.pattern.permute.xlu0 2
        %2581 = vperm.xlu0 %2580, %v232
        %v2582 = vpop.permute.xlu0 %2581
        %2584 = vset.pattern.permute.xlu0 2
        %2585 = vperm.xlu0 %2584, %v233
        %v2586 = vpop.permute.xlu0 %2585
        %2588 = vset.pattern.permute.xlu0 2
        %2589 = vperm.xlu0 %2588, %v234
        %v2590 = vpop.permute.xlu0 %2589
        %2592 = vset.pattern.permute.xlu0 2
        %2593 = vperm.xlu0 %2592, %v235
        %v2594 = vpop.permute.xlu0 %2593
        %2596 = vset.pattern.permute.xlu0 2
        %2597 = vperm.xlu0 %2596, %v236
        %v2598 = vpop.permute.xlu0 %2597
        %2600 = vset.pattern.permute.xlu0 2
        %2601 = vperm.xlu0 %2600, %v237
        %v2602 = vpop.permute.xlu0 %2601
        %2604 = vset.pattern.permute.xlu0 2
        %2605 = vperm.xlu0 %2604, %v238
        %v2606 = vpop.permute.xlu0 %2605
        %2608 = vset.pattern.permute.xlu0 2
        %2609 = vperm.xlu0 %2608, %v239
        %v2610 = vpop.permute.xlu0 %2609
        %2612 = vset.pattern.permute.xlu0 2
        %2613 = vperm.xlu0 %2612, %v240
        %v2614 = vpop.permute.xlu0 %2613
        %2616 = vset.pattern.permute.xlu0 2
        %2617 = vperm.xlu0 %2616, %v241
        %v2618 = vpop.permute.xlu0 %2617
        %2620 = vset.pattern.permute.xlu0 2
        %2621 = vperm.xlu0 %2620, %v242
        %v2622 = vpop.permute.xlu0 %2621
        %2624 = vset.pattern.permute.xlu0 2
        %2625 = vperm.xlu0 %2624, %v243
        %v2626 = vpop.permute.xlu0 %2625
        %2628 = vset.pattern.permute.xlu0 2
        %2629 = vperm.xlu0 %2628, %v244
        %v2630 = vpop.permute.xlu0 %2629
        %2632 = vset.pattern.permute.xlu0 2
        %2633 = vperm.xlu0 %2632, %v245
        %v2634 = vpop.permute.xlu0 %2633
        %2636 = vset.pattern.permute.xlu0 2
        %2637 = vperm.xlu0 %2636, %v246
        %v2638 = vpop.permute.xlu0 %2637
        %2640 = vset.pattern.permute.xlu0 2
        %2641 = vperm.xlu0 %2640, %v247
        %v2642 = vpop.permute.xlu0 %2641
        %2644 = vset.pattern.permute.xlu0 2
        %2645 = vperm.xlu0 %2644, %v248
        %v2646 = vpop.permute.xlu0 %2645
        %2648 = vset.pattern.permute.xlu0 2
        %2649 = vperm.xlu0 %2648, %v249
        %v2650 = vpop.permute.xlu0 %2649
        %v2652 = vlaneseq
        %v2653 = vshrl.u32 %v2652, 7
        %v2654 = vsub.s32 2, %v2653
        %v2655 = vrot.slane %v1852, %v2654
        %v2656 = vlaneseq
        %v2657 = vshrl.u32 %v2656, 7
        %v2658 = vsub.s32 2, %v2657
        %v2659 = vrot.slane %v1853, %v2658
        %v2660 = vlaneseq
        %v2661 = vshrl.u32 %v2660, 7
        %v2662 = vsub.s32 2, %v2661
        %v2663 = vrot.slane %v1854, %v2662
        %v2664 = vlaneseq
        %v2665 = vshrl.u32 %v2664, 7
        %v2666 = vsub.s32 2, %v2665
        %v2667 = vrot.slane %v1855, %v2666
        %v2668 = vlaneseq
        %v2669 = vshrl.u32 %v2668, 7
        %v2670 = vsub.s32 2, %v2669
        %v2671 = vrot.slane %v1856, %v2670
        %v2672 = vlaneseq
        %v2673 = vshrl.u32 %v2672, 7
        %v2674 = vsub.s32 2, %v2673
        %v2675 = vrot.slane %v1857, %v2674
        %v2676 = vlaneseq
        %v2677 = vshrl.u32 %v2676, 7
        %v2678 = vsub.s32 2, %v2677
        %v2679 = vrot.slane %v1858, %v2678
        %v2680 = vlaneseq
        %v2681 = vshrl.u32 %v2680, 7
        %v2682 = vsub.s32 2, %v2681
        %v2683 = vrot.slane %v1859, %v2682
        %v2684 = vlaneseq
        %v2685 = vshrl.u32 %v2684, 7
        %v2686 = vsub.s32 2, %v2685
        %v2687 = vrot.slane %v1860, %v2686
        %v2688 = vlaneseq
        %v2689 = vshrl.u32 %v2688, 7
        %v2690 = vsub.s32 2, %v2689
        %v2691 = vrot.slane %v1861, %v2690
        %v2692 = vlaneseq
        %v2693 = vshrl.u32 %v2692, 7
        %v2694 = vsub.s32 2, %v2693
        %v2695 = vrot.slane %v1862, %v2694
        %v2696 = vlaneseq
        %v2697 = vshrl.u32 %v2696, 7
        %v2698 = vsub.s32 2, %v2697
        %v2699 = vrot.slane %v1863, %v2698
        %v2700 = vlaneseq
        %v2701 = vshrl.u32 %v2700, 7
        %v2702 = vsub.s32 2, %v2701
        %v2703 = vrot.slane %v1864, %v2702
        %v2704 = vlaneseq
        %v2705 = vshrl.u32 %v2704, 7
        %v2706 = vsub.s32 2, %v2705
        %v2707 = vrot.slane %v1865, %v2706
        %v2708 = vlaneseq
        %v2709 = vshrl.u32 %v2708, 7
        %v2710 = vsub.s32 2, %v2709
        %v2711 = vrot.slane %v1866, %v2710
        %v2712 = vlaneseq
        %v2713 = vshrl.u32 %v2712, 7
        %v2714 = vsub.s32 2, %v2713
        %v2715 = vrot.slane %v1867, %v2714
        %v2716 = vlaneseq
        %v2717 = vshrl.u32 %v2716, 7
        %v2718 = vsub.s32 2, %v2717
        %v2719 = vrot.slane %v1868, %v2718
        %v2720 = vlaneseq
        %v2721 = vshrl.u32 %v2720, 7
        %v2722 = vsub.s32 2, %v2721
        %v2723 = vrot.slane %v1869, %v2722
        %v2724 = vlaneseq
        %v2725 = vshrl.u32 %v2724, 7
        %v2726 = vsub.s32 2, %v2725
        %v2727 = vrot.slane %v1870, %v2726
        %v2728 = vlaneseq
        %v2729 = vshrl.u32 %v2728, 7
        %v2730 = vsub.s32 2, %v2729
        %v2731 = vrot.slane %v1871, %v2730
        %v2732 = vlaneseq
        %v2733 = vshrl.u32 %v2732, 7
        %v2734 = vsub.s32 2, %v2733
        %v2735 = vrot.slane %v1872, %v2734
        %v2736 = vlaneseq
        %v2737 = vshrl.u32 %v2736, 7
        %v2738 = vsub.s32 2, %v2737
        %v2739 = vrot.slane %v1873, %v2738
        %v2740 = vlaneseq
        %v2741 = vshrl.u32 %v2740, 7
        %v2742 = vsub.s32 2, %v2741
        %v2743 = vrot.slane %v1874, %v2742
        %v2744 = vlaneseq
        %v2745 = vshrl.u32 %v2744, 7
        %v2746 = vsub.s32 2, %v2745
        %v2747 = vrot.slane %v1875, %v2746
        %v2748 = vlaneseq
        %v2749 = vshrl.u32 %v2748, 7
        %v2750 = vsub.s32 2, %v2749
        %v2751 = vrot.slane %v1876, %v2750
        %v2752 = vlaneseq
        %v2753 = vshrl.u32 %v2752, 7
        %v2754 = vsub.s32 2, %v2753
        %v2755 = vrot.slane %v1877, %v2754
        %v2756 = vlaneseq
        %v2757 = vshrl.u32 %v2756, 7
        %v2758 = vsub.s32 2, %v2757
        %v2759 = vrot.slane %v1878, %v2758
        %v2760 = vlaneseq
        %v2761 = vshrl.u32 %v2760, 7
        %v2762 = vsub.s32 2, %v2761
        %v2763 = vrot.slane %v1879, %v2762
        %v2764 = vlaneseq
        %v2765 = vshrl.u32 %v2764, 7
        %v2766 = vsub.s32 2, %v2765
        %v2767 = vrot.slane %v1880, %v2766
        %v2768 = vlaneseq
        %v2769 = vshrl.u32 %v2768, 7
        %v2770 = vsub.s32 2, %v2769
        %v2771 = vrot.slane %v1881, %v2770
        %v2772 = vlaneseq
        %v2773 = vshrl.u32 %v2772, 7
        %v2774 = vsub.s32 2, %v2773
        %v2775 = vrot.slane %v1882, %v2774
        %v2776 = vlaneseq
        %v2777 = vshrl.u32 %v2776, 7
        %v2778 = vsub.s32 2, %v2777
        %v2779 = vrot.slane %v1883, %v2778
        %v2780 = vmul.f32 %v2526, %v2655
        %v2781 = vmul.f32 %v2530, %v2659
        %v2782 = vmul.f32 %v2534, %v2663
        %v2783 = vmul.f32 %v2538, %v2667
        %v2784 = vmul.f32 %v2542, %v2671
        %v2785 = vmul.f32 %v2546, %v2675
        %v2786 = vmul.f32 %v2550, %v2679
        %v2787 = vmul.f32 %v2554, %v2683
        %v2788 = vmul.f32 %v2558, %v2687
        %v2789 = vmul.f32 %v2562, %v2691
        %v2790 = vmul.f32 %v2566, %v2695
        %v2791 = vmul.f32 %v2570, %v2699
        %v2792 = vmul.f32 %v2574, %v2703
        %v2793 = vmul.f32 %v2578, %v2707
        %v2794 = vmul.f32 %v2582, %v2711
        %v2795 = vmul.f32 %v2586, %v2715
        %v2796 = vmul.f32 %v2590, %v2719
        %v2797 = vmul.f32 %v2594, %v2723
        %v2798 = vmul.f32 %v2598, %v2727
        %v2799 = vmul.f32 %v2602, %v2731
        %v2800 = vmul.f32 %v2606, %v2735
        %v2801 = vmul.f32 %v2610, %v2739
        %v2802 = vmul.f32 %v2614, %v2743
        %v2803 = vmul.f32 %v2618, %v2747
        %v2804 = vmul.f32 %v2622, %v2751
        %v2805 = vmul.f32 %v2626, %v2755
        %v2806 = vmul.f32 %v2630, %v2759
        %v2807 = vmul.f32 %v2634, %v2763
        %v2808 = vmul.f32 %v2638, %v2767
        %v2809 = vmul.f32 %v2642, %v2771
        %v2810 = vmul.f32 %v2646, %v2775
        %v2811 = vmul.f32 %v2650, %v2779
        %v2812 = vadd.f32 %v2492, %v2780
        %v2813 = vadd.f32 %v2493, %v2781
        %v2814 = vadd.f32 %v2494, %v2782
        %v2815 = vadd.f32 %v2495, %v2783
        %v2816 = vadd.f32 %v2496, %v2784
        %v2817 = vadd.f32 %v2497, %v2785
        %v2818 = vadd.f32 %v2498, %v2786
        %v2819 = vadd.f32 %v2499, %v2787
        %v2820 = vadd.f32 %v2500, %v2788
        %v2821 = vadd.f32 %v2501, %v2789
        %v2822 = vadd.f32 %v2502, %v2790
        %v2823 = vadd.f32 %v2503, %v2791
        %v2824 = vadd.f32 %v2504, %v2792
        %v2825 = vadd.f32 %v2505, %v2793
        %v2826 = vadd.f32 %v2506, %v2794
        %v2827 = vadd.f32 %v2507, %v2795
        %v2828 = vadd.f32 %v2508, %v2796
        %v2829 = vadd.f32 %v2509, %v2797
        %v2830 = vadd.f32 %v2510, %v2798
        %v2831 = vadd.f32 %v2511, %v2799
        %v2832 = vadd.f32 %v2512, %v2800
        %v2833 = vadd.f32 %v2513, %v2801
        %v2834 = vadd.f32 %v2514, %v2802
        %v2835 = vadd.f32 %v2515, %v2803
        %v2836 = vadd.f32 %v2516, %v2804
        %v2837 = vadd.f32 %v2517, %v2805
        %v2838 = vadd.f32 %v2518, %v2806
        %v2839 = vadd.f32 %v2519, %v2807
        %v2840 = vadd.f32 %v2520, %v2808
        %v2841 = vadd.f32 %v2521, %v2809
        %v2842 = vadd.f32 %v2522, %v2810
        %v2843 = vadd.f32 %v2523, %v2811
        %2844 = vset.pattern.permute.xlu0 3
        %2845 = vperm.xlu0 %2844, %v218
        %v2846 = vpop.permute.xlu0 %2845
        %2848 = vset.pattern.permute.xlu0 3
        %2849 = vperm.xlu0 %2848, %v219
        %v2850 = vpop.permute.xlu0 %2849
        %2852 = vset.pattern.permute.xlu0 3
        %2853 = vperm.xlu0 %2852, %v220
        %v2854 = vpop.permute.xlu0 %2853
        %2856 = vset.pattern.permute.xlu0 3
        %2857 = vperm.xlu0 %2856, %v221
        %v2858 = vpop.permute.xlu0 %2857
        %2860 = vset.pattern.permute.xlu0 3
        %2861 = vperm.xlu0 %2860, %v222
        %v2862 = vpop.permute.xlu0 %2861
        %2864 = vset.pattern.permute.xlu0 3
        %2865 = vperm.xlu0 %2864, %v223
        %v2866 = vpop.permute.xlu0 %2865
        %2868 = vset.pattern.permute.xlu0 3
        %2869 = vperm.xlu0 %2868, %v224
        %v2870 = vpop.permute.xlu0 %2869
        %2872 = vset.pattern.permute.xlu0 3
        %2873 = vperm.xlu0 %2872, %v225
        %v2874 = vpop.permute.xlu0 %2873
        %2876 = vset.pattern.permute.xlu0 3
        %2877 = vperm.xlu0 %2876, %v226
        %v2878 = vpop.permute.xlu0 %2877
        %2880 = vset.pattern.permute.xlu0 3
        %2881 = vperm.xlu0 %2880, %v227
        %v2882 = vpop.permute.xlu0 %2881
        %2884 = vset.pattern.permute.xlu0 3
        %2885 = vperm.xlu0 %2884, %v228
        %v2886 = vpop.permute.xlu0 %2885
        %2888 = vset.pattern.permute.xlu0 3
        %2889 = vperm.xlu0 %2888, %v229
        %v2890 = vpop.permute.xlu0 %2889
        %2892 = vset.pattern.permute.xlu0 3
        %2893 = vperm.xlu0 %2892, %v230
        %v2894 = vpop.permute.xlu0 %2893
        %2896 = vset.pattern.permute.xlu0 3
        %2897 = vperm.xlu0 %2896, %v231
        %v2898 = vpop.permute.xlu0 %2897
        %2900 = vset.pattern.permute.xlu0 3
        %2901 = vperm.xlu0 %2900, %v232
        %v2902 = vpop.permute.xlu0 %2901
        %2904 = vset.pattern.permute.xlu0 3
        %2905 = vperm.xlu0 %2904, %v233
        %v2906 = vpop.permute.xlu0 %2905
        %2908 = vset.pattern.permute.xlu0 3
        %2909 = vperm.xlu0 %2908, %v234
        %v2910 = vpop.permute.xlu0 %2909
        %2912 = vset.pattern.permute.xlu0 3
        %2913 = vperm.xlu0 %2912, %v235
        %v2914 = vpop.permute.xlu0 %2913
        %2916 = vset.pattern.permute.xlu0 3
        %2917 = vperm.xlu0 %2916, %v236
        %v2918 = vpop.permute.xlu0 %2917
        %2920 = vset.pattern.permute.xlu0 3
        %2921 = vperm.xlu0 %2920, %v237
        %v2922 = vpop.permute.xlu0 %2921
        %2924 = vset.pattern.permute.xlu0 3
        %2925 = vperm.xlu0 %2924, %v238
        %v2926 = vpop.permute.xlu0 %2925
        %2928 = vset.pattern.permute.xlu0 3
        %2929 = vperm.xlu0 %2928, %v239
        %v2930 = vpop.permute.xlu0 %2929
        %2932 = vset.pattern.permute.xlu0 3
        %2933 = vperm.xlu0 %2932, %v240
        %v2934 = vpop.permute.xlu0 %2933
        %2936 = vset.pattern.permute.xlu0 3
        %2937 = vperm.xlu0 %2936, %v241
        %v2938 = vpop.permute.xlu0 %2937
        %2940 = vset.pattern.permute.xlu0 3
        %2941 = vperm.xlu0 %2940, %v242
        %v2942 = vpop.permute.xlu0 %2941
        %2944 = vset.pattern.permute.xlu0 3
        %2945 = vperm.xlu0 %2944, %v243
        %v2946 = vpop.permute.xlu0 %2945
        %2948 = vset.pattern.permute.xlu0 3
        %2949 = vperm.xlu0 %2948, %v244
        %v2950 = vpop.permute.xlu0 %2949
        %2952 = vset.pattern.permute.xlu0 3
        %2953 = vperm.xlu0 %2952, %v245
        %v2954 = vpop.permute.xlu0 %2953
        %2956 = vset.pattern.permute.xlu0 3
        %2957 = vperm.xlu0 %2956, %v246
        %v2958 = vpop.permute.xlu0 %2957
        %2960 = vset.pattern.permute.xlu0 3
        %2961 = vperm.xlu0 %2960, %v247
        %v2962 = vpop.permute.xlu0 %2961
        %2964 = vset.pattern.permute.xlu0 3
        %2965 = vperm.xlu0 %2964, %v248
        %v2966 = vpop.permute.xlu0 %2965
        %2968 = vset.pattern.permute.xlu0 3
        %2969 = vperm.xlu0 %2968, %v249
        %v2970 = vpop.permute.xlu0 %2969
        %v2972 = vlaneseq
        %v2973 = vshrl.u32 %v2972, 7
        %v2974 = vsub.s32 3, %v2973
        %v2975 = vrot.slane %v1852, %v2974
        %v2976 = vlaneseq
        %v2977 = vshrl.u32 %v2976, 7
        %v2978 = vsub.s32 3, %v2977
        %v2979 = vrot.slane %v1853, %v2978
        %v2980 = vlaneseq
        %v2981 = vshrl.u32 %v2980, 7
        %v2982 = vsub.s32 3, %v2981
        %v2983 = vrot.slane %v1854, %v2982
        %v2984 = vlaneseq
        %v2985 = vshrl.u32 %v2984, 7
        %v2986 = vsub.s32 3, %v2985
        %v2987 = vrot.slane %v1855, %v2986
        %v2988 = vlaneseq
        %v2989 = vshrl.u32 %v2988, 7
        %v2990 = vsub.s32 3, %v2989
        %v2991 = vrot.slane %v1856, %v2990
        %v2992 = vlaneseq
        %v2993 = vshrl.u32 %v2992, 7
        %v2994 = vsub.s32 3, %v2993
        %v2995 = vrot.slane %v1857, %v2994
        %v2996 = vlaneseq
        %v2997 = vshrl.u32 %v2996, 7
        %v2998 = vsub.s32 3, %v2997
        %v2999 = vrot.slane %v1858, %v2998
        %v3000 = vlaneseq
        %v3001 = vshrl.u32 %v3000, 7
        %v3002 = vsub.s32 3, %v3001
        %v3003 = vrot.slane %v1859, %v3002
        %v3004 = vlaneseq
        %v3005 = vshrl.u32 %v3004, 7
        %v3006 = vsub.s32 3, %v3005
        %v3007 = vrot.slane %v1860, %v3006
        %v3008 = vlaneseq
        %v3009 = vshrl.u32 %v3008, 7
        %v3010 = vsub.s32 3, %v3009
        %v3011 = vrot.slane %v1861, %v3010
        %v3012 = vlaneseq
        %v3013 = vshrl.u32 %v3012, 7
        %v3014 = vsub.s32 3, %v3013
        %v3015 = vrot.slane %v1862, %v3014
        %v3016 = vlaneseq
        %v3017 = vshrl.u32 %v3016, 7
        %v3018 = vsub.s32 3, %v3017
        %v3019 = vrot.slane %v1863, %v3018
        %v3020 = vlaneseq
        %v3021 = vshrl.u32 %v3020, 7
        %v3022 = vsub.s32 3, %v3021
        %v3023 = vrot.slane %v1864, %v3022
        %v3024 = vlaneseq
        %v3025 = vshrl.u32 %v3024, 7
        %v3026 = vsub.s32 3, %v3025
        %v3027 = vrot.slane %v1865, %v3026
        %v3028 = vlaneseq
        %v3029 = vshrl.u32 %v3028, 7
        %v3030 = vsub.s32 3, %v3029
        %v3031 = vrot.slane %v1866, %v3030
        %v3032 = vlaneseq
        %v3033 = vshrl.u32 %v3032, 7
        %v3034 = vsub.s32 3, %v3033
        %v3035 = vrot.slane %v1867, %v3034
        %v3036 = vlaneseq
        %v3037 = vshrl.u32 %v3036, 7
        %v3038 = vsub.s32 3, %v3037
        %v3039 = vrot.slane %v1868, %v3038
        %v3040 = vlaneseq
        %v3041 = vshrl.u32 %v3040, 7
        %v3042 = vsub.s32 3, %v3041
        %v3043 = vrot.slane %v1869, %v3042
        %v3044 = vlaneseq
        %v3045 = vshrl.u32 %v3044, 7
        %v3046 = vsub.s32 3, %v3045
        %v3047 = vrot.slane %v1870, %v3046
        %v3048 = vlaneseq
        %v3049 = vshrl.u32 %v3048, 7
        %v3050 = vsub.s32 3, %v3049
        %v3051 = vrot.slane %v1871, %v3050
        %v3052 = vlaneseq
        %v3053 = vshrl.u32 %v3052, 7
        %v3054 = vsub.s32 3, %v3053
        %v3055 = vrot.slane %v1872, %v3054
        %v3056 = vlaneseq
        %v3057 = vshrl.u32 %v3056, 7
        %v3058 = vsub.s32 3, %v3057
        %v3059 = vrot.slane %v1873, %v3058
        %v3060 = vlaneseq
        %v3061 = vshrl.u32 %v3060, 7
        %v3062 = vsub.s32 3, %v3061
        %v3063 = vrot.slane %v1874, %v3062
        %v3064 = vlaneseq
        %v3065 = vshrl.u32 %v3064, 7
        %v3066 = vsub.s32 3, %v3065
        %v3067 = vrot.slane %v1875, %v3066
        %v3068 = vlaneseq
        %v3069 = vshrl.u32 %v3068, 7
        %v3070 = vsub.s32 3, %v3069
        %v3071 = vrot.slane %v1876, %v3070
        %v3072 = vlaneseq
        %v3073 = vshrl.u32 %v3072, 7
        %v3074 = vsub.s32 3, %v3073
        %v3075 = vrot.slane %v1877, %v3074
        %v3076 = vlaneseq
        %v3077 = vshrl.u32 %v3076, 7
        %v3078 = vsub.s32 3, %v3077
        %v3079 = vrot.slane %v1878, %v3078
        %v3080 = vlaneseq
        %v3081 = vshrl.u32 %v3080, 7
        %v3082 = vsub.s32 3, %v3081
        %v3083 = vrot.slane %v1879, %v3082
        %v3084 = vlaneseq
        %v3085 = vshrl.u32 %v3084, 7
        %v3086 = vsub.s32 3, %v3085
        %v3087 = vrot.slane %v1880, %v3086
        %v3088 = vlaneseq
        %v3089 = vshrl.u32 %v3088, 7
        %v3090 = vsub.s32 3, %v3089
        %v3091 = vrot.slane %v1881, %v3090
        %v3092 = vlaneseq
        %v3093 = vshrl.u32 %v3092, 7
        %v3094 = vsub.s32 3, %v3093
        %v3095 = vrot.slane %v1882, %v3094
        %v3096 = vlaneseq
        %v3097 = vshrl.u32 %v3096, 7
        %v3098 = vsub.s32 3, %v3097
        %v3099 = vrot.slane %v1883, %v3098
        %v3100 = vmul.f32 %v2846, %v2975
        %v3101 = vmul.f32 %v2850, %v2979
        %v3102 = vmul.f32 %v2854, %v2983
        %v3103 = vmul.f32 %v2858, %v2987
        %v3104 = vmul.f32 %v2862, %v2991
        %v3105 = vmul.f32 %v2866, %v2995
        %v3106 = vmul.f32 %v2870, %v2999
        %v3107 = vmul.f32 %v2874, %v3003
        %v3108 = vmul.f32 %v2878, %v3007
        %v3109 = vmul.f32 %v2882, %v3011
        %v3110 = vmul.f32 %v2886, %v3015
        %v3111 = vmul.f32 %v2890, %v3019
        %v3112 = vmul.f32 %v2894, %v3023
        %v3113 = vmul.f32 %v2898, %v3027
        %v3114 = vmul.f32 %v2902, %v3031
        %v3115 = vmul.f32 %v2906, %v3035
        %v3116 = vmul.f32 %v2910, %v3039
        %v3117 = vmul.f32 %v2914, %v3043
        %v3118 = vmul.f32 %v2918, %v3047
        %v3119 = vmul.f32 %v2922, %v3051
        %v3120 = vmul.f32 %v2926, %v3055
        %v3121 = vmul.f32 %v2930, %v3059
        %v3122 = vmul.f32 %v2934, %v3063
        %v3123 = vmul.f32 %v2938, %v3067
        %v3124 = vmul.f32 %v2942, %v3071
        %v3125 = vmul.f32 %v2946, %v3075
        %v3126 = vmul.f32 %v2950, %v3079
        %v3127 = vmul.f32 %v2954, %v3083
        %v3128 = vmul.f32 %v2958, %v3087
        %v3129 = vmul.f32 %v2962, %v3091
        %v3130 = vmul.f32 %v2966, %v3095
        %v3131 = vmul.f32 %v2970, %v3099
        %v3132 = vadd.f32 %v2812, %v3100
        %v3133 = vadd.f32 %v2813, %v3101
        %v3134 = vadd.f32 %v2814, %v3102
        %v3135 = vadd.f32 %v2815, %v3103
        %v3136 = vadd.f32 %v2816, %v3104
        %v3137 = vadd.f32 %v2817, %v3105
        %v3138 = vadd.f32 %v2818, %v3106
        %v3139 = vadd.f32 %v2819, %v3107
        %v3140 = vadd.f32 %v2820, %v3108
        %v3141 = vadd.f32 %v2821, %v3109
        %v3142 = vadd.f32 %v2822, %v3110
        %v3143 = vadd.f32 %v2823, %v3111
        %v3144 = vadd.f32 %v2824, %v3112
        %v3145 = vadd.f32 %v2825, %v3113
        %v3146 = vadd.f32 %v2826, %v3114
        %v3147 = vadd.f32 %v2827, %v3115
        %v3148 = vadd.f32 %v2828, %v3116
        %v3149 = vadd.f32 %v2829, %v3117
        %v3150 = vadd.f32 %v2830, %v3118
        %v3151 = vadd.f32 %v2831, %v3119
        %v3152 = vadd.f32 %v2832, %v3120
        %v3153 = vadd.f32 %v2833, %v3121
        %v3154 = vadd.f32 %v2834, %v3122
        %v3155 = vadd.f32 %v2835, %v3123
        %v3156 = vadd.f32 %v2836, %v3124
        %v3157 = vadd.f32 %v2837, %v3125
        %v3158 = vadd.f32 %v2838, %v3126
        %v3159 = vadd.f32 %v2839, %v3127
        %v3160 = vadd.f32 %v2840, %v3128
        %v3161 = vadd.f32 %v2841, %v3129
        %v3162 = vadd.f32 %v2842, %v3130
        %v3163 = vadd.f32 %v2843, %v3131
        %3164 = vset.pattern.permute.xlu0 4
        %3165 = vperm.xlu0 %3164, %v218
        %v3166 = vpop.permute.xlu0 %3165
        %3168 = vset.pattern.permute.xlu0 4
        %3169 = vperm.xlu0 %3168, %v219
        %v3170 = vpop.permute.xlu0 %3169
        %3172 = vset.pattern.permute.xlu0 4
        %3173 = vperm.xlu0 %3172, %v220
        %v3174 = vpop.permute.xlu0 %3173
        %3176 = vset.pattern.permute.xlu0 4
        %3177 = vperm.xlu0 %3176, %v221
        %v3178 = vpop.permute.xlu0 %3177
        %3180 = vset.pattern.permute.xlu0 4
        %3181 = vperm.xlu0 %3180, %v222
        %v3182 = vpop.permute.xlu0 %3181
        %3184 = vset.pattern.permute.xlu0 4
        %3185 = vperm.xlu0 %3184, %v223
        %v3186 = vpop.permute.xlu0 %3185
        %3188 = vset.pattern.permute.xlu0 4
        %3189 = vperm.xlu0 %3188, %v224
        %v3190 = vpop.permute.xlu0 %3189
        %3192 = vset.pattern.permute.xlu0 4
        %3193 = vperm.xlu0 %3192, %v225
        %v3194 = vpop.permute.xlu0 %3193
        %3196 = vset.pattern.permute.xlu0 4
        %3197 = vperm.xlu0 %3196, %v226
        %v3198 = vpop.permute.xlu0 %3197
        %3200 = vset.pattern.permute.xlu0 4
        %3201 = vperm.xlu0 %3200, %v227
        %v3202 = vpop.permute.xlu0 %3201
        %3204 = vset.pattern.permute.xlu0 4
        %3205 = vperm.xlu0 %3204, %v228
        %v3206 = vpop.permute.xlu0 %3205
        %3208 = vset.pattern.permute.xlu0 4
        %3209 = vperm.xlu0 %3208, %v229
        %v3210 = vpop.permute.xlu0 %3209
        %3212 = vset.pattern.permute.xlu0 4
        %3213 = vperm.xlu0 %3212, %v230
        %v3214 = vpop.permute.xlu0 %3213
        %3216 = vset.pattern.permute.xlu0 4
        %3217 = vperm.xlu0 %3216, %v231
        %v3218 = vpop.permute.xlu0 %3217
        %3220 = vset.pattern.permute.xlu0 4
        %3221 = vperm.xlu0 %3220, %v232
        %v3222 = vpop.permute.xlu0 %3221
        %3224 = vset.pattern.permute.xlu0 4
        %3225 = vperm.xlu0 %3224, %v233
        %v3226 = vpop.permute.xlu0 %3225
        %3228 = vset.pattern.permute.xlu0 4
        %3229 = vperm.xlu0 %3228, %v234
        %v3230 = vpop.permute.xlu0 %3229
        %3232 = vset.pattern.permute.xlu0 4
        %3233 = vperm.xlu0 %3232, %v235
        %v3234 = vpop.permute.xlu0 %3233
        %3236 = vset.pattern.permute.xlu0 4
        %3237 = vperm.xlu0 %3236, %v236
        %v3238 = vpop.permute.xlu0 %3237
        %3240 = vset.pattern.permute.xlu0 4
        %3241 = vperm.xlu0 %3240, %v237
        %v3242 = vpop.permute.xlu0 %3241
        %3244 = vset.pattern.permute.xlu0 4
        %3245 = vperm.xlu0 %3244, %v238
        %v3246 = vpop.permute.xlu0 %3245
        %3248 = vset.pattern.permute.xlu0 4
        %3249 = vperm.xlu0 %3248, %v239
        %v3250 = vpop.permute.xlu0 %3249
        %3252 = vset.pattern.permute.xlu0 4
        %3253 = vperm.xlu0 %3252, %v240
        %v3254 = vpop.permute.xlu0 %3253
        %3256 = vset.pattern.permute.xlu0 4
        %3257 = vperm.xlu0 %3256, %v241
        %v3258 = vpop.permute.xlu0 %3257
        %3260 = vset.pattern.permute.xlu0 4
        %3261 = vperm.xlu0 %3260, %v242
        %v3262 = vpop.permute.xlu0 %3261
        %3264 = vset.pattern.permute.xlu0 4
        %3265 = vperm.xlu0 %3264, %v243
        %v3266 = vpop.permute.xlu0 %3265
        %3268 = vset.pattern.permute.xlu0 4
        %3269 = vperm.xlu0 %3268, %v244
        %v3270 = vpop.permute.xlu0 %3269
        %3272 = vset.pattern.permute.xlu0 4
        %3273 = vperm.xlu0 %3272, %v245
        %v3274 = vpop.permute.xlu0 %3273
        %3276 = vset.pattern.permute.xlu0 4
        %3277 = vperm.xlu0 %3276, %v246
        %v3278 = vpop.permute.xlu0 %3277
        %3280 = vset.pattern.permute.xlu0 4
        %3281 = vperm.xlu0 %3280, %v247
        %v3282 = vpop.permute.xlu0 %3281
        %3284 = vset.pattern.permute.xlu0 4
        %3285 = vperm.xlu0 %3284, %v248
        %v3286 = vpop.permute.xlu0 %3285
        %3288 = vset.pattern.permute.xlu0 4
        %3289 = vperm.xlu0 %3288, %v249
        %v3290 = vpop.permute.xlu0 %3289
        %v3292 = vlaneseq
        %v3293 = vshrl.u32 %v3292, 7
        %v3294 = vsub.s32 4, %v3293
        %v3295 = vrot.slane %v1852, %v3294
        %v3296 = vlaneseq
        %v3297 = vshrl.u32 %v3296, 7
        %v3298 = vsub.s32 4, %v3297
        %v3299 = vrot.slane %v1853, %v3298
        %v3300 = vlaneseq
        %v3301 = vshrl.u32 %v3300, 7
        %v3302 = vsub.s32 4, %v3301
        %v3303 = vrot.slane %v1854, %v3302
        %v3304 = vlaneseq
        %v3305 = vshrl.u32 %v3304, 7
        %v3306 = vsub.s32 4, %v3305
        %v3307 = vrot.slane %v1855, %v3306
        %v3308 = vlaneseq
        %v3309 = vshrl.u32 %v3308, 7
        %v3310 = vsub.s32 4, %v3309
        %v3311 = vrot.slane %v1856, %v3310
        %v3312 = vlaneseq
        %v3313 = vshrl.u32 %v3312, 7
        %v3314 = vsub.s32 4, %v3313
        %v3315 = vrot.slane %v1857, %v3314
        %v3316 = vlaneseq
        %v3317 = vshrl.u32 %v3316, 7
        %v3318 = vsub.s32 4, %v3317
        %v3319 = vrot.slane %v1858, %v3318
        %v3320 = vlaneseq
        %v3321 = vshrl.u32 %v3320, 7
        %v3322 = vsub.s32 4, %v3321
        %v3323 = vrot.slane %v1859, %v3322
        %v3324 = vlaneseq
        %v3325 = vshrl.u32 %v3324, 7
        %v3326 = vsub.s32 4, %v3325
        %v3327 = vrot.slane %v1860, %v3326
        %v3328 = vlaneseq
        %v3329 = vshrl.u32 %v3328, 7
        %v3330 = vsub.s32 4, %v3329
        %v3331 = vrot.slane %v1861, %v3330
        %v3332 = vlaneseq
        %v3333 = vshrl.u32 %v3332, 7
        %v3334 = vsub.s32 4, %v3333
        %v3335 = vrot.slane %v1862, %v3334
        %v3336 = vlaneseq
        %v3337 = vshrl.u32 %v3336, 7
        %v3338 = vsub.s32 4, %v3337
        %v3339 = vrot.slane %v1863, %v3338
        %v3340 = vlaneseq
        %v3341 = vshrl.u32 %v3340, 7
        %v3342 = vsub.s32 4, %v3341
        %v3343 = vrot.slane %v1864, %v3342
        %v3344 = vlaneseq
        %v3345 = vshrl.u32 %v3344, 7
        %v3346 = vsub.s32 4, %v3345
        %v3347 = vrot.slane %v1865, %v3346
        %v3348 = vlaneseq
        %v3349 = vshrl.u32 %v3348, 7
        %v3350 = vsub.s32 4, %v3349
        %v3351 = vrot.slane %v1866, %v3350
        %v3352 = vlaneseq
        %v3353 = vshrl.u32 %v3352, 7
        %v3354 = vsub.s32 4, %v3353
        %v3355 = vrot.slane %v1867, %v3354
        %v3356 = vlaneseq
        %v3357 = vshrl.u32 %v3356, 7
        %v3358 = vsub.s32 4, %v3357
        %v3359 = vrot.slane %v1868, %v3358
        %v3360 = vlaneseq
        %v3361 = vshrl.u32 %v3360, 7
        %v3362 = vsub.s32 4, %v3361
        %v3363 = vrot.slane %v1869, %v3362
        %v3364 = vlaneseq
        %v3365 = vshrl.u32 %v3364, 7
        %v3366 = vsub.s32 4, %v3365
        %v3367 = vrot.slane %v1870, %v3366
        %v3368 = vlaneseq
        %v3369 = vshrl.u32 %v3368, 7
        %v3370 = vsub.s32 4, %v3369
        %v3371 = vrot.slane %v1871, %v3370
        %v3372 = vlaneseq
        %v3373 = vshrl.u32 %v3372, 7
        %v3374 = vsub.s32 4, %v3373
        %v3375 = vrot.slane %v1872, %v3374
        %v3376 = vlaneseq
        %v3377 = vshrl.u32 %v3376, 7
        %v3378 = vsub.s32 4, %v3377
        %v3379 = vrot.slane %v1873, %v3378
        %v3380 = vlaneseq
        %v3381 = vshrl.u32 %v3380, 7
        %v3382 = vsub.s32 4, %v3381
        %v3383 = vrot.slane %v1874, %v3382
        %v3384 = vlaneseq
        %v3385 = vshrl.u32 %v3384, 7
        %v3386 = vsub.s32 4, %v3385
        %v3387 = vrot.slane %v1875, %v3386
        %v3388 = vlaneseq
        %v3389 = vshrl.u32 %v3388, 7
        %v3390 = vsub.s32 4, %v3389
        %v3391 = vrot.slane %v1876, %v3390
        %v3392 = vlaneseq
        %v3393 = vshrl.u32 %v3392, 7
        %v3394 = vsub.s32 4, %v3393
        %v3395 = vrot.slane %v1877, %v3394
        %v3396 = vlaneseq
        %v3397 = vshrl.u32 %v3396, 7
        %v3398 = vsub.s32 4, %v3397
        %v3399 = vrot.slane %v1878, %v3398
        %v3400 = vlaneseq
        %v3401 = vshrl.u32 %v3400, 7
        %v3402 = vsub.s32 4, %v3401
        %v3403 = vrot.slane %v1879, %v3402
        %v3404 = vlaneseq
        %v3405 = vshrl.u32 %v3404, 7
        %v3406 = vsub.s32 4, %v3405
        %v3407 = vrot.slane %v1880, %v3406
        %v3408 = vlaneseq
        %v3409 = vshrl.u32 %v3408, 7
        %v3410 = vsub.s32 4, %v3409
        %v3411 = vrot.slane %v1881, %v3410
        %v3412 = vlaneseq
        %v3413 = vshrl.u32 %v3412, 7
        %v3414 = vsub.s32 4, %v3413
        %v3415 = vrot.slane %v1882, %v3414
        %v3416 = vlaneseq
        %v3417 = vshrl.u32 %v3416, 7
        %v3418 = vsub.s32 4, %v3417
        %v3419 = vrot.slane %v1883, %v3418
        %v3420 = vmul.f32 %v3166, %v3295
        %v3421 = vmul.f32 %v3170, %v3299
        %v3422 = vmul.f32 %v3174, %v3303
        %v3423 = vmul.f32 %v3178, %v3307
        %v3424 = vmul.f32 %v3182, %v3311
        %v3425 = vmul.f32 %v3186, %v3315
        %v3426 = vmul.f32 %v3190, %v3319
        %v3427 = vmul.f32 %v3194, %v3323
        %v3428 = vmul.f32 %v3198, %v3327
        %v3429 = vmul.f32 %v3202, %v3331
        %v3430 = vmul.f32 %v3206, %v3335
        %v3431 = vmul.f32 %v3210, %v3339
        %v3432 = vmul.f32 %v3214, %v3343
        %v3433 = vmul.f32 %v3218, %v3347
        %v3434 = vmul.f32 %v3222, %v3351
        %v3435 = vmul.f32 %v3226, %v3355
        %v3436 = vmul.f32 %v3230, %v3359
        %v3437 = vmul.f32 %v3234, %v3363
        %v3438 = vmul.f32 %v3238, %v3367
        %v3439 = vmul.f32 %v3242, %v3371
        %v3440 = vmul.f32 %v3246, %v3375
        %v3441 = vmul.f32 %v3250, %v3379
        %v3442 = vmul.f32 %v3254, %v3383
        %v3443 = vmul.f32 %v3258, %v3387
        %v3444 = vmul.f32 %v3262, %v3391
        %v3445 = vmul.f32 %v3266, %v3395
        %v3446 = vmul.f32 %v3270, %v3399
        %v3447 = vmul.f32 %v3274, %v3403
        %v3448 = vmul.f32 %v3278, %v3407
        %v3449 = vmul.f32 %v3282, %v3411
        %v3450 = vmul.f32 %v3286, %v3415
        %v3451 = vmul.f32 %v3290, %v3419
        %v3452 = vadd.f32 %v3132, %v3420
        %v3453 = vadd.f32 %v3133, %v3421
        %v3454 = vadd.f32 %v3134, %v3422
        %v3455 = vadd.f32 %v3135, %v3423
        %v3456 = vadd.f32 %v3136, %v3424
        %v3457 = vadd.f32 %v3137, %v3425
        %v3458 = vadd.f32 %v3138, %v3426
        %v3459 = vadd.f32 %v3139, %v3427
        %v3460 = vadd.f32 %v3140, %v3428
        %v3461 = vadd.f32 %v3141, %v3429
        %v3462 = vadd.f32 %v3142, %v3430
        %v3463 = vadd.f32 %v3143, %v3431
        %v3464 = vadd.f32 %v3144, %v3432
        %v3465 = vadd.f32 %v3145, %v3433
        %v3466 = vadd.f32 %v3146, %v3434
        %v3467 = vadd.f32 %v3147, %v3435
        %v3468 = vadd.f32 %v3148, %v3436
        %v3469 = vadd.f32 %v3149, %v3437
        %v3470 = vadd.f32 %v3150, %v3438
        %v3471 = vadd.f32 %v3151, %v3439
        %v3472 = vadd.f32 %v3152, %v3440
        %v3473 = vadd.f32 %v3153, %v3441
        %v3474 = vadd.f32 %v3154, %v3442
        %v3475 = vadd.f32 %v3155, %v3443
        %v3476 = vadd.f32 %v3156, %v3444
        %v3477 = vadd.f32 %v3157, %v3445
        %v3478 = vadd.f32 %v3158, %v3446
        %v3479 = vadd.f32 %v3159, %v3447
        %v3480 = vadd.f32 %v3160, %v3448
        %v3481 = vadd.f32 %v3161, %v3449
        %v3482 = vadd.f32 %v3162, %v3450
        %v3483 = vadd.f32 %v3163, %v3451
        %3484 = vset.pattern.permute.xlu0 5
        %3485 = vperm.xlu0 %3484, %v218
        %v3486 = vpop.permute.xlu0 %3485
        %3488 = vset.pattern.permute.xlu0 5
        %3489 = vperm.xlu0 %3488, %v219
        %v3490 = vpop.permute.xlu0 %3489
        %3492 = vset.pattern.permute.xlu0 5
        %3493 = vperm.xlu0 %3492, %v220
        %v3494 = vpop.permute.xlu0 %3493
        %3496 = vset.pattern.permute.xlu0 5
        %3497 = vperm.xlu0 %3496, %v221
        %v3498 = vpop.permute.xlu0 %3497
        %3500 = vset.pattern.permute.xlu0 5
        %3501 = vperm.xlu0 %3500, %v222
        %v3502 = vpop.permute.xlu0 %3501
        %3504 = vset.pattern.permute.xlu0 5
        %3505 = vperm.xlu0 %3504, %v223
        %v3506 = vpop.permute.xlu0 %3505
        %3508 = vset.pattern.permute.xlu0 5
        %3509 = vperm.xlu0 %3508, %v224
        %v3510 = vpop.permute.xlu0 %3509
        %3512 = vset.pattern.permute.xlu0 5
        %3513 = vperm.xlu0 %3512, %v225
        %v3514 = vpop.permute.xlu0 %3513
        %3516 = vset.pattern.permute.xlu0 5
        %3517 = vperm.xlu0 %3516, %v226
        %v3518 = vpop.permute.xlu0 %3517
        %3520 = vset.pattern.permute.xlu0 5
        %3521 = vperm.xlu0 %3520, %v227
        %v3522 = vpop.permute.xlu0 %3521
        %3524 = vset.pattern.permute.xlu0 5
        %3525 = vperm.xlu0 %3524, %v228
        %v3526 = vpop.permute.xlu0 %3525
        %3528 = vset.pattern.permute.xlu0 5
        %3529 = vperm.xlu0 %3528, %v229
        %v3530 = vpop.permute.xlu0 %3529
        %3532 = vset.pattern.permute.xlu0 5
        %3533 = vperm.xlu0 %3532, %v230
        %v3534 = vpop.permute.xlu0 %3533
        %3536 = vset.pattern.permute.xlu0 5
        %3537 = vperm.xlu0 %3536, %v231
        %v3538 = vpop.permute.xlu0 %3537
        %3540 = vset.pattern.permute.xlu0 5
        %3541 = vperm.xlu0 %3540, %v232
        %v3542 = vpop.permute.xlu0 %3541
        %3544 = vset.pattern.permute.xlu0 5
        %3545 = vperm.xlu0 %3544, %v233
        %v3546 = vpop.permute.xlu0 %3545
        %3548 = vset.pattern.permute.xlu0 5
        %3549 = vperm.xlu0 %3548, %v234
        %v3550 = vpop.permute.xlu0 %3549
        %3552 = vset.pattern.permute.xlu0 5
        %3553 = vperm.xlu0 %3552, %v235
        %v3554 = vpop.permute.xlu0 %3553
        %3556 = vset.pattern.permute.xlu0 5
        %3557 = vperm.xlu0 %3556, %v236
        %v3558 = vpop.permute.xlu0 %3557
        %3560 = vset.pattern.permute.xlu0 5
        %3561 = vperm.xlu0 %3560, %v237
        %v3562 = vpop.permute.xlu0 %3561
        %3564 = vset.pattern.permute.xlu0 5
        %3565 = vperm.xlu0 %3564, %v238
        %v3566 = vpop.permute.xlu0 %3565
        %3568 = vset.pattern.permute.xlu0 5
        %3569 = vperm.xlu0 %3568, %v239
        %v3570 = vpop.permute.xlu0 %3569
        %3572 = vset.pattern.permute.xlu0 5
        %3573 = vperm.xlu0 %3572, %v240
        %v3574 = vpop.permute.xlu0 %3573
        %3576 = vset.pattern.permute.xlu0 5
        %3577 = vperm.xlu0 %3576, %v241
        %v3578 = vpop.permute.xlu0 %3577
        %3580 = vset.pattern.permute.xlu0 5
        %3581 = vperm.xlu0 %3580, %v242
        %v3582 = vpop.permute.xlu0 %3581
        %3584 = vset.pattern.permute.xlu0 5
        %3585 = vperm.xlu0 %3584, %v243
        %v3586 = vpop.permute.xlu0 %3585
        %3588 = vset.pattern.permute.xlu0 5
        %3589 = vperm.xlu0 %3588, %v244
        %v3590 = vpop.permute.xlu0 %3589
        %3592 = vset.pattern.permute.xlu0 5
        %3593 = vperm.xlu0 %3592, %v245
        %v3594 = vpop.permute.xlu0 %3593
        %3596 = vset.pattern.permute.xlu0 5
        %3597 = vperm.xlu0 %3596, %v246
        %v3598 = vpop.permute.xlu0 %3597
        %3600 = vset.pattern.permute.xlu0 5
        %3601 = vperm.xlu0 %3600, %v247
        %v3602 = vpop.permute.xlu0 %3601
        %3604 = vset.pattern.permute.xlu0 5
        %3605 = vperm.xlu0 %3604, %v248
        %v3606 = vpop.permute.xlu0 %3605
        %3608 = vset.pattern.permute.xlu0 5
        %3609 = vperm.xlu0 %3608, %v249
        %v3610 = vpop.permute.xlu0 %3609
        %v3612 = vlaneseq
        %v3613 = vshrl.u32 %v3612, 7
        %v3614 = vsub.s32 5, %v3613
        %v3615 = vrot.slane %v1852, %v3614
        %v3616 = vlaneseq
        %v3617 = vshrl.u32 %v3616, 7
        %v3618 = vsub.s32 5, %v3617
        %v3619 = vrot.slane %v1853, %v3618
        %v3620 = vlaneseq
        %v3621 = vshrl.u32 %v3620, 7
        %v3622 = vsub.s32 5, %v3621
        %v3623 = vrot.slane %v1854, %v3622
        %v3624 = vlaneseq
        %v3625 = vshrl.u32 %v3624, 7
        %v3626 = vsub.s32 5, %v3625
        %v3627 = vrot.slane %v1855, %v3626
        %v3628 = vlaneseq
        %v3629 = vshrl.u32 %v3628, 7
        %v3630 = vsub.s32 5, %v3629
        %v3631 = vrot.slane %v1856, %v3630
        %v3632 = vlaneseq
        %v3633 = vshrl.u32 %v3632, 7
        %v3634 = vsub.s32 5, %v3633
        %v3635 = vrot.slane %v1857, %v3634
        %v3636 = vlaneseq
        %v3637 = vshrl.u32 %v3636, 7
        %v3638 = vsub.s32 5, %v3637
        %v3639 = vrot.slane %v1858, %v3638
        %v3640 = vlaneseq
        %v3641 = vshrl.u32 %v3640, 7
        %v3642 = vsub.s32 5, %v3641
        %v3643 = vrot.slane %v1859, %v3642
        %v3644 = vlaneseq
        %v3645 = vshrl.u32 %v3644, 7
        %v3646 = vsub.s32 5, %v3645
        %v3647 = vrot.slane %v1860, %v3646
        %v3648 = vlaneseq
        %v3649 = vshrl.u32 %v3648, 7
        %v3650 = vsub.s32 5, %v3649
        %v3651 = vrot.slane %v1861, %v3650
        %v3652 = vlaneseq
        %v3653 = vshrl.u32 %v3652, 7
        %v3654 = vsub.s32 5, %v3653
        %v3655 = vrot.slane %v1862, %v3654
        %v3656 = vlaneseq
        %v3657 = vshrl.u32 %v3656, 7
        %v3658 = vsub.s32 5, %v3657
        %v3659 = vrot.slane %v1863, %v3658
        %v3660 = vlaneseq
        %v3661 = vshrl.u32 %v3660, 7
        %v3662 = vsub.s32 5, %v3661
        %v3663 = vrot.slane %v1864, %v3662
        %v3664 = vlaneseq
        %v3665 = vshrl.u32 %v3664, 7
        %v3666 = vsub.s32 5, %v3665
        %v3667 = vrot.slane %v1865, %v3666
        %v3668 = vlaneseq
        %v3669 = vshrl.u32 %v3668, 7
        %v3670 = vsub.s32 5, %v3669
        %v3671 = vrot.slane %v1866, %v3670
        %v3672 = vlaneseq
        %v3673 = vshrl.u32 %v3672, 7
        %v3674 = vsub.s32 5, %v3673
        %v3675 = vrot.slane %v1867, %v3674
        %v3676 = vlaneseq
        %v3677 = vshrl.u32 %v3676, 7
        %v3678 = vsub.s32 5, %v3677
        %v3679 = vrot.slane %v1868, %v3678
        %v3680 = vlaneseq
        %v3681 = vshrl.u32 %v3680, 7
        %v3682 = vsub.s32 5, %v3681
        %v3683 = vrot.slane %v1869, %v3682
        %v3684 = vlaneseq
        %v3685 = vshrl.u32 %v3684, 7
        %v3686 = vsub.s32 5, %v3685
        %v3687 = vrot.slane %v1870, %v3686
        %v3688 = vlaneseq
        %v3689 = vshrl.u32 %v3688, 7
        %v3690 = vsub.s32 5, %v3689
        %v3691 = vrot.slane %v1871, %v3690
        %v3692 = vlaneseq
        %v3693 = vshrl.u32 %v3692, 7
        %v3694 = vsub.s32 5, %v3693
        %v3695 = vrot.slane %v1872, %v3694
        %v3696 = vlaneseq
        %v3697 = vshrl.u32 %v3696, 7
        %v3698 = vsub.s32 5, %v3697
        %v3699 = vrot.slane %v1873, %v3698
        %v3700 = vlaneseq
        %v3701 = vshrl.u32 %v3700, 7
        %v3702 = vsub.s32 5, %v3701
        %v3703 = vrot.slane %v1874, %v3702
        %v3704 = vlaneseq
        %v3705 = vshrl.u32 %v3704, 7
        %v3706 = vsub.s32 5, %v3705
        %v3707 = vrot.slane %v1875, %v3706
        %v3708 = vlaneseq
        %v3709 = vshrl.u32 %v3708, 7
        %v3710 = vsub.s32 5, %v3709
        %v3711 = vrot.slane %v1876, %v3710
        %v3712 = vlaneseq
        %v3713 = vshrl.u32 %v3712, 7
        %v3714 = vsub.s32 5, %v3713
        %v3715 = vrot.slane %v1877, %v3714
        %v3716 = vlaneseq
        %v3717 = vshrl.u32 %v3716, 7
        %v3718 = vsub.s32 5, %v3717
        %v3719 = vrot.slane %v1878, %v3718
        %v3720 = vlaneseq
        %v3721 = vshrl.u32 %v3720, 7
        %v3722 = vsub.s32 5, %v3721
        %v3723 = vrot.slane %v1879, %v3722
        %v3724 = vlaneseq
        %v3725 = vshrl.u32 %v3724, 7
        %v3726 = vsub.s32 5, %v3725
        %v3727 = vrot.slane %v1880, %v3726
        %v3728 = vlaneseq
        %v3729 = vshrl.u32 %v3728, 7
        %v3730 = vsub.s32 5, %v3729
        %v3731 = vrot.slane %v1881, %v3730
        %v3732 = vlaneseq
        %v3733 = vshrl.u32 %v3732, 7
        %v3734 = vsub.s32 5, %v3733
        %v3735 = vrot.slane %v1882, %v3734
        %v3736 = vlaneseq
        %v3737 = vshrl.u32 %v3736, 7
        %v3738 = vsub.s32 5, %v3737
        %v3739 = vrot.slane %v1883, %v3738
        %v3740 = vmul.f32 %v3486, %v3615
        %v3741 = vmul.f32 %v3490, %v3619
        %v3742 = vmul.f32 %v3494, %v3623
        %v3743 = vmul.f32 %v3498, %v3627
        %v3744 = vmul.f32 %v3502, %v3631
        %v3745 = vmul.f32 %v3506, %v3635
        %v3746 = vmul.f32 %v3510, %v3639
        %v3747 = vmul.f32 %v3514, %v3643
        %v3748 = vmul.f32 %v3518, %v3647
        %v3749 = vmul.f32 %v3522, %v3651
        %v3750 = vmul.f32 %v3526, %v3655
        %v3751 = vmul.f32 %v3530, %v3659
        %v3752 = vmul.f32 %v3534, %v3663
        %v3753 = vmul.f32 %v3538, %v3667
        %v3754 = vmul.f32 %v3542, %v3671
        %v3755 = vmul.f32 %v3546, %v3675
        %v3756 = vmul.f32 %v3550, %v3679
        %v3757 = vmul.f32 %v3554, %v3683
        %v3758 = vmul.f32 %v3558, %v3687
        %v3759 = vmul.f32 %v3562, %v3691
        %v3760 = vmul.f32 %v3566, %v3695
        %v3761 = vmul.f32 %v3570, %v3699
        %v3762 = vmul.f32 %v3574, %v3703
        %v3763 = vmul.f32 %v3578, %v3707
        %v3764 = vmul.f32 %v3582, %v3711
        %v3765 = vmul.f32 %v3586, %v3715
        %v3766 = vmul.f32 %v3590, %v3719
        %v3767 = vmul.f32 %v3594, %v3723
        %v3768 = vmul.f32 %v3598, %v3727
        %v3769 = vmul.f32 %v3602, %v3731
        %v3770 = vmul.f32 %v3606, %v3735
        %v3771 = vmul.f32 %v3610, %v3739
        %v3772 = vadd.f32 %v3452, %v3740
        %v3773 = vadd.f32 %v3453, %v3741
        %v3774 = vadd.f32 %v3454, %v3742
        %v3775 = vadd.f32 %v3455, %v3743
        %v3776 = vadd.f32 %v3456, %v3744
        %v3777 = vadd.f32 %v3457, %v3745
        %v3778 = vadd.f32 %v3458, %v3746
        %v3779 = vadd.f32 %v3459, %v3747
        %v3780 = vadd.f32 %v3460, %v3748
        %v3781 = vadd.f32 %v3461, %v3749
        %v3782 = vadd.f32 %v3462, %v3750
        %v3783 = vadd.f32 %v3463, %v3751
        %v3784 = vadd.f32 %v3464, %v3752
        %v3785 = vadd.f32 %v3465, %v3753
        %v3786 = vadd.f32 %v3466, %v3754
        %v3787 = vadd.f32 %v3467, %v3755
        %v3788 = vadd.f32 %v3468, %v3756
        %v3789 = vadd.f32 %v3469, %v3757
        %v3790 = vadd.f32 %v3470, %v3758
        %v3791 = vadd.f32 %v3471, %v3759
        %v3792 = vadd.f32 %v3472, %v3760
        %v3793 = vadd.f32 %v3473, %v3761
        %v3794 = vadd.f32 %v3474, %v3762
        %v3795 = vadd.f32 %v3475, %v3763
        %v3796 = vadd.f32 %v3476, %v3764
        %v3797 = vadd.f32 %v3477, %v3765
        %v3798 = vadd.f32 %v3478, %v3766
        %v3799 = vadd.f32 %v3479, %v3767
        %v3800 = vadd.f32 %v3480, %v3768
        %v3801 = vadd.f32 %v3481, %v3769
        %v3802 = vadd.f32 %v3482, %v3770
        %v3803 = vadd.f32 %v3483, %v3771
        %3804 = vset.pattern.permute.xlu0 6
        %3805 = vperm.xlu0 %3804, %v218
        %v3806 = vpop.permute.xlu0 %3805
        %3808 = vset.pattern.permute.xlu0 6
        %3809 = vperm.xlu0 %3808, %v219
        %v3810 = vpop.permute.xlu0 %3809
        %3812 = vset.pattern.permute.xlu0 6
        %3813 = vperm.xlu0 %3812, %v220
        %v3814 = vpop.permute.xlu0 %3813
        %3816 = vset.pattern.permute.xlu0 6
        %3817 = vperm.xlu0 %3816, %v221
        %v3818 = vpop.permute.xlu0 %3817
        %3820 = vset.pattern.permute.xlu0 6
        %3821 = vperm.xlu0 %3820, %v222
        %v3822 = vpop.permute.xlu0 %3821
        %3824 = vset.pattern.permute.xlu0 6
        %3825 = vperm.xlu0 %3824, %v223
        %v3826 = vpop.permute.xlu0 %3825
        %3828 = vset.pattern.permute.xlu0 6
        %3829 = vperm.xlu0 %3828, %v224
        %v3830 = vpop.permute.xlu0 %3829
        %3832 = vset.pattern.permute.xlu0 6
        %3833 = vperm.xlu0 %3832, %v225
        %v3834 = vpop.permute.xlu0 %3833
        %3836 = vset.pattern.permute.xlu0 6
        %3837 = vperm.xlu0 %3836, %v226
        %v3838 = vpop.permute.xlu0 %3837
        %3840 = vset.pattern.permute.xlu0 6
        %3841 = vperm.xlu0 %3840, %v227
        %v3842 = vpop.permute.xlu0 %3841
        %3844 = vset.pattern.permute.xlu0 6
        %3845 = vperm.xlu0 %3844, %v228
        %v3846 = vpop.permute.xlu0 %3845
        %3848 = vset.pattern.permute.xlu0 6
        %3849 = vperm.xlu0 %3848, %v229
        %v3850 = vpop.permute.xlu0 %3849
        %3852 = vset.pattern.permute.xlu0 6
        %3853 = vperm.xlu0 %3852, %v230
        %v3854 = vpop.permute.xlu0 %3853
        %3856 = vset.pattern.permute.xlu0 6
        %3857 = vperm.xlu0 %3856, %v231
        %v3858 = vpop.permute.xlu0 %3857
        %3860 = vset.pattern.permute.xlu0 6
        %3861 = vperm.xlu0 %3860, %v232
        %v3862 = vpop.permute.xlu0 %3861
        %3864 = vset.pattern.permute.xlu0 6
        %3865 = vperm.xlu0 %3864, %v233
        %v3866 = vpop.permute.xlu0 %3865
        %3868 = vset.pattern.permute.xlu0 6
        %3869 = vperm.xlu0 %3868, %v234
        %v3870 = vpop.permute.xlu0 %3869
        %3872 = vset.pattern.permute.xlu0 6
        %3873 = vperm.xlu0 %3872, %v235
        %v3874 = vpop.permute.xlu0 %3873
        %3876 = vset.pattern.permute.xlu0 6
        %3877 = vperm.xlu0 %3876, %v236
        %v3878 = vpop.permute.xlu0 %3877
        %3880 = vset.pattern.permute.xlu0 6
        %3881 = vperm.xlu0 %3880, %v237
        %v3882 = vpop.permute.xlu0 %3881
        %3884 = vset.pattern.permute.xlu0 6
        %3885 = vperm.xlu0 %3884, %v238
        %v3886 = vpop.permute.xlu0 %3885
        %3888 = vset.pattern.permute.xlu0 6
        %3889 = vperm.xlu0 %3888, %v239
        %v3890 = vpop.permute.xlu0 %3889
        %3892 = vset.pattern.permute.xlu0 6
        %3893 = vperm.xlu0 %3892, %v240
        %v3894 = vpop.permute.xlu0 %3893
        %3896 = vset.pattern.permute.xlu0 6
        %3897 = vperm.xlu0 %3896, %v241
        %v3898 = vpop.permute.xlu0 %3897
        %3900 = vset.pattern.permute.xlu0 6
        %3901 = vperm.xlu0 %3900, %v242
        %v3902 = vpop.permute.xlu0 %3901
        %3904 = vset.pattern.permute.xlu0 6
        %3905 = vperm.xlu0 %3904, %v243
        %v3906 = vpop.permute.xlu0 %3905
        %3908 = vset.pattern.permute.xlu0 6
        %3909 = vperm.xlu0 %3908, %v244
        %v3910 = vpop.permute.xlu0 %3909
        %3912 = vset.pattern.permute.xlu0 6
        %3913 = vperm.xlu0 %3912, %v245
        %v3914 = vpop.permute.xlu0 %3913
        %3916 = vset.pattern.permute.xlu0 6
        %3917 = vperm.xlu0 %3916, %v246
        %v3918 = vpop.permute.xlu0 %3917
        %3920 = vset.pattern.permute.xlu0 6
        %3921 = vperm.xlu0 %3920, %v247
        %v3922 = vpop.permute.xlu0 %3921
        %3924 = vset.pattern.permute.xlu0 6
        %3925 = vperm.xlu0 %3924, %v248
        %v3926 = vpop.permute.xlu0 %3925
        %3928 = vset.pattern.permute.xlu0 6
        %3929 = vperm.xlu0 %3928, %v249
        %v3930 = vpop.permute.xlu0 %3929
        %v3932 = vlaneseq
        %v3933 = vshrl.u32 %v3932, 7
        %v3934 = vsub.s32 6, %v3933
        %v3935 = vrot.slane %v1852, %v3934
        %v3936 = vlaneseq
        %v3937 = vshrl.u32 %v3936, 7
        %v3938 = vsub.s32 6, %v3937
        %v3939 = vrot.slane %v1853, %v3938
        %v3940 = vlaneseq
        %v3941 = vshrl.u32 %v3940, 7
        %v3942 = vsub.s32 6, %v3941
        %v3943 = vrot.slane %v1854, %v3942
        %v3944 = vlaneseq
        %v3945 = vshrl.u32 %v3944, 7
        %v3946 = vsub.s32 6, %v3945
        %v3947 = vrot.slane %v1855, %v3946
        %v3948 = vlaneseq
        %v3949 = vshrl.u32 %v3948, 7
        %v3950 = vsub.s32 6, %v3949
        %v3951 = vrot.slane %v1856, %v3950
        %v3952 = vlaneseq
        %v3953 = vshrl.u32 %v3952, 7
        %v3954 = vsub.s32 6, %v3953
        %v3955 = vrot.slane %v1857, %v3954
        %v3956 = vlaneseq
        %v3957 = vshrl.u32 %v3956, 7
        %v3958 = vsub.s32 6, %v3957
        %v3959 = vrot.slane %v1858, %v3958
        %v3960 = vlaneseq
        %v3961 = vshrl.u32 %v3960, 7
        %v3962 = vsub.s32 6, %v3961
        %v3963 = vrot.slane %v1859, %v3962
        %v3964 = vlaneseq
        %v3965 = vshrl.u32 %v3964, 7
        %v3966 = vsub.s32 6, %v3965
        %v3967 = vrot.slane %v1860, %v3966
        %v3968 = vlaneseq
        %v3969 = vshrl.u32 %v3968, 7
        %v3970 = vsub.s32 6, %v3969
        %v3971 = vrot.slane %v1861, %v3970
        %v3972 = vlaneseq
        %v3973 = vshrl.u32 %v3972, 7
        %v3974 = vsub.s32 6, %v3973
        %v3975 = vrot.slane %v1862, %v3974
        %v3976 = vlaneseq
        %v3977 = vshrl.u32 %v3976, 7
        %v3978 = vsub.s32 6, %v3977
        %v3979 = vrot.slane %v1863, %v3978
        %v3980 = vlaneseq
        %v3981 = vshrl.u32 %v3980, 7
        %v3982 = vsub.s32 6, %v3981
        %v3983 = vrot.slane %v1864, %v3982
        %v3984 = vlaneseq
        %v3985 = vshrl.u32 %v3984, 7
        %v3986 = vsub.s32 6, %v3985
        %v3987 = vrot.slane %v1865, %v3986
        %v3988 = vlaneseq
        %v3989 = vshrl.u32 %v3988, 7
        %v3990 = vsub.s32 6, %v3989
        %v3991 = vrot.slane %v1866, %v3990
        %v3992 = vlaneseq
        %v3993 = vshrl.u32 %v3992, 7
        %v3994 = vsub.s32 6, %v3993
        %v3995 = vrot.slane %v1867, %v3994
        %v3996 = vlaneseq
        %v3997 = vshrl.u32 %v3996, 7
        %v3998 = vsub.s32 6, %v3997
        %v3999 = vrot.slane %v1868, %v3998
        %v4000 = vlaneseq
        %v4001 = vshrl.u32 %v4000, 7
        %v4002 = vsub.s32 6, %v4001
        %v4003 = vrot.slane %v1869, %v4002
        %v4004 = vlaneseq
        %v4005 = vshrl.u32 %v4004, 7
        %v4006 = vsub.s32 6, %v4005
        %v4007 = vrot.slane %v1870, %v4006
        %v4008 = vlaneseq
        %v4009 = vshrl.u32 %v4008, 7
        %v4010 = vsub.s32 6, %v4009
        %v4011 = vrot.slane %v1871, %v4010
        %v4012 = vlaneseq
        %v4013 = vshrl.u32 %v4012, 7
        %v4014 = vsub.s32 6, %v4013
        %v4015 = vrot.slane %v1872, %v4014
        %v4016 = vlaneseq
        %v4017 = vshrl.u32 %v4016, 7
        %v4018 = vsub.s32 6, %v4017
        %v4019 = vrot.slane %v1873, %v4018
        %v4020 = vlaneseq
        %v4021 = vshrl.u32 %v4020, 7
        %v4022 = vsub.s32 6, %v4021
        %v4023 = vrot.slane %v1874, %v4022
        %v4024 = vlaneseq
        %v4025 = vshrl.u32 %v4024, 7
        %v4026 = vsub.s32 6, %v4025
        %v4027 = vrot.slane %v1875, %v4026
        %v4028 = vlaneseq
        %v4029 = vshrl.u32 %v4028, 7
        %v4030 = vsub.s32 6, %v4029
        %v4031 = vrot.slane %v1876, %v4030
        %v4032 = vlaneseq
        %v4033 = vshrl.u32 %v4032, 7
        %v4034 = vsub.s32 6, %v4033
        %v4035 = vrot.slane %v1877, %v4034
        %v4036 = vlaneseq
        %v4037 = vshrl.u32 %v4036, 7
        %v4038 = vsub.s32 6, %v4037
        %v4039 = vrot.slane %v1878, %v4038
        %v4040 = vlaneseq
        %v4041 = vshrl.u32 %v4040, 7
        %v4042 = vsub.s32 6, %v4041
        %v4043 = vrot.slane %v1879, %v4042
        %v4044 = vlaneseq
        %v4045 = vshrl.u32 %v4044, 7
        %v4046 = vsub.s32 6, %v4045
        %v4047 = vrot.slane %v1880, %v4046
        %v4048 = vlaneseq
        %v4049 = vshrl.u32 %v4048, 7
        %v4050 = vsub.s32 6, %v4049
        %v4051 = vrot.slane %v1881, %v4050
        %v4052 = vlaneseq
        %v4053 = vshrl.u32 %v4052, 7
        %v4054 = vsub.s32 6, %v4053
        %v4055 = vrot.slane %v1882, %v4054
        %v4056 = vlaneseq
        %v4057 = vshrl.u32 %v4056, 7
        %v4058 = vsub.s32 6, %v4057
        %v4059 = vrot.slane %v1883, %v4058
        %v4060 = vmul.f32 %v3806, %v3935
        %v4061 = vmul.f32 %v3810, %v3939
        %v4062 = vmul.f32 %v3814, %v3943
        %v4063 = vmul.f32 %v3818, %v3947
        %v4064 = vmul.f32 %v3822, %v3951
        %v4065 = vmul.f32 %v3826, %v3955
        %v4066 = vmul.f32 %v3830, %v3959
        %v4067 = vmul.f32 %v3834, %v3963
        %v4068 = vmul.f32 %v3838, %v3967
        %v4069 = vmul.f32 %v3842, %v3971
        %v4070 = vmul.f32 %v3846, %v3975
        %v4071 = vmul.f32 %v3850, %v3979
        %v4072 = vmul.f32 %v3854, %v3983
        %v4073 = vmul.f32 %v3858, %v3987
        %v4074 = vmul.f32 %v3862, %v3991
        %v4075 = vmul.f32 %v3866, %v3995
        %v4076 = vmul.f32 %v3870, %v3999
        %v4077 = vmul.f32 %v3874, %v4003
        %v4078 = vmul.f32 %v3878, %v4007
        %v4079 = vmul.f32 %v3882, %v4011
        %v4080 = vmul.f32 %v3886, %v4015
        %v4081 = vmul.f32 %v3890, %v4019
        %v4082 = vmul.f32 %v3894, %v4023
        %v4083 = vmul.f32 %v3898, %v4027
        %v4084 = vmul.f32 %v3902, %v4031
        %v4085 = vmul.f32 %v3906, %v4035
        %v4086 = vmul.f32 %v3910, %v4039
        %v4087 = vmul.f32 %v3914, %v4043
        %v4088 = vmul.f32 %v3918, %v4047
        %v4089 = vmul.f32 %v3922, %v4051
        %v4090 = vmul.f32 %v3926, %v4055
        %v4091 = vmul.f32 %v3930, %v4059
        %v4092 = vadd.f32 %v3772, %v4060
        %v4093 = vadd.f32 %v3773, %v4061
        %v4094 = vadd.f32 %v3774, %v4062
        %v4095 = vadd.f32 %v3775, %v4063
        %v4096 = vadd.f32 %v3776, %v4064
        %v4097 = vadd.f32 %v3777, %v4065
        %v4098 = vadd.f32 %v3778, %v4066
        %v4099 = vadd.f32 %v3779, %v4067
        %v4100 = vadd.f32 %v3780, %v4068
        %v4101 = vadd.f32 %v3781, %v4069
        %v4102 = vadd.f32 %v3782, %v4070
        %v4103 = vadd.f32 %v3783, %v4071
        %v4104 = vadd.f32 %v3784, %v4072
        %v4105 = vadd.f32 %v3785, %v4073
        %v4106 = vadd.f32 %v3786, %v4074
        %v4107 = vadd.f32 %v3787, %v4075
        %v4108 = vadd.f32 %v3788, %v4076
        %v4109 = vadd.f32 %v3789, %v4077
        %v4110 = vadd.f32 %v3790, %v4078
        %v4111 = vadd.f32 %v3791, %v4079
        %v4112 = vadd.f32 %v3792, %v4080
        %v4113 = vadd.f32 %v3793, %v4081
        %v4114 = vadd.f32 %v3794, %v4082
        %v4115 = vadd.f32 %v3795, %v4083
        %v4116 = vadd.f32 %v3796, %v4084
        %v4117 = vadd.f32 %v3797, %v4085
        %v4118 = vadd.f32 %v3798, %v4086
        %v4119 = vadd.f32 %v3799, %v4087
        %v4120 = vadd.f32 %v3800, %v4088
        %v4121 = vadd.f32 %v3801, %v4089
        %v4122 = vadd.f32 %v3802, %v4090
        %v4123 = vadd.f32 %v3803, %v4091
        %4124 = vset.pattern.permute.xlu0 7
        %4125 = vperm.xlu0 %4124, %v218
        %v4126 = vpop.permute.xlu0 %4125
        %4128 = vset.pattern.permute.xlu0 7
        %4129 = vperm.xlu0 %4128, %v219
        %v4130 = vpop.permute.xlu0 %4129
        %4132 = vset.pattern.permute.xlu0 7
        %4133 = vperm.xlu0 %4132, %v220
        %v4134 = vpop.permute.xlu0 %4133
        %4136 = vset.pattern.permute.xlu0 7
        %4137 = vperm.xlu0 %4136, %v221
        %v4138 = vpop.permute.xlu0 %4137
        %4140 = vset.pattern.permute.xlu0 7
        %4141 = vperm.xlu0 %4140, %v222
        %v4142 = vpop.permute.xlu0 %4141
        %4144 = vset.pattern.permute.xlu0 7
        %4145 = vperm.xlu0 %4144, %v223
        %v4146 = vpop.permute.xlu0 %4145
        %4148 = vset.pattern.permute.xlu0 7
        %4149 = vperm.xlu0 %4148, %v224
        %v4150 = vpop.permute.xlu0 %4149
        %4152 = vset.pattern.permute.xlu0 7
        %4153 = vperm.xlu0 %4152, %v225
        %v4154 = vpop.permute.xlu0 %4153
        %4156 = vset.pattern.permute.xlu0 7
        %4157 = vperm.xlu0 %4156, %v226
        %v4158 = vpop.permute.xlu0 %4157
        %4160 = vset.pattern.permute.xlu0 7
        %4161 = vperm.xlu0 %4160, %v227
        %v4162 = vpop.permute.xlu0 %4161
        %4164 = vset.pattern.permute.xlu0 7
        %4165 = vperm.xlu0 %4164, %v228
        %v4166 = vpop.permute.xlu0 %4165
        %4168 = vset.pattern.permute.xlu0 7
        %4169 = vperm.xlu0 %4168, %v229
        %v4170 = vpop.permute.xlu0 %4169
        %4172 = vset.pattern.permute.xlu0 7
        %4173 = vperm.xlu0 %4172, %v230
        %v4174 = vpop.permute.xlu0 %4173
        %4176 = vset.pattern.permute.xlu0 7
        %4177 = vperm.xlu0 %4176, %v231
        %v4178 = vpop.permute.xlu0 %4177
        %4180 = vset.pattern.permute.xlu0 7
        %4181 = vperm.xlu0 %4180, %v232
        %v4182 = vpop.permute.xlu0 %4181
        %4184 = vset.pattern.permute.xlu0 7
        %4185 = vperm.xlu0 %4184, %v233
        %v4186 = vpop.permute.xlu0 %4185
        %4188 = vset.pattern.permute.xlu0 7
        %4189 = vperm.xlu0 %4188, %v234
        %v4190 = vpop.permute.xlu0 %4189
        %4192 = vset.pattern.permute.xlu0 7
        %4193 = vperm.xlu0 %4192, %v235
        %v4194 = vpop.permute.xlu0 %4193
        %4196 = vset.pattern.permute.xlu0 7
        %4197 = vperm.xlu0 %4196, %v236
        %v4198 = vpop.permute.xlu0 %4197
        %4200 = vset.pattern.permute.xlu0 7
        %4201 = vperm.xlu0 %4200, %v237
        %v4202 = vpop.permute.xlu0 %4201
        %4204 = vset.pattern.permute.xlu0 7
        %4205 = vperm.xlu0 %4204, %v238
        %v4206 = vpop.permute.xlu0 %4205
        %4208 = vset.pattern.permute.xlu0 7
        %4209 = vperm.xlu0 %4208, %v239
        %v4210 = vpop.permute.xlu0 %4209
        %4212 = vset.pattern.permute.xlu0 7
        %4213 = vperm.xlu0 %4212, %v240
        %v4214 = vpop.permute.xlu0 %4213
        %4216 = vset.pattern.permute.xlu0 7
        %4217 = vperm.xlu0 %4216, %v241
        %v4218 = vpop.permute.xlu0 %4217
        %4220 = vset.pattern.permute.xlu0 7
        %4221 = vperm.xlu0 %4220, %v242
        %v4222 = vpop.permute.xlu0 %4221
        %4224 = vset.pattern.permute.xlu0 7
        %4225 = vperm.xlu0 %4224, %v243
        %v4226 = vpop.permute.xlu0 %4225
        %4228 = vset.pattern.permute.xlu0 7
        %4229 = vperm.xlu0 %4228, %v244
        %v4230 = vpop.permute.xlu0 %4229
        %4232 = vset.pattern.permute.xlu0 7
        %4233 = vperm.xlu0 %4232, %v245
        %v4234 = vpop.permute.xlu0 %4233
        %4236 = vset.pattern.permute.xlu0 7
        %4237 = vperm.xlu0 %4236, %v246
        %v4238 = vpop.permute.xlu0 %4237
        %4240 = vset.pattern.permute.xlu0 7
        %4241 = vperm.xlu0 %4240, %v247
        %v4242 = vpop.permute.xlu0 %4241
        %4244 = vset.pattern.permute.xlu0 7
        %4245 = vperm.xlu0 %4244, %v248
        %v4246 = vpop.permute.xlu0 %4245
        %4248 = vset.pattern.permute.xlu0 7
        %4249 = vperm.xlu0 %4248, %v249
        %v4250 = vpop.permute.xlu0 %4249
        %v4252 = vlaneseq
        %v4253 = vshrl.u32 %v4252, 7
        %v4254 = vsub.s32 7, %v4253
        %v4255 = vrot.slane %v1852, %v4254
        %v4256 = vlaneseq
        %v4257 = vshrl.u32 %v4256, 7
        %v4258 = vsub.s32 7, %v4257
        %v4259 = vrot.slane %v1853, %v4258
        %v4260 = vlaneseq
        %v4261 = vshrl.u32 %v4260, 7
        %v4262 = vsub.s32 7, %v4261
        %v4263 = vrot.slane %v1854, %v4262
        %v4264 = vlaneseq
        %v4265 = vshrl.u32 %v4264, 7
        %v4266 = vsub.s32 7, %v4265
        %v4267 = vrot.slane %v1855, %v4266
        %v4268 = vlaneseq
        %v4269 = vshrl.u32 %v4268, 7
        %v4270 = vsub.s32 7, %v4269
        %v4271 = vrot.slane %v1856, %v4270
        %v4272 = vlaneseq
        %v4273 = vshrl.u32 %v4272, 7
        %v4274 = vsub.s32 7, %v4273
        %v4275 = vrot.slane %v1857, %v4274
        %v4276 = vlaneseq
        %v4277 = vshrl.u32 %v4276, 7
        %v4278 = vsub.s32 7, %v4277
        %v4279 = vrot.slane %v1858, %v4278
        %v4280 = vlaneseq
        %v4281 = vshrl.u32 %v4280, 7
        %v4282 = vsub.s32 7, %v4281
        %v4283 = vrot.slane %v1859, %v4282
        %v4284 = vlaneseq
        %v4285 = vshrl.u32 %v4284, 7
        %v4286 = vsub.s32 7, %v4285
        %v4287 = vrot.slane %v1860, %v4286
        %v4288 = vlaneseq
        %v4289 = vshrl.u32 %v4288, 7
        %v4290 = vsub.s32 7, %v4289
        %v4291 = vrot.slane %v1861, %v4290
        %v4292 = vlaneseq
        %v4293 = vshrl.u32 %v4292, 7
        %v4294 = vsub.s32 7, %v4293
        %v4295 = vrot.slane %v1862, %v4294
        %v4296 = vlaneseq
        %v4297 = vshrl.u32 %v4296, 7
        %v4298 = vsub.s32 7, %v4297
        %v4299 = vrot.slane %v1863, %v4298
        %v4300 = vlaneseq
        %v4301 = vshrl.u32 %v4300, 7
        %v4302 = vsub.s32 7, %v4301
        %v4303 = vrot.slane %v1864, %v4302
        %v4304 = vlaneseq
        %v4305 = vshrl.u32 %v4304, 7
        %v4306 = vsub.s32 7, %v4305
        %v4307 = vrot.slane %v1865, %v4306
        %v4308 = vlaneseq
        %v4309 = vshrl.u32 %v4308, 7
        %v4310 = vsub.s32 7, %v4309
        %v4311 = vrot.slane %v1866, %v4310
        %v4312 = vlaneseq
        %v4313 = vshrl.u32 %v4312, 7
        %v4314 = vsub.s32 7, %v4313
        %v4315 = vrot.slane %v1867, %v4314
        %v4316 = vlaneseq
        %v4317 = vshrl.u32 %v4316, 7
        %v4318 = vsub.s32 7, %v4317
        %v4319 = vrot.slane %v1868, %v4318
        %v4320 = vlaneseq
        %v4321 = vshrl.u32 %v4320, 7
        %v4322 = vsub.s32 7, %v4321
        %v4323 = vrot.slane %v1869, %v4322
        %v4324 = vlaneseq
        %v4325 = vshrl.u32 %v4324, 7
        %v4326 = vsub.s32 7, %v4325
        %v4327 = vrot.slane %v1870, %v4326
        %v4328 = vlaneseq
        %v4329 = vshrl.u32 %v4328, 7
        %v4330 = vsub.s32 7, %v4329
        %v4331 = vrot.slane %v1871, %v4330
        %v4332 = vlaneseq
        %v4333 = vshrl.u32 %v4332, 7
        %v4334 = vsub.s32 7, %v4333
        %v4335 = vrot.slane %v1872, %v4334
        %v4336 = vlaneseq
        %v4337 = vshrl.u32 %v4336, 7
        %v4338 = vsub.s32 7, %v4337
        %v4339 = vrot.slane %v1873, %v4338
        %v4340 = vlaneseq
        %v4341 = vshrl.u32 %v4340, 7
        %v4342 = vsub.s32 7, %v4341
        %v4343 = vrot.slane %v1874, %v4342
        %v4344 = vlaneseq
        %v4345 = vshrl.u32 %v4344, 7
        %v4346 = vsub.s32 7, %v4345
        %v4347 = vrot.slane %v1875, %v4346
        %v4348 = vlaneseq
        %v4349 = vshrl.u32 %v4348, 7
        %v4350 = vsub.s32 7, %v4349
        %v4351 = vrot.slane %v1876, %v4350
        %v4352 = vlaneseq
        %v4353 = vshrl.u32 %v4352, 7
        %v4354 = vsub.s32 7, %v4353
        %v4355 = vrot.slane %v1877, %v4354
        %v4356 = vlaneseq
        %v4357 = vshrl.u32 %v4356, 7
        %v4358 = vsub.s32 7, %v4357
        %v4359 = vrot.slane %v1878, %v4358
        %v4360 = vlaneseq
        %v4361 = vshrl.u32 %v4360, 7
        %v4362 = vsub.s32 7, %v4361
        %v4363 = vrot.slane %v1879, %v4362
        %v4364 = vlaneseq
        %v4365 = vshrl.u32 %v4364, 7
        %v4366 = vsub.s32 7, %v4365
        %v4367 = vrot.slane %v1880, %v4366
        %v4368 = vlaneseq
        %v4369 = vshrl.u32 %v4368, 7
        %v4370 = vsub.s32 7, %v4369
        %v4371 = vrot.slane %v1881, %v4370
        %v4372 = vlaneseq
        %v4373 = vshrl.u32 %v4372, 7
        %v4374 = vsub.s32 7, %v4373
        %v4375 = vrot.slane %v1882, %v4374
        %v4376 = vlaneseq
        %v4377 = vshrl.u32 %v4376, 7
        %v4378 = vsub.s32 7, %v4377
        %v4379 = vrot.slane %v1883, %v4378
        %v4380 = vmul.f32 %v4126, %v4255
        %v4381 = vmul.f32 %v4130, %v4259
        %v4382 = vmul.f32 %v4134, %v4263
        %v4383 = vmul.f32 %v4138, %v4267
        %v4384 = vmul.f32 %v4142, %v4271
        %v4385 = vmul.f32 %v4146, %v4275
        %v4386 = vmul.f32 %v4150, %v4279
        %v4387 = vmul.f32 %v4154, %v4283
        %v4388 = vmul.f32 %v4158, %v4287
        %v4389 = vmul.f32 %v4162, %v4291
        %v4390 = vmul.f32 %v4166, %v4295
        %v4391 = vmul.f32 %v4170, %v4299
        %v4392 = vmul.f32 %v4174, %v4303
        %v4393 = vmul.f32 %v4178, %v4307
        %v4394 = vmul.f32 %v4182, %v4311
        %v4395 = vmul.f32 %v4186, %v4315
        %v4396 = vmul.f32 %v4190, %v4319
        %v4397 = vmul.f32 %v4194, %v4323
        %v4398 = vmul.f32 %v4198, %v4327
        %v4399 = vmul.f32 %v4202, %v4331
        %v4400 = vmul.f32 %v4206, %v4335
        %v4401 = vmul.f32 %v4210, %v4339
        %v4402 = vmul.f32 %v4214, %v4343
        %v4403 = vmul.f32 %v4218, %v4347
        %v4404 = vmul.f32 %v4222, %v4351
        %v4405 = vmul.f32 %v4226, %v4355
        %v4406 = vmul.f32 %v4230, %v4359
        %v4407 = vmul.f32 %v4234, %v4363
        %v4408 = vmul.f32 %v4238, %v4367
        %v4409 = vmul.f32 %v4242, %v4371
        %v4410 = vmul.f32 %v4246, %v4375
        %v4411 = vmul.f32 %v4250, %v4379
        %v4412 = vadd.f32 %v4092, %v4380
        %v4413 = vadd.f32 %v4093, %v4381
        %v4414 = vadd.f32 %v4094, %v4382
        %v4415 = vadd.f32 %v4095, %v4383
        %v4416 = vadd.f32 %v4096, %v4384
        %v4417 = vadd.f32 %v4097, %v4385
        %v4418 = vadd.f32 %v4098, %v4386
        %v4419 = vadd.f32 %v4099, %v4387
        %v4420 = vadd.f32 %v4100, %v4388
        %v4421 = vadd.f32 %v4101, %v4389
        %v4422 = vadd.f32 %v4102, %v4390
        %v4423 = vadd.f32 %v4103, %v4391
        %v4424 = vadd.f32 %v4104, %v4392
        %v4425 = vadd.f32 %v4105, %v4393
        %v4426 = vadd.f32 %v4106, %v4394
        %v4427 = vadd.f32 %v4107, %v4395
        %v4428 = vadd.f32 %v4108, %v4396
        %v4429 = vadd.f32 %v4109, %v4397
        %v4430 = vadd.f32 %v4110, %v4398
        %v4431 = vadd.f32 %v4111, %v4399
        %v4432 = vadd.f32 %v4112, %v4400
        %v4433 = vadd.f32 %v4113, %v4401
        %v4434 = vadd.f32 %v4114, %v4402
        %v4435 = vadd.f32 %v4115, %v4403
        %v4436 = vadd.f32 %v4116, %v4404
        %v4437 = vadd.f32 %v4117, %v4405
        %v4438 = vadd.f32 %v4118, %v4406
        %v4439 = vadd.f32 %v4119, %v4407
        %v4440 = vadd.f32 %v4120, %v4408
        %v4441 = vadd.f32 %v4121, %v4409
        %v4442 = vadd.f32 %v4122, %v4410
        %v4443 = vadd.f32 %v4123, %v4411
        %v4444 = vlaneseq
        %v4445 = vshrl.u32 %v4444, 7
        %v4446 = vsub.s32 0, %v4445
        %v4447 = vrot.slane %v217, %v4446
        %v4448 = vadd.f32 %v4412, %v4447
        %v4449 = vadd.f32 %v4413, %v4447
        %v4450 = vadd.f32 %v4414, %v4447
        %v4451 = vadd.f32 %v4415, %v4447
        %v4452 = vadd.f32 %v4416, %v4447
        %v4453 = vadd.f32 %v4417, %v4447
        %v4454 = vadd.f32 %v4418, %v4447
        %v4455 = vadd.f32 %v4419, %v4447
        %v4456 = vadd.f32 %v4420, %v4447
        %v4457 = vadd.f32 %v4421, %v4447
        %v4458 = vadd.f32 %v4422, %v4447
        %v4459 = vadd.f32 %v4423, %v4447
        %v4460 = vadd.f32 %v4424, %v4447
        %v4461 = vadd.f32 %v4425, %v4447
        %v4462 = vadd.f32 %v4426, %v4447
        %v4463 = vadd.f32 %v4427, %v4447
        %v4464 = vadd.f32 %v4428, %v4447
        %v4465 = vadd.f32 %v4429, %v4447
        %v4466 = vadd.f32 %v4430, %v4447
        %v4467 = vadd.f32 %v4431, %v4447
        %v4468 = vadd.f32 %v4432, %v4447
        %v4469 = vadd.f32 %v4433, %v4447
        %v4470 = vadd.f32 %v4434, %v4447
        %v4471 = vadd.f32 %v4435, %v4447
        %v4472 = vadd.f32 %v4436, %v4447
        %v4473 = vadd.f32 %v4437, %v4447
        %v4474 = vadd.f32 %v4438, %v4447
        %v4475 = vadd.f32 %v4439, %v4447
        %v4476 = vadd.f32 %v4440, %v4447
        %v4477 = vadd.f32 %v4441, %v4447
        %v4478 = vadd.f32 %v4442, %v4447
        %v4479 = vadd.f32 %v4443, %v4447
        %v4480 = vmax.f32 %v4448, 0.0
        %v4481 = vmax.f32 %v4449, 0.0
        %v4482 = vmax.f32 %v4450, 0.0
        %v4483 = vmax.f32 %v4451, 0.0
        %v4484 = vmax.f32 %v4452, 0.0
        %v4485 = vmax.f32 %v4453, 0.0
        %v4486 = vmax.f32 %v4454, 0.0
        %v4487 = vmax.f32 %v4455, 0.0
        %v4488 = vmax.f32 %v4456, 0.0
        %v4489 = vmax.f32 %v4457, 0.0
        %v4490 = vmax.f32 %v4458, 0.0
        %v4491 = vmax.f32 %v4459, 0.0
        %v4492 = vmax.f32 %v4460, 0.0
        %v4493 = vmax.f32 %v4461, 0.0
        %v4494 = vmax.f32 %v4462, 0.0
        %v4495 = vmax.f32 %v4463, 0.0
        %v4496 = vmax.f32 %v4464, 0.0
        %v4497 = vmax.f32 %v4465, 0.0
        %v4498 = vmax.f32 %v4466, 0.0
        %v4499 = vmax.f32 %v4467, 0.0
        %v4500 = vmax.f32 %v4468, 0.0
        %v4501 = vmax.f32 %v4469, 0.0
        %v4502 = vmax.f32 %v4470, 0.0
        %v4503 = vmax.f32 %v4471, 0.0
        %v4504 = vmax.f32 %v4472, 0.0
        %v4505 = vmax.f32 %v4473, 0.0
        %v4506 = vmax.f32 %v4474, 0.0
        %v4507 = vmax.f32 %v4475, 0.0
        %v4508 = vmax.f32 %v4476, 0.0
        %v4509 = vmax.f32 %v4477, 0.0
        %v4510 = vmax.f32 %v4478, 0.0
        %v4511 = vmax.f32 %v4479, 0.0
        %v4512 = vpack.c.bf16 %v4481, %v4480
        %v4513 = vpack.c.bf16 %v4483, %v4482
        %v4514 = vpack.c.bf16 %v4485, %v4484
        %v4515 = vpack.c.bf16 %v4487, %v4486
        %v4516 = vpack.c.bf16 %v4489, %v4488
        %v4517 = vpack.c.bf16 %v4491, %v4490
        %v4518 = vpack.c.bf16 %v4493, %v4492
        %v4519 = vpack.c.bf16 %v4495, %v4494
        %v4520 = vpack.c.bf16 %v4497, %v4496
        %v4521 = vpack.c.bf16 %v4499, %v4498
        %v4522 = vpack.c.bf16 %v4501, %v4500
        %v4523 = vpack.c.bf16 %v4503, %v4502
        %v4524 = vpack.c.bf16 %v4505, %v4504
        %v4525 = vpack.c.bf16 %v4507, %v4506
        %v4526 = vpack.c.bf16 %v4509, %v4508
        %v4527 = vpack.c.bf16 %v4511, %v4510
        %s4528 = scalar_lea.vmem %s2, 64
        %v4529 = vld [vmem:[%s4528] sm:$0xf]
        %v4530 = vld [vmem:[%s4528 + $0x4] sm:$0xf]
        %v4531 = vld [vmem:[%s4528 + $0x8] sm:$0xf]
        %v4532 = vld [vmem:[%s4528 + $0xc] sm:$0xf]
        %v4533 = vld [vmem:[%s4528 + $0x10] sm:$0xf]
        %v4534 = vld [vmem:[%s4528 + $0x14] sm:$0xf]
        %v4535 = vld [vmem:[%s4528 + $0x18] sm:$0xf]
        %v4536 = vld [vmem:[%s4528 + $0x1c] sm:$0xf]
        %v4537 = vld [vmem:[%s4528 + $0x20] sm:$0xf]
        %v4538 = vld [vmem:[%s4528 + $0x24] sm:$0xf]
        %v4539 = vld [vmem:[%s4528 + $0x28] sm:$0xf]
        %v4540 = vld [vmem:[%s4528 + $0x2c] sm:$0xf]
        %v4541 = vld [vmem:[%s4528 + $0x30] sm:$0xf]
        %v4542 = vld [vmem:[%s4528 + $0x34] sm:$0xf]
        %v4543 = vld [vmem:[%s4528 + $0x38] sm:$0xf]
        %v4544 = vld [vmem:[%s4528 + $0x3c] sm:$0xf]
        %v4561 = vunpack.c.l.b16 %v4529
        %v4562 = vunpack.c.l.b16 %v4530
        %v4563 = vunpack.c.l.b16 %v4531
        %v4564 = vunpack.c.l.b16 %v4532
        %v4565 = vunpack.c.l.b16 %v4533
        %v4566 = vunpack.c.l.b16 %v4534
        %v4567 = vunpack.c.l.b16 %v4535
        %v4568 = vunpack.c.l.b16 %v4536
        %v4569 = vunpack.c.l.b16 %v4537
        %v4570 = vunpack.c.l.b16 %v4538
        %v4571 = vunpack.c.l.b16 %v4539
        %v4572 = vunpack.c.l.b16 %v4540
        %v4573 = vunpack.c.l.b16 %v4541
        %v4574 = vunpack.c.l.b16 %v4542
        %v4575 = vunpack.c.l.b16 %v4543
        %v4576 = vunpack.c.l.b16 %v4544
        %v4577 = vpack.c.b16 %v4562, %v4561
        %v4578 = vpack.c.b16 %v4564, %v4563
        %v4579 = vpack.c.b16 %v4566, %v4565
        %v4580 = vpack.c.b16 %v4568, %v4567
        %v4581 = vpack.c.b16 %v4570, %v4569
        %v4582 = vpack.c.b16 %v4572, %v4571
        %v4583 = vpack.c.b16 %v4574, %v4573
        %v4584 = vpack.c.b16 %v4576, %v4575
        %4593 = vmatprep.subr.bf16.mxu0 0
        %4594 = vmatpush1.bf16.msra.mxu0 %v4577
        %4595 = vmatprep.subr.bf16.mxu0 0
        %4596 = vmatpush1.bf16.msra.mxu0 %v4578
        %4597 = vmatprep.subr.bf16.mxu0 0
        %4598 = vmatpush1.bf16.msra.mxu0 %v4579
        %4599 = vmatprep.subr.bf16.mxu0 0
        %4600 = vmatpush1.bf16.msra.mxu0 %v4580
        %4601 = vmatprep.subr.bf16.mxu0 0
        %4602 = vmatpush1.bf16.msra.mxu0 %v4581
        %4603 = vmatprep.subr.bf16.mxu0 0
        %4604 = vmatpush1.bf16.msra.mxu0 %v4582
        %4605 = vmatprep.subr.bf16.mxu0 0
        %4606 = vmatpush1.bf16.msra.mxu0 %v4583
        %4607 = vmatprep.subr.bf16.mxu0 0
        %4608 = vmatpush1.bf16.msra.mxu0 %v4584
        %4609 = vmatprep.subr.bf16.mxu0 0
        %4610 = vmatpush1.bf16.msra.mxu0 0
        %4611 = vmatprep.subr.bf16.mxu0 0
        %4612 = vmatpush1.bf16.msra.mxu0 0
        %4613 = vmatprep.subr.bf16.mxu0 0
        %4614 = vmatpush1.bf16.msra.mxu0 0
        %4615 = vmatprep.subr.bf16.mxu0 0
        %4616 = vmatpush1.bf16.msra.mxu0 0
        %4617 = vmatprep.subr.bf16.mxu0 0
        %4618 = vmatpush1.bf16.msra.mxu0 0
        %4619 = vmatprep.subr.bf16.mxu0 0
        %4620 = vmatpush1.bf16.msra.mxu0 0
        %4621 = vmatprep.subr.bf16.mxu0 0
        %4622 = vmatpush1.bf16.msra.mxu0 0
        %4623 = vmatprep.subr.bf16.mxu0 0
        %4624 = vmatpush1.bf16.msra.mxu0 0
        %4625 = vmatprep.mubr.bf16.mxu0 0
        %4626 = vmatmul.mubr.bf16.gmra.mrb[0].mxu0 %v4512
        %v4627 = vpop.f32.mrb[0].mxu0
        %v4628 = vadd.f32 0.0, %v4627
        %v4629 = vpop.f32.mrb[0].mxu0
        %v4630 = vpop.f32.mrb[0].mxu0
        %v4631 = vadd.f32 0.0, %v4630
        %v4632 = vpop.f32.mrb[0].mxu0
        %4633 = vmatprep.mubr.bf16.mxu0 0
        %4634 = vmatmul.mubr.bf16.gmra.mrb[0].mxu0 %v4513
        %v4635 = vpop.f32.mrb[0].mxu0
        %v4636 = vadd.f32 0.0, %v4635
        %v4637 = vpop.f32.mrb[0].mxu0
        %v4638 = vpop.f32.mrb[0].mxu0
        %v4639 = vadd.f32 0.0, %v4638
        %v4640 = vpop.f32.mrb[0].mxu0
        %4641 = vmatprep.mubr.bf16.mxu0 0
        %4642 = vmatmul.mubr.bf16.gmra.mrb[0].mxu0 %v4514
        %v4643 = vpop.f32.mrb[0].mxu0
        %v4644 = vadd.f32 0.0, %v4643
        %v4645 = vpop.f32.mrb[0].mxu0
        %v4646 = vpop.f32.mrb[0].mxu0
        %v4647 = vadd.f32 0.0, %v4646
        %v4648 = vpop.f32.mrb[0].mxu0
        %4649 = vmatprep.mubr.bf16.mxu0 0
        %4650 = vmatmul.mubr.bf16.gmra.mrb[0].mxu0 %v4515
        %v4651 = vpop.f32.mrb[0].mxu0
        %v4652 = vadd.f32 0.0, %v4651
        %v4653 = vpop.f32.mrb[0].mxu0
        %v4654 = vpop.f32.mrb[0].mxu0
        %v4655 = vadd.f32 0.0, %v4654
        %v4656 = vpop.f32.mrb[0].mxu0
        %4657 = vmatprep.mubr.bf16.mxu0 0
        %4658 = vmatmul.mubr.bf16.gmra.mrb[0].mxu0 %v4516
        %v4659 = vpop.f32.mrb[0].mxu0
        %v4660 = vadd.f32 0.0, %v4659
        %v4661 = vpop.f32.mrb[0].mxu0
        %v4662 = vpop.f32.mrb[0].mxu0
        %v4663 = vadd.f32 0.0, %v4662
        %v4664 = vpop.f32.mrb[0].mxu0
        %4665 = vmatprep.mubr.bf16.mxu0 0
        %4666 = vmatmul.mubr.bf16.gmra.mrb[0].mxu0 %v4517
        %v4667 = vpop.f32.mrb[0].mxu0
        %v4668 = vadd.f32 0.0, %v4667
        %v4669 = vpop.f32.mrb[0].mxu0
        %v4670 = vpop.f32.mrb[0].mxu0
        %v4671 = vadd.f32 0.0, %v4670
        %v4672 = vpop.f32.mrb[0].mxu0
        %4673 = vmatprep.mubr.bf16.mxu0 0
        %4674 = vmatmul.mubr.bf16.gmra.mrb[0].mxu0 %v4518
        %v4675 = vpop.f32.mrb[0].mxu0
        %v4676 = vadd.f32 0.0, %v4675
        %v4677 = vpop.f32.mrb[0].mxu0
        %v4678 = vpop.f32.mrb[0].mxu0
        %v4679 = vadd.f32 0.0, %v4678
        %v4680 = vpop.f32.mrb[0].mxu0
        %4681 = vmatprep.mubr.bf16.mxu0 0
        %4682 = vmatmul.mubr.bf16.gmra.mrb[0].mxu0 %v4519
        %v4683 = vpop.f32.mrb[0].mxu0
        %v4684 = vadd.f32 0.0, %v4683
        %v4685 = vpop.f32.mrb[0].mxu0
        %v4686 = vpop.f32.mrb[0].mxu0
        %v4687 = vadd.f32 0.0, %v4686
        %v4688 = vpop.f32.mrb[0].mxu0
        %4689 = vmatprep.mubr.bf16.mxu0 0
        %4690 = vmatmul.mubr.bf16.gmra.mrb[0].mxu0 %v4520
        %v4691 = vpop.f32.mrb[0].mxu0
        %v4692 = vadd.f32 0.0, %v4691
        %v4693 = vpop.f32.mrb[0].mxu0
        %v4694 = vpop.f32.mrb[0].mxu0
        %v4695 = vadd.f32 0.0, %v4694
        %v4696 = vpop.f32.mrb[0].mxu0
        %4697 = vmatprep.mubr.bf16.mxu0 0
        %4698 = vmatmul.mubr.bf16.gmra.mrb[0].mxu0 %v4521
        %v4699 = vpop.f32.mrb[0].mxu0
        %v4700 = vadd.f32 0.0, %v4699
        %v4701 = vpop.f32.mrb[0].mxu0
        %v4702 = vpop.f32.mrb[0].mxu0
        %v4703 = vadd.f32 0.0, %v4702
        %v4704 = vpop.f32.mrb[0].mxu0
        %4705 = vmatprep.mubr.bf16.mxu0 0
        %4706 = vmatmul.mubr.bf16.gmra.mrb[0].mxu0 %v4522
        %v4707 = vpop.f32.mrb[0].mxu0
        %v4708 = vadd.f32 0.0, %v4707
        %v4709 = vpop.f32.mrb[0].mxu0
        %v4710 = vpop.f32.mrb[0].mxu0
        %v4711 = vadd.f32 0.0, %v4710
        %v4712 = vpop.f32.mrb[0].mxu0
        %4713 = vmatprep.mubr.bf16.mxu0 0
        %4714 = vmatmul.mubr.bf16.gmra.mrb[0].mxu0 %v4523
        %v4715 = vpop.f32.mrb[0].mxu0
        %v4716 = vadd.f32 0.0, %v4715
        %v4717 = vpop.f32.mrb[0].mxu0
        %v4718 = vpop.f32.mrb[0].mxu0
        %v4719 = vadd.f32 0.0, %v4718
        %v4720 = vpop.f32.mrb[0].mxu0
        %4721 = vmatprep.mubr.bf16.mxu0 0
        %4722 = vmatmul.mubr.bf16.gmra.mrb[0].mxu0 %v4524
        %v4723 = vpop.f32.mrb[0].mxu0
        %v4724 = vadd.f32 0.0, %v4723
        %v4725 = vpop.f32.mrb[0].mxu0
        %v4726 = vpop.f32.mrb[0].mxu0
        %v4727 = vadd.f32 0.0, %v4726
        %v4728 = vpop.f32.mrb[0].mxu0
        %4729 = vmatprep.mubr.bf16.mxu0 0
        %4730 = vmatmul.mubr.bf16.gmra.mrb[0].mxu0 %v4525
        %v4731 = vpop.f32.mrb[0].mxu0
        %v4732 = vadd.f32 0.0, %v4731
        %v4733 = vpop.f32.mrb[0].mxu0
        %v4734 = vpop.f32.mrb[0].mxu0
        %v4735 = vadd.f32 0.0, %v4734
        %v4736 = vpop.f32.mrb[0].mxu0
        %4737 = vmatprep.mubr.bf16.mxu0 0
        %4738 = vmatmul.mubr.bf16.gmra.mrb[0].mxu0 %v4526
        %v4739 = vpop.f32.mrb[0].mxu0
        %v4740 = vadd.f32 0.0, %v4739
        %v4741 = vpop.f32.mrb[0].mxu0
        %v4742 = vpop.f32.mrb[0].mxu0
        %v4743 = vadd.f32 0.0, %v4742
        %v4744 = vpop.f32.mrb[0].mxu0
        %4745 = vmatprep.mubr.bf16.mxu0 0
        %4746 = vmatmul.mubr.bf16.gmra.mrb[0].mxu0 %v4527
        %v4747 = vpop.f32.mrb[0].mxu0
        %v4748 = vadd.f32 0.0, %v4747
        %v4749 = vpop.f32.mrb[0].mxu0
        %v4750 = vpop.f32.mrb[0].mxu0
        %v4751 = vadd.f32 0.0, %v4750
        %v4752 = vpop.f32.mrb[0].mxu0
        %4753 = vdwg.mxu0
        %v4754 = vlaneseq
        %v4755 = vshrl.u32 %v4754, 7
        %v4756 = vsub.s32 0, %v4755
        %v4757 = vrot.slane %v4628, %v4756
        %v4758 = vlaneseq
        %v4759 = vshrl.u32 %v4758, 7
        %v4760 = vsub.s32 0, %v4759
        %v4761 = vrot.slane %v4631, %v4760
        %v4762 = vlaneseq
        %v4763 = vshrl.u32 %v4762, 7
        %v4764 = vsub.s32 0, %v4763
        %v4765 = vrot.slane %v4636, %v4764
        %v4766 = vlaneseq
        %v4767 = vshrl.u32 %v4766, 7
        %v4768 = vsub.s32 0, %v4767
        %v4769 = vrot.slane %v4639, %v4768
        %v4770 = vlaneseq
        %v4771 = vshrl.u32 %v4770, 7
        %v4772 = vsub.s32 0, %v4771
        %v4773 = vrot.slane %v4644, %v4772
        %v4774 = vlaneseq
        %v4775 = vshrl.u32 %v4774, 7
        %v4776 = vsub.s32 0, %v4775
        %v4777 = vrot.slane %v4647, %v4776
        %v4778 = vlaneseq
        %v4779 = vshrl.u32 %v4778, 7
        %v4780 = vsub.s32 0, %v4779
        %v4781 = vrot.slane %v4652, %v4780
        %v4782 = vlaneseq
        %v4783 = vshrl.u32 %v4782, 7
        %v4784 = vsub.s32 0, %v4783
        %v4785 = vrot.slane %v4655, %v4784
        %v4786 = vlaneseq
        %v4787 = vshrl.u32 %v4786, 7
        %v4788 = vsub.s32 0, %v4787
        %v4789 = vrot.slane %v4660, %v4788
        %v4790 = vlaneseq
        %v4791 = vshrl.u32 %v4790, 7
        %v4792 = vsub.s32 0, %v4791
        %v4793 = vrot.slane %v4663, %v4792
        %v4794 = vlaneseq
        %v4795 = vshrl.u32 %v4794, 7
        %v4796 = vsub.s32 0, %v4795
        %v4797 = vrot.slane %v4668, %v4796
        %v4798 = vlaneseq
        %v4799 = vshrl.u32 %v4798, 7
        %v4800 = vsub.s32 0, %v4799
        %v4801 = vrot.slane %v4671, %v4800
        %v4802 = vlaneseq
        %v4803 = vshrl.u32 %v4802, 7
        %v4804 = vsub.s32 0, %v4803
        %v4805 = vrot.slane %v4676, %v4804
        %v4806 = vlaneseq
        %v4807 = vshrl.u32 %v4806, 7
        %v4808 = vsub.s32 0, %v4807
        %v4809 = vrot.slane %v4679, %v4808
        %v4810 = vlaneseq
        %v4811 = vshrl.u32 %v4810, 7
        %v4812 = vsub.s32 0, %v4811
        %v4813 = vrot.slane %v4684, %v4812
        %v4814 = vlaneseq
        %v4815 = vshrl.u32 %v4814, 7
        %v4816 = vsub.s32 0, %v4815
        %v4817 = vrot.slane %v4687, %v4816
        %v4818 = vlaneseq
        %v4819 = vshrl.u32 %v4818, 7
        %v4820 = vsub.s32 0, %v4819
        %v4821 = vrot.slane %v4692, %v4820
        %v4822 = vlaneseq
        %v4823 = vshrl.u32 %v4822, 7
        %v4824 = vsub.s32 0, %v4823
        %v4825 = vrot.slane %v4695, %v4824
        %v4826 = vlaneseq
        %v4827 = vshrl.u32 %v4826, 7
        %v4828 = vsub.s32 0, %v4827
        %v4829 = vrot.slane %v4700, %v4828
        %v4830 = vlaneseq
        %v4831 = vshrl.u32 %v4830, 7
        %v4832 = vsub.s32 0, %v4831
        %v4833 = vrot.slane %v4703, %v4832
        %v4834 = vlaneseq
        %v4835 = vshrl.u32 %v4834, 7
        %v4836 = vsub.s32 0, %v4835
        %v4837 = vrot.slane %v4708, %v4836
        %v4838 = vlaneseq
        %v4839 = vshrl.u32 %v4838, 7
        %v4840 = vsub.s32 0, %v4839
        %v4841 = vrot.slane %v4711, %v4840
        %v4842 = vlaneseq
        %v4843 = vshrl.u32 %v4842, 7
        %v4844 = vsub.s32 0, %v4843
        %v4845 = vrot.slane %v4716, %v4844
        %v4846 = vlaneseq
        %v4847 = vshrl.u32 %v4846, 7
        %v4848 = vsub.s32 0, %v4847
        %v4849 = vrot.slane %v4719, %v4848
        %v4850 = vlaneseq
        %v4851 = vshrl.u32 %v4850, 7
        %v4852 = vsub.s32 0, %v4851
        %v4853 = vrot.slane %v4724, %v4852
        %v4854 = vlaneseq
        %v4855 = vshrl.u32 %v4854, 7
        %v4856 = vsub.s32 0, %v4855
        %v4857 = vrot.slane %v4727, %v4856
        %v4858 = vlaneseq
        %v4859 = vshrl.u32 %v4858, 7
        %v4860 = vsub.s32 0, %v4859
        %v4861 = vrot.slane %v4732, %v4860
        %v4862 = vlaneseq
        %v4863 = vshrl.u32 %v4862, 7
        %v4864 = vsub.s32 0, %v4863
        %v4865 = vrot.slane %v4735, %v4864
        %v4866 = vlaneseq
        %v4867 = vshrl.u32 %v4866, 7
        %v4868 = vsub.s32 0, %v4867
        %v4869 = vrot.slane %v4740, %v4868
        %v4870 = vlaneseq
        %v4871 = vshrl.u32 %v4870, 7
        %v4872 = vsub.s32 0, %v4871
        %v4873 = vrot.slane %v4743, %v4872
        %v4874 = vlaneseq
        %v4875 = vshrl.u32 %v4874, 7
        %v4876 = vsub.s32 0, %v4875
        %v4877 = vrot.slane %v4748, %v4876
        %v4878 = vlaneseq
        %v4879 = vshrl.u32 %v4878, 7
        %v4880 = vsub.s32 0, %v4879
        %v4881 = vrot.slane %v4751, %v4880
        %v4882 = vmul.f32 %v1887, %v4757
        %v4883 = vmul.f32 %v1892, %v4761
        %v4884 = vmul.f32 %v1897, %v4765
        %v4885 = vmul.f32 %v1902, %v4769
        %v4886 = vmul.f32 %v1907, %v4773
        %v4887 = vmul.f32 %v1912, %v4777
        %v4888 = vmul.f32 %v1917, %v4781
        %v4889 = vmul.f32 %v1922, %v4785
        %v4890 = vmul.f32 %v1927, %v4789
        %v4891 = vmul.f32 %v1932, %v4793
        %v4892 = vmul.f32 %v1937, %v4797
        %v4893 = vmul.f32 %v1942, %v4801
        %v4894 = vmul.f32 %v1947, %v4805
        %v4895 = vmul.f32 %v1952, %v4809
        %v4896 = vmul.f32 %v1957, %v4813
        %v4897 = vmul.f32 %v1962, %v4817
        %v4898 = vmul.f32 %v1967, %v4821
        %v4899 = vmul.f32 %v1972, %v4825
        %v4900 = vmul.f32 %v1977, %v4829
        %v4901 = vmul.f32 %v1982, %v4833
        %v4902 = vmul.f32 %v1987, %v4837
        %v4903 = vmul.f32 %v1992, %v4841
        %v4904 = vmul.f32 %v1997, %v4845
        %v4905 = vmul.f32 %v2002, %v4849
        %v4906 = vmul.f32 %v2007, %v4853
        %v4907 = vmul.f32 %v2012, %v4857
        %v4908 = vmul.f32 %v2017, %v4861
        %v4909 = vmul.f32 %v2022, %v4865
        %v4910 = vmul.f32 %v2027, %v4869
        %v4911 = vmul.f32 %v2032, %v4873
        %v4912 = vmul.f32 %v2037, %v4877
        %v4913 = vmul.f32 %v2042, %v4881
        %v4914 = vlaneseq
        %v4915 = vshrl.u32 %v4914, 7
        %v4916 = vsub.s32 1, %v4915
        %v4917 = vrot.slane %v4628, %v4916
        %v4918 = vlaneseq
        %v4919 = vshrl.u32 %v4918, 7
        %v4920 = vsub.s32 1, %v4919
        %v4921 = vrot.slane %v4631, %v4920
        %v4922 = vlaneseq
        %v4923 = vshrl.u32 %v4922, 7
        %v4924 = vsub.s32 1, %v4923
        %v4925 = vrot.slane %v4636, %v4924
        %v4926 = vlaneseq
        %v4927 = vshrl.u32 %v4926, 7
        %v4928 = vsub.s32 1, %v4927
        %v4929 = vrot.slane %v4639, %v4928
        %v4930 = vlaneseq
        %v4931 = vshrl.u32 %v4930, 7
        %v4932 = vsub.s32 1, %v4931
        %v4933 = vrot.slane %v4644, %v4932
        %v4934 = vlaneseq
        %v4935 = vshrl.u32 %v4934, 7
        %v4936 = vsub.s32 1, %v4935
        %v4937 = vrot.slane %v4647, %v4936
        %v4938 = vlaneseq
        %v4939 = vshrl.u32 %v4938, 7
        %v4940 = vsub.s32 1, %v4939
        %v4941 = vrot.slane %v4652, %v4940
        %v4942 = vlaneseq
        %v4943 = vshrl.u32 %v4942, 7
        %v4944 = vsub.s32 1, %v4943
        %v4945 = vrot.slane %v4655, %v4944
        %v4946 = vlaneseq
        %v4947 = vshrl.u32 %v4946, 7
        %v4948 = vsub.s32 1, %v4947
        %v4949 = vrot.slane %v4660, %v4948
        %v4950 = vlaneseq
        %v4951 = vshrl.u32 %v4950, 7
        %v4952 = vsub.s32 1, %v4951
        %v4953 = vrot.slane %v4663, %v4952
        %v4954 = vlaneseq
        %v4955 = vshrl.u32 %v4954, 7
        %v4956 = vsub.s32 1, %v4955
        %v4957 = vrot.slane %v4668, %v4956
        %v4958 = vlaneseq
        %v4959 = vshrl.u32 %v4958, 7
        %v4960 = vsub.s32 1, %v4959
        %v4961 = vrot.slane %v4671, %v4960
        %v4962 = vlaneseq
        %v4963 = vshrl.u32 %v4962, 7
        %v4964 = vsub.s32 1, %v4963
        %v4965 = vrot.slane %v4676, %v4964
        %v4966 = vlaneseq
        %v4967 = vshrl.u32 %v4966, 7
        %v4968 = vsub.s32 1, %v4967
        %v4969 = vrot.slane %v4679, %v4968
        %v4970 = vlaneseq
        %v4971 = vshrl.u32 %v4970, 7
        %v4972 = vsub.s32 1, %v4971
        %v4973 = vrot.slane %v4684, %v4972
        %v4974 = vlaneseq
        %v4975 = vshrl.u32 %v4974, 7
        %v4976 = vsub.s32 1, %v4975
        %v4977 = vrot.slane %v4687, %v4976
        %v4978 = vlaneseq
        %v4979 = vshrl.u32 %v4978, 7
        %v4980 = vsub.s32 1, %v4979
        %v4981 = vrot.slane %v4692, %v4980
        %v4982 = vlaneseq
        %v4983 = vshrl.u32 %v4982, 7
        %v4984 = vsub.s32 1, %v4983
        %v4985 = vrot.slane %v4695, %v4984
        %v4986 = vlaneseq
        %v4987 = vshrl.u32 %v4986, 7
        %v4988 = vsub.s32 1, %v4987
        %v4989 = vrot.slane %v4700, %v4988
        %v4990 = vlaneseq
        %v4991 = vshrl.u32 %v4990, 7
        %v4992 = vsub.s32 1, %v4991
        %v4993 = vrot.slane %v4703, %v4992
        %v4994 = vlaneseq
        %v4995 = vshrl.u32 %v4994, 7
        %v4996 = vsub.s32 1, %v4995
        %v4997 = vrot.slane %v4708, %v4996
        %v4998 = vlaneseq
        %v4999 = vshrl.u32 %v4998, 7
        %v5000 = vsub.s32 1, %v4999
        %v5001 = vrot.slane %v4711, %v5000
        %v5002 = vlaneseq
        %v5003 = vshrl.u32 %v5002, 7
        %v5004 = vsub.s32 1, %v5003
        %v5005 = vrot.slane %v4716, %v5004
        %v5006 = vlaneseq
        %v5007 = vshrl.u32 %v5006, 7
        %v5008 = vsub.s32 1, %v5007
        %v5009 = vrot.slane %v4719, %v5008
        %v5010 = vlaneseq
        %v5011 = vshrl.u32 %v5010, 7
        %v5012 = vsub.s32 1, %v5011
        %v5013 = vrot.slane %v4724, %v5012
        %v5014 = vlaneseq
        %v5015 = vshrl.u32 %v5014, 7
        %v5016 = vsub.s32 1, %v5015
        %v5017 = vrot.slane %v4727, %v5016
        %v5018 = vlaneseq
        %v5019 = vshrl.u32 %v5018, 7
        %v5020 = vsub.s32 1, %v5019
        %v5021 = vrot.slane %v4732, %v5020
        %v5022 = vlaneseq
        %v5023 = vshrl.u32 %v5022, 7
        %v5024 = vsub.s32 1, %v5023
        %v5025 = vrot.slane %v4735, %v5024
        %v5026 = vlaneseq
        %v5027 = vshrl.u32 %v5026, 7
        %v5028 = vsub.s32 1, %v5027
        %v5029 = vrot.slane %v4740, %v5028
        %v5030 = vlaneseq
        %v5031 = vshrl.u32 %v5030, 7
        %v5032 = vsub.s32 1, %v5031
        %v5033 = vrot.slane %v4743, %v5032
        %v5034 = vlaneseq
        %v5035 = vshrl.u32 %v5034, 7
        %v5036 = vsub.s32 1, %v5035
        %v5037 = vrot.slane %v4748, %v5036
        %v5038 = vlaneseq
        %v5039 = vshrl.u32 %v5038, 7
        %v5040 = vsub.s32 1, %v5039
        %v5041 = vrot.slane %v4751, %v5040
        %v5042 = vmul.f32 %v2206, %v4917
        %v5043 = vmul.f32 %v2210, %v4921
        %v5044 = vmul.f32 %v2214, %v4925
        %v5045 = vmul.f32 %v2218, %v4929
        %v5046 = vmul.f32 %v2222, %v4933
        %v5047 = vmul.f32 %v2226, %v4937
        %v5048 = vmul.f32 %v2230, %v4941
        %v5049 = vmul.f32 %v2234, %v4945
        %v5050 = vmul.f32 %v2238, %v4949
        %v5051 = vmul.f32 %v2242, %v4953
        %v5052 = vmul.f32 %v2246, %v4957
        %v5053 = vmul.f32 %v2250, %v4961
        %v5054 = vmul.f32 %v2254, %v4965
        %v5055 = vmul.f32 %v2258, %v4969
        %v5056 = vmul.f32 %v2262, %v4973
        %v5057 = vmul.f32 %v2266, %v4977
        %v5058 = vmul.f32 %v2270, %v4981
        %v5059 = vmul.f32 %v2274, %v4985
        %v5060 = vmul.f32 %v2278, %v4989
        %v5061 = vmul.f32 %v2282, %v4993
        %v5062 = vmul.f32 %v2286, %v4997
        %v5063 = vmul.f32 %v2290, %v5001
        %v5064 = vmul.f32 %v2294, %v5005
        %v5065 = vmul.f32 %v2298, %v5009
        %v5066 = vmul.f32 %v2302, %v5013
        %v5067 = vmul.f32 %v2306, %v5017
        %v5068 = vmul.f32 %v2310, %v5021
        %v5069 = vmul.f32 %v2314, %v5025
        %v5070 = vmul.f32 %v2318, %v5029
        %v5071 = vmul.f32 %v2322, %v5033
        %v5072 = vmul.f32 %v2326, %v5037
        %v5073 = vmul.f32 %v2330, %v5041
        %v5074 = vadd.f32 %v4882, %v5042
        %v5075 = vadd.f32 %v4883, %v5043
        %v5076 = vadd.f32 %v4884, %v5044
        %v5077 = vadd.f32 %v4885, %v5045
        %v5078 = vadd.f32 %v4886, %v5046
        %v5079 = vadd.f32 %v4887, %v5047
        %v5080 = vadd.f32 %v4888, %v5048
        %v5081 = vadd.f32 %v4889, %v5049
        %v5082 = vadd.f32 %v4890, %v5050
        %v5083 = vadd.f32 %v4891, %v5051
        %v5084 = vadd.f32 %v4892, %v5052
        %v5085 = vadd.f32 %v4893, %v5053
        %v5086 = vadd.f32 %v4894, %v5054
        %v5087 = vadd.f32 %v4895, %v5055
        %v5088 = vadd.f32 %v4896, %v5056
        %v5089 = vadd.f32 %v4897, %v5057
        %v5090 = vadd.f32 %v4898, %v5058
        %v5091 = vadd.f32 %v4899, %v5059
        %v5092 = vadd.f32 %v4900, %v5060
        %v5093 = vadd.f32 %v4901, %v5061
        %v5094 = vadd.f32 %v4902, %v5062
        %v5095 = vadd.f32 %v4903, %v5063
        %v5096 = vadd.f32 %v4904, %v5064
        %v5097 = vadd.f32 %v4905, %v5065
        %v5098 = vadd.f32 %v4906, %v5066
        %v5099 = vadd.f32 %v4907, %v5067
        %v5100 = vadd.f32 %v4908, %v5068
        %v5101 = vadd.f32 %v4909, %v5069
        %v5102 = vadd.f32 %v4910, %v5070
        %v5103 = vadd.f32 %v4911, %v5071
        %v5104 = vadd.f32 %v4912, %v5072
        %v5105 = vadd.f32 %v4913, %v5073
        %v5106 = vlaneseq
        %v5107 = vshrl.u32 %v5106, 7
        %v5108 = vsub.s32 2, %v5107
        %v5109 = vrot.slane %v4628, %v5108
        %v5110 = vlaneseq
        %v5111 = vshrl.u32 %v5110, 7
        %v5112 = vsub.s32 2, %v5111
        %v5113 = vrot.slane %v4631, %v5112
        %v5114 = vlaneseq
        %v5115 = vshrl.u32 %v5114, 7
        %v5116 = vsub.s32 2, %v5115
        %v5117 = vrot.slane %v4636, %v5116
        %v5118 = vlaneseq
        %v5119 = vshrl.u32 %v5118, 7
        %v5120 = vsub.s32 2, %v5119
        %v5121 = vrot.slane %v4639, %v5120
        %v5122 = vlaneseq
        %v5123 = vshrl.u32 %v5122, 7
        %v5124 = vsub.s32 2, %v5123
        %v5125 = vrot.slane %v4644, %v5124
        %v5126 = vlaneseq
        %v5127 = vshrl.u32 %v5126, 7
        %v5128 = vsub.s32 2, %v5127
        %v5129 = vrot.slane %v4647, %v5128
        %v5130 = vlaneseq
        %v5131 = vshrl.u32 %v5130, 7
        %v5132 = vsub.s32 2, %v5131
        %v5133 = vrot.slane %v4652, %v5132
        %v5134 = vlaneseq
        %v5135 = vshrl.u32 %v5134, 7
        %v5136 = vsub.s32 2, %v5135
        %v5137 = vrot.slane %v4655, %v5136
        %v5138 = vlaneseq
        %v5139 = vshrl.u32 %v5138, 7
        %v5140 = vsub.s32 2, %v5139
        %v5141 = vrot.slane %v4660, %v5140
        %v5142 = vlaneseq
        %v5143 = vshrl.u32 %v5142, 7
        %v5144 = vsub.s32 2, %v5143
        %v5145 = vrot.slane %v4663, %v5144
        %v5146 = vlaneseq
        %v5147 = vshrl.u32 %v5146, 7
        %v5148 = vsub.s32 2, %v5147
        %v5149 = vrot.slane %v4668, %v5148
        %v5150 = vlaneseq
        %v5151 = vshrl.u32 %v5150, 7
        %v5152 = vsub.s32 2, %v5151
        %v5153 = vrot.slane %v4671, %v5152
        %v5154 = vlaneseq
        %v5155 = vshrl.u32 %v5154, 7
        %v5156 = vsub.s32 2, %v5155
        %v5157 = vrot.slane %v4676, %v5156
        %v5158 = vlaneseq
        %v5159 = vshrl.u32 %v5158, 7
        %v5160 = vsub.s32 2, %v5159
        %v5161 = vrot.slane %v4679, %v5160
        %v5162 = vlaneseq
        %v5163 = vshrl.u32 %v5162, 7
        %v5164 = vsub.s32 2, %v5163
        %v5165 = vrot.slane %v4684, %v5164
        %v5166 = vlaneseq
        %v5167 = vshrl.u32 %v5166, 7
        %v5168 = vsub.s32 2, %v5167
        %v5169 = vrot.slane %v4687, %v5168
        %v5170 = vlaneseq
        %v5171 = vshrl.u32 %v5170, 7
        %v5172 = vsub.s32 2, %v5171
        %v5173 = vrot.slane %v4692, %v5172
        %v5174 = vlaneseq
        %v5175 = vshrl.u32 %v5174, 7
        %v5176 = vsub.s32 2, %v5175
        %v5177 = vrot.slane %v4695, %v5176
        %v5178 = vlaneseq
        %v5179 = vshrl.u32 %v5178, 7
        %v5180 = vsub.s32 2, %v5179
        %v5181 = vrot.slane %v4700, %v5180
        %v5182 = vlaneseq
        %v5183 = vshrl.u32 %v5182, 7
        %v5184 = vsub.s32 2, %v5183
        %v5185 = vrot.slane %v4703, %v5184
        %v5186 = vlaneseq
        %v5187 = vshrl.u32 %v5186, 7
        %v5188 = vsub.s32 2, %v5187
        %v5189 = vrot.slane %v4708, %v5188
        %v5190 = vlaneseq
        %v5191 = vshrl.u32 %v5190, 7
        %v5192 = vsub.s32 2, %v5191
        %v5193 = vrot.slane %v4711, %v5192
        %v5194 = vlaneseq
        %v5195 = vshrl.u32 %v5194, 7
        %v5196 = vsub.s32 2, %v5195
        %v5197 = vrot.slane %v4716, %v5196
        %v5198 = vlaneseq
        %v5199 = vshrl.u32 %v5198, 7
        %v5200 = vsub.s32 2, %v5199
        %v5201 = vrot.slane %v4719, %v5200
        %v5202 = vlaneseq
        %v5203 = vshrl.u32 %v5202, 7
        %v5204 = vsub.s32 2, %v5203
        %v5205 = vrot.slane %v4724, %v5204
        %v5206 = vlaneseq
        %v5207 = vshrl.u32 %v5206, 7
        %v5208 = vsub.s32 2, %v5207
        %v5209 = vrot.slane %v4727, %v5208
        %v5210 = vlaneseq
        %v5211 = vshrl.u32 %v5210, 7
        %v5212 = vsub.s32 2, %v5211
        %v5213 = vrot.slane %v4732, %v5212
        %v5214 = vlaneseq
        %v5215 = vshrl.u32 %v5214, 7
        %v5216 = vsub.s32 2, %v5215
        %v5217 = vrot.slane %v4735, %v5216
        %v5218 = vlaneseq
        %v5219 = vshrl.u32 %v5218, 7
        %v5220 = vsub.s32 2, %v5219
        %v5221 = vrot.slane %v4740, %v5220
        %v5222 = vlaneseq
        %v5223 = vshrl.u32 %v5222, 7
        %v5224 = vsub.s32 2, %v5223
        %v5225 = vrot.slane %v4743, %v5224
        %v5226 = vlaneseq
        %v5227 = vshrl.u32 %v5226, 7
        %v5228 = vsub.s32 2, %v5227
        %v5229 = vrot.slane %v4748, %v5228
        %v5230 = vlaneseq
        %v5231 = vshrl.u32 %v5230, 7
        %v5232 = vsub.s32 2, %v5231
        %v5233 = vrot.slane %v4751, %v5232
        %v5234 = vmul.f32 %v2526, %v5109
        %v5235 = vmul.f32 %v2530, %v5113
        %v5236 = vmul.f32 %v2534, %v5117
        %v5237 = vmul.f32 %v2538, %v5121
        %v5238 = vmul.f32 %v2542, %v5125
        %v5239 = vmul.f32 %v2546, %v5129
        %v5240 = vmul.f32 %v2550, %v5133
        %v5241 = vmul.f32 %v2554, %v5137
        %v5242 = vmul.f32 %v2558, %v5141
        %v5243 = vmul.f32 %v2562, %v5145
        %v5244 = vmul.f32 %v2566, %v5149
        %v5245 = vmul.f32 %v2570, %v5153
        %v5246 = vmul.f32 %v2574, %v5157
        %v5247 = vmul.f32 %v2578, %v5161
        %v5248 = vmul.f32 %v2582, %v5165
        %v5249 = vmul.f32 %v2586, %v5169
        %v5250 = vmul.f32 %v2590, %v5173
        %v5251 = vmul.f32 %v2594, %v5177
        %v5252 = vmul.f32 %v2598, %v5181
        %v5253 = vmul.f32 %v2602, %v5185
        %v5254 = vmul.f32 %v2606, %v5189
        %v5255 = vmul.f32 %v2610, %v5193
        %v5256 = vmul.f32 %v2614, %v5197
        %v5257 = vmul.f32 %v2618, %v5201
        %v5258 = vmul.f32 %v2622, %v5205
        %v5259 = vmul.f32 %v2626, %v5209
        %v5260 = vmul.f32 %v2630, %v5213
        %v5261 = vmul.f32 %v2634, %v5217
        %v5262 = vmul.f32 %v2638, %v5221
        %v5263 = vmul.f32 %v2642, %v5225
        %v5264 = vmul.f32 %v2646, %v5229
        %v5265 = vmul.f32 %v2650, %v5233
        %v5266 = vadd.f32 %v5074, %v5234
        %v5267 = vadd.f32 %v5075, %v5235
        %v5268 = vadd.f32 %v5076, %v5236
        %v5269 = vadd.f32 %v5077, %v5237
        %v5270 = vadd.f32 %v5078, %v5238
        %v5271 = vadd.f32 %v5079, %v5239
        %v5272 = vadd.f32 %v5080, %v5240
        %v5273 = vadd.f32 %v5081, %v5241
        %v5274 = vadd.f32 %v5082, %v5242
        %v5275 = vadd.f32 %v5083, %v5243
        %v5276 = vadd.f32 %v5084, %v5244
        %v5277 = vadd.f32 %v5085, %v5245
        %v5278 = vadd.f32 %v5086, %v5246
        %v5279 = vadd.f32 %v5087, %v5247
        %v5280 = vadd.f32 %v5088, %v5248
        %v5281 = vadd.f32 %v5089, %v5249
        %v5282 = vadd.f32 %v5090, %v5250
        %v5283 = vadd.f32 %v5091, %v5251
        %v5284 = vadd.f32 %v5092, %v5252
        %v5285 = vadd.f32 %v5093, %v5253
        %v5286 = vadd.f32 %v5094, %v5254
        %v5287 = vadd.f32 %v5095, %v5255
        %v5288 = vadd.f32 %v5096, %v5256
        %v5289 = vadd.f32 %v5097, %v5257
        %v5290 = vadd.f32 %v5098, %v5258
        %v5291 = vadd.f32 %v5099, %v5259
        %v5292 = vadd.f32 %v5100, %v5260
        %v5293 = vadd.f32 %v5101, %v5261
        %v5294 = vadd.f32 %v5102, %v5262
        %v5295 = vadd.f32 %v5103, %v5263
        %v5296 = vadd.f32 %v5104, %v5264
        %v5297 = vadd.f32 %v5105, %v5265
        %v5298 = vlaneseq
        %v5299 = vshrl.u32 %v5298, 7
        %v5300 = vsub.s32 3, %v5299
        %v5301 = vrot.slane %v4628, %v5300
        %v5302 = vlaneseq
        %v5303 = vshrl.u32 %v5302, 7
        %v5304 = vsub.s32 3, %v5303
        %v5305 = vrot.slane %v4631, %v5304
        %v5306 = vlaneseq
        %v5307 = vshrl.u32 %v5306, 7
        %v5308 = vsub.s32 3, %v5307
        %v5309 = vrot.slane %v4636, %v5308
        %v5310 = vlaneseq
        %v5311 = vshrl.u32 %v5310, 7
        %v5312 = vsub.s32 3, %v5311
        %v5313 = vrot.slane %v4639, %v5312
        %v5314 = vlaneseq
        %v5315 = vshrl.u32 %v5314, 7
        %v5316 = vsub.s32 3, %v5315
        %v5317 = vrot.slane %v4644, %v5316
        %v5318 = vlaneseq
        %v5319 = vshrl.u32 %v5318, 7
        %v5320 = vsub.s32 3, %v5319
        %v5321 = vrot.slane %v4647, %v5320
        %v5322 = vlaneseq
        %v5323 = vshrl.u32 %v5322, 7
        %v5324 = vsub.s32 3, %v5323
        %v5325 = vrot.slane %v4652, %v5324
        %v5326 = vlaneseq
        %v5327 = vshrl.u32 %v5326, 7
        %v5328 = vsub.s32 3, %v5327
        %v5329 = vrot.slane %v4655, %v5328
        %v5330 = vlaneseq
        %v5331 = vshrl.u32 %v5330, 7
        %v5332 = vsub.s32 3, %v5331
        %v5333 = vrot.slane %v4660, %v5332
        %v5334 = vlaneseq
        %v5335 = vshrl.u32 %v5334, 7
        %v5336 = vsub.s32 3, %v5335
        %v5337 = vrot.slane %v4663, %v5336
        %v5338 = vlaneseq
        %v5339 = vshrl.u32 %v5338, 7
        %v5340 = vsub.s32 3, %v5339
        %v5341 = vrot.slane %v4668, %v5340
        %v5342 = vlaneseq
        %v5343 = vshrl.u32 %v5342, 7
        %v5344 = vsub.s32 3, %v5343
        %v5345 = vrot.slane %v4671, %v5344
        %v5346 = vlaneseq
        %v5347 = vshrl.u32 %v5346, 7
        %v5348 = vsub.s32 3, %v5347
        %v5349 = vrot.slane %v4676, %v5348
        %v5350 = vlaneseq
        %v5351 = vshrl.u32 %v5350, 7
        %v5352 = vsub.s32 3, %v5351
        %v5353 = vrot.slane %v4679, %v5352
        %v5354 = vlaneseq
        %v5355 = vshrl.u32 %v5354, 7
        %v5356 = vsub.s32 3, %v5355
        %v5357 = vrot.slane %v4684, %v5356
        %v5358 = vlaneseq
        %v5359 = vshrl.u32 %v5358, 7
        %v5360 = vsub.s32 3, %v5359
        %v5361 = vrot.slane %v4687, %v5360
        %v5362 = vlaneseq
        %v5363 = vshrl.u32 %v5362, 7
        %v5364 = vsub.s32 3, %v5363
        %v5365 = vrot.slane %v4692, %v5364
        %v5366 = vlaneseq
        %v5367 = vshrl.u32 %v5366, 7
        %v5368 = vsub.s32 3, %v5367
        %v5369 = vrot.slane %v4695, %v5368
        %v5370 = vlaneseq
        %v5371 = vshrl.u32 %v5370, 7
        %v5372 = vsub.s32 3, %v5371
        %v5373 = vrot.slane %v4700, %v5372
        %v5374 = vlaneseq
        %v5375 = vshrl.u32 %v5374, 7
        %v5376 = vsub.s32 3, %v5375
        %v5377 = vrot.slane %v4703, %v5376
        %v5378 = vlaneseq
        %v5379 = vshrl.u32 %v5378, 7
        %v5380 = vsub.s32 3, %v5379
        %v5381 = vrot.slane %v4708, %v5380
        %v5382 = vlaneseq
        %v5383 = vshrl.u32 %v5382, 7
        %v5384 = vsub.s32 3, %v5383
        %v5385 = vrot.slane %v4711, %v5384
        %v5386 = vlaneseq
        %v5387 = vshrl.u32 %v5386, 7
        %v5388 = vsub.s32 3, %v5387
        %v5389 = vrot.slane %v4716, %v5388
        %v5390 = vlaneseq
        %v5391 = vshrl.u32 %v5390, 7
        %v5392 = vsub.s32 3, %v5391
        %v5393 = vrot.slane %v4719, %v5392
        %v5394 = vlaneseq
        %v5395 = vshrl.u32 %v5394, 7
        %v5396 = vsub.s32 3, %v5395
        %v5397 = vrot.slane %v4724, %v5396
        %v5398 = vlaneseq
        %v5399 = vshrl.u32 %v5398, 7
        %v5400 = vsub.s32 3, %v5399
        %v5401 = vrot.slane %v4727, %v5400
        %v5402 = vlaneseq
        %v5403 = vshrl.u32 %v5402, 7
        %v5404 = vsub.s32 3, %v5403
        %v5405 = vrot.slane %v4732, %v5404
        %v5406 = vlaneseq
        %v5407 = vshrl.u32 %v5406, 7
        %v5408 = vsub.s32 3, %v5407
        %v5409 = vrot.slane %v4735, %v5408
        %v5410 = vlaneseq
        %v5411 = vshrl.u32 %v5410, 7
        %v5412 = vsub.s32 3, %v5411
        %v5413 = vrot.slane %v4740, %v5412
        %v5414 = vlaneseq
        %v5415 = vshrl.u32 %v5414, 7
        %v5416 = vsub.s32 3, %v5415
        %v5417 = vrot.slane %v4743, %v5416
        %v5418 = vlaneseq
        %v5419 = vshrl.u32 %v5418, 7
        %v5420 = vsub.s32 3, %v5419
        %v5421 = vrot.slane %v4748, %v5420
        %v5422 = vlaneseq
        %v5423 = vshrl.u32 %v5422, 7
        %v5424 = vsub.s32 3, %v5423
        %v5425 = vrot.slane %v4751, %v5424
        %v5426 = vmul.f32 %v2846, %v5301
        %v5427 = vmul.f32 %v2850, %v5305
        %v5428 = vmul.f32 %v2854, %v5309
        %v5429 = vmul.f32 %v2858, %v5313
        %v5430 = vmul.f32 %v2862, %v5317
        %v5431 = vmul.f32 %v2866, %v5321
        %v5432 = vmul.f32 %v2870, %v5325
        %v5433 = vmul.f32 %v2874, %v5329
        %v5434 = vmul.f32 %v2878, %v5333
        %v5435 = vmul.f32 %v2882, %v5337
        %v5436 = vmul.f32 %v2886, %v5341
        %v5437 = vmul.f32 %v2890, %v5345
        %v5438 = vmul.f32 %v2894, %v5349
        %v5439 = vmul.f32 %v2898, %v5353
        %v5440 = vmul.f32 %v2902, %v5357
        %v5441 = vmul.f32 %v2906, %v5361
        %v5442 = vmul.f32 %v2910, %v5365
        %v5443 = vmul.f32 %v2914, %v5369
        %v5444 = vmul.f32 %v2918, %v5373
        %v5445 = vmul.f32 %v2922, %v5377
        %v5446 = vmul.f32 %v2926, %v5381
        %v5447 = vmul.f32 %v2930, %v5385
        %v5448 = vmul.f32 %v2934, %v5389
        %v5449 = vmul.f32 %v2938, %v5393
        %v5450 = vmul.f32 %v2942, %v5397
        %v5451 = vmul.f32 %v2946, %v5401
        %v5452 = vmul.f32 %v2950, %v5405
        %v5453 = vmul.f32 %v2954, %v5409
        %v5454 = vmul.f32 %v2958, %v5413
        %v5455 = vmul.f32 %v2962, %v5417
        %v5456 = vmul.f32 %v2966, %v5421
        %v5457 = vmul.f32 %v2970, %v5425
        %v5458 = vadd.f32 %v5266, %v5426
        %v5459 = vadd.f32 %v5267, %v5427
        %v5460 = vadd.f32 %v5268, %v5428
        %v5461 = vadd.f32 %v5269, %v5429
        %v5462 = vadd.f32 %v5270, %v5430
        %v5463 = vadd.f32 %v5271, %v5431
        %v5464 = vadd.f32 %v5272, %v5432
        %v5465 = vadd.f32 %v5273, %v5433
        %v5466 = vadd.f32 %v5274, %v5434
        %v5467 = vadd.f32 %v5275, %v5435
        %v5468 = vadd.f32 %v5276, %v5436
        %v5469 = vadd.f32 %v5277, %v5437
        %v5470 = vadd.f32 %v5278, %v5438
        %v5471 = vadd.f32 %v5279, %v5439
        %v5472 = vadd.f32 %v5280, %v5440
        %v5473 = vadd.f32 %v5281, %v5441
        %v5474 = vadd.f32 %v5282, %v5442
        %v5475 = vadd.f32 %v5283, %v5443
        %v5476 = vadd.f32 %v5284, %v5444
        %v5477 = vadd.f32 %v5285, %v5445
        %v5478 = vadd.f32 %v5286, %v5446
        %v5479 = vadd.f32 %v5287, %v5447
        %v5480 = vadd.f32 %v5288, %v5448
        %v5481 = vadd.f32 %v5289, %v5449
        %v5482 = vadd.f32 %v5290, %v5450
        %v5483 = vadd.f32 %v5291, %v5451
        %v5484 = vadd.f32 %v5292, %v5452
        %v5485 = vadd.f32 %v5293, %v5453
        %v5486 = vadd.f32 %v5294, %v5454
        %v5487 = vadd.f32 %v5295, %v5455
        %v5488 = vadd.f32 %v5296, %v5456
        %v5489 = vadd.f32 %v5297, %v5457
        %v5490 = vlaneseq
        %v5491 = vshrl.u32 %v5490, 7
        %v5492 = vsub.s32 4, %v5491
        %v5493 = vrot.slane %v4628, %v5492
        %v5494 = vlaneseq
        %v5495 = vshrl.u32 %v5494, 7
        %v5496 = vsub.s32 4, %v5495
        %v5497 = vrot.slane %v4631, %v5496
        %v5498 = vlaneseq
        %v5499 = vshrl.u32 %v5498, 7
        %v5500 = vsub.s32 4, %v5499
        %v5501 = vrot.slane %v4636, %v5500
        %v5502 = vlaneseq
        %v5503 = vshrl.u32 %v5502, 7
        %v5504 = vsub.s32 4, %v5503
        %v5505 = vrot.slane %v4639, %v5504
        %v5506 = vlaneseq
        %v5507 = vshrl.u32 %v5506, 7
        %v5508 = vsub.s32 4, %v5507
        %v5509 = vrot.slane %v4644, %v5508
        %v5510 = vlaneseq
        %v5511 = vshrl.u32 %v5510, 7
        %v5512 = vsub.s32 4, %v5511
        %v5513 = vrot.slane %v4647, %v5512
        %v5514 = vlaneseq
        %v5515 = vshrl.u32 %v5514, 7
        %v5516 = vsub.s32 4, %v5515
        %v5517 = vrot.slane %v4652, %v5516
        %v5518 = vlaneseq
        %v5519 = vshrl.u32 %v5518, 7
        %v5520 = vsub.s32 4, %v5519
        %v5521 = vrot.slane %v4655, %v5520
        %v5522 = vlaneseq
        %v5523 = vshrl.u32 %v5522, 7
        %v5524 = vsub.s32 4, %v5523
        %v5525 = vrot.slane %v4660, %v5524
        %v5526 = vlaneseq
        %v5527 = vshrl.u32 %v5526, 7
        %v5528 = vsub.s32 4, %v5527
        %v5529 = vrot.slane %v4663, %v5528
        %v5530 = vlaneseq
        %v5531 = vshrl.u32 %v5530, 7
        %v5532 = vsub.s32 4, %v5531
        %v5533 = vrot.slane %v4668, %v5532
        %v5534 = vlaneseq
        %v5535 = vshrl.u32 %v5534, 7
        %v5536 = vsub.s32 4, %v5535
        %v5537 = vrot.slane %v4671, %v5536
        %v5538 = vlaneseq
        %v5539 = vshrl.u32 %v5538, 7
        %v5540 = vsub.s32 4, %v5539
        %v5541 = vrot.slane %v4676, %v5540
        %v5542 = vlaneseq
        %v5543 = vshrl.u32 %v5542, 7
        %v5544 = vsub.s32 4, %v5543
        %v5545 = vrot.slane %v4679, %v5544
        %v5546 = vlaneseq
        %v5547 = vshrl.u32 %v5546, 7
        %v5548 = vsub.s32 4, %v5547
        %v5549 = vrot.slane %v4684, %v5548
        %v5550 = vlaneseq
        %v5551 = vshrl.u32 %v5550, 7
        %v5552 = vsub.s32 4, %v5551
        %v5553 = vrot.slane %v4687, %v5552
        %v5554 = vlaneseq
        %v5555 = vshrl.u32 %v5554, 7
        %v5556 = vsub.s32 4, %v5555
        %v5557 = vrot.slane %v4692, %v5556
        %v5558 = vlaneseq
        %v5559 = vshrl.u32 %v5558, 7
        %v5560 = vsub.s32 4, %v5559
        %v5561 = vrot.slane %v4695, %v5560
        %v5562 = vlaneseq
        %v5563 = vshrl.u32 %v5562, 7
        %v5564 = vsub.s32 4, %v5563
        %v5565 = vrot.slane %v4700, %v5564
        %v5566 = vlaneseq
        %v5567 = vshrl.u32 %v5566, 7
        %v5568 = vsub.s32 4, %v5567
        %v5569 = vrot.slane %v4703, %v5568
        %v5570 = vlaneseq
        %v5571 = vshrl.u32 %v5570, 7
        %v5572 = vsub.s32 4, %v5571
        %v5573 = vrot.slane %v4708, %v5572
        %v5574 = vlaneseq
        %v5575 = vshrl.u32 %v5574, 7
        %v5576 = vsub.s32 4, %v5575
        %v5577 = vrot.slane %v4711, %v5576
        %v5578 = vlaneseq
        %v5579 = vshrl.u32 %v5578, 7
        %v5580 = vsub.s32 4, %v5579
        %v5581 = vrot.slane %v4716, %v5580
        %v5582 = vlaneseq
        %v5583 = vshrl.u32 %v5582, 7
        %v5584 = vsub.s32 4, %v5583
        %v5585 = vrot.slane %v4719, %v5584
        %v5586 = vlaneseq
        %v5587 = vshrl.u32 %v5586, 7
        %v5588 = vsub.s32 4, %v5587
        %v5589 = vrot.slane %v4724, %v5588
        %v5590 = vlaneseq
        %v5591 = vshrl.u32 %v5590, 7
        %v5592 = vsub.s32 4, %v5591
        %v5593 = vrot.slane %v4727, %v5592
        %v5594 = vlaneseq
        %v5595 = vshrl.u32 %v5594, 7
        %v5596 = vsub.s32 4, %v5595
        %v5597 = vrot.slane %v4732, %v5596
        %v5598 = vlaneseq
        %v5599 = vshrl.u32 %v5598, 7
        %v5600 = vsub.s32 4, %v5599
        %v5601 = vrot.slane %v4735, %v5600
        %v5602 = vlaneseq
        %v5603 = vshrl.u32 %v5602, 7
        %v5604 = vsub.s32 4, %v5603
        %v5605 = vrot.slane %v4740, %v5604
        %v5606 = vlaneseq
        %v5607 = vshrl.u32 %v5606, 7
        %v5608 = vsub.s32 4, %v5607
        %v5609 = vrot.slane %v4743, %v5608
        %v5610 = vlaneseq
        %v5611 = vshrl.u32 %v5610, 7
        %v5612 = vsub.s32 4, %v5611
        %v5613 = vrot.slane %v4748, %v5612
        %v5614 = vlaneseq
        %v5615 = vshrl.u32 %v5614, 7
        %v5616 = vsub.s32 4, %v5615
        %v5617 = vrot.slane %v4751, %v5616
        %v5618 = vmul.f32 %v3166, %v5493
        %v5619 = vmul.f32 %v3170, %v5497
        %v5620 = vmul.f32 %v3174, %v5501
        %v5621 = vmul.f32 %v3178, %v5505
        %v5622 = vmul.f32 %v3182, %v5509
        %v5623 = vmul.f32 %v3186, %v5513
        %v5624 = vmul.f32 %v3190, %v5517
        %v5625 = vmul.f32 %v3194, %v5521
        %v5626 = vmul.f32 %v3198, %v5525
        %v5627 = vmul.f32 %v3202, %v5529
        %v5628 = vmul.f32 %v3206, %v5533
        %v5629 = vmul.f32 %v3210, %v5537
        %v5630 = vmul.f32 %v3214, %v5541
        %v5631 = vmul.f32 %v3218, %v5545
        %v5632 = vmul.f32 %v3222, %v5549
        %v5633 = vmul.f32 %v3226, %v5553
        %v5634 = vmul.f32 %v3230, %v5557
        %v5635 = vmul.f32 %v3234, %v5561
        %v5636 = vmul.f32 %v3238, %v5565
        %v5637 = vmul.f32 %v3242, %v5569
        %v5638 = vmul.f32 %v3246, %v5573
        %v5639 = vmul.f32 %v3250, %v5577
        %v5640 = vmul.f32 %v3254, %v5581
        %v5641 = vmul.f32 %v3258, %v5585
        %v5642 = vmul.f32 %v3262, %v5589
        %v5643 = vmul.f32 %v3266, %v5593
        %v5644 = vmul.f32 %v3270, %v5597
        %v5645 = vmul.f32 %v3274, %v5601
        %v5646 = vmul.f32 %v3278, %v5605
        %v5647 = vmul.f32 %v3282, %v5609
        %v5648 = vmul.f32 %v3286, %v5613
        %v5649 = vmul.f32 %v3290, %v5617
        %v5650 = vadd.f32 %v5458, %v5618
        %v5651 = vadd.f32 %v5459, %v5619
        %v5652 = vadd.f32 %v5460, %v5620
        %v5653 = vadd.f32 %v5461, %v5621
        %v5654 = vadd.f32 %v5462, %v5622
        %v5655 = vadd.f32 %v5463, %v5623
        %v5656 = vadd.f32 %v5464, %v5624
        %v5657 = vadd.f32 %v5465, %v5625
        %v5658 = vadd.f32 %v5466, %v5626
        %v5659 = vadd.f32 %v5467, %v5627
        %v5660 = vadd.f32 %v5468, %v5628
        %v5661 = vadd.f32 %v5469, %v5629
        %v5662 = vadd.f32 %v5470, %v5630
        %v5663 = vadd.f32 %v5471, %v5631
        %v5664 = vadd.f32 %v5472, %v5632
        %v5665 = vadd.f32 %v5473, %v5633
        %v5666 = vadd.f32 %v5474, %v5634
        %v5667 = vadd.f32 %v5475, %v5635
        %v5668 = vadd.f32 %v5476, %v5636
        %v5669 = vadd.f32 %v5477, %v5637
        %v5670 = vadd.f32 %v5478, %v5638
        %v5671 = vadd.f32 %v5479, %v5639
        %v5672 = vadd.f32 %v5480, %v5640
        %v5673 = vadd.f32 %v5481, %v5641
        %v5674 = vadd.f32 %v5482, %v5642
        %v5675 = vadd.f32 %v5483, %v5643
        %v5676 = vadd.f32 %v5484, %v5644
        %v5677 = vadd.f32 %v5485, %v5645
        %v5678 = vadd.f32 %v5486, %v5646
        %v5679 = vadd.f32 %v5487, %v5647
        %v5680 = vadd.f32 %v5488, %v5648
        %v5681 = vadd.f32 %v5489, %v5649
        %v5682 = vlaneseq
        %v5683 = vshrl.u32 %v5682, 7
        %v5684 = vsub.s32 5, %v5683
        %v5685 = vrot.slane %v4628, %v5684
        %v5686 = vlaneseq
        %v5687 = vshrl.u32 %v5686, 7
        %v5688 = vsub.s32 5, %v5687
        %v5689 = vrot.slane %v4631, %v5688
        %v5690 = vlaneseq
        %v5691 = vshrl.u32 %v5690, 7
        %v5692 = vsub.s32 5, %v5691
        %v5693 = vrot.slane %v4636, %v5692
        %v5694 = vlaneseq
        %v5695 = vshrl.u32 %v5694, 7
        %v5696 = vsub.s32 5, %v5695
        %v5697 = vrot.slane %v4639, %v5696
        %v5698 = vlaneseq
        %v5699 = vshrl.u32 %v5698, 7
        %v5700 = vsub.s32 5, %v5699
        %v5701 = vrot.slane %v4644, %v5700
        %v5702 = vlaneseq
        %v5703 = vshrl.u32 %v5702, 7
        %v5704 = vsub.s32 5, %v5703
        %v5705 = vrot.slane %v4647, %v5704
        %v5706 = vlaneseq
        %v5707 = vshrl.u32 %v5706, 7
        %v5708 = vsub.s32 5, %v5707
        %v5709 = vrot.slane %v4652, %v5708
        %v5710 = vlaneseq
        %v5711 = vshrl.u32 %v5710, 7
        %v5712 = vsub.s32 5, %v5711
        %v5713 = vrot.slane %v4655, %v5712
        %v5714 = vlaneseq
        %v5715 = vshrl.u32 %v5714, 7
        %v5716 = vsub.s32 5, %v5715
        %v5717 = vrot.slane %v4660, %v5716
        %v5718 = vlaneseq
        %v5719 = vshrl.u32 %v5718, 7
        %v5720 = vsub.s32 5, %v5719
        %v5721 = vrot.slane %v4663, %v5720
        %v5722 = vlaneseq
        %v5723 = vshrl.u32 %v5722, 7
        %v5724 = vsub.s32 5, %v5723
        %v5725 = vrot.slane %v4668, %v5724
        %v5726 = vlaneseq
        %v5727 = vshrl.u32 %v5726, 7
        %v5728 = vsub.s32 5, %v5727
        %v5729 = vrot.slane %v4671, %v5728
        %v5730 = vlaneseq
        %v5731 = vshrl.u32 %v5730, 7
        %v5732 = vsub.s32 5, %v5731
        %v5733 = vrot.slane %v4676, %v5732
        %v5734 = vlaneseq
        %v5735 = vshrl.u32 %v5734, 7
        %v5736 = vsub.s32 5, %v5735
        %v5737 = vrot.slane %v4679, %v5736
        %v5738 = vlaneseq
        %v5739 = vshrl.u32 %v5738, 7
        %v5740 = vsub.s32 5, %v5739
        %v5741 = vrot.slane %v4684, %v5740
        %v5742 = vlaneseq
        %v5743 = vshrl.u32 %v5742, 7
        %v5744 = vsub.s32 5, %v5743
        %v5745 = vrot.slane %v4687, %v5744
        %v5746 = vlaneseq
        %v5747 = vshrl.u32 %v5746, 7
        %v5748 = vsub.s32 5, %v5747
        %v5749 = vrot.slane %v4692, %v5748
        %v5750 = vlaneseq
        %v5751 = vshrl.u32 %v5750, 7
        %v5752 = vsub.s32 5, %v5751
        %v5753 = vrot.slane %v4695, %v5752
        %v5754 = vlaneseq
        %v5755 = vshrl.u32 %v5754, 7
        %v5756 = vsub.s32 5, %v5755
        %v5757 = vrot.slane %v4700, %v5756
        %v5758 = vlaneseq
        %v5759 = vshrl.u32 %v5758, 7
        %v5760 = vsub.s32 5, %v5759
        %v5761 = vrot.slane %v4703, %v5760
        %v5762 = vlaneseq
        %v5763 = vshrl.u32 %v5762, 7
        %v5764 = vsub.s32 5, %v5763
        %v5765 = vrot.slane %v4708, %v5764
        %v5766 = vlaneseq
        %v5767 = vshrl.u32 %v5766, 7
        %v5768 = vsub.s32 5, %v5767
        %v5769 = vrot.slane %v4711, %v5768
        %v5770 = vlaneseq
        %v5771 = vshrl.u32 %v5770, 7
        %v5772 = vsub.s32 5, %v5771
        %v5773 = vrot.slane %v4716, %v5772
        %v5774 = vlaneseq
        %v5775 = vshrl.u32 %v5774, 7
        %v5776 = vsub.s32 5, %v5775
        %v5777 = vrot.slane %v4719, %v5776
        %v5778 = vlaneseq
        %v5779 = vshrl.u32 %v5778, 7
        %v5780 = vsub.s32 5, %v5779
        %v5781 = vrot.slane %v4724, %v5780
        %v5782 = vlaneseq
        %v5783 = vshrl.u32 %v5782, 7
        %v5784 = vsub.s32 5, %v5783
        %v5785 = vrot.slane %v4727, %v5784
        %v5786 = vlaneseq
        %v5787 = vshrl.u32 %v5786, 7
        %v5788 = vsub.s32 5, %v5787
        %v5789 = vrot.slane %v4732, %v5788
        %v5790 = vlaneseq
        %v5791 = vshrl.u32 %v5790, 7
        %v5792 = vsub.s32 5, %v5791
        %v5793 = vrot.slane %v4735, %v5792
        %v5794 = vlaneseq
        %v5795 = vshrl.u32 %v5794, 7
        %v5796 = vsub.s32 5, %v5795
        %v5797 = vrot.slane %v4740, %v5796
        %v5798 = vlaneseq
        %v5799 = vshrl.u32 %v5798, 7
        %v5800 = vsub.s32 5, %v5799
        %v5801 = vrot.slane %v4743, %v5800
        %v5802 = vlaneseq
        %v5803 = vshrl.u32 %v5802, 7
        %v5804 = vsub.s32 5, %v5803
        %v5805 = vrot.slane %v4748, %v5804
        %v5806 = vlaneseq
        %v5807 = vshrl.u32 %v5806, 7
        %v5808 = vsub.s32 5, %v5807
        %v5809 = vrot.slane %v4751, %v5808
        %v5810 = vmul.f32 %v3486, %v5685
        %v5811 = vmul.f32 %v3490, %v5689
        %v5812 = vmul.f32 %v3494, %v5693
        %v5813 = vmul.f32 %v3498, %v5697
        %v5814 = vmul.f32 %v3502, %v5701
        %v5815 = vmul.f32 %v3506, %v5705
        %v5816 = vmul.f32 %v3510, %v5709
        %v5817 = vmul.f32 %v3514, %v5713
        %v5818 = vmul.f32 %v3518, %v5717
        %v5819 = vmul.f32 %v3522, %v5721
        %v5820 = vmul.f32 %v3526, %v5725
        %v5821 = vmul.f32 %v3530, %v5729
        %v5822 = vmul.f32 %v3534, %v5733
        %v5823 = vmul.f32 %v3538, %v5737
        %v5824 = vmul.f32 %v3542, %v5741
        %v5825 = vmul.f32 %v3546, %v5745
        %v5826 = vmul.f32 %v3550, %v5749
        %v5827 = vmul.f32 %v3554, %v5753
        %v5828 = vmul.f32 %v3558, %v5757
        %v5829 = vmul.f32 %v3562, %v5761
        %v5830 = vmul.f32 %v3566, %v5765
        %v5831 = vmul.f32 %v3570, %v5769
        %v5832 = vmul.f32 %v3574, %v5773
        %v5833 = vmul.f32 %v3578, %v5777
        %v5834 = vmul.f32 %v3582, %v5781
        %v5835 = vmul.f32 %v3586, %v5785
        %v5836 = vmul.f32 %v3590, %v5789
        %v5837 = vmul.f32 %v3594, %v5793
        %v5838 = vmul.f32 %v3598, %v5797
        %v5839 = vmul.f32 %v3602, %v5801
        %v5840 = vmul.f32 %v3606, %v5805
        %v5841 = vmul.f32 %v3610, %v5809
        %v5842 = vadd.f32 %v5650, %v5810
        %v5843 = vadd.f32 %v5651, %v5811
        %v5844 = vadd.f32 %v5652, %v5812
        %v5845 = vadd.f32 %v5653, %v5813
        %v5846 = vadd.f32 %v5654, %v5814
        %v5847 = vadd.f32 %v5655, %v5815
        %v5848 = vadd.f32 %v5656, %v5816
        %v5849 = vadd.f32 %v5657, %v5817
        %v5850 = vadd.f32 %v5658, %v5818
        %v5851 = vadd.f32 %v5659, %v5819
        %v5852 = vadd.f32 %v5660, %v5820
        %v5853 = vadd.f32 %v5661, %v5821
        %v5854 = vadd.f32 %v5662, %v5822
        %v5855 = vadd.f32 %v5663, %v5823
        %v5856 = vadd.f32 %v5664, %v5824
        %v5857 = vadd.f32 %v5665, %v5825
        %v5858 = vadd.f32 %v5666, %v5826
        %v5859 = vadd.f32 %v5667, %v5827
        %v5860 = vadd.f32 %v5668, %v5828
        %v5861 = vadd.f32 %v5669, %v5829
        %v5862 = vadd.f32 %v5670, %v5830
        %v5863 = vadd.f32 %v5671, %v5831
        %v5864 = vadd.f32 %v5672, %v5832
        %v5865 = vadd.f32 %v5673, %v5833
        %v5866 = vadd.f32 %v5674, %v5834
        %v5867 = vadd.f32 %v5675, %v5835
        %v5868 = vadd.f32 %v5676, %v5836
        %v5869 = vadd.f32 %v5677, %v5837
        %v5870 = vadd.f32 %v5678, %v5838
        %v5871 = vadd.f32 %v5679, %v5839
        %v5872 = vadd.f32 %v5680, %v5840
        %v5873 = vadd.f32 %v5681, %v5841
        %v5874 = vlaneseq
        %v5875 = vshrl.u32 %v5874, 7
        %v5876 = vsub.s32 6, %v5875
        %v5877 = vrot.slane %v4628, %v5876
        %v5878 = vlaneseq
        %v5879 = vshrl.u32 %v5878, 7
        %v5880 = vsub.s32 6, %v5879
        %v5881 = vrot.slane %v4631, %v5880
        %v5882 = vlaneseq
        %v5883 = vshrl.u32 %v5882, 7
        %v5884 = vsub.s32 6, %v5883
        %v5885 = vrot.slane %v4636, %v5884
        %v5886 = vlaneseq
        %v5887 = vshrl.u32 %v5886, 7
        %v5888 = vsub.s32 6, %v5887
        %v5889 = vrot.slane %v4639, %v5888
        %v5890 = vlaneseq
        %v5891 = vshrl.u32 %v5890, 7
        %v5892 = vsub.s32 6, %v5891
        %v5893 = vrot.slane %v4644, %v5892
        %v5894 = vlaneseq
        %v5895 = vshrl.u32 %v5894, 7
        %v5896 = vsub.s32 6, %v5895
        %v5897 = vrot.slane %v4647, %v5896
        %v5898 = vlaneseq
        %v5899 = vshrl.u32 %v5898, 7
        %v5900 = vsub.s32 6, %v5899
        %v5901 = vrot.slane %v4652, %v5900
        %v5902 = vlaneseq
        %v5903 = vshrl.u32 %v5902, 7
        %v5904 = vsub.s32 6, %v5903
        %v5905 = vrot.slane %v4655, %v5904
        %v5906 = vlaneseq
        %v5907 = vshrl.u32 %v5906, 7
        %v5908 = vsub.s32 6, %v5907
        %v5909 = vrot.slane %v4660, %v5908
        %v5910 = vlaneseq
        %v5911 = vshrl.u32 %v5910, 7
        %v5912 = vsub.s32 6, %v5911
        %v5913 = vrot.slane %v4663, %v5912
        %v5914 = vlaneseq
        %v5915 = vshrl.u32 %v5914, 7
        %v5916 = vsub.s32 6, %v5915
        %v5917 = vrot.slane %v4668, %v5916
        %v5918 = vlaneseq
        %v5919 = vshrl.u32 %v5918, 7
        %v5920 = vsub.s32 6, %v5919
        %v5921 = vrot.slane %v4671, %v5920
        %v5922 = vlaneseq
        %v5923 = vshrl.u32 %v5922, 7
        %v5924 = vsub.s32 6, %v5923
        %v5925 = vrot.slane %v4676, %v5924
        %v5926 = vlaneseq
        %v5927 = vshrl.u32 %v5926, 7
        %v5928 = vsub.s32 6, %v5927
        %v5929 = vrot.slane %v4679, %v5928
        %v5930 = vlaneseq
        %v5931 = vshrl.u32 %v5930, 7
        %v5932 = vsub.s32 6, %v5931
        %v5933 = vrot.slane %v4684, %v5932
        %v5934 = vlaneseq
        %v5935 = vshrl.u32 %v5934, 7
        %v5936 = vsub.s32 6, %v5935
        %v5937 = vrot.slane %v4687, %v5936
        %v5938 = vlaneseq
        %v5939 = vshrl.u32 %v5938, 7
        %v5940 = vsub.s32 6, %v5939
        %v5941 = vrot.slane %v4692, %v5940
        %v5942 = vlaneseq
        %v5943 = vshrl.u32 %v5942, 7
        %v5944 = vsub.s32 6, %v5943
        %v5945 = vrot.slane %v4695, %v5944
        %v5946 = vlaneseq
        %v5947 = vshrl.u32 %v5946, 7
        %v5948 = vsub.s32 6, %v5947
        %v5949 = vrot.slane %v4700, %v5948
        %v5950 = vlaneseq
        %v5951 = vshrl.u32 %v5950, 7
        %v5952 = vsub.s32 6, %v5951
        %v5953 = vrot.slane %v4703, %v5952
        %v5954 = vlaneseq
        %v5955 = vshrl.u32 %v5954, 7
        %v5956 = vsub.s32 6, %v5955
        %v5957 = vrot.slane %v4708, %v5956
        %v5958 = vlaneseq
        %v5959 = vshrl.u32 %v5958, 7
        %v5960 = vsub.s32 6, %v5959
        %v5961 = vrot.slane %v4711, %v5960
        %v5962 = vlaneseq
        %v5963 = vshrl.u32 %v5962, 7
        %v5964 = vsub.s32 6, %v5963
        %v5965 = vrot.slane %v4716, %v5964
        %v5966 = vlaneseq
        %v5967 = vshrl.u32 %v5966, 7
        %v5968 = vsub.s32 6, %v5967
        %v5969 = vrot.slane %v4719, %v5968
        %v5970 = vlaneseq
        %v5971 = vshrl.u32 %v5970, 7
        %v5972 = vsub.s32 6, %v5971
        %v5973 = vrot.slane %v4724, %v5972
        %v5974 = vlaneseq
        %v5975 = vshrl.u32 %v5974, 7
        %v5976 = vsub.s32 6, %v5975
        %v5977 = vrot.slane %v4727, %v5976
        %v5978 = vlaneseq
        %v5979 = vshrl.u32 %v5978, 7
        %v5980 = vsub.s32 6, %v5979
        %v5981 = vrot.slane %v4732, %v5980
        %v5982 = vlaneseq
        %v5983 = vshrl.u32 %v5982, 7
        %v5984 = vsub.s32 6, %v5983
        %v5985 = vrot.slane %v4735, %v5984
        %v5986 = vlaneseq
        %v5987 = vshrl.u32 %v5986, 7
        %v5988 = vsub.s32 6, %v5987
        %v5989 = vrot.slane %v4740, %v5988
        %v5990 = vlaneseq
        %v5991 = vshrl.u32 %v5990, 7
        %v5992 = vsub.s32 6, %v5991
        %v5993 = vrot.slane %v4743, %v5992
        %v5994 = vlaneseq
        %v5995 = vshrl.u32 %v5994, 7
        %v5996 = vsub.s32 6, %v5995
        %v5997 = vrot.slane %v4748, %v5996
        %v5998 = vlaneseq
        %v5999 = vshrl.u32 %v5998, 7
        %v6000 = vsub.s32 6, %v5999
        %v6001 = vrot.slane %v4751, %v6000
        %v6002 = vmul.f32 %v3806, %v5877
        %v6003 = vmul.f32 %v3810, %v5881
        %v6004 = vmul.f32 %v3814, %v5885
        %v6005 = vmul.f32 %v3818, %v5889
        %v6006 = vmul.f32 %v3822, %v5893
        %v6007 = vmul.f32 %v3826, %v5897
        %v6008 = vmul.f32 %v3830, %v5901
        %v6009 = vmul.f32 %v3834, %v5905
        %v6010 = vmul.f32 %v3838, %v5909
        %v6011 = vmul.f32 %v3842, %v5913
        %v6012 = vmul.f32 %v3846, %v5917
        %v6013 = vmul.f32 %v3850, %v5921
        %v6014 = vmul.f32 %v3854, %v5925
        %v6015 = vmul.f32 %v3858, %v5929
        %v6016 = vmul.f32 %v3862, %v5933
        %v6017 = vmul.f32 %v3866, %v5937
        %v6018 = vmul.f32 %v3870, %v5941
        %v6019 = vmul.f32 %v3874, %v5945
        %v6020 = vmul.f32 %v3878, %v5949
        %v6021 = vmul.f32 %v3882, %v5953
        %v6022 = vmul.f32 %v3886, %v5957
        %v6023 = vmul.f32 %v3890, %v5961
        %v6024 = vmul.f32 %v3894, %v5965
        %v6025 = vmul.f32 %v3898, %v5969
        %v6026 = vmul.f32 %v3902, %v5973
        %v6027 = vmul.f32 %v3906, %v5977
        %v6028 = vmul.f32 %v3910, %v5981
        %v6029 = vmul.f32 %v3914, %v5985
        %v6030 = vmul.f32 %v3918, %v5989
        %v6031 = vmul.f32 %v3922, %v5993
        %v6032 = vmul.f32 %v3926, %v5997
        %v6033 = vmul.f32 %v3930, %v6001
        %v6034 = vadd.f32 %v5842, %v6002
        %v6035 = vadd.f32 %v5843, %v6003
        %v6036 = vadd.f32 %v5844, %v6004
        %v6037 = vadd.f32 %v5845, %v6005
        %v6038 = vadd.f32 %v5846, %v6006
        %v6039 = vadd.f32 %v5847, %v6007
        %v6040 = vadd.f32 %v5848, %v6008
        %v6041 = vadd.f32 %v5849, %v6009
        %v6042 = vadd.f32 %v5850, %v6010
        %v6043 = vadd.f32 %v5851, %v6011
        %v6044 = vadd.f32 %v5852, %v6012
        %v6045 = vadd.f32 %v5853, %v6013
        %v6046 = vadd.f32 %v5854, %v6014
        %v6047 = vadd.f32 %v5855, %v6015
        %v6048 = vadd.f32 %v5856, %v6016
        %v6049 = vadd.f32 %v5857, %v6017
        %v6050 = vadd.f32 %v5858, %v6018
        %v6051 = vadd.f32 %v5859, %v6019
        %v6052 = vadd.f32 %v5860, %v6020
        %v6053 = vadd.f32 %v5861, %v6021
        %v6054 = vadd.f32 %v5862, %v6022
        %v6055 = vadd.f32 %v5863, %v6023
        %v6056 = vadd.f32 %v5864, %v6024
        %v6057 = vadd.f32 %v5865, %v6025
        %v6058 = vadd.f32 %v5866, %v6026
        %v6059 = vadd.f32 %v5867, %v6027
        %v6060 = vadd.f32 %v5868, %v6028
        %v6061 = vadd.f32 %v5869, %v6029
        %v6062 = vadd.f32 %v5870, %v6030
        %v6063 = vadd.f32 %v5871, %v6031
        %v6064 = vadd.f32 %v5872, %v6032
        %v6065 = vadd.f32 %v5873, %v6033
        %v6066 = vlaneseq
        %v6067 = vshrl.u32 %v6066, 7
        %v6068 = vsub.s32 7, %v6067
        %v6069 = vrot.slane %v4628, %v6068
        %v6070 = vlaneseq
        %v6071 = vshrl.u32 %v6070, 7
        %v6072 = vsub.s32 7, %v6071
        %v6073 = vrot.slane %v4631, %v6072
        %v6074 = vlaneseq
        %v6075 = vshrl.u32 %v6074, 7
        %v6076 = vsub.s32 7, %v6075
        %v6077 = vrot.slane %v4636, %v6076
        %v6078 = vlaneseq
        %v6079 = vshrl.u32 %v6078, 7
        %v6080 = vsub.s32 7, %v6079
        %v6081 = vrot.slane %v4639, %v6080
        %v6082 = vlaneseq
        %v6083 = vshrl.u32 %v6082, 7
        %v6084 = vsub.s32 7, %v6083
        %v6085 = vrot.slane %v4644, %v6084
        %v6086 = vlaneseq
        %v6087 = vshrl.u32 %v6086, 7
        %v6088 = vsub.s32 7, %v6087
        %v6089 = vrot.slane %v4647, %v6088
        %v6090 = vlaneseq
        %v6091 = vshrl.u32 %v6090, 7
        %v6092 = vsub.s32 7, %v6091
        %v6093 = vrot.slane %v4652, %v6092
        %v6094 = vlaneseq
        %v6095 = vshrl.u32 %v6094, 7
        %v6096 = vsub.s32 7, %v6095
        %v6097 = vrot.slane %v4655, %v6096
        %v6098 = vlaneseq
        %v6099 = vshrl.u32 %v6098, 7
        %v6100 = vsub.s32 7, %v6099
        %v6101 = vrot.slane %v4660, %v6100
        %v6102 = vlaneseq
        %v6103 = vshrl.u32 %v6102, 7
        %v6104 = vsub.s32 7, %v6103
        %v6105 = vrot.slane %v4663, %v6104
        %v6106 = vlaneseq
        %v6107 = vshrl.u32 %v6106, 7
        %v6108 = vsub.s32 7, %v6107
        %v6109 = vrot.slane %v4668, %v6108
        %v6110 = vlaneseq
        %v6111 = vshrl.u32 %v6110, 7
        %v6112 = vsub.s32 7, %v6111
        %v6113 = vrot.slane %v4671, %v6112
        %v6114 = vlaneseq
        %v6115 = vshrl.u32 %v6114, 7
        %v6116 = vsub.s32 7, %v6115
        %v6117 = vrot.slane %v4676, %v6116
        %v6118 = vlaneseq
        %v6119 = vshrl.u32 %v6118, 7
        %v6120 = vsub.s32 7, %v6119
        %v6121 = vrot.slane %v4679, %v6120
        %v6122 = vlaneseq
        %v6123 = vshrl.u32 %v6122, 7
        %v6124 = vsub.s32 7, %v6123
        %v6125 = vrot.slane %v4684, %v6124
        %v6126 = vlaneseq
        %v6127 = vshrl.u32 %v6126, 7
        %v6128 = vsub.s32 7, %v6127
        %v6129 = vrot.slane %v4687, %v6128
        %v6130 = vlaneseq
        %v6131 = vshrl.u32 %v6130, 7
        %v6132 = vsub.s32 7, %v6131
        %v6133 = vrot.slane %v4692, %v6132
        %v6134 = vlaneseq
        %v6135 = vshrl.u32 %v6134, 7
        %v6136 = vsub.s32 7, %v6135
        %v6137 = vrot.slane %v4695, %v6136
        %v6138 = vlaneseq
        %v6139 = vshrl.u32 %v6138, 7
        %v6140 = vsub.s32 7, %v6139
        %v6141 = vrot.slane %v4700, %v6140
        %v6142 = vlaneseq
        %v6143 = vshrl.u32 %v6142, 7
        %v6144 = vsub.s32 7, %v6143
        %v6145 = vrot.slane %v4703, %v6144
        %v6146 = vlaneseq
        %v6147 = vshrl.u32 %v6146, 7
        %v6148 = vsub.s32 7, %v6147
        %v6149 = vrot.slane %v4708, %v6148
        %v6150 = vlaneseq
        %v6151 = vshrl.u32 %v6150, 7
        %v6152 = vsub.s32 7, %v6151
        %v6153 = vrot.slane %v4711, %v6152
        %v6154 = vlaneseq
        %v6155 = vshrl.u32 %v6154, 7
        %v6156 = vsub.s32 7, %v6155
        %v6157 = vrot.slane %v4716, %v6156
        %v6158 = vlaneseq
        %v6159 = vshrl.u32 %v6158, 7
        %v6160 = vsub.s32 7, %v6159
        %v6161 = vrot.slane %v4719, %v6160
        %v6162 = vlaneseq
        %v6163 = vshrl.u32 %v6162, 7
        %v6164 = vsub.s32 7, %v6163
        %v6165 = vrot.slane %v4724, %v6164
        %v6166 = vlaneseq
        %v6167 = vshrl.u32 %v6166, 7
        %v6168 = vsub.s32 7, %v6167
        %v6169 = vrot.slane %v4727, %v6168
        %v6170 = vlaneseq
        %v6171 = vshrl.u32 %v6170, 7
        %v6172 = vsub.s32 7, %v6171
        %v6173 = vrot.slane %v4732, %v6172
        %v6174 = vlaneseq
        %v6175 = vshrl.u32 %v6174, 7
        %v6176 = vsub.s32 7, %v6175
        %v6177 = vrot.slane %v4735, %v6176
        %v6178 = vlaneseq
        %v6179 = vshrl.u32 %v6178, 7
        %v6180 = vsub.s32 7, %v6179
        %v6181 = vrot.slane %v4740, %v6180
        %v6182 = vlaneseq
        %v6183 = vshrl.u32 %v6182, 7
        %v6184 = vsub.s32 7, %v6183
        %v6185 = vrot.slane %v4743, %v6184
        %v6186 = vlaneseq
        %v6187 = vshrl.u32 %v6186, 7
        %v6188 = vsub.s32 7, %v6187
        %v6189 = vrot.slane %v4748, %v6188
        %v6190 = vlaneseq
        %v6191 = vshrl.u32 %v6190, 7
        %v6192 = vsub.s32 7, %v6191
        %v6193 = vrot.slane %v4751, %v6192
        %v6194 = vmul.f32 %v4126, %v6069
        %v6195 = vmul.f32 %v4130, %v6073
        %v6196 = vmul.f32 %v4134, %v6077
        %v6197 = vmul.f32 %v4138, %v6081
        %v6198 = vmul.f32 %v4142, %v6085
        %v6199 = vmul.f32 %v4146, %v6089
        %v6200 = vmul.f32 %v4150, %v6093
        %v6201 = vmul.f32 %v4154, %v6097
        %v6202 = vmul.f32 %v4158, %v6101
        %v6203 = vmul.f32 %v4162, %v6105
        %v6204 = vmul.f32 %v4166, %v6109
        %v6205 = vmul.f32 %v4170, %v6113
        %v6206 = vmul.f32 %v4174, %v6117
        %v6207 = vmul.f32 %v4178, %v6121
        %v6208 = vmul.f32 %v4182, %v6125
        %v6209 = vmul.f32 %v4186, %v6129
        %v6210 = vmul.f32 %v4190, %v6133
        %v6211 = vmul.f32 %v4194, %v6137
        %v6212 = vmul.f32 %v4198, %v6141
        %v6213 = vmul.f32 %v4202, %v6145
        %v6214 = vmul.f32 %v4206, %v6149
        %v6215 = vmul.f32 %v4210, %v6153
        %v6216 = vmul.f32 %v4214, %v6157
        %v6217 = vmul.f32 %v4218, %v6161
        %v6218 = vmul.f32 %v4222, %v6165
        %v6219 = vmul.f32 %v4226, %v6169
        %v6220 = vmul.f32 %v4230, %v6173
        %v6221 = vmul.f32 %v4234, %v6177
        %v6222 = vmul.f32 %v4238, %v6181
        %v6223 = vmul.f32 %v4242, %v6185
        %v6224 = vmul.f32 %v4246, %v6189
        %v6225 = vmul.f32 %v4250, %v6193
        %v6226 = vadd.f32 %v6034, %v6194
        %v6227 = vadd.f32 %v6035, %v6195
        %v6228 = vadd.f32 %v6036, %v6196
        %v6229 = vadd.f32 %v6037, %v6197
        %v6230 = vadd.f32 %v6038, %v6198
        %v6231 = vadd.f32 %v6039, %v6199
        %v6232 = vadd.f32 %v6040, %v6200
        %v6233 = vadd.f32 %v6041, %v6201
        %v6234 = vadd.f32 %v6042, %v6202
        %v6235 = vadd.f32 %v6043, %v6203
        %v6236 = vadd.f32 %v6044, %v6204
        %v6237 = vadd.f32 %v6045, %v6205
        %v6238 = vadd.f32 %v6046, %v6206
        %v6239 = vadd.f32 %v6047, %v6207
        %v6240 = vadd.f32 %v6048, %v6208
        %v6241 = vadd.f32 %v6049, %v6209
        %v6242 = vadd.f32 %v6050, %v6210
        %v6243 = vadd.f32 %v6051, %v6211
        %v6244 = vadd.f32 %v6052, %v6212
        %v6245 = vadd.f32 %v6053, %v6213
        %v6246 = vadd.f32 %v6054, %v6214
        %v6247 = vadd.f32 %v6055, %v6215
        %v6248 = vadd.f32 %v6056, %v6216
        %v6249 = vadd.f32 %v6057, %v6217
        %v6250 = vadd.f32 %v6058, %v6218
        %v6251 = vadd.f32 %v6059, %v6219
        %v6252 = vadd.f32 %v6060, %v6220
        %v6253 = vadd.f32 %v6061, %v6221
        %v6254 = vadd.f32 %v6062, %v6222
        %v6255 = vadd.f32 %v6063, %v6223
        %v6256 = vadd.f32 %v6064, %v6224
        %v6257 = vadd.f32 %v6065, %v6225
        %v6258 = vlaneseq
        %v6259 = vshrl.u32 %v6258, 7
        %v6260 = vsub.s32 1, %v6259
        %v6261 = vrot.slane %v217, %v6260
        %v6262 = vadd.f32 %v6226, %v6261
        %v6263 = vadd.f32 %v6227, %v6261
        %v6264 = vadd.f32 %v6228, %v6261
        %v6265 = vadd.f32 %v6229, %v6261
        %v6266 = vadd.f32 %v6230, %v6261
        %v6267 = vadd.f32 %v6231, %v6261
        %v6268 = vadd.f32 %v6232, %v6261
        %v6269 = vadd.f32 %v6233, %v6261
        %v6270 = vadd.f32 %v6234, %v6261
        %v6271 = vadd.f32 %v6235, %v6261
        %v6272 = vadd.f32 %v6236, %v6261
        %v6273 = vadd.f32 %v6237, %v6261
        %v6274 = vadd.f32 %v6238, %v6261
        %v6275 = vadd.f32 %v6239, %v6261
        %v6276 = vadd.f32 %v6240, %v6261
        %v6277 = vadd.f32 %v6241, %v6261
        %v6278 = vadd.f32 %v6242, %v6261
        %v6279 = vadd.f32 %v6243, %v6261
        %v6280 = vadd.f32 %v6244, %v6261
        %v6281 = vadd.f32 %v6245, %v6261
        %v6282 = vadd.f32 %v6246, %v6261
        %v6283 = vadd.f32 %v6247, %v6261
        %v6284 = vadd.f32 %v6248, %v6261
        %v6285 = vadd.f32 %v6249, %v6261
        %v6286 = vadd.f32 %v6250, %v6261
        %v6287 = vadd.f32 %v6251, %v6261
        %v6288 = vadd.f32 %v6252, %v6261
        %v6289 = vadd.f32 %v6253, %v6261
        %v6290 = vadd.f32 %v6254, %v6261
        %v6291 = vadd.f32 %v6255, %v6261
        %v6292 = vadd.f32 %v6256, %v6261
        %v6293 = vadd.f32 %v6257, %v6261
        %v6294 = vmax.f32 %v6262, 0.0
        %v6295 = vmax.f32 %v6263, 0.0
        %v6296 = vmax.f32 %v6264, 0.0
        %v6297 = vmax.f32 %v6265, 0.0
        %v6298 = vmax.f32 %v6266, 0.0
        %v6299 = vmax.f32 %v6267, 0.0
        %v6300 = vmax.f32 %v6268, 0.0
        %v6301 = vmax.f32 %v6269, 0.0
        %v6302 = vmax.f32 %v6270, 0.0
        %v6303 = vmax.f32 %v6271, 0.0
        %v6304 = vmax.f32 %v6272, 0.0
        %v6305 = vmax.f32 %v6273, 0.0
        %v6306 = vmax.f32 %v6274, 0.0
        %v6307 = vmax.f32 %v6275, 0.0
        %v6308 = vmax.f32 %v6276, 0.0
        %v6309 = vmax.f32 %v6277, 0.0
        %v6310 = vmax.f32 %v6278, 0.0
        %v6311 = vmax.f32 %v6279, 0.0
        %v6312 = vmax.f32 %v6280, 0.0
        %v6313 = vmax.f32 %v6281, 0.0
        %v6314 = vmax.f32 %v6282, 0.0
        %v6315 = vmax.f32 %v6283, 0.0
        %v6316 = vmax.f32 %v6284, 0.0
        %v6317 = vmax.f32 %v6285, 0.0
        %v6318 = vmax.f32 %v6286, 0.0
        %v6319 = vmax.f32 %v6287, 0.0
        %v6320 = vmax.f32 %v6288, 0.0
        %v6321 = vmax.f32 %v6289, 0.0
        %v6322 = vmax.f32 %v6290, 0.0
        %v6323 = vmax.f32 %v6291, 0.0
        %v6324 = vmax.f32 %v6292, 0.0
        %v6325 = vmax.f32 %v6293, 0.0
        %v6326 = vpack.c.bf16 %v6295, %v6294
        %v6327 = vpack.c.bf16 %v6297, %v6296
        %v6328 = vpack.c.bf16 %v6299, %v6298
        %v6329 = vpack.c.bf16 %v6301, %v6300
        %v6330 = vpack.c.bf16 %v6303, %v6302
        %v6331 = vpack.c.bf16 %v6305, %v6304
        %v6332 = vpack.c.bf16 %v6307, %v6306
        %v6333 = vpack.c.bf16 %v6309, %v6308
        %v6334 = vpack.c.bf16 %v6311, %v6310
        %v6335 = vpack.c.bf16 %v6313, %v6312
        %v6336 = vpack.c.bf16 %v6315, %v6314
        %v6337 = vpack.c.bf16 %v6317, %v6316
        %v6338 = vpack.c.bf16 %v6319, %v6318
        %v6339 = vpack.c.bf16 %v6321, %v6320
        %v6340 = vpack.c.bf16 %v6323, %v6322
        %v6341 = vpack.c.bf16 %v6325, %v6324
        %s6342 = scalar_lea.vmem %s2, 128
        %v6343 = vld [vmem:[%s6342] sm:$0xf]
        %v6344 = vld [vmem:[%s6342 + $0x4] sm:$0xf]
        %v6345 = vld [vmem:[%s6342 + $0x8] sm:$0xf]
        %v6346 = vld [vmem:[%s6342 + $0xc] sm:$0xf]
        %v6347 = vld [vmem:[%s6342 + $0x10] sm:$0xf]
        %v6348 = vld [vmem:[%s6342 + $0x14] sm:$0xf]
        %v6349 = vld [vmem:[%s6342 + $0x18] sm:$0xf]
        %v6350 = vld [vmem:[%s6342 + $0x1c] sm:$0xf]
        %v6351 = vld [vmem:[%s6342 + $0x20] sm:$0xf]
        %v6352 = vld [vmem:[%s6342 + $0x24] sm:$0xf]
        %v6353 = vld [vmem:[%s6342 + $0x28] sm:$0xf]
        %v6354 = vld [vmem:[%s6342 + $0x2c] sm:$0xf]
        %v6355 = vld [vmem:[%s6342 + $0x30] sm:$0xf]
        %v6356 = vld [vmem:[%s6342 + $0x34] sm:$0xf]
        %v6357 = vld [vmem:[%s6342 + $0x38] sm:$0xf]
        %v6358 = vld [vmem:[%s6342 + $0x3c] sm:$0xf]
        %v6375 = vunpack.c.l.b16 %v6343
        %v6376 = vunpack.c.l.b16 %v6344
        %v6377 = vunpack.c.l.b16 %v6345
        %v6378 = vunpack.c.l.b16 %v6346
        %v6379 = vunpack.c.l.b16 %v6347
        %v6380 = vunpack.c.l.b16 %v6348
        %v6381 = vunpack.c.l.b16 %v6349
        %v6382 = vunpack.c.l.b16 %v6350
        %v6383 = vunpack.c.l.b16 %v6351
        %v6384 = vunpack.c.l.b16 %v6352
        %v6385 = vunpack.c.l.b16 %v6353
        %v6386 = vunpack.c.l.b16 %v6354
        %v6387 = vunpack.c.l.b16 %v6355
        %v6388 = vunpack.c.l.b16 %v6356
        %v6389 = vunpack.c.l.b16 %v6357
        %v6390 = vunpack.c.l.b16 %v6358
        %v6391 = vpack.c.b16 %v6376, %v6375
        %v6392 = vpack.c.b16 %v6378, %v6377
        %v6393 = vpack.c.b16 %v6380, %v6379
        %v6394 = vpack.c.b16 %v6382, %v6381
        %v6395 = vpack.c.b16 %v6384, %v6383
        %v6396 = vpack.c.b16 %v6386, %v6385
        %v6397 = vpack.c.b16 %v6388, %v6387
        %v6398 = vpack.c.b16 %v6390, %v6389
        %6407 = vmatprep.subr.bf16.mxu0 0
        %6408 = vmatpush1.bf16.msra.mxu0 %v6391
        %6409 = vmatprep.subr.bf16.mxu0 0
        %6410 = vmatpush1.bf16.msra.mxu0 %v6392
        %6411 = vmatprep.subr.bf16.mxu0 0
        %6412 = vmatpush1.bf16.msra.mxu0 %v6393
        %6413 = vmatprep.subr.bf16.mxu0 0
        %6414 = vmatpush1.bf16.msra.mxu0 %v6394
        %6415 = vmatprep.subr.bf16.mxu0 0
        %6416 = vmatpush1.bf16.msra.mxu0 %v6395
        %6417 = vmatprep.subr.bf16.mxu0 0
        %6418 = vmatpush1.bf16.msra.mxu0 %v6396
        %6419 = vmatprep.subr.bf16.mxu0 0
        %6420 = vmatpush1.bf16.msra.mxu0 %v6397
        %6421 = vmatprep.subr.bf16.mxu0 0
        %6422 = vmatpush1.bf16.msra.mxu0 %v6398
        %6423 = vmatprep.subr.bf16.mxu0 0
        %6424 = vmatpush1.bf16.msra.mxu0 0
        %6425 = vmatprep.subr.bf16.mxu0 0
        %6426 = vmatpush1.bf16.msra.mxu0 0
        %6427 = vmatprep.subr.bf16.mxu0 0
        %6428 = vmatpush1.bf16.msra.mxu0 0
        %6429 = vmatprep.subr.bf16.mxu0 0
        %6430 = vmatpush1.bf16.msra.mxu0 0
        %6431 = vmatprep.subr.bf16.mxu0 0
        %6432 = vmatpush1.bf16.msra.mxu0 0
        %6433 = vmatprep.subr.bf16.mxu0 0
        %6434 = vmatpush1.bf16.msra.mxu0 0
        %6435 = vmatprep.subr.bf16.mxu0 0
        %6436 = vmatpush1.bf16.msra.mxu0 0
        %6437 = vmatprep.subr.bf16.mxu0 0
        %6438 = vmatpush1.bf16.msra.mxu0 0
        %6439 = vmatprep.mubr.bf16.mxu0 0
        %6440 = vmatmul.mubr.bf16.gmra.mrb[0].mxu0 %v6326
        %v6441 = vpop.f32.mrb[0].mxu0
        %v6442 = vadd.f32 0.0, %v6441
        %v6443 = vpop.f32.mrb[0].mxu0
        %v6444 = vpop.f32.mrb[0].mxu0
        %v6445 = vadd.f32 0.0, %v6444
        %v6446 = vpop.f32.mrb[0].mxu0
        %6447 = vmatprep.mubr.bf16.mxu0 0
        %6448 = vmatmul.mubr.bf16.gmra.mrb[0].mxu0 %v6327
        %v6449 = vpop.f32.mrb[0].mxu0
        %v6450 = vadd.f32 0.0, %v6449
        %v6451 = vpop.f32.mrb[0].mxu0
        %v6452 = vpop.f32.mrb[0].mxu0
        %v6453 = vadd.f32 0.0, %v6452
        %v6454 = vpop.f32.mrb[0].mxu0
        %6455 = vmatprep.mubr.bf16.mxu0 0
        %6456 = vmatmul.mubr.bf16.gmra.mrb[0].mxu0 %v6328
        %v6457 = vpop.f32.mrb[0].mxu0
        %v6458 = vadd.f32 0.0, %v6457
        %v6459 = vpop.f32.mrb[0].mxu0
        %v6460 = vpop.f32.mrb[0].mxu0
        %v6461 = vadd.f32 0.0, %v6460
        %v6462 = vpop.f32.mrb[0].mxu0
        %6463 = vmatprep.mubr.bf16.mxu0 0
        %6464 = vmatmul.mubr.bf16.gmra.mrb[0].mxu0 %v6329
        %v6465 = vpop.f32.mrb[0].mxu0
        %v6466 = vadd.f32 0.0, %v6465
        %v6467 = vpop.f32.mrb[0].mxu0
        %v6468 = vpop.f32.mrb[0].mxu0
        %v6469 = vadd.f32 0.0, %v6468
        %v6470 = vpop.f32.mrb[0].mxu0
        %6471 = vmatprep.mubr.bf16.mxu0 0
        %6472 = vmatmul.mubr.bf16.gmra.mrb[0].mxu0 %v6330
        %v6473 = vpop.f32.mrb[0].mxu0
        %v6474 = vadd.f32 0.0, %v6473
        %v6475 = vpop.f32.mrb[0].mxu0
        %v6476 = vpop.f32.mrb[0].mxu0
        %v6477 = vadd.f32 0.0, %v6476
        %v6478 = vpop.f32.mrb[0].mxu0
        %6479 = vmatprep.mubr.bf16.mxu0 0
        %6480 = vmatmul.mubr.bf16.gmra.mrb[0].mxu0 %v6331
        %v6481 = vpop.f32.mrb[0].mxu0
        %v6482 = vadd.f32 0.0, %v6481
        %v6483 = vpop.f32.mrb[0].mxu0
        %v6484 = vpop.f32.mrb[0].mxu0
        %v6485 = vadd.f32 0.0, %v6484
        %v6486 = vpop.f32.mrb[0].mxu0
        %6487 = vmatprep.mubr.bf16.mxu0 0
        %6488 = vmatmul.mubr.bf16.gmra.mrb[0].mxu0 %v6332
        %v6489 = vpop.f32.mrb[0].mxu0
        %v6490 = vadd.f32 0.0, %v6489
        %v6491 = vpop.f32.mrb[0].mxu0
        %v6492 = vpop.f32.mrb[0].mxu0
        %v6493 = vadd.f32 0.0, %v6492
        %v6494 = vpop.f32.mrb[0].mxu0
        %6495 = vmatprep.mubr.bf16.mxu0 0
        %6496 = vmatmul.mubr.bf16.gmra.mrb[0].mxu0 %v6333
        %v6497 = vpop.f32.mrb[0].mxu0
        %v6498 = vadd.f32 0.0, %v6497
        %v6499 = vpop.f32.mrb[0].mxu0
        %v6500 = vpop.f32.mrb[0].mxu0
        %v6501 = vadd.f32 0.0, %v6500
        %v6502 = vpop.f32.mrb[0].mxu0
        %6503 = vmatprep.mubr.bf16.mxu0 0
        %6504 = vmatmul.mubr.bf16.gmra.mrb[0].mxu0 %v6334
        %v6505 = vpop.f32.mrb[0].mxu0
        %v6506 = vadd.f32 0.0, %v6505
        %v6507 = vpop.f32.mrb[0].mxu0
        %v6508 = vpop.f32.mrb[0].mxu0
        %v6509 = vadd.f32 0.0, %v6508
        %v6510 = vpop.f32.mrb[0].mxu0
        %6511 = vmatprep.mubr.bf16.mxu0 0
        %6512 = vmatmul.mubr.bf16.gmra.mrb[0].mxu0 %v6335
        %v6513 = vpop.f32.mrb[0].mxu0
        %v6514 = vadd.f32 0.0, %v6513
        %v6515 = vpop.f32.mrb[0].mxu0
        %v6516 = vpop.f32.mrb[0].mxu0
        %v6517 = vadd.f32 0.0, %v6516
        %v6518 = vpop.f32.mrb[0].mxu0
        %6519 = vmatprep.mubr.bf16.mxu0 0
        %6520 = vmatmul.mubr.bf16.gmra.mrb[0].mxu0 %v6336
        %v6521 = vpop.f32.mrb[0].mxu0
        %v6522 = vadd.f32 0.0, %v6521
        %v6523 = vpop.f32.mrb[0].mxu0
        %v6524 = vpop.f32.mrb[0].mxu0
        %v6525 = vadd.f32 0.0, %v6524
        %v6526 = vpop.f32.mrb[0].mxu0
        %6527 = vmatprep.mubr.bf16.mxu0 0
        %6528 = vmatmul.mubr.bf16.gmra.mrb[0].mxu0 %v6337
        %v6529 = vpop.f32.mrb[0].mxu0
        %v6530 = vadd.f32 0.0, %v6529
        %v6531 = vpop.f32.mrb[0].mxu0
        %v6532 = vpop.f32.mrb[0].mxu0
        %v6533 = vadd.f32 0.0, %v6532
        %v6534 = vpop.f32.mrb[0].mxu0
        %6535 = vmatprep.mubr.bf16.mxu0 0
        %6536 = vmatmul.mubr.bf16.gmra.mrb[0].mxu0 %v6338
        %v6537 = vpop.f32.mrb[0].mxu0
        %v6538 = vadd.f32 0.0, %v6537
        %v6539 = vpop.f32.mrb[0].mxu0
        %v6540 = vpop.f32.mrb[0].mxu0
        %v6541 = vadd.f32 0.0, %v6540
        %v6542 = vpop.f32.mrb[0].mxu0
        %6543 = vmatprep.mubr.bf16.mxu0 0
        %6544 = vmatmul.mubr.bf16.gmra.mrb[0].mxu0 %v6339
        %v6545 = vpop.f32.mrb[0].mxu0
        %v6546 = vadd.f32 0.0, %v6545
        %v6547 = vpop.f32.mrb[0].mxu0
        %v6548 = vpop.f32.mrb[0].mxu0
        %v6549 = vadd.f32 0.0, %v6548
        %v6550 = vpop.f32.mrb[0].mxu0
        %6551 = vmatprep.mubr.bf16.mxu0 0
        %6552 = vmatmul.mubr.bf16.gmra.mrb[0].mxu0 %v6340
        %v6553 = vpop.f32.mrb[0].mxu0
        %v6554 = vadd.f32 0.0, %v6553
        %v6555 = vpop.f32.mrb[0].mxu0
        %v6556 = vpop.f32.mrb[0].mxu0
        %v6557 = vadd.f32 0.0, %v6556
        %v6558 = vpop.f32.mrb[0].mxu0
        %6559 = vmatprep.mubr.bf16.mxu0 0
        %6560 = vmatmul.mubr.bf16.gmra.mrb[0].mxu0 %v6341
        %v6561 = vpop.f32.mrb[0].mxu0
        %v6562 = vadd.f32 0.0, %v6561
        %v6563 = vpop.f32.mrb[0].mxu0
        %v6564 = vpop.f32.mrb[0].mxu0
        %v6565 = vadd.f32 0.0, %v6564
        %v6566 = vpop.f32.mrb[0].mxu0
        %6567 = vdwg.mxu0
        %v6568 = vlaneseq
        %v6569 = vshrl.u32 %v6568, 7
        %v6570 = vsub.s32 0, %v6569
        %v6571 = vrot.slane %v6442, %v6570
        %v6572 = vlaneseq
        %v6573 = vshrl.u32 %v6572, 7
        %v6574 = vsub.s32 0, %v6573
        %v6575 = vrot.slane %v6445, %v6574
        %v6576 = vlaneseq
        %v6577 = vshrl.u32 %v6576, 7
        %v6578 = vsub.s32 0, %v6577
        %v6579 = vrot.slane %v6450, %v6578
        %v6580 = vlaneseq
        %v6581 = vshrl.u32 %v6580, 7
        %v6582 = vsub.s32 0, %v6581
        %v6583 = vrot.slane %v6453, %v6582
        %v6584 = vlaneseq
        %v6585 = vshrl.u32 %v6584, 7
        %v6586 = vsub.s32 0, %v6585
        %v6587 = vrot.slane %v6458, %v6586
        %v6588 = vlaneseq
        %v6589 = vshrl.u32 %v6588, 7
        %v6590 = vsub.s32 0, %v6589
        %v6591 = vrot.slane %v6461, %v6590
        %v6592 = vlaneseq
        %v6593 = vshrl.u32 %v6592, 7
        %v6594 = vsub.s32 0, %v6593
        %v6595 = vrot.slane %v6466, %v6594
        %v6596 = vlaneseq
        %v6597 = vshrl.u32 %v6596, 7
        %v6598 = vsub.s32 0, %v6597
        %v6599 = vrot.slane %v6469, %v6598
        %v6600 = vlaneseq
        %v6601 = vshrl.u32 %v6600, 7
        %v6602 = vsub.s32 0, %v6601
        %v6603 = vrot.slane %v6474, %v6602
        %v6604 = vlaneseq
        %v6605 = vshrl.u32 %v6604, 7
        %v6606 = vsub.s32 0, %v6605
        %v6607 = vrot.slane %v6477, %v6606
        %v6608 = vlaneseq
        %v6609 = vshrl.u32 %v6608, 7
        %v6610 = vsub.s32 0, %v6609
        %v6611 = vrot.slane %v6482, %v6610
        %v6612 = vlaneseq
        %v6613 = vshrl.u32 %v6612, 7
        %v6614 = vsub.s32 0, %v6613
        %v6615 = vrot.slane %v6485, %v6614
        %v6616 = vlaneseq
        %v6617 = vshrl.u32 %v6616, 7
        %v6618 = vsub.s32 0, %v6617
        %v6619 = vrot.slane %v6490, %v6618
        %v6620 = vlaneseq
        %v6621 = vshrl.u32 %v6620, 7
        %v6622 = vsub.s32 0, %v6621
        %v6623 = vrot.slane %v6493, %v6622
        %v6624 = vlaneseq
        %v6625 = vshrl.u32 %v6624, 7
        %v6626 = vsub.s32 0, %v6625
        %v6627 = vrot.slane %v6498, %v6626
        %v6628 = vlaneseq
        %v6629 = vshrl.u32 %v6628, 7
        %v6630 = vsub.s32 0, %v6629
        %v6631 = vrot.slane %v6501, %v6630
        %v6632 = vlaneseq
        %v6633 = vshrl.u32 %v6632, 7
        %v6634 = vsub.s32 0, %v6633
        %v6635 = vrot.slane %v6506, %v6634
        %v6636 = vlaneseq
        %v6637 = vshrl.u32 %v6636, 7
        %v6638 = vsub.s32 0, %v6637
        %v6639 = vrot.slane %v6509, %v6638
        %v6640 = vlaneseq
        %v6641 = vshrl.u32 %v6640, 7
        %v6642 = vsub.s32 0, %v6641
        %v6643 = vrot.slane %v6514, %v6642
        %v6644 = vlaneseq
        %v6645 = vshrl.u32 %v6644, 7
        %v6646 = vsub.s32 0, %v6645
        %v6647 = vrot.slane %v6517, %v6646
        %v6648 = vlaneseq
        %v6649 = vshrl.u32 %v6648, 7
        %v6650 = vsub.s32 0, %v6649
        %v6651 = vrot.slane %v6522, %v6650
        %v6652 = vlaneseq
        %v6653 = vshrl.u32 %v6652, 7
        %v6654 = vsub.s32 0, %v6653
        %v6655 = vrot.slane %v6525, %v6654
        %v6656 = vlaneseq
        %v6657 = vshrl.u32 %v6656, 7
        %v6658 = vsub.s32 0, %v6657
        %v6659 = vrot.slane %v6530, %v6658
        %v6660 = vlaneseq
        %v6661 = vshrl.u32 %v6660, 7
        %v6662 = vsub.s32 0, %v6661
        %v6663 = vrot.slane %v6533, %v6662
        %v6664 = vlaneseq
        %v6665 = vshrl.u32 %v6664, 7
        %v6666 = vsub.s32 0, %v6665
        %v6667 = vrot.slane %v6538, %v6666
        %v6668 = vlaneseq
        %v6669 = vshrl.u32 %v6668, 7
        %v6670 = vsub.s32 0, %v6669
        %v6671 = vrot.slane %v6541, %v6670
        %v6672 = vlaneseq
        %v6673 = vshrl.u32 %v6672, 7
        %v6674 = vsub.s32 0, %v6673
        %v6675 = vrot.slane %v6546, %v6674
        %v6676 = vlaneseq
        %v6677 = vshrl.u32 %v6676, 7
        %v6678 = vsub.s32 0, %v6677
        %v6679 = vrot.slane %v6549, %v6678
        %v6680 = vlaneseq
        %v6681 = vshrl.u32 %v6680, 7
        %v6682 = vsub.s32 0, %v6681
        %v6683 = vrot.slane %v6554, %v6682
        %v6684 = vlaneseq
        %v6685 = vshrl.u32 %v6684, 7
        %v6686 = vsub.s32 0, %v6685
        %v6687 = vrot.slane %v6557, %v6686
        %v6688 = vlaneseq
        %v6689 = vshrl.u32 %v6688, 7
        %v6690 = vsub.s32 0, %v6689
        %v6691 = vrot.slane %v6562, %v6690
        %v6692 = vlaneseq
        %v6693 = vshrl.u32 %v6692, 7
        %v6694 = vsub.s32 0, %v6693
        %v6695 = vrot.slane %v6565, %v6694
        %v6696 = vmul.f32 %v1887, %v6571
        %v6697 = vmul.f32 %v1892, %v6575
        %v6698 = vmul.f32 %v1897, %v6579
        %v6699 = vmul.f32 %v1902, %v6583
        %v6700 = vmul.f32 %v1907, %v6587
        %v6701 = vmul.f32 %v1912, %v6591
        %v6702 = vmul.f32 %v1917, %v6595
        %v6703 = vmul.f32 %v1922, %v6599
        %v6704 = vmul.f32 %v1927, %v6603
        %v6705 = vmul.f32 %v1932, %v6607
        %v6706 = vmul.f32 %v1937, %v6611
        %v6707 = vmul.f32 %v1942, %v6615
        %v6708 = vmul.f32 %v1947, %v6619
        %v6709 = vmul.f32 %v1952, %v6623
        %v6710 = vmul.f32 %v1957, %v6627
        %v6711 = vmul.f32 %v1962, %v6631
        %v6712 = vmul.f32 %v1967, %v6635
        %v6713 = vmul.f32 %v1972, %v6639
        %v6714 = vmul.f32 %v1977, %v6643
        %v6715 = vmul.f32 %v1982, %v6647
        %v6716 = vmul.f32 %v1987, %v6651
        %v6717 = vmul.f32 %v1992, %v6655
        %v6718 = vmul.f32 %v1997, %v6659
        %v6719 = vmul.f32 %v2002, %v6663
        %v6720 = vmul.f32 %v2007, %v6667
        %v6721 = vmul.f32 %v2012, %v6671
        %v6722 = vmul.f32 %v2017, %v6675
        %v6723 = vmul.f32 %v2022, %v6679
        %v6724 = vmul.f32 %v2027, %v6683
        %v6725 = vmul.f32 %v2032, %v6687
        %v6726 = vmul.f32 %v2037, %v6691
        %v6727 = vmul.f32 %v2042, %v6695
        %v6728 = vlaneseq
        %v6729 = vshrl.u32 %v6728, 7
        %v6730 = vsub.s32 1, %v6729
        %v6731 = vrot.slane %v6442, %v6730
        %v6732 = vlaneseq
        %v6733 = vshrl.u32 %v6732, 7
        %v6734 = vsub.s32 1, %v6733
        %v6735 = vrot.slane %v6445, %v6734
        %v6736 = vlaneseq
        %v6737 = vshrl.u32 %v6736, 7
        %v6738 = vsub.s32 1, %v6737
        %v6739 = vrot.slane %v6450, %v6738
        %v6740 = vlaneseq
        %v6741 = vshrl.u32 %v6740, 7
        %v6742 = vsub.s32 1, %v6741
        %v6743 = vrot.slane %v6453, %v6742
        %v6744 = vlaneseq
        %v6745 = vshrl.u32 %v6744, 7
        %v6746 = vsub.s32 1, %v6745
        %v6747 = vrot.slane %v6458, %v6746
        %v6748 = vlaneseq
        %v6749 = vshrl.u32 %v6748, 7
        %v6750 = vsub.s32 1, %v6749
        %v6751 = vrot.slane %v6461, %v6750
        %v6752 = vlaneseq
        %v6753 = vshrl.u32 %v6752, 7
        %v6754 = vsub.s32 1, %v6753
        %v6755 = vrot.slane %v6466, %v6754
        %v6756 = vlaneseq
        %v6757 = vshrl.u32 %v6756, 7
        %v6758 = vsub.s32 1, %v6757
        %v6759 = vrot.slane %v6469, %v6758
        %v6760 = vlaneseq
        %v6761 = vshrl.u32 %v6760, 7
        %v6762 = vsub.s32 1, %v6761
        %v6763 = vrot.slane %v6474, %v6762
        %v6764 = vlaneseq
        %v6765 = vshrl.u32 %v6764, 7
        %v6766 = vsub.s32 1, %v6765
        %v6767 = vrot.slane %v6477, %v6766
        %v6768 = vlaneseq
        %v6769 = vshrl.u32 %v6768, 7
        %v6770 = vsub.s32 1, %v6769
        %v6771 = vrot.slane %v6482, %v6770
        %v6772 = vlaneseq
        %v6773 = vshrl.u32 %v6772, 7
        %v6774 = vsub.s32 1, %v6773
        %v6775 = vrot.slane %v6485, %v6774
        %v6776 = vlaneseq
        %v6777 = vshrl.u32 %v6776, 7
        %v6778 = vsub.s32 1, %v6777
        %v6779 = vrot.slane %v6490, %v6778
        %v6780 = vlaneseq
        %v6781 = vshrl.u32 %v6780, 7
        %v6782 = vsub.s32 1, %v6781
        %v6783 = vrot.slane %v6493, %v6782
        %v6784 = vlaneseq
        %v6785 = vshrl.u32 %v6784, 7
        %v6786 = vsub.s32 1, %v6785
        %v6787 = vrot.slane %v6498, %v6786
        %v6788 = vlaneseq
        %v6789 = vshrl.u32 %v6788, 7
        %v6790 = vsub.s32 1, %v6789
        %v6791 = vrot.slane %v6501, %v6790
        %v6792 = vlaneseq
        %v6793 = vshrl.u32 %v6792, 7
        %v6794 = vsub.s32 1, %v6793
        %v6795 = vrot.slane %v6506, %v6794
        %v6796 = vlaneseq
        %v6797 = vshrl.u32 %v6796, 7
        %v6798 = vsub.s32 1, %v6797
        %v6799 = vrot.slane %v6509, %v6798
        %v6800 = vlaneseq
        %v6801 = vshrl.u32 %v6800, 7
        %v6802 = vsub.s32 1, %v6801
        %v6803 = vrot.slane %v6514, %v6802
        %v6804 = vlaneseq
        %v6805 = vshrl.u32 %v6804, 7
        %v6806 = vsub.s32 1, %v6805
        %v6807 = vrot.slane %v6517, %v6806
        %v6808 = vlaneseq
        %v6809 = vshrl.u32 %v6808, 7
        %v6810 = vsub.s32 1, %v6809
        %v6811 = vrot.slane %v6522, %v6810
        %v6812 = vlaneseq
        %v6813 = vshrl.u32 %v6812, 7
        %v6814 = vsub.s32 1, %v6813
        %v6815 = vrot.slane %v6525, %v6814
        %v6816 = vlaneseq
        %v6817 = vshrl.u32 %v6816, 7
        %v6818 = vsub.s32 1, %v6817
        %v6819 = vrot.slane %v6530, %v6818
        %v6820 = vlaneseq
        %v6821 = vshrl.u32 %v6820, 7
        %v6822 = vsub.s32 1, %v6821
        %v6823 = vrot.slane %v6533, %v6822
        %v6824 = vlaneseq
        %v6825 = vshrl.u32 %v6824, 7
        %v6826 = vsub.s32 1, %v6825
        %v6827 = vrot.slane %v6538, %v6826
        %v6828 = vlaneseq
        %v6829 = vshrl.u32 %v6828, 7
        %v6830 = vsub.s32 1, %v6829
        %v6831 = vrot.slane %v6541, %v6830
        %v6832 = vlaneseq
        %v6833 = vshrl.u32 %v6832, 7
        %v6834 = vsub.s32 1, %v6833
        %v6835 = vrot.slane %v6546, %v6834
        %v6836 = vlaneseq
        %v6837 = vshrl.u32 %v6836, 7
        %v6838 = vsub.s32 1, %v6837
        %v6839 = vrot.slane %v6549, %v6838
        %v6840 = vlaneseq
        %v6841 = vshrl.u32 %v6840, 7
        %v6842 = vsub.s32 1, %v6841
        %v6843 = vrot.slane %v6554, %v6842
        %v6844 = vlaneseq
        %v6845 = vshrl.u32 %v6844, 7
        %v6846 = vsub.s32 1, %v6845
        %v6847 = vrot.slane %v6557, %v6846
        %v6848 = vlaneseq
        %v6849 = vshrl.u32 %v6848, 7
        %v6850 = vsub.s32 1, %v6849
        %v6851 = vrot.slane %v6562, %v6850
        %v6852 = vlaneseq
        %v6853 = vshrl.u32 %v6852, 7
        %v6854 = vsub.s32 1, %v6853
        %v6855 = vrot.slane %v6565, %v6854
        %v6856 = vmul.f32 %v2206, %v6731
        %v6857 = vmul.f32 %v2210, %v6735
        %v6858 = vmul.f32 %v2214, %v6739
        %v6859 = vmul.f32 %v2218, %v6743
        %v6860 = vmul.f32 %v2222, %v6747
        %v6861 = vmul.f32 %v2226, %v6751
        %v6862 = vmul.f32 %v2230, %v6755
        %v6863 = vmul.f32 %v2234, %v6759
        %v6864 = vmul.f32 %v2238, %v6763
        %v6865 = vmul.f32 %v2242, %v6767
        %v6866 = vmul.f32 %v2246, %v6771
        %v6867 = vmul.f32 %v2250, %v6775
        %v6868 = vmul.f32 %v2254, %v6779
        %v6869 = vmul.f32 %v2258, %v6783
        %v6870 = vmul.f32 %v2262, %v6787
        %v6871 = vmul.f32 %v2266, %v6791
        %v6872 = vmul.f32 %v2270, %v6795
        %v6873 = vmul.f32 %v2274, %v6799
        %v6874 = vmul.f32 %v2278, %v6803
        %v6875 = vmul.f32 %v2282, %v6807
        %v6876 = vmul.f32 %v2286, %v6811
        %v6877 = vmul.f32 %v2290, %v6815
        %v6878 = vmul.f32 %v2294, %v6819
        %v6879 = vmul.f32 %v2298, %v6823
        %v6880 = vmul.f32 %v2302, %v6827
        %v6881 = vmul.f32 %v2306, %v6831
        %v6882 = vmul.f32 %v2310, %v6835
        %v6883 = vmul.f32 %v2314, %v6839
        %v6884 = vmul.f32 %v2318, %v6843
        %v6885 = vmul.f32 %v2322, %v6847
        %v6886 = vmul.f32 %v2326, %v6851
        %v6887 = vmul.f32 %v2330, %v6855
        %v6888 = vadd.f32 %v6696, %v6856
        %v6889 = vadd.f32 %v6697, %v6857
        %v6890 = vadd.f32 %v6698, %v6858
        %v6891 = vadd.f32 %v6699, %v6859
        %v6892 = vadd.f32 %v6700, %v6860
        %v6893 = vadd.f32 %v6701, %v6861
        %v6894 = vadd.f32 %v6702, %v6862
        %v6895 = vadd.f32 %v6703, %v6863
        %v6896 = vadd.f32 %v6704, %v6864
        %v6897 = vadd.f32 %v6705, %v6865
        %v6898 = vadd.f32 %v6706, %v6866
        %v6899 = vadd.f32 %v6707, %v6867
        %v6900 = vadd.f32 %v6708, %v6868
        %v6901 = vadd.f32 %v6709, %v6869
        %v6902 = vadd.f32 %v6710, %v6870
        %v6903 = vadd.f32 %v6711, %v6871
        %v6904 = vadd.f32 %v6712, %v6872
        %v6905 = vadd.f32 %v6713, %v6873
        %v6906 = vadd.f32 %v6714, %v6874
        %v6907 = vadd.f32 %v6715, %v6875
        %v6908 = vadd.f32 %v6716, %v6876
        %v6909 = vadd.f32 %v6717, %v6877
        %v6910 = vadd.f32 %v6718, %v6878
        %v6911 = vadd.f32 %v6719, %v6879
        %v6912 = vadd.f32 %v6720, %v6880
        %v6913 = vadd.f32 %v6721, %v6881
        %v6914 = vadd.f32 %v6722, %v6882
        %v6915 = vadd.f32 %v6723, %v6883
        %v6916 = vadd.f32 %v6724, %v6884
        %v6917 = vadd.f32 %v6725, %v6885
        %v6918 = vadd.f32 %v6726, %v6886
        %v6919 = vadd.f32 %v6727, %v6887
        %v6920 = vlaneseq
        %v6921 = vshrl.u32 %v6920, 7
        %v6922 = vsub.s32 2, %v6921
        %v6923 = vrot.slane %v6442, %v6922
        %v6924 = vlaneseq
        %v6925 = vshrl.u32 %v6924, 7
        %v6926 = vsub.s32 2, %v6925
        %v6927 = vrot.slane %v6445, %v6926
        %v6928 = vlaneseq
        %v6929 = vshrl.u32 %v6928, 7
        %v6930 = vsub.s32 2, %v6929
        %v6931 = vrot.slane %v6450, %v6930
        %v6932 = vlaneseq
        %v6933 = vshrl.u32 %v6932, 7
        %v6934 = vsub.s32 2, %v6933
        %v6935 = vrot.slane %v6453, %v6934
        %v6936 = vlaneseq
        %v6937 = vshrl.u32 %v6936, 7
        %v6938 = vsub.s32 2, %v6937
        %v6939 = vrot.slane %v6458, %v6938
        %v6940 = vlaneseq
        %v6941 = vshrl.u32 %v6940, 7
        %v6942 = vsub.s32 2, %v6941
        %v6943 = vrot.slane %v6461, %v6942
        %v6944 = vlaneseq
        %v6945 = vshrl.u32 %v6944, 7
        %v6946 = vsub.s32 2, %v6945
        %v6947 = vrot.slane %v6466, %v6946
        %v6948 = vlaneseq
        %v6949 = vshrl.u32 %v6948, 7
        %v6950 = vsub.s32 2, %v6949
        %v6951 = vrot.slane %v6469, %v6950
        %v6952 = vlaneseq
        %v6953 = vshrl.u32 %v6952, 7
        %v6954 = vsub.s32 2, %v6953
        %v6955 = vrot.slane %v6474, %v6954
        %v6956 = vlaneseq
        %v6957 = vshrl.u32 %v6956, 7
        %v6958 = vsub.s32 2, %v6957
        %v6959 = vrot.slane %v6477, %v6958
        %v6960 = vlaneseq
        %v6961 = vshrl.u32 %v6960, 7
        %v6962 = vsub.s32 2, %v6961
        %v6963 = vrot.slane %v6482, %v6962
        %v6964 = vlaneseq
        %v6965 = vshrl.u32 %v6964, 7
        %v6966 = vsub.s32 2, %v6965
        %v6967 = vrot.slane %v6485, %v6966
        %v6968 = vlaneseq
        %v6969 = vshrl.u32 %v6968, 7
        %v6970 = vsub.s32 2, %v6969
        %v6971 = vrot.slane %v6490, %v6970
        %v6972 = vlaneseq
        %v6973 = vshrl.u32 %v6972, 7
        %v6974 = vsub.s32 2, %v6973
        %v6975 = vrot.slane %v6493, %v6974
        %v6976 = vlaneseq
        %v6977 = vshrl.u32 %v6976, 7
        %v6978 = vsub.s32 2, %v6977
        %v6979 = vrot.slane %v6498, %v6978
        %v6980 = vlaneseq
        %v6981 = vshrl.u32 %v6980, 7
        %v6982 = vsub.s32 2, %v6981
        %v6983 = vrot.slane %v6501, %v6982
        %v6984 = vlaneseq
        %v6985 = vshrl.u32 %v6984, 7
        %v6986 = vsub.s32 2, %v6985
        %v6987 = vrot.slane %v6506, %v6986
        %v6988 = vlaneseq
        %v6989 = vshrl.u32 %v6988, 7
        %v6990 = vsub.s32 2, %v6989
        %v6991 = vrot.slane %v6509, %v6990
        %v6992 = vlaneseq
        %v6993 = vshrl.u32 %v6992, 7
        %v6994 = vsub.s32 2, %v6993
        %v6995 = vrot.slane %v6514, %v6994
        %v6996 = vlaneseq
        %v6997 = vshrl.u32 %v6996, 7
        %v6998 = vsub.s32 2, %v6997
        %v6999 = vrot.slane %v6517, %v6998
        %v7000 = vlaneseq
        %v7001 = vshrl.u32 %v7000, 7
        %v7002 = vsub.s32 2, %v7001
        %v7003 = vrot.slane %v6522, %v7002
        %v7004 = vlaneseq
        %v7005 = vshrl.u32 %v7004, 7
        %v7006 = vsub.s32 2, %v7005
        %v7007 = vrot.slane %v6525, %v7006
        %v7008 = vlaneseq
        %v7009 = vshrl.u32 %v7008, 7
        %v7010 = vsub.s32 2, %v7009
        %v7011 = vrot.slane %v6530, %v7010
        %v7012 = vlaneseq
        %v7013 = vshrl.u32 %v7012, 7
        %v7014 = vsub.s32 2, %v7013
        %v7015 = vrot.slane %v6533, %v7014
        %v7016 = vlaneseq
        %v7017 = vshrl.u32 %v7016, 7
        %v7018 = vsub.s32 2, %v7017
        %v7019 = vrot.slane %v6538, %v7018
        %v7020 = vlaneseq
        %v7021 = vshrl.u32 %v7020, 7
        %v7022 = vsub.s32 2, %v7021
        %v7023 = vrot.slane %v6541, %v7022
        %v7024 = vlaneseq
        %v7025 = vshrl.u32 %v7024, 7
        %v7026 = vsub.s32 2, %v7025
        %v7027 = vrot.slane %v6546, %v7026
        %v7028 = vlaneseq
        %v7029 = vshrl.u32 %v7028, 7
        %v7030 = vsub.s32 2, %v7029
        %v7031 = vrot.slane %v6549, %v7030
        %v7032 = vlaneseq
        %v7033 = vshrl.u32 %v7032, 7
        %v7034 = vsub.s32 2, %v7033
        %v7035 = vrot.slane %v6554, %v7034
        %v7036 = vlaneseq
        %v7037 = vshrl.u32 %v7036, 7
        %v7038 = vsub.s32 2, %v7037
        %v7039 = vrot.slane %v6557, %v7038
        %v7040 = vlaneseq
        %v7041 = vshrl.u32 %v7040, 7
        %v7042 = vsub.s32 2, %v7041
        %v7043 = vrot.slane %v6562, %v7042
        %v7044 = vlaneseq
        %v7045 = vshrl.u32 %v7044, 7
        %v7046 = vsub.s32 2, %v7045
        %v7047 = vrot.slane %v6565, %v7046
        %v7048 = vmul.f32 %v2526, %v6923
        %v7049 = vmul.f32 %v2530, %v6927
        %v7050 = vmul.f32 %v2534, %v6931
        %v7051 = vmul.f32 %v2538, %v6935
        %v7052 = vmul.f32 %v2542, %v6939
        %v7053 = vmul.f32 %v2546, %v6943
        %v7054 = vmul.f32 %v2550, %v6947
        %v7055 = vmul.f32 %v2554, %v6951
        %v7056 = vmul.f32 %v2558, %v6955
        %v7057 = vmul.f32 %v2562, %v6959
        %v7058 = vmul.f32 %v2566, %v6963
        %v7059 = vmul.f32 %v2570, %v6967
        %v7060 = vmul.f32 %v2574, %v6971
        %v7061 = vmul.f32 %v2578, %v6975
        %v7062 = vmul.f32 %v2582, %v6979
        %v7063 = vmul.f32 %v2586, %v6983
        %v7064 = vmul.f32 %v2590, %v6987
        %v7065 = vmul.f32 %v2594, %v6991
        %v7066 = vmul.f32 %v2598, %v6995
        %v7067 = vmul.f32 %v2602, %v6999
        %v7068 = vmul.f32 %v2606, %v7003
        %v7069 = vmul.f32 %v2610, %v7007
        %v7070 = vmul.f32 %v2614, %v7011
        %v7071 = vmul.f32 %v2618, %v7015
        %v7072 = vmul.f32 %v2622, %v7019
        %v7073 = vmul.f32 %v2626, %v7023
        %v7074 = vmul.f32 %v2630, %v7027
        %v7075 = vmul.f32 %v2634, %v7031
        %v7076 = vmul.f32 %v2638, %v7035
        %v7077 = vmul.f32 %v2642, %v7039
        %v7078 = vmul.f32 %v2646, %v7043
        %v7079 = vmul.f32 %v2650, %v7047
        %v7080 = vadd.f32 %v6888, %v7048
        %v7081 = vadd.f32 %v6889, %v7049
        %v7082 = vadd.f32 %v6890, %v7050
        %v7083 = vadd.f32 %v6891, %v7051
        %v7084 = vadd.f32 %v6892, %v7052
        %v7085 = vadd.f32 %v6893, %v7053
        %v7086 = vadd.f32 %v6894, %v7054
        %v7087 = vadd.f32 %v6895, %v7055
        %v7088 = vadd.f32 %v6896, %v7056
        %v7089 = vadd.f32 %v6897, %v7057
        %v7090 = vadd.f32 %v6898, %v7058
        %v7091 = vadd.f32 %v6899, %v7059
        %v7092 = vadd.f32 %v6900, %v7060
        %v7093 = vadd.f32 %v6901, %v7061
        %v7094 = vadd.f32 %v6902, %v7062
        %v7095 = vadd.f32 %v6903, %v7063
        %v7096 = vadd.f32 %v6904, %v7064
        %v7097 = vadd.f32 %v6905, %v7065
        %v7098 = vadd.f32 %v6906, %v7066
        %v7099 = vadd.f32 %v6907, %v7067
        %v7100 = vadd.f32 %v6908, %v7068
        %v7101 = vadd.f32 %v6909, %v7069
        %v7102 = vadd.f32 %v6910, %v7070
        %v7103 = vadd.f32 %v6911, %v7071
        %v7104 = vadd.f32 %v6912, %v7072
        %v7105 = vadd.f32 %v6913, %v7073
        %v7106 = vadd.f32 %v6914, %v7074
        %v7107 = vadd.f32 %v6915, %v7075
        %v7108 = vadd.f32 %v6916, %v7076
        %v7109 = vadd.f32 %v6917, %v7077
        %v7110 = vadd.f32 %v6918, %v7078
        %v7111 = vadd.f32 %v6919, %v7079
        %v7112 = vlaneseq
        %v7113 = vshrl.u32 %v7112, 7
        %v7114 = vsub.s32 3, %v7113
        %v7115 = vrot.slane %v6442, %v7114
        %v7116 = vlaneseq
        %v7117 = vshrl.u32 %v7116, 7
        %v7118 = vsub.s32 3, %v7117
        %v7119 = vrot.slane %v6445, %v7118
        %v7120 = vlaneseq
        %v7121 = vshrl.u32 %v7120, 7
        %v7122 = vsub.s32 3, %v7121
        %v7123 = vrot.slane %v6450, %v7122
        %v7124 = vlaneseq
        %v7125 = vshrl.u32 %v7124, 7
        %v7126 = vsub.s32 3, %v7125
        %v7127 = vrot.slane %v6453, %v7126
        %v7128 = vlaneseq
        %v7129 = vshrl.u32 %v7128, 7
        %v7130 = vsub.s32 3, %v7129
        %v7131 = vrot.slane %v6458, %v7130
        %v7132 = vlaneseq
        %v7133 = vshrl.u32 %v7132, 7
        %v7134 = vsub.s32 3, %v7133
        %v7135 = vrot.slane %v6461, %v7134
        %v7136 = vlaneseq
        %v7137 = vshrl.u32 %v7136, 7
        %v7138 = vsub.s32 3, %v7137
        %v7139 = vrot.slane %v6466, %v7138
        %v7140 = vlaneseq
        %v7141 = vshrl.u32 %v7140, 7
        %v7142 = vsub.s32 3, %v7141
        %v7143 = vrot.slane %v6469, %v7142
        %v7144 = vlaneseq
        %v7145 = vshrl.u32 %v7144, 7
        %v7146 = vsub.s32 3, %v7145
        %v7147 = vrot.slane %v6474, %v7146
        %v7148 = vlaneseq
        %v7149 = vshrl.u32 %v7148, 7
        %v7150 = vsub.s32 3, %v7149
        %v7151 = vrot.slane %v6477, %v7150
        %v7152 = vlaneseq
        %v7153 = vshrl.u32 %v7152, 7
        %v7154 = vsub.s32 3, %v7153
        %v7155 = vrot.slane %v6482, %v7154
        %v7156 = vlaneseq
        %v7157 = vshrl.u32 %v7156, 7
        %v7158 = vsub.s32 3, %v7157
        %v7159 = vrot.slane %v6485, %v7158
        %v7160 = vlaneseq
        %v7161 = vshrl.u32 %v7160, 7
        %v7162 = vsub.s32 3, %v7161
        %v7163 = vrot.slane %v6490, %v7162
        %v7164 = vlaneseq
        %v7165 = vshrl.u32 %v7164, 7
        %v7166 = vsub.s32 3, %v7165
        %v7167 = vrot.slane %v6493, %v7166
        %v7168 = vlaneseq
        %v7169 = vshrl.u32 %v7168, 7
        %v7170 = vsub.s32 3, %v7169
        %v7171 = vrot.slane %v6498, %v7170
        %v7172 = vlaneseq
        %v7173 = vshrl.u32 %v7172, 7
        %v7174 = vsub.s32 3, %v7173
        %v7175 = vrot.slane %v6501, %v7174
        %v7176 = vlaneseq
        %v7177 = vshrl.u32 %v7176, 7
        %v7178 = vsub.s32 3, %v7177
        %v7179 = vrot.slane %v6506, %v7178
        %v7180 = vlaneseq
        %v7181 = vshrl.u32 %v7180, 7
        %v7182 = vsub.s32 3, %v7181
        %v7183 = vrot.slane %v6509, %v7182
        %v7184 = vlaneseq
        %v7185 = vshrl.u32 %v7184, 7
        %v7186 = vsub.s32 3, %v7185
        %v7187 = vrot.slane %v6514, %v7186
        %v7188 = vlaneseq
        %v7189 = vshrl.u32 %v7188, 7
        %v7190 = vsub.s32 3, %v7189
        %v7191 = vrot.slane %v6517, %v7190
        %v7192 = vlaneseq
        %v7193 = vshrl.u32 %v7192, 7
        %v7194 = vsub.s32 3, %v7193
        %v7195 = vrot.slane %v6522, %v7194
        %v7196 = vlaneseq
        %v7197 = vshrl.u32 %v7196, 7
        %v7198 = vsub.s32 3, %v7197
        %v7199 = vrot.slane %v6525, %v7198
        %v7200 = vlaneseq
        %v7201 = vshrl.u32 %v7200, 7
        %v7202 = vsub.s32 3, %v7201
        %v7203 = vrot.slane %v6530, %v7202
        %v7204 = vlaneseq
        %v7205 = vshrl.u32 %v7204, 7
        %v7206 = vsub.s32 3, %v7205
        %v7207 = vrot.slane %v6533, %v7206
        %v7208 = vlaneseq
        %v7209 = vshrl.u32 %v7208, 7
        %v7210 = vsub.s32 3, %v7209
        %v7211 = vrot.slane %v6538, %v7210
        %v7212 = vlaneseq
        %v7213 = vshrl.u32 %v7212, 7
        %v7214 = vsub.s32 3, %v7213
        %v7215 = vrot.slane %v6541, %v7214
        %v7216 = vlaneseq
        %v7217 = vshrl.u32 %v7216, 7
        %v7218 = vsub.s32 3, %v7217
        %v7219 = vrot.slane %v6546, %v7218
        %v7220 = vlaneseq
        %v7221 = vshrl.u32 %v7220, 7
        %v7222 = vsub.s32 3, %v7221
        %v7223 = vrot.slane %v6549, %v7222
        %v7224 = vlaneseq
        %v7225 = vshrl.u32 %v7224, 7
        %v7226 = vsub.s32 3, %v7225
        %v7227 = vrot.slane %v6554, %v7226
        %v7228 = vlaneseq
        %v7229 = vshrl.u32 %v7228, 7
        %v7230 = vsub.s32 3, %v7229
        %v7231 = vrot.slane %v6557, %v7230
        %v7232 = vlaneseq
        %v7233 = vshrl.u32 %v7232, 7
        %v7234 = vsub.s32 3, %v7233
        %v7235 = vrot.slane %v6562, %v7234
        %v7236 = vlaneseq
        %v7237 = vshrl.u32 %v7236, 7
        %v7238 = vsub.s32 3, %v7237
        %v7239 = vrot.slane %v6565, %v7238
        %v7240 = vmul.f32 %v2846, %v7115
        %v7241 = vmul.f32 %v2850, %v7119
        %v7242 = vmul.f32 %v2854, %v7123
        %v7243 = vmul.f32 %v2858, %v7127
        %v7244 = vmul.f32 %v2862, %v7131
        %v7245 = vmul.f32 %v2866, %v7135
        %v7246 = vmul.f32 %v2870, %v7139
        %v7247 = vmul.f32 %v2874, %v7143
        %v7248 = vmul.f32 %v2878, %v7147
        %v7249 = vmul.f32 %v2882, %v7151
        %v7250 = vmul.f32 %v2886, %v7155
        %v7251 = vmul.f32 %v2890, %v7159
        %v7252 = vmul.f32 %v2894, %v7163
        %v7253 = vmul.f32 %v2898, %v7167
        %v7254 = vmul.f32 %v2902, %v7171
        %v7255 = vmul.f32 %v2906, %v7175
        %v7256 = vmul.f32 %v2910, %v7179
        %v7257 = vmul.f32 %v2914, %v7183
        %v7258 = vmul.f32 %v2918, %v7187
        %v7259 = vmul.f32 %v2922, %v7191
        %v7260 = vmul.f32 %v2926, %v7195
        %v7261 = vmul.f32 %v2930, %v7199
        %v7262 = vmul.f32 %v2934, %v7203
        %v7263 = vmul.f32 %v2938, %v7207
        %v7264 = vmul.f32 %v2942, %v7211
        %v7265 = vmul.f32 %v2946, %v7215
        %v7266 = vmul.f32 %v2950, %v7219
        %v7267 = vmul.f32 %v2954, %v7223
        %v7268 = vmul.f32 %v2958, %v7227
        %v7269 = vmul.f32 %v2962, %v7231
        %v7270 = vmul.f32 %v2966, %v7235
        %v7271 = vmul.f32 %v2970, %v7239
        %v7272 = vadd.f32 %v7080, %v7240
        %v7273 = vadd.f32 %v7081, %v7241
        %v7274 = vadd.f32 %v7082, %v7242
        %v7275 = vadd.f32 %v7083, %v7243
        %v7276 = vadd.f32 %v7084, %v7244
        %v7277 = vadd.f32 %v7085, %v7245
        %v7278 = vadd.f32 %v7086, %v7246
        %v7279 = vadd.f32 %v7087, %v7247
        %v7280 = vadd.f32 %v7088, %v7248
        %v7281 = vadd.f32 %v7089, %v7249
        %v7282 = vadd.f32 %v7090, %v7250
        %v7283 = vadd.f32 %v7091, %v7251
        %v7284 = vadd.f32 %v7092, %v7252
        %v7285 = vadd.f32 %v7093, %v7253
        %v7286 = vadd.f32 %v7094, %v7254
        %v7287 = vadd.f32 %v7095, %v7255
        %v7288 = vadd.f32 %v7096, %v7256
        %v7289 = vadd.f32 %v7097, %v7257
        %v7290 = vadd.f32 %v7098, %v7258
        %v7291 = vadd.f32 %v7099, %v7259
        %v7292 = vadd.f32 %v7100, %v7260
        %v7293 = vadd.f32 %v7101, %v7261
        %v7294 = vadd.f32 %v7102, %v7262
        %v7295 = vadd.f32 %v7103, %v7263
        %v7296 = vadd.f32 %v7104, %v7264
        %v7297 = vadd.f32 %v7105, %v7265
        %v7298 = vadd.f32 %v7106, %v7266
        %v7299 = vadd.f32 %v7107, %v7267
        %v7300 = vadd.f32 %v7108, %v7268
        %v7301 = vadd.f32 %v7109, %v7269
        %v7302 = vadd.f32 %v7110, %v7270
        %v7303 = vadd.f32 %v7111, %v7271
        %v7304 = vlaneseq
        %v7305 = vshrl.u32 %v7304, 7
        %v7306 = vsub.s32 4, %v7305
        %v7307 = vrot.slane %v6442, %v7306
        %v7308 = vlaneseq
        %v7309 = vshrl.u32 %v7308, 7
        %v7310 = vsub.s32 4, %v7309
        %v7311 = vrot.slane %v6445, %v7310
        %v7312 = vlaneseq
        %v7313 = vshrl.u32 %v7312, 7
        %v7314 = vsub.s32 4, %v7313
        %v7315 = vrot.slane %v6450, %v7314
        %v7316 = vlaneseq
        %v7317 = vshrl.u32 %v7316, 7
        %v7318 = vsub.s32 4, %v7317
        %v7319 = vrot.slane %v6453, %v7318
        %v7320 = vlaneseq
        %v7321 = vshrl.u32 %v7320, 7
        %v7322 = vsub.s32 4, %v7321
        %v7323 = vrot.slane %v6458, %v7322
        %v7324 = vlaneseq
        %v7325 = vshrl.u32 %v7324, 7
        %v7326 = vsub.s32 4, %v7325
        %v7327 = vrot.slane %v6461, %v7326
        %v7328 = vlaneseq
        %v7329 = vshrl.u32 %v7328, 7
        %v7330 = vsub.s32 4, %v7329
        %v7331 = vrot.slane %v6466, %v7330
        %v7332 = vlaneseq
        %v7333 = vshrl.u32 %v7332, 7
        %v7334 = vsub.s32 4, %v7333
        %v7335 = vrot.slane %v6469, %v7334
        %v7336 = vlaneseq
        %v7337 = vshrl.u32 %v7336, 7
        %v7338 = vsub.s32 4, %v7337
        %v7339 = vrot.slane %v6474, %v7338
        %v7340 = vlaneseq
        %v7341 = vshrl.u32 %v7340, 7
        %v7342 = vsub.s32 4, %v7341
        %v7343 = vrot.slane %v6477, %v7342
        %v7344 = vlaneseq
        %v7345 = vshrl.u32 %v7344, 7
        %v7346 = vsub.s32 4, %v7345
        %v7347 = vrot.slane %v6482, %v7346
        %v7348 = vlaneseq
        %v7349 = vshrl.u32 %v7348, 7
        %v7350 = vsub.s32 4, %v7349
        %v7351 = vrot.slane %v6485, %v7350
        %v7352 = vlaneseq
        %v7353 = vshrl.u32 %v7352, 7
        %v7354 = vsub.s32 4, %v7353
        %v7355 = vrot.slane %v6490, %v7354
        %v7356 = vlaneseq
        %v7357 = vshrl.u32 %v7356, 7
        %v7358 = vsub.s32 4, %v7357
        %v7359 = vrot.slane %v6493, %v7358
        %v7360 = vlaneseq
        %v7361 = vshrl.u32 %v7360, 7
        %v7362 = vsub.s32 4, %v7361
        %v7363 = vrot.slane %v6498, %v7362
        %v7364 = vlaneseq
        %v7365 = vshrl.u32 %v7364, 7
        %v7366 = vsub.s32 4, %v7365
        %v7367 = vrot.slane %v6501, %v7366
        %v7368 = vlaneseq
        %v7369 = vshrl.u32 %v7368, 7
        %v7370 = vsub.s32 4, %v7369
        %v7371 = vrot.slane %v6506, %v7370
        %v7372 = vlaneseq
        %v7373 = vshrl.u32 %v7372, 7
        %v7374 = vsub.s32 4, %v7373
        %v7375 = vrot.slane %v6509, %v7374
        %v7376 = vlaneseq
        %v7377 = vshrl.u32 %v7376, 7
        %v7378 = vsub.s32 4, %v7377
        %v7379 = vrot.slane %v6514, %v7378
        %v7380 = vlaneseq
        %v7381 = vshrl.u32 %v7380, 7
        %v7382 = vsub.s32 4, %v7381
        %v7383 = vrot.slane %v6517, %v7382
        %v7384 = vlaneseq
        %v7385 = vshrl.u32 %v7384, 7
        %v7386 = vsub.s32 4, %v7385
        %v7387 = vrot.slane %v6522, %v7386
        %v7388 = vlaneseq
        %v7389 = vshrl.u32 %v7388, 7
        %v7390 = vsub.s32 4, %v7389
        %v7391 = vrot.slane %v6525, %v7390
        %v7392 = vlaneseq
        %v7393 = vshrl.u32 %v7392, 7
        %v7394 = vsub.s32 4, %v7393
        %v7395 = vrot.slane %v6530, %v7394
        %v7396 = vlaneseq
        %v7397 = vshrl.u32 %v7396, 7
        %v7398 = vsub.s32 4, %v7397
        %v7399 = vrot.slane %v6533, %v7398
        %v7400 = vlaneseq
        %v7401 = vshrl.u32 %v7400, 7
        %v7402 = vsub.s32 4, %v7401
        %v7403 = vrot.slane %v6538, %v7402
        %v7404 = vlaneseq
        %v7405 = vshrl.u32 %v7404, 7
        %v7406 = vsub.s32 4, %v7405
        %v7407 = vrot.slane %v6541, %v7406
        %v7408 = vlaneseq
        %v7409 = vshrl.u32 %v7408, 7
        %v7410 = vsub.s32 4, %v7409
        %v7411 = vrot.slane %v6546, %v7410
        %v7412 = vlaneseq
        %v7413 = vshrl.u32 %v7412, 7
        %v7414 = vsub.s32 4, %v7413
        %v7415 = vrot.slane %v6549, %v7414
        %v7416 = vlaneseq
        %v7417 = vshrl.u32 %v7416, 7
        %v7418 = vsub.s32 4, %v7417
        %v7419 = vrot.slane %v6554, %v7418
        %v7420 = vlaneseq
        %v7421 = vshrl.u32 %v7420, 7
        %v7422 = vsub.s32 4, %v7421
        %v7423 = vrot.slane %v6557, %v7422
        %v7424 = vlaneseq
        %v7425 = vshrl.u32 %v7424, 7
        %v7426 = vsub.s32 4, %v7425
        %v7427 = vrot.slane %v6562, %v7426
        %v7428 = vlaneseq
        %v7429 = vshrl.u32 %v7428, 7
        %v7430 = vsub.s32 4, %v7429
        %v7431 = vrot.slane %v6565, %v7430
        %v7432 = vmul.f32 %v3166, %v7307
        %v7433 = vmul.f32 %v3170, %v7311
        %v7434 = vmul.f32 %v3174, %v7315
        %v7435 = vmul.f32 %v3178, %v7319
        %v7436 = vmul.f32 %v3182, %v7323
        %v7437 = vmul.f32 %v3186, %v7327
        %v7438 = vmul.f32 %v3190, %v7331
        %v7439 = vmul.f32 %v3194, %v7335
        %v7440 = vmul.f32 %v3198, %v7339
        %v7441 = vmul.f32 %v3202, %v7343
        %v7442 = vmul.f32 %v3206, %v7347
        %v7443 = vmul.f32 %v3210, %v7351
        %v7444 = vmul.f32 %v3214, %v7355
        %v7445 = vmul.f32 %v3218, %v7359
        %v7446 = vmul.f32 %v3222, %v7363
        %v7447 = vmul.f32 %v3226, %v7367
        %v7448 = vmul.f32 %v3230, %v7371
        %v7449 = vmul.f32 %v3234, %v7375
        %v7450 = vmul.f32 %v3238, %v7379
        %v7451 = vmul.f32 %v3242, %v7383
        %v7452 = vmul.f32 %v3246, %v7387
        %v7453 = vmul.f32 %v3250, %v7391
        %v7454 = vmul.f32 %v3254, %v7395
        %v7455 = vmul.f32 %v3258, %v7399
        %v7456 = vmul.f32 %v3262, %v7403
        %v7457 = vmul.f32 %v3266, %v7407
        %v7458 = vmul.f32 %v3270, %v7411
        %v7459 = vmul.f32 %v3274, %v7415
        %v7460 = vmul.f32 %v3278, %v7419
        %v7461 = vmul.f32 %v3282, %v7423
        %v7462 = vmul.f32 %v3286, %v7427
        %v7463 = vmul.f32 %v3290, %v7431
        %v7464 = vadd.f32 %v7272, %v7432
        %v7465 = vadd.f32 %v7273, %v7433
        %v7466 = vadd.f32 %v7274, %v7434
        %v7467 = vadd.f32 %v7275, %v7435
        %v7468 = vadd.f32 %v7276, %v7436
        %v7469 = vadd.f32 %v7277, %v7437
        %v7470 = vadd.f32 %v7278, %v7438
        %v7471 = vadd.f32 %v7279, %v7439
        %v7472 = vadd.f32 %v7280, %v7440
        %v7473 = vadd.f32 %v7281, %v7441
        %v7474 = vadd.f32 %v7282, %v7442
        %v7475 = vadd.f32 %v7283, %v7443
        %v7476 = vadd.f32 %v7284, %v7444
        %v7477 = vadd.f32 %v7285, %v7445
        %v7478 = vadd.f32 %v7286, %v7446
        %v7479 = vadd.f32 %v7287, %v7447
        %v7480 = vadd.f32 %v7288, %v7448
        %v7481 = vadd.f32 %v7289, %v7449
        %v7482 = vadd.f32 %v7290, %v7450
        %v7483 = vadd.f32 %v7291, %v7451
        %v7484 = vadd.f32 %v7292, %v7452
        %v7485 = vadd.f32 %v7293, %v7453
        %v7486 = vadd.f32 %v7294, %v7454
        %v7487 = vadd.f32 %v7295, %v7455
        %v7488 = vadd.f32 %v7296, %v7456
        %v7489 = vadd.f32 %v7297, %v7457
        %v7490 = vadd.f32 %v7298, %v7458
        %v7491 = vadd.f32 %v7299, %v7459
        %v7492 = vadd.f32 %v7300, %v7460
        %v7493 = vadd.f32 %v7301, %v7461
        %v7494 = vadd.f32 %v7302, %v7462
        %v7495 = vadd.f32 %v7303, %v7463
        %v7496 = vlaneseq
        %v7497 = vshrl.u32 %v7496, 7
        %v7498 = vsub.s32 5, %v7497
        %v7499 = vrot.slane %v6442, %v7498
        %v7500 = vlaneseq
        %v7501 = vshrl.u32 %v7500, 7
        %v7502 = vsub.s32 5, %v7501
        %v7503 = vrot.slane %v6445, %v7502
        %v7504 = vlaneseq
        %v7505 = vshrl.u32 %v7504, 7
        %v7506 = vsub.s32 5, %v7505
        %v7507 = vrot.slane %v6450, %v7506
        %v7508 = vlaneseq
        %v7509 = vshrl.u32 %v7508, 7
        %v7510 = vsub.s32 5, %v7509
        %v7511 = vrot.slane %v6453, %v7510
        %v7512 = vlaneseq
        %v7513 = vshrl.u32 %v7512, 7
        %v7514 = vsub.s32 5, %v7513
        %v7515 = vrot.slane %v6458, %v7514
        %v7516 = vlaneseq
        %v7517 = vshrl.u32 %v7516, 7
        %v7518 = vsub.s32 5, %v7517
        %v7519 = vrot.slane %v6461, %v7518
        %v7520 = vlaneseq
        %v7521 = vshrl.u32 %v7520, 7
        %v7522 = vsub.s32 5, %v7521
        %v7523 = vrot.slane %v6466, %v7522
        %v7524 = vlaneseq
        %v7525 = vshrl.u32 %v7524, 7
        %v7526 = vsub.s32 5, %v7525
        %v7527 = vrot.slane %v6469, %v7526
        %v7528 = vlaneseq
        %v7529 = vshrl.u32 %v7528, 7
        %v7530 = vsub.s32 5, %v7529
        %v7531 = vrot.slane %v6474, %v7530
        %v7532 = vlaneseq
        %v7533 = vshrl.u32 %v7532, 7
        %v7534 = vsub.s32 5, %v7533
        %v7535 = vrot.slane %v6477, %v7534
        %v7536 = vlaneseq
        %v7537 = vshrl.u32 %v7536, 7
        %v7538 = vsub.s32 5, %v7537
        %v7539 = vrot.slane %v6482, %v7538
        %v7540 = vlaneseq
        %v7541 = vshrl.u32 %v7540, 7
        %v7542 = vsub.s32 5, %v7541
        %v7543 = vrot.slane %v6485, %v7542
        %v7544 = vlaneseq
        %v7545 = vshrl.u32 %v7544, 7
        %v7546 = vsub.s32 5, %v7545
        %v7547 = vrot.slane %v6490, %v7546
        %v7548 = vlaneseq
        %v7549 = vshrl.u32 %v7548, 7
        %v7550 = vsub.s32 5, %v7549
        %v7551 = vrot.slane %v6493, %v7550
        %v7552 = vlaneseq
        %v7553 = vshrl.u32 %v7552, 7
        %v7554 = vsub.s32 5, %v7553
        %v7555 = vrot.slane %v6498, %v7554
        %v7556 = vlaneseq
        %v7557 = vshrl.u32 %v7556, 7
        %v7558 = vsub.s32 5, %v7557
        %v7559 = vrot.slane %v6501, %v7558
        %v7560 = vlaneseq
        %v7561 = vshrl.u32 %v7560, 7
        %v7562 = vsub.s32 5, %v7561
        %v7563 = vrot.slane %v6506, %v7562
        %v7564 = vlaneseq
        %v7565 = vshrl.u32 %v7564, 7
        %v7566 = vsub.s32 5, %v7565
        %v7567 = vrot.slane %v6509, %v7566
        %v7568 = vlaneseq
        %v7569 = vshrl.u32 %v7568, 7
        %v7570 = vsub.s32 5, %v7569
        %v7571 = vrot.slane %v6514, %v7570
        %v7572 = vlaneseq
        %v7573 = vshrl.u32 %v7572, 7
        %v7574 = vsub.s32 5, %v7573
        %v7575 = vrot.slane %v6517, %v7574
        %v7576 = vlaneseq
        %v7577 = vshrl.u32 %v7576, 7
        %v7578 = vsub.s32 5, %v7577
        %v7579 = vrot.slane %v6522, %v7578
        %v7580 = vlaneseq
        %v7581 = vshrl.u32 %v7580, 7
        %v7582 = vsub.s32 5, %v7581
        %v7583 = vrot.slane %v6525, %v7582
        %v7584 = vlaneseq
        %v7585 = vshrl.u32 %v7584, 7
        %v7586 = vsub.s32 5, %v7585
        %v7587 = vrot.slane %v6530, %v7586
        %v7588 = vlaneseq
        %v7589 = vshrl.u32 %v7588, 7
        %v7590 = vsub.s32 5, %v7589
        %v7591 = vrot.slane %v6533, %v7590
        %v7592 = vlaneseq
        %v7593 = vshrl.u32 %v7592, 7
        %v7594 = vsub.s32 5, %v7593
        %v7595 = vrot.slane %v6538, %v7594
        %v7596 = vlaneseq
        %v7597 = vshrl.u32 %v7596, 7
        %v7598 = vsub.s32 5, %v7597
        %v7599 = vrot.slane %v6541, %v7598
        %v7600 = vlaneseq
        %v7601 = vshrl.u32 %v7600, 7
        %v7602 = vsub.s32 5, %v7601
        %v7603 = vrot.slane %v6546, %v7602
        %v7604 = vlaneseq
        %v7605 = vshrl.u32 %v7604, 7
        %v7606 = vsub.s32 5, %v7605
        %v7607 = vrot.slane %v6549, %v7606
        %v7608 = vlaneseq
        %v7609 = vshrl.u32 %v7608, 7
        %v7610 = vsub.s32 5, %v7609
        %v7611 = vrot.slane %v6554, %v7610
        %v7612 = vlaneseq
        %v7613 = vshrl.u32 %v7612, 7
        %v7614 = vsub.s32 5, %v7613
        %v7615 = vrot.slane %v6557, %v7614
        %v7616 = vlaneseq
        %v7617 = vshrl.u32 %v7616, 7
        %v7618 = vsub.s32 5, %v7617
        %v7619 = vrot.slane %v6562, %v7618
        %v7620 = vlaneseq
        %v7621 = vshrl.u32 %v7620, 7
        %v7622 = vsub.s32 5, %v7621
        %v7623 = vrot.slane %v6565, %v7622
        %v7624 = vmul.f32 %v3486, %v7499
        %v7625 = vmul.f32 %v3490, %v7503
        %v7626 = vmul.f32 %v3494, %v7507
        %v7627 = vmul.f32 %v3498, %v7511
        %v7628 = vmul.f32 %v3502, %v7515
        %v7629 = vmul.f32 %v3506, %v7519
        %v7630 = vmul.f32 %v3510, %v7523
        %v7631 = vmul.f32 %v3514, %v7527
        %v7632 = vmul.f32 %v3518, %v7531
        %v7633 = vmul.f32 %v3522, %v7535
        %v7634 = vmul.f32 %v3526, %v7539
        %v7635 = vmul.f32 %v3530, %v7543
        %v7636 = vmul.f32 %v3534, %v7547
        %v7637 = vmul.f32 %v3538, %v7551
        %v7638 = vmul.f32 %v3542, %v7555
        %v7639 = vmul.f32 %v3546, %v7559
        %v7640 = vmul.f32 %v3550, %v7563
        %v7641 = vmul.f32 %v3554, %v7567
        %v7642 = vmul.f32 %v3558, %v7571
        %v7643 = vmul.f32 %v3562, %v7575
        %v7644 = vmul.f32 %v3566, %v7579
        %v7645 = vmul.f32 %v3570, %v7583
        %v7646 = vmul.f32 %v3574, %v7587
        %v7647 = vmul.f32 %v3578, %v7591
        %v7648 = vmul.f32 %v3582, %v7595
        %v7649 = vmul.f32 %v3586, %v7599
        %v7650 = vmul.f32 %v3590, %v7603
        %v7651 = vmul.f32 %v3594, %v7607
        %v7652 = vmul.f32 %v3598, %v7611
        %v7653 = vmul.f32 %v3602, %v7615
        %v7654 = vmul.f32 %v3606, %v7619
        %v7655 = vmul.f32 %v3610, %v7623
        %v7656 = vadd.f32 %v7464, %v7624
        %v7657 = vadd.f32 %v7465, %v7625
        %v7658 = vadd.f32 %v7466, %v7626
        %v7659 = vadd.f32 %v7467, %v7627
        %v7660 = vadd.f32 %v7468, %v7628
        %v7661 = vadd.f32 %v7469, %v7629
        %v7662 = vadd.f32 %v7470, %v7630
        %v7663 = vadd.f32 %v7471, %v7631
        %v7664 = vadd.f32 %v7472, %v7632
        %v7665 = vadd.f32 %v7473, %v7633
        %v7666 = vadd.f32 %v7474, %v7634
        %v7667 = vadd.f32 %v7475, %v7635
        %v7668 = vadd.f32 %v7476, %v7636
        %v7669 = vadd.f32 %v7477, %v7637
        %v7670 = vadd.f32 %v7478, %v7638
        %v7671 = vadd.f32 %v7479, %v7639
        %v7672 = vadd.f32 %v7480, %v7640
        %v7673 = vadd.f32 %v7481, %v7641
        %v7674 = vadd.f32 %v7482, %v7642
        %v7675 = vadd.f32 %v7483, %v7643
        %v7676 = vadd.f32 %v7484, %v7644
        %v7677 = vadd.f32 %v7485, %v7645
        %v7678 = vadd.f32 %v7486, %v7646
        %v7679 = vadd.f32 %v7487, %v7647
        %v7680 = vadd.f32 %v7488, %v7648
        %v7681 = vadd.f32 %v7489, %v7649
        %v7682 = vadd.f32 %v7490, %v7650
        %v7683 = vadd.f32 %v7491, %v7651
        %v7684 = vadd.f32 %v7492, %v7652
        %v7685 = vadd.f32 %v7493, %v7653
        %v7686 = vadd.f32 %v7494, %v7654
        %v7687 = vadd.f32 %v7495, %v7655
        %v7688 = vlaneseq
        %v7689 = vshrl.u32 %v7688, 7
        %v7690 = vsub.s32 6, %v7689
        %v7691 = vrot.slane %v6442, %v7690
        %v7692 = vlaneseq
        %v7693 = vshrl.u32 %v7692, 7
        %v7694 = vsub.s32 6, %v7693
        %v7695 = vrot.slane %v6445, %v7694
        %v7696 = vlaneseq
        %v7697 = vshrl.u32 %v7696, 7
        %v7698 = vsub.s32 6, %v7697
        %v7699 = vrot.slane %v6450, %v7698
        %v7700 = vlaneseq
        %v7701 = vshrl.u32 %v7700, 7
        %v7702 = vsub.s32 6, %v7701
        %v7703 = vrot.slane %v6453, %v7702
        %v7704 = vlaneseq
        %v7705 = vshrl.u32 %v7704, 7
        %v7706 = vsub.s32 6, %v7705
        %v7707 = vrot.slane %v6458, %v7706
        %v7708 = vlaneseq
        %v7709 = vshrl.u32 %v7708, 7
        %v7710 = vsub.s32 6, %v7709
        %v7711 = vrot.slane %v6461, %v7710
        %v7712 = vlaneseq
        %v7713 = vshrl.u32 %v7712, 7
        %v7714 = vsub.s32 6, %v7713
        %v7715 = vrot.slane %v6466, %v7714
        %v7716 = vlaneseq
        %v7717 = vshrl.u32 %v7716, 7
        %v7718 = vsub.s32 6, %v7717
        %v7719 = vrot.slane %v6469, %v7718
        %v7720 = vlaneseq
        %v7721 = vshrl.u32 %v7720, 7
        %v7722 = vsub.s32 6, %v7721
        %v7723 = vrot.slane %v6474, %v7722
        %v7724 = vlaneseq
        %v7725 = vshrl.u32 %v7724, 7
        %v7726 = vsub.s32 6, %v7725
        %v7727 = vrot.slane %v6477, %v7726
        %v7728 = vlaneseq
        %v7729 = vshrl.u32 %v7728, 7
        %v7730 = vsub.s32 6, %v7729
        %v7731 = vrot.slane %v6482, %v7730
        %v7732 = vlaneseq
        %v7733 = vshrl.u32 %v7732, 7
        %v7734 = vsub.s32 6, %v7733
        %v7735 = vrot.slane %v6485, %v7734
        %v7736 = vlaneseq
        %v7737 = vshrl.u32 %v7736, 7
        %v7738 = vsub.s32 6, %v7737
        %v7739 = vrot.slane %v6490, %v7738
        %v7740 = vlaneseq
        %v7741 = vshrl.u32 %v7740, 7
        %v7742 = vsub.s32 6, %v7741
        %v7743 = vrot.slane %v6493, %v7742
        %v7744 = vlaneseq
        %v7745 = vshrl.u32 %v7744, 7
        %v7746 = vsub.s32 6, %v7745
        %v7747 = vrot.slane %v6498, %v7746
        %v7748 = vlaneseq
        %v7749 = vshrl.u32 %v7748, 7
        %v7750 = vsub.s32 6, %v7749
        %v7751 = vrot.slane %v6501, %v7750
        %v7752 = vlaneseq
        %v7753 = vshrl.u32 %v7752, 7
        %v7754 = vsub.s32 6, %v7753
        %v7755 = vrot.slane %v6506, %v7754
        %v7756 = vlaneseq
        %v7757 = vshrl.u32 %v7756, 7
        %v7758 = vsub.s32 6, %v7757
        %v7759 = vrot.slane %v6509, %v7758
        %v7760 = vlaneseq
        %v7761 = vshrl.u32 %v7760, 7
        %v7762 = vsub.s32 6, %v7761
        %v7763 = vrot.slane %v6514, %v7762
        %v7764 = vlaneseq
        %v7765 = vshrl.u32 %v7764, 7
        %v7766 = vsub.s32 6, %v7765
        %v7767 = vrot.slane %v6517, %v7766
        %v7768 = vlaneseq
        %v7769 = vshrl.u32 %v7768, 7
        %v7770 = vsub.s32 6, %v7769
        %v7771 = vrot.slane %v6522, %v7770
        %v7772 = vlaneseq
        %v7773 = vshrl.u32 %v7772, 7
        %v7774 = vsub.s32 6, %v7773
        %v7775 = vrot.slane %v6525, %v7774
        %v7776 = vlaneseq
        %v7777 = vshrl.u32 %v7776, 7
        %v7778 = vsub.s32 6, %v7777
        %v7779 = vrot.slane %v6530, %v7778
        %v7780 = vlaneseq
        %v7781 = vshrl.u32 %v7780, 7
        %v7782 = vsub.s32 6, %v7781
        %v7783 = vrot.slane %v6533, %v7782
        %v7784 = vlaneseq
        %v7785 = vshrl.u32 %v7784, 7
        %v7786 = vsub.s32 6, %v7785
        %v7787 = vrot.slane %v6538, %v7786
        %v7788 = vlaneseq
        %v7789 = vshrl.u32 %v7788, 7
        %v7790 = vsub.s32 6, %v7789
        %v7791 = vrot.slane %v6541, %v7790
        %v7792 = vlaneseq
        %v7793 = vshrl.u32 %v7792, 7
        %v7794 = vsub.s32 6, %v7793
        %v7795 = vrot.slane %v6546, %v7794
        %v7796 = vlaneseq
        %v7797 = vshrl.u32 %v7796, 7
        %v7798 = vsub.s32 6, %v7797
        %v7799 = vrot.slane %v6549, %v7798
        %v7800 = vlaneseq
        %v7801 = vshrl.u32 %v7800, 7
        %v7802 = vsub.s32 6, %v7801
        %v7803 = vrot.slane %v6554, %v7802
        %v7804 = vlaneseq
        %v7805 = vshrl.u32 %v7804, 7
        %v7806 = vsub.s32 6, %v7805
        %v7807 = vrot.slane %v6557, %v7806
        %v7808 = vlaneseq
        %v7809 = vshrl.u32 %v7808, 7
        %v7810 = vsub.s32 6, %v7809
        %v7811 = vrot.slane %v6562, %v7810
        %v7812 = vlaneseq
        %v7813 = vshrl.u32 %v7812, 7
        %v7814 = vsub.s32 6, %v7813
        %v7815 = vrot.slane %v6565, %v7814
        %v7816 = vmul.f32 %v3806, %v7691
        %v7817 = vmul.f32 %v3810, %v7695
        %v7818 = vmul.f32 %v3814, %v7699
        %v7819 = vmul.f32 %v3818, %v7703
        %v7820 = vmul.f32 %v3822, %v7707
        %v7821 = vmul.f32 %v3826, %v7711
        %v7822 = vmul.f32 %v3830, %v7715
        %v7823 = vmul.f32 %v3834, %v7719
        %v7824 = vmul.f32 %v3838, %v7723
        %v7825 = vmul.f32 %v3842, %v7727
        %v7826 = vmul.f32 %v3846, %v7731
        %v7827 = vmul.f32 %v3850, %v7735
        %v7828 = vmul.f32 %v3854, %v7739
        %v7829 = vmul.f32 %v3858, %v7743
        %v7830 = vmul.f32 %v3862, %v7747
        %v7831 = vmul.f32 %v3866, %v7751
        %v7832 = vmul.f32 %v3870, %v7755
        %v7833 = vmul.f32 %v3874, %v7759
        %v7834 = vmul.f32 %v3878, %v7763
        %v7835 = vmul.f32 %v3882, %v7767
        %v7836 = vmul.f32 %v3886, %v7771
        %v7837 = vmul.f32 %v3890, %v7775
        %v7838 = vmul.f32 %v3894, %v7779
        %v7839 = vmul.f32 %v3898, %v7783
        %v7840 = vmul.f32 %v3902, %v7787
        %v7841 = vmul.f32 %v3906, %v7791
        %v7842 = vmul.f32 %v3910, %v7795
        %v7843 = vmul.f32 %v3914, %v7799
        %v7844 = vmul.f32 %v3918, %v7803
        %v7845 = vmul.f32 %v3922, %v7807
        %v7846 = vmul.f32 %v3926, %v7811
        %v7847 = vmul.f32 %v3930, %v7815
        %v7848 = vadd.f32 %v7656, %v7816
        %v7849 = vadd.f32 %v7657, %v7817
        %v7850 = vadd.f32 %v7658, %v7818
        %v7851 = vadd.f32 %v7659, %v7819
        %v7852 = vadd.f32 %v7660, %v7820
        %v7853 = vadd.f32 %v7661, %v7821
        %v7854 = vadd.f32 %v7662, %v7822
        %v7855 = vadd.f32 %v7663, %v7823
        %v7856 = vadd.f32 %v7664, %v7824
        %v7857 = vadd.f32 %v7665, %v7825
        %v7858 = vadd.f32 %v7666, %v7826
        %v7859 = vadd.f32 %v7667, %v7827
        %v7860 = vadd.f32 %v7668, %v7828
        %v7861 = vadd.f32 %v7669, %v7829
        %v7862 = vadd.f32 %v7670, %v7830
        %v7863 = vadd.f32 %v7671, %v7831
        %v7864 = vadd.f32 %v7672, %v7832
        %v7865 = vadd.f32 %v7673, %v7833
        %v7866 = vadd.f32 %v7674, %v7834
        %v7867 = vadd.f32 %v7675, %v7835
        %v7868 = vadd.f32 %v7676, %v7836
        %v7869 = vadd.f32 %v7677, %v7837
        %v7870 = vadd.f32 %v7678, %v7838
        %v7871 = vadd.f32 %v7679, %v7839
        %v7872 = vadd.f32 %v7680, %v7840
        %v7873 = vadd.f32 %v7681, %v7841
        %v7874 = vadd.f32 %v7682, %v7842
        %v7875 = vadd.f32 %v7683, %v7843
        %v7876 = vadd.f32 %v7684, %v7844
        %v7877 = vadd.f32 %v7685, %v7845
        %v7878 = vadd.f32 %v7686, %v7846
        %v7879 = vadd.f32 %v7687, %v7847
        %v7880 = vlaneseq
        %v7881 = vshrl.u32 %v7880, 7
        %v7882 = vsub.s32 7, %v7881
        %v7883 = vrot.slane %v6442, %v7882
        %v7884 = vlaneseq
        %v7885 = vshrl.u32 %v7884, 7
        %v7886 = vsub.s32 7, %v7885
        %v7887 = vrot.slane %v6445, %v7886
        %v7888 = vlaneseq
        %v7889 = vshrl.u32 %v7888, 7
        %v7890 = vsub.s32 7, %v7889
        %v7891 = vrot.slane %v6450, %v7890
        %v7892 = vlaneseq
        %v7893 = vshrl.u32 %v7892, 7
        %v7894 = vsub.s32 7, %v7893
        %v7895 = vrot.slane %v6453, %v7894
        %v7896 = vlaneseq
        %v7897 = vshrl.u32 %v7896, 7
        %v7898 = vsub.s32 7, %v7897
        %v7899 = vrot.slane %v6458, %v7898
        %v7900 = vlaneseq
        %v7901 = vshrl.u32 %v7900, 7
        %v7902 = vsub.s32 7, %v7901
        %v7903 = vrot.slane %v6461, %v7902
        %v7904 = vlaneseq
        %v7905 = vshrl.u32 %v7904, 7
        %v7906 = vsub.s32 7, %v7905
        %v7907 = vrot.slane %v6466, %v7906
        %v7908 = vlaneseq
        %v7909 = vshrl.u32 %v7908, 7
        %v7910 = vsub.s32 7, %v7909
        %v7911 = vrot.slane %v6469, %v7910
        %v7912 = vlaneseq
        %v7913 = vshrl.u32 %v7912, 7
        %v7914 = vsub.s32 7, %v7913
        %v7915 = vrot.slane %v6474, %v7914
        %v7916 = vlaneseq
        %v7917 = vshrl.u32 %v7916, 7
        %v7918 = vsub.s32 7, %v7917
        %v7919 = vrot.slane %v6477, %v7918
        %v7920 = vlaneseq
        %v7921 = vshrl.u32 %v7920, 7
        %v7922 = vsub.s32 7, %v7921
        %v7923 = vrot.slane %v6482, %v7922
        %v7924 = vlaneseq
        %v7925 = vshrl.u32 %v7924, 7
        %v7926 = vsub.s32 7, %v7925
        %v7927 = vrot.slane %v6485, %v7926
        %v7928 = vlaneseq
        %v7929 = vshrl.u32 %v7928, 7
        %v7930 = vsub.s32 7, %v7929
        %v7931 = vrot.slane %v6490, %v7930
        %v7932 = vlaneseq
        %v7933 = vshrl.u32 %v7932, 7
        %v7934 = vsub.s32 7, %v7933
        %v7935 = vrot.slane %v6493, %v7934
        %v7936 = vlaneseq
        %v7937 = vshrl.u32 %v7936, 7
        %v7938 = vsub.s32 7, %v7937
        %v7939 = vrot.slane %v6498, %v7938
        %v7940 = vlaneseq
        %v7941 = vshrl.u32 %v7940, 7
        %v7942 = vsub.s32 7, %v7941
        %v7943 = vrot.slane %v6501, %v7942
        %v7944 = vlaneseq
        %v7945 = vshrl.u32 %v7944, 7
        %v7946 = vsub.s32 7, %v7945
        %v7947 = vrot.slane %v6506, %v7946
        %v7948 = vlaneseq
        %v7949 = vshrl.u32 %v7948, 7
        %v7950 = vsub.s32 7, %v7949
        %v7951 = vrot.slane %v6509, %v7950
        %v7952 = vlaneseq
        %v7953 = vshrl.u32 %v7952, 7
        %v7954 = vsub.s32 7, %v7953
        %v7955 = vrot.slane %v6514, %v7954
        %v7956 = vlaneseq
        %v7957 = vshrl.u32 %v7956, 7
        %v7958 = vsub.s32 7, %v7957
        %v7959 = vrot.slane %v6517, %v7958
        %v7960 = vlaneseq
        %v7961 = vshrl.u32 %v7960, 7
        %v7962 = vsub.s32 7, %v7961
        %v7963 = vrot.slane %v6522, %v7962
        %v7964 = vlaneseq
        %v7965 = vshrl.u32 %v7964, 7
        %v7966 = vsub.s32 7, %v7965
        %v7967 = vrot.slane %v6525, %v7966
        %v7968 = vlaneseq
        %v7969 = vshrl.u32 %v7968, 7
        %v7970 = vsub.s32 7, %v7969
        %v7971 = vrot.slane %v6530, %v7970
        %v7972 = vlaneseq
        %v7973 = vshrl.u32 %v7972, 7
        %v7974 = vsub.s32 7, %v7973
        %v7975 = vrot.slane %v6533, %v7974
        %v7976 = vlaneseq
        %v7977 = vshrl.u32 %v7976, 7
        %v7978 = vsub.s32 7, %v7977
        %v7979 = vrot.slane %v6538, %v7978
        %v7980 = vlaneseq
        %v7981 = vshrl.u32 %v7980, 7
        %v7982 = vsub.s32 7, %v7981
        %v7983 = vrot.slane %v6541, %v7982
        %v7984 = vlaneseq
        %v7985 = vshrl.u32 %v7984, 7
        %v7986 = vsub.s32 7, %v7985
        %v7987 = vrot.slane %v6546, %v7986
        %v7988 = vlaneseq
        %v7989 = vshrl.u32 %v7988, 7
        %v7990 = vsub.s32 7, %v7989
        %v7991 = vrot.slane %v6549, %v7990
        %v7992 = vlaneseq
        %v7993 = vshrl.u32 %v7992, 7
        %v7994 = vsub.s32 7, %v7993
        %v7995 = vrot.slane %v6554, %v7994
        %v7996 = vlaneseq
        %v7997 = vshrl.u32 %v7996, 7
        %v7998 = vsub.s32 7, %v7997
        %v7999 = vrot.slane %v6557, %v7998
        %v8000 = vlaneseq
        %v8001 = vshrl.u32 %v8000, 7
        %v8002 = vsub.s32 7, %v8001
        %v8003 = vrot.slane %v6562, %v8002
        %v8004 = vlaneseq
        %v8005 = vshrl.u32 %v8004, 7
        %v8006 = vsub.s32 7, %v8005
        %v8007 = vrot.slane %v6565, %v8006
        %v8008 = vmul.f32 %v4126, %v7883
        %v8009 = vmul.f32 %v4130, %v7887
        %v8010 = vmul.f32 %v4134, %v7891
        %v8011 = vmul.f32 %v4138, %v7895
        %v8012 = vmul.f32 %v4142, %v7899
        %v8013 = vmul.f32 %v4146, %v7903
        %v8014 = vmul.f32 %v4150, %v7907
        %v8015 = vmul.f32 %v4154, %v7911
        %v8016 = vmul.f32 %v4158, %v7915
        %v8017 = vmul.f32 %v4162, %v7919
        %v8018 = vmul.f32 %v4166, %v7923
        %v8019 = vmul.f32 %v4170, %v7927
        %v8020 = vmul.f32 %v4174, %v7931
        %v8021 = vmul.f32 %v4178, %v7935
        %v8022 = vmul.f32 %v4182, %v7939
        %v8023 = vmul.f32 %v4186, %v7943
        %v8024 = vmul.f32 %v4190, %v7947
        %v8025 = vmul.f32 %v4194, %v7951
        %v8026 = vmul.f32 %v4198, %v7955
        %v8027 = vmul.f32 %v4202, %v7959
        %v8028 = vmul.f32 %v4206, %v7963
        %v8029 = vmul.f32 %v4210, %v7967
        %v8030 = vmul.f32 %v4214, %v7971
        %v8031 = vmul.f32 %v4218, %v7975
        %v8032 = vmul.f32 %v4222, %v7979
        %v8033 = vmul.f32 %v4226, %v7983
        %v8034 = vmul.f32 %v4230, %v7987
        %v8035 = vmul.f32 %v4234, %v7991
        %v8036 = vmul.f32 %v4238, %v7995
        %v8037 = vmul.f32 %v4242, %v7999
        %v8038 = vmul.f32 %v4246, %v8003
        %v8039 = vmul.f32 %v4250, %v8007
        %v8040 = vadd.f32 %v7848, %v8008
        %v8041 = vadd.f32 %v7849, %v8009
        %v8042 = vadd.f32 %v7850, %v8010
        %v8043 = vadd.f32 %v7851, %v8011
        %v8044 = vadd.f32 %v7852, %v8012
        %v8045 = vadd.f32 %v7853, %v8013
        %v8046 = vadd.f32 %v7854, %v8014
        %v8047 = vadd.f32 %v7855, %v8015
        %v8048 = vadd.f32 %v7856, %v8016
        %v8049 = vadd.f32 %v7857, %v8017
        %v8050 = vadd.f32 %v7858, %v8018
        %v8051 = vadd.f32 %v7859, %v8019
        %v8052 = vadd.f32 %v7860, %v8020
        %v8053 = vadd.f32 %v7861, %v8021
        %v8054 = vadd.f32 %v7862, %v8022
        %v8055 = vadd.f32 %v7863, %v8023
        %v8056 = vadd.f32 %v7864, %v8024
        %v8057 = vadd.f32 %v7865, %v8025
        %v8058 = vadd.f32 %v7866, %v8026
        %v8059 = vadd.f32 %v7867, %v8027
        %v8060 = vadd.f32 %v7868, %v8028
        %v8061 = vadd.f32 %v7869, %v8029
        %v8062 = vadd.f32 %v7870, %v8030
        %v8063 = vadd.f32 %v7871, %v8031
        %v8064 = vadd.f32 %v7872, %v8032
        %v8065 = vadd.f32 %v7873, %v8033
        %v8066 = vadd.f32 %v7874, %v8034
        %v8067 = vadd.f32 %v7875, %v8035
        %v8068 = vadd.f32 %v7876, %v8036
        %v8069 = vadd.f32 %v7877, %v8037
        %v8070 = vadd.f32 %v7878, %v8038
        %v8071 = vadd.f32 %v7879, %v8039
        %v8072 = vlaneseq
        %v8073 = vshrl.u32 %v8072, 7
        %v8074 = vsub.s32 2, %v8073
        %v8075 = vrot.slane %v217, %v8074
        %v8076 = vadd.f32 %v8040, %v8075
        %v8077 = vadd.f32 %v8041, %v8075
        %v8078 = vadd.f32 %v8042, %v8075
        %v8079 = vadd.f32 %v8043, %v8075
        %v8080 = vadd.f32 %v8044, %v8075
        %v8081 = vadd.f32 %v8045, %v8075
        %v8082 = vadd.f32 %v8046, %v8075
        %v8083 = vadd.f32 %v8047, %v8075
        %v8084 = vadd.f32 %v8048, %v8075
        %v8085 = vadd.f32 %v8049, %v8075
        %v8086 = vadd.f32 %v8050, %v8075
        %v8087 = vadd.f32 %v8051, %v8075
        %v8088 = vadd.f32 %v8052, %v8075
        %v8089 = vadd.f32 %v8053, %v8075
        %v8090 = vadd.f32 %v8054, %v8075
        %v8091 = vadd.f32 %v8055, %v8075
        %v8092 = vadd.f32 %v8056, %v8075
        %v8093 = vadd.f32 %v8057, %v8075
        %v8094 = vadd.f32 %v8058, %v8075
        %v8095 = vadd.f32 %v8059, %v8075
        %v8096 = vadd.f32 %v8060, %v8075
        %v8097 = vadd.f32 %v8061, %v8075
        %v8098 = vadd.f32 %v8062, %v8075
        %v8099 = vadd.f32 %v8063, %v8075
        %v8100 = vadd.f32 %v8064, %v8075
        %v8101 = vadd.f32 %v8065, %v8075
        %v8102 = vadd.f32 %v8066, %v8075
        %v8103 = vadd.f32 %v8067, %v8075
        %v8104 = vadd.f32 %v8068, %v8075
        %v8105 = vadd.f32 %v8069, %v8075
        %v8106 = vadd.f32 %v8070, %v8075
        %v8107 = vadd.f32 %v8071, %v8075
        %v8108 = vmax.f32 %v8076, 0.0
        %v8109 = vmax.f32 %v8077, 0.0
        %v8110 = vmax.f32 %v8078, 0.0
        %v8111 = vmax.f32 %v8079, 0.0
        %v8112 = vmax.f32 %v8080, 0.0
        %v8113 = vmax.f32 %v8081, 0.0
        %v8114 = vmax.f32 %v8082, 0.0
        %v8115 = vmax.f32 %v8083, 0.0
        %v8116 = vmax.f32 %v8084, 0.0
        %v8117 = vmax.f32 %v8085, 0.0
        %v8118 = vmax.f32 %v8086, 0.0
        %v8119 = vmax.f32 %v8087, 0.0
        %v8120 = vmax.f32 %v8088, 0.0
        %v8121 = vmax.f32 %v8089, 0.0
        %v8122 = vmax.f32 %v8090, 0.0
        %v8123 = vmax.f32 %v8091, 0.0
        %v8124 = vmax.f32 %v8092, 0.0
        %v8125 = vmax.f32 %v8093, 0.0
        %v8126 = vmax.f32 %v8094, 0.0
        %v8127 = vmax.f32 %v8095, 0.0
        %v8128 = vmax.f32 %v8096, 0.0
        %v8129 = vmax.f32 %v8097, 0.0
        %v8130 = vmax.f32 %v8098, 0.0
        %v8131 = vmax.f32 %v8099, 0.0
        %v8132 = vmax.f32 %v8100, 0.0
        %v8133 = vmax.f32 %v8101, 0.0
        %v8134 = vmax.f32 %v8102, 0.0
        %v8135 = vmax.f32 %v8103, 0.0
        %v8136 = vmax.f32 %v8104, 0.0
        %v8137 = vmax.f32 %v8105, 0.0
        %v8138 = vmax.f32 %v8106, 0.0
        %v8139 = vmax.f32 %v8107, 0.0
        %v8140 = vrot.slane %v8108, 4
        %v8141 = vadd.f32 %v8108, %v8140
        %v8142 = vrot.slane %v8141, 2
        %v8143 = vadd.f32 %v8141, %v8142
        %v8144 = vrot.slane %v8143, 1
        %v8145 = vadd.f32 %v8143, %v8144
        %v8146 = vrot.slane %v8109, 4
        %v8147 = vadd.f32 %v8109, %v8146
        %v8148 = vrot.slane %v8147, 2
        %v8149 = vadd.f32 %v8147, %v8148
        %v8150 = vrot.slane %v8149, 1
        %v8151 = vadd.f32 %v8149, %v8150
        %v8152 = vrot.slane %v8110, 4
        %v8153 = vadd.f32 %v8110, %v8152
        %v8154 = vrot.slane %v8153, 2
        %v8155 = vadd.f32 %v8153, %v8154
        %v8156 = vrot.slane %v8155, 1
        %v8157 = vadd.f32 %v8155, %v8156
        %v8158 = vrot.slane %v8111, 4
        %v8159 = vadd.f32 %v8111, %v8158
        %v8160 = vrot.slane %v8159, 2
        %v8161 = vadd.f32 %v8159, %v8160
        %v8162 = vrot.slane %v8161, 1
        %v8163 = vadd.f32 %v8161, %v8162
        %v8164 = vrot.slane %v8112, 4
        %v8165 = vadd.f32 %v8112, %v8164
        %v8166 = vrot.slane %v8165, 2
        %v8167 = vadd.f32 %v8165, %v8166
        %v8168 = vrot.slane %v8167, 1
        %v8169 = vadd.f32 %v8167, %v8168
        %v8170 = vrot.slane %v8113, 4
        %v8171 = vadd.f32 %v8113, %v8170
        %v8172 = vrot.slane %v8171, 2
        %v8173 = vadd.f32 %v8171, %v8172
        %v8174 = vrot.slane %v8173, 1
        %v8175 = vadd.f32 %v8173, %v8174
        %v8176 = vrot.slane %v8114, 4
        %v8177 = vadd.f32 %v8114, %v8176
        %v8178 = vrot.slane %v8177, 2
        %v8179 = vadd.f32 %v8177, %v8178
        %v8180 = vrot.slane %v8179, 1
        %v8181 = vadd.f32 %v8179, %v8180
        %v8182 = vrot.slane %v8115, 4
        %v8183 = vadd.f32 %v8115, %v8182
        %v8184 = vrot.slane %v8183, 2
        %v8185 = vadd.f32 %v8183, %v8184
        %v8186 = vrot.slane %v8185, 1
        %v8187 = vadd.f32 %v8185, %v8186
        %v8188 = vrot.slane %v8116, 4
        %v8189 = vadd.f32 %v8116, %v8188
        %v8190 = vrot.slane %v8189, 2
        %v8191 = vadd.f32 %v8189, %v8190
        %v8192 = vrot.slane %v8191, 1
        %v8193 = vadd.f32 %v8191, %v8192
        %v8194 = vrot.slane %v8117, 4
        %v8195 = vadd.f32 %v8117, %v8194
        %v8196 = vrot.slane %v8195, 2
        %v8197 = vadd.f32 %v8195, %v8196
        %v8198 = vrot.slane %v8197, 1
        %v8199 = vadd.f32 %v8197, %v8198
        %v8200 = vrot.slane %v8118, 4
        %v8201 = vadd.f32 %v8118, %v8200
        %v8202 = vrot.slane %v8201, 2
        %v8203 = vadd.f32 %v8201, %v8202
        %v8204 = vrot.slane %v8203, 1
        %v8205 = vadd.f32 %v8203, %v8204
        %v8206 = vrot.slane %v8119, 4
        %v8207 = vadd.f32 %v8119, %v8206
        %v8208 = vrot.slane %v8207, 2
        %v8209 = vadd.f32 %v8207, %v8208
        %v8210 = vrot.slane %v8209, 1
        %v8211 = vadd.f32 %v8209, %v8210
        %v8212 = vrot.slane %v8120, 4
        %v8213 = vadd.f32 %v8120, %v8212
        %v8214 = vrot.slane %v8213, 2
        %v8215 = vadd.f32 %v8213, %v8214
        %v8216 = vrot.slane %v8215, 1
        %v8217 = vadd.f32 %v8215, %v8216
        %v8218 = vrot.slane %v8121, 4
        %v8219 = vadd.f32 %v8121, %v8218
        %v8220 = vrot.slane %v8219, 2
        %v8221 = vadd.f32 %v8219, %v8220
        %v8222 = vrot.slane %v8221, 1
        %v8223 = vadd.f32 %v8221, %v8222
        %v8224 = vrot.slane %v8122, 4
        %v8225 = vadd.f32 %v8122, %v8224
        %v8226 = vrot.slane %v8225, 2
        %v8227 = vadd.f32 %v8225, %v8226
        %v8228 = vrot.slane %v8227, 1
        %v8229 = vadd.f32 %v8227, %v8228
        %v8230 = vrot.slane %v8123, 4
        %v8231 = vadd.f32 %v8123, %v8230
        %v8232 = vrot.slane %v8231, 2
        %v8233 = vadd.f32 %v8231, %v8232
        %v8234 = vrot.slane %v8233, 1
        %v8235 = vadd.f32 %v8233, %v8234
        %v8236 = vrot.slane %v8124, 4
        %v8237 = vadd.f32 %v8124, %v8236
        %v8238 = vrot.slane %v8237, 2
        %v8239 = vadd.f32 %v8237, %v8238
        %v8240 = vrot.slane %v8239, 1
        %v8241 = vadd.f32 %v8239, %v8240
        %v8242 = vrot.slane %v8125, 4
        %v8243 = vadd.f32 %v8125, %v8242
        %v8244 = vrot.slane %v8243, 2
        %v8245 = vadd.f32 %v8243, %v8244
        %v8246 = vrot.slane %v8245, 1
        %v8247 = vadd.f32 %v8245, %v8246
        %v8248 = vrot.slane %v8126, 4
        %v8249 = vadd.f32 %v8126, %v8248
        %v8250 = vrot.slane %v8249, 2
        %v8251 = vadd.f32 %v8249, %v8250
        %v8252 = vrot.slane %v8251, 1
        %v8253 = vadd.f32 %v8251, %v8252
        %v8254 = vrot.slane %v8127, 4
        %v8255 = vadd.f32 %v8127, %v8254
        %v8256 = vrot.slane %v8255, 2
        %v8257 = vadd.f32 %v8255, %v8256
        %v8258 = vrot.slane %v8257, 1
        %v8259 = vadd.f32 %v8257, %v8258
        %v8260 = vrot.slane %v8128, 4
        %v8261 = vadd.f32 %v8128, %v8260
        %v8262 = vrot.slane %v8261, 2
        %v8263 = vadd.f32 %v8261, %v8262
        %v8264 = vrot.slane %v8263, 1
        %v8265 = vadd.f32 %v8263, %v8264
        %v8266 = vrot.slane %v8129, 4
        %v8267 = vadd.f32 %v8129, %v8266
        %v8268 = vrot.slane %v8267, 2
        %v8269 = vadd.f32 %v8267, %v8268
        %v8270 = vrot.slane %v8269, 1
        %v8271 = vadd.f32 %v8269, %v8270
        %v8272 = vrot.slane %v8130, 4
        %v8273 = vadd.f32 %v8130, %v8272
        %v8274 = vrot.slane %v8273, 2
        %v8275 = vadd.f32 %v8273, %v8274
        %v8276 = vrot.slane %v8275, 1
        %v8277 = vadd.f32 %v8275, %v8276
        %v8278 = vrot.slane %v8131, 4
        %v8279 = vadd.f32 %v8131, %v8278
        %v8280 = vrot.slane %v8279, 2
        %v8281 = vadd.f32 %v8279, %v8280
        %v8282 = vrot.slane %v8281, 1
        %v8283 = vadd.f32 %v8281, %v8282
        %v8284 = vrot.slane %v8132, 4
        %v8285 = vadd.f32 %v8132, %v8284
        %v8286 = vrot.slane %v8285, 2
        %v8287 = vadd.f32 %v8285, %v8286
        %v8288 = vrot.slane %v8287, 1
        %v8289 = vadd.f32 %v8287, %v8288
        %v8290 = vrot.slane %v8133, 4
        %v8291 = vadd.f32 %v8133, %v8290
        %v8292 = vrot.slane %v8291, 2
        %v8293 = vadd.f32 %v8291, %v8292
        %v8294 = vrot.slane %v8293, 1
        %v8295 = vadd.f32 %v8293, %v8294
        %v8296 = vrot.slane %v8134, 4
        %v8297 = vadd.f32 %v8134, %v8296
        %v8298 = vrot.slane %v8297, 2
        %v8299 = vadd.f32 %v8297, %v8298
        %v8300 = vrot.slane %v8299, 1
        %v8301 = vadd.f32 %v8299, %v8300
        %v8302 = vrot.slane %v8135, 4
        %v8303 = vadd.f32 %v8135, %v8302
        %v8304 = vrot.slane %v8303, 2
        %v8305 = vadd.f32 %v8303, %v8304
        %v8306 = vrot.slane %v8305, 1
        %v8307 = vadd.f32 %v8305, %v8306
        %v8308 = vrot.slane %v8136, 4
        %v8309 = vadd.f32 %v8136, %v8308
        %v8310 = vrot.slane %v8309, 2
        %v8311 = vadd.f32 %v8309, %v8310
        %v8312 = vrot.slane %v8311, 1
        %v8313 = vadd.f32 %v8311, %v8312
        %v8314 = vrot.slane %v8137, 4
        %v8315 = vadd.f32 %v8137, %v8314
        %v8316 = vrot.slane %v8315, 2
        %v8317 = vadd.f32 %v8315, %v8316
        %v8318 = vrot.slane %v8317, 1
        %v8319 = vadd.f32 %v8317, %v8318
        %v8320 = vrot.slane %v8138, 4
        %v8321 = vadd.f32 %v8138, %v8320
        %v8322 = vrot.slane %v8321, 2
        %v8323 = vadd.f32 %v8321, %v8322
        %v8324 = vrot.slane %v8323, 1
        %v8325 = vadd.f32 %v8323, %v8324
        %v8326 = vrot.slane %v8139, 4
        %v8327 = vadd.f32 %v8139, %v8326
        %v8328 = vrot.slane %v8327, 2
        %v8329 = vadd.f32 %v8327, %v8328
        %v8330 = vrot.slane %v8329, 1
        %v8331 = vadd.f32 %v8329, %v8330
        %v8332 = vpack.c.bf16 %v8145, %v8145
        %v8333 = vpack.c.bf16 %v8151, %v8151
        %v8334 = vpack.c.bf16 %v8157, %v8157
        %v8335 = vpack.c.bf16 %v8163, %v8163
        %v8336 = vpack.c.bf16 %v8169, %v8169
        %v8337 = vpack.c.bf16 %v8175, %v8175
        %v8338 = vpack.c.bf16 %v8181, %v8181
        %v8339 = vpack.c.bf16 %v8187, %v8187
        %v8340 = vpack.c.bf16 %v8193, %v8193
        %v8341 = vpack.c.bf16 %v8199, %v8199
        %v8342 = vpack.c.bf16 %v8205, %v8205
        %v8343 = vpack.c.bf16 %v8211, %v8211
        %v8344 = vpack.c.bf16 %v8217, %v8217
        %v8345 = vpack.c.bf16 %v8223, %v8223
        %v8346 = vpack.c.bf16 %v8229, %v8229
        %v8347 = vpack.c.bf16 %v8235, %v8235
        %v8348 = vpack.c.bf16 %v8241, %v8241
        %v8349 = vpack.c.bf16 %v8247, %v8247
        %v8350 = vpack.c.bf16 %v8253, %v8253
        %v8351 = vpack.c.bf16 %v8259, %v8259
        %v8352 = vpack.c.bf16 %v8265, %v8265
        %v8353 = vpack.c.bf16 %v8271, %v8271
        %v8354 = vpack.c.bf16 %v8277, %v8277
        %v8355 = vpack.c.bf16 %v8283, %v8283
        %v8356 = vpack.c.bf16 %v8289, %v8289
        %v8357 = vpack.c.bf16 %v8295, %v8295
        %v8358 = vpack.c.bf16 %v8301, %v8301
        %v8359 = vpack.c.bf16 %v8307, %v8307
        %v8360 = vpack.c.bf16 %v8313, %v8313
        %v8361 = vpack.c.bf16 %v8319, %v8319
        %v8362 = vpack.c.bf16 %v8325, %v8325
        %v8363 = vpack.c.bf16 %v8331, %v8331
        %s8364 = scalar_lea.vmem %s2, 192
        %v8365 = vld [vmem:[%s8364] sm:$0xf]
        %v8366 = vld [vmem:[%s8364 + $0x4] sm:$0xf]
        %v8367 = vld [vmem:[%s8364 + $0x8] sm:$0xf]
        %v8368 = vld [vmem:[%s8364 + $0xc] sm:$0xf]
        %v8369 = vld [vmem:[%s8364 + $0x10] sm:$0xf]
        %v8370 = vld [vmem:[%s8364 + $0x14] sm:$0xf]
        %v8371 = vld [vmem:[%s8364 + $0x18] sm:$0xf]
        %v8372 = vld [vmem:[%s8364 + $0x1c] sm:$0xf]
        %v8373 = vld [vmem:[%s8364 + $0x20] sm:$0xf]
        %v8374 = vld [vmem:[%s8364 + $0x24] sm:$0xf]
        %v8375 = vld [vmem:[%s8364 + $0x28] sm:$0xf]
        %v8376 = vld [vmem:[%s8364 + $0x2c] sm:$0xf]
        %v8377 = vld [vmem:[%s8364 + $0x30] sm:$0xf]
        %v8378 = vld [vmem:[%s8364 + $0x34] sm:$0xf]
        %v8379 = vld [vmem:[%s8364 + $0x38] sm:$0xf]
        %v8380 = vld [vmem:[%s8364 + $0x3c] sm:$0xf]
        %v8381 = vlaneseq
        %v8382 = vshrl.u32 %v8381, 7
        %v8383 = vsub.s32 3, %v8382
        %v8384 = vrot.slane %v217, %v8383
        %v8417 = vunpack.c.l.b16 %v8332
        %v8418 = vunpack.c.l.b16 %v8333
        %v8419 = vunpack.c.l.b16 %v8334
        %v8420 = vunpack.c.l.b16 %v8335
        %v8421 = vunpack.c.l.b16 %v8336
        %v8422 = vunpack.c.l.b16 %v8337
        %v8423 = vunpack.c.l.b16 %v8338
        %v8424 = vunpack.c.l.b16 %v8339
        %v8425 = vunpack.c.l.b16 %v8340
        %v8426 = vunpack.c.l.b16 %v8341
        %v8427 = vunpack.c.l.b16 %v8342
        %v8428 = vunpack.c.l.b16 %v8343
        %v8429 = vunpack.c.l.b16 %v8344
        %v8430 = vunpack.c.l.b16 %v8345
        %v8431 = vunpack.c.l.b16 %v8346
        %v8432 = vunpack.c.l.b16 %v8347
        %v8433 = vunpack.c.l.b16 %v8348
        %v8434 = vunpack.c.l.b16 %v8349
        %v8435 = vunpack.c.l.b16 %v8350
        %v8436 = vunpack.c.l.b16 %v8351
        %v8437 = vunpack.c.l.b16 %v8352
        %v8438 = vunpack.c.l.b16 %v8353
        %v8439 = vunpack.c.l.b16 %v8354
        %v8440 = vunpack.c.l.b16 %v8355
        %v8441 = vunpack.c.l.b16 %v8356
        %v8442 = vunpack.c.l.b16 %v8357
        %v8443 = vunpack.c.l.b16 %v8358
        %v8444 = vunpack.c.l.b16 %v8359
        %v8445 = vunpack.c.l.b16 %v8360
        %v8446 = vunpack.c.l.b16 %v8361
        %v8447 = vunpack.c.l.b16 %v8362
        %v8448 = vunpack.c.l.b16 %v8363
        %vm8449 = vcmask 1041409
        %v8450 = vsel %vm8449, %v8418, %v8417
        %vm8451 = vcmask 1042434
        %v8452 = vsel %vm8451, %v8419, %v8450
        %vm8453 = vcmask 1043459
        %v8454 = vsel %vm8453, %v8420, %v8452
        %vm8455 = vcmask 1044484
        %v8456 = vsel %vm8455, %v8421, %v8454
        %vm8457 = vcmask 1045509
        %v8458 = vsel %vm8457, %v8422, %v8456
        %vm8459 = vcmask 1046534
        %v8460 = vsel %vm8459, %v8423, %v8458
        %vm8461 = vcmask 1047559
        %v8462 = vsel %vm8461, %v8424, %v8460
        %v8463 = vsel %vm8449, %v8426, %v8425
        %v8464 = vsel %vm8451, %v8427, %v8463
        %v8465 = vsel %vm8453, %v8428, %v8464
        %v8466 = vsel %vm8455, %v8429, %v8465
        %v8467 = vsel %vm8457, %v8430, %v8466
        %v8468 = vsel %vm8459, %v8431, %v8467
        %v8469 = vsel %vm8461, %v8432, %v8468
        %v8470 = vsel %vm8449, %v8434, %v8433
        %v8471 = vsel %vm8451, %v8435, %v8470
        %v8472 = vsel %vm8453, %v8436, %v8471
        %v8473 = vsel %vm8455, %v8437, %v8472
        %v8474 = vsel %vm8457, %v8438, %v8473
        %v8475 = vsel %vm8459, %v8439, %v8474
        %v8476 = vsel %vm8461, %v8440, %v8475
        %v8477 = vsel %vm8449, %v8442, %v8441
        %v8478 = vsel %vm8451, %v8443, %v8477
        %v8479 = vsel %vm8453, %v8444, %v8478
        %v8480 = vsel %vm8455, %v8445, %v8479
        %v8481 = vsel %vm8457, %v8446, %v8480
        %v8482 = vsel %vm8459, %v8447, %v8481
        %v8483 = vsel %vm8461, %v8448, %v8482
        %v8484 = vpack.c.b16 %v8469, %v8462
        %v8485 = vpack.c.b16 %v8483, %v8476
        %v8504 = vunpack.c.l.b16 %v8365
        %v8505 = vunpack.c.l.b16 %v8366
        %v8506 = vunpack.c.l.b16 %v8367
        %v8507 = vunpack.c.l.b16 %v8368
        %v8508 = vunpack.c.l.b16 %v8369
        %v8509 = vunpack.c.l.b16 %v8370
        %v8510 = vunpack.c.l.b16 %v8371
        %v8511 = vunpack.c.l.b16 %v8372
        %v8512 = vunpack.c.l.b16 %v8373
        %v8513 = vunpack.c.l.b16 %v8374
        %v8514 = vunpack.c.l.b16 %v8375
        %v8515 = vunpack.c.l.b16 %v8376
        %v8516 = vunpack.c.l.b16 %v8377
        %v8517 = vunpack.c.l.b16 %v8378
        %v8518 = vunpack.c.l.b16 %v8379
        %v8519 = vunpack.c.l.b16 %v8380
        %v8520 = vpack.c.b16 %v8505, %v8504
        %v8521 = vpack.c.b16 %v8507, %v8506
        %v8522 = vpack.c.b16 %v8509, %v8508
        %v8523 = vpack.c.b16 %v8511, %v8510
        %v8524 = vpack.c.b16 %v8513, %v8512
        %v8525 = vpack.c.b16 %v8515, %v8514
        %v8526 = vpack.c.b16 %v8517, %v8516
        %v8527 = vpack.c.b16 %v8519, %v8518
        %8536 = vmatprep.subr.bf16.mxu0 0
        %8537 = vmatpush1.bf16.msra.mxu0 %v8520
        %8538 = vmatprep.subr.bf16.mxu0 0
        %8539 = vmatpush1.bf16.msra.mxu0 %v8521
        %8540 = vmatprep.subr.bf16.mxu0 0
        %8541 = vmatpush1.bf16.msra.mxu0 %v8522
        %8542 = vmatprep.subr.bf16.mxu0 0
        %8543 = vmatpush1.bf16.msra.mxu0 %v8523
        %8544 = vmatprep.subr.bf16.mxu0 0
        %8545 = vmatpush1.bf16.msra.mxu0 %v8524
        %8546 = vmatprep.subr.bf16.mxu0 0
        %8547 = vmatpush1.bf16.msra.mxu0 %v8525
        %8548 = vmatprep.subr.bf16.mxu0 0
        %8549 = vmatpush1.bf16.msra.mxu0 %v8526
        %8550 = vmatprep.subr.bf16.mxu0 0
        %8551 = vmatpush1.bf16.msra.mxu0 %v8527
        %8552 = vmatprep.subr.bf16.mxu0 0
        %8553 = vmatpush1.bf16.msra.mxu0 0
        %8554 = vmatprep.subr.bf16.mxu0 0
        %8555 = vmatpush1.bf16.msra.mxu0 0
        %8556 = vmatprep.subr.bf16.mxu0 0
        %8557 = vmatpush1.bf16.msra.mxu0 0
        %8558 = vmatprep.subr.bf16.mxu0 0
        %8559 = vmatpush1.bf16.msra.mxu0 0
        %8560 = vmatprep.subr.bf16.mxu0 0
        %8561 = vmatpush1.bf16.msra.mxu0 0
        %8562 = vmatprep.subr.bf16.mxu0 0
        %8563 = vmatpush1.bf16.msra.mxu0 0
        %8564 = vmatprep.subr.bf16.mxu0 0
        %8565 = vmatpush1.bf16.msra.mxu0 0
        %8566 = vmatprep.subr.bf16.mxu0 0
        %8567 = vmatpush1.bf16.msra.mxu0 0
        %8568 = vmatprep.mubr.bf16.mxu0 0
        %8569 = vmatmul.mubr.bf16.gmra.mrb[0].mxu0 %v8484
        %v8570 = vpop.f32.mrb[0].mxu0
        %v8571 = vadd.f32 %v8384, %v8570
        %v8572 = vpop.f32.mrb[0].mxu0
        %v8573 = vpop.f32.mrb[0].mxu0
        %v8574 = vadd.f32 %v8384, %v8573
        %v8575 = vpop.f32.mrb[0].mxu0
        %8576 = vmatprep.mubr.bf16.mxu0 0
        %8577 = vmatmul.mubr.bf16.gmra.mrb[0].mxu0 %v8485
        %v8578 = vpop.f32.mrb[0].mxu0
        %v8579 = vadd.f32 %v8384, %v8578
        %v8580 = vpop.f32.mrb[0].mxu0
        %v8581 = vpop.f32.mrb[0].mxu0
        %v8582 = vadd.f32 %v8384, %v8581
        %v8583 = vpop.f32.mrb[0].mxu0
        %8584 = vdwg.mxu0
        %v8585 = vmax.f32 %v8571, 0.0
        %v8586 = vmax.f32 %v8574, 0.0
        %v8587 = vmax.f32 %v8579, 0.0
        %v8588 = vmax.f32 %v8582, 0.0
        %v8589 = vpack.c.bf16 %v8586, %v8585
        %v8590 = vpack.c.bf16 %v8588, %v8587
        %s8591 = scalar_lea.vmem %s2, 256
        %v8592 = vld [vmem:[%s8591] sm:$0xf]
        %v8593 = vld [vmem:[%s8591 + $0x4] sm:$0xf]
        %v8594 = vld [vmem:[%s8591 + $0x8] sm:$0xf]
        %v8595 = vld [vmem:[%s8591 + $0xc] sm:$0xf]
        %v8596 = vld [vmem:[%s8591 + $0x10] sm:$0xf]
        %v8597 = vld [vmem:[%s8591 + $0x14] sm:$0xf]
        %v8598 = vld [vmem:[%s8591 + $0x18] sm:$0xf]
        %v8599 = vld [vmem:[%s8591 + $0x1c] sm:$0xf]
        %v8600 = vld [vmem:[%s8591 + $0x20] sm:$0xf]
        %v8601 = vld [vmem:[%s8591 + $0x24] sm:$0xf]
        %v8602 = vld [vmem:[%s8591 + $0x28] sm:$0xf]
        %v8603 = vld [vmem:[%s8591 + $0x2c] sm:$0xf]
        %v8604 = vld [vmem:[%s8591 + $0x30] sm:$0xf]
        %v8605 = vld [vmem:[%s8591 + $0x34] sm:$0xf]
        %v8606 = vld [vmem:[%s8591 + $0x38] sm:$0xf]
        %v8607 = vld [vmem:[%s8591 + $0x3c] sm:$0xf]
        %v8608 = vlaneseq
        %v8609 = vshrl.u32 %v8608, 7
        %v8610 = vsub.s32 4, %v8609
        %v8611 = vrot.slane %v217, %v8610
        %v8628 = vunpack.c.l.b16 %v8592
        %v8629 = vunpack.c.l.b16 %v8593
        %v8630 = vunpack.c.l.b16 %v8594
        %v8631 = vunpack.c.l.b16 %v8595
        %v8632 = vunpack.c.l.b16 %v8596
        %v8633 = vunpack.c.l.b16 %v8597
        %v8634 = vunpack.c.l.b16 %v8598
        %v8635 = vunpack.c.l.b16 %v8599
        %v8636 = vunpack.c.l.b16 %v8600
        %v8637 = vunpack.c.l.b16 %v8601
        %v8638 = vunpack.c.l.b16 %v8602
        %v8639 = vunpack.c.l.b16 %v8603
        %v8640 = vunpack.c.l.b16 %v8604
        %v8641 = vunpack.c.l.b16 %v8605
        %v8642 = vunpack.c.l.b16 %v8606
        %v8643 = vunpack.c.l.b16 %v8607
        %v8644 = vpack.c.b16 %v8629, %v8628
        %v8645 = vpack.c.b16 %v8631, %v8630
        %v8646 = vpack.c.b16 %v8633, %v8632
        %v8647 = vpack.c.b16 %v8635, %v8634
        %v8648 = vpack.c.b16 %v8637, %v8636
        %v8649 = vpack.c.b16 %v8639, %v8638
        %v8650 = vpack.c.b16 %v8641, %v8640
        %v8651 = vpack.c.b16 %v8643, %v8642
        %8660 = vmatprep.subr.bf16.mxu0 0
        %8661 = vmatpush1.bf16.msra.mxu0 %v8644
        %8662 = vmatprep.subr.bf16.mxu0 0
        %8663 = vmatpush1.bf16.msra.mxu0 %v8645
        %8664 = vmatprep.subr.bf16.mxu0 0
        %8665 = vmatpush1.bf16.msra.mxu0 %v8646
        %8666 = vmatprep.subr.bf16.mxu0 0
        %8667 = vmatpush1.bf16.msra.mxu0 %v8647
        %8668 = vmatprep.subr.bf16.mxu0 0
        %8669 = vmatpush1.bf16.msra.mxu0 %v8648
        %8670 = vmatprep.subr.bf16.mxu0 0
        %8671 = vmatpush1.bf16.msra.mxu0 %v8649
        %8672 = vmatprep.subr.bf16.mxu0 0
        %8673 = vmatpush1.bf16.msra.mxu0 %v8650
        %8674 = vmatprep.subr.bf16.mxu0 0
        %8675 = vmatpush1.bf16.msra.mxu0 %v8651
        %8676 = vmatprep.subr.bf16.mxu0 0
        %8677 = vmatpush1.bf16.msra.mxu0 0
        %8678 = vmatprep.subr.bf16.mxu0 0
        %8679 = vmatpush1.bf16.msra.mxu0 0
        %8680 = vmatprep.subr.bf16.mxu0 0
        %8681 = vmatpush1.bf16.msra.mxu0 0
        %8682 = vmatprep.subr.bf16.mxu0 0
        %8683 = vmatpush1.bf16.msra.mxu0 0
        %8684 = vmatprep.subr.bf16.mxu0 0
        %8685 = vmatpush1.bf16.msra.mxu0 0
        %8686 = vmatprep.subr.bf16.mxu0 0
        %8687 = vmatpush1.bf16.msra.mxu0 0
        %8688 = vmatprep.subr.bf16.mxu0 0
        %8689 = vmatpush1.bf16.msra.mxu0 0
        %8690 = vmatprep.subr.bf16.mxu0 0
        %8691 = vmatpush1.bf16.msra.mxu0 0
        %8692 = vmatprep.mubr.bf16.mxu0 0
        %8693 = vmatmul.mubr.bf16.gmra.mrb[0].mxu0 %v8589
        %v8694 = vpop.f32.mrb[0].mxu0
        %v8695 = vadd.f32 %v8611, %v8694
        %v8696 = vpop.f32.mrb[0].mxu0
        %v8697 = vpop.f32.mrb[0].mxu0
        %v8698 = vadd.f32 %v8611, %v8697
        %v8699 = vpop.f32.mrb[0].mxu0
        %8700 = vmatprep.mubr.bf16.mxu0 0
        %8701 = vmatmul.mubr.bf16.gmra.mrb[0].mxu0 %v8590
        %v8702 = vpop.f32.mrb[0].mxu0
        %v8703 = vadd.f32 %v8611, %v8702
        %v8704 = vpop.f32.mrb[0].mxu0
        %v8705 = vpop.f32.mrb[0].mxu0
        %v8706 = vadd.f32 %v8611, %v8705
        %v8707 = vpop.f32.mrb[0].mxu0
        %8708 = vdwg.mxu0
        %v8709 = vadd.f32 %v8571, %v8695
        %v8710 = vadd.f32 %v8574, %v8698
        %v8711 = vadd.f32 %v8579, %v8703
        %v8712 = vadd.f32 %v8582, %v8706
        %8713 = vst [vmem:[%s205] sm:$0xff] %v8709
        %8714 = vst [vmem:[%s205 + $0x8] sm:$0xff] %v8710
        %8715 = vst [vmem:[%s205 + $0x10] sm:$0xff] %v8711
        %8716 = vst [vmem:[%s205 + $0x18] sm:$0xff] %v8712
        %s8717 = sand.u32 %s120, 1
        %s8718 = scalar_lea.sflag [#allocation3], %s8717
        %s8719 = sand.u32 %s120, 1
        %s8720 = smul.addr %s8719, 32
        %s8721 = scalar_lea.vmem [#allocation2], %s8720
        // Predicated region
        $region37: #{tpu_custom_call.1} parent=35 // pred_check
          %p8722 = pneg %p130
        $region38: #{tpu_custom_call.1} parent=35 // pred_check_branch
          %8724 = sbr.rel (%p8722) target = $region40
        $region39: #{tpu_custom_call.1} parent=35 // pred_region
          %s8726 = ssub.s32 512, 512
          %8727 = vsyncadd %s8718, %s8726
          %s8728 = smul.addr %s18, 4
          %s8729 = smul.addr %s8728, 128
          %s8730 = scalar_lea.hbm %s4, %s8729
          %s8731 = sshll.u32 %s8721, 4
          %s8732 = int_to_ptr.vmem [resolvable:$true] %s8731
          %8737 = dma.vmem_to_hbm [thread:$0]  %s8732, 512, %s8730, %s8718, 128, 128, 8
        $region40: #{tpu_custom_call.1} parent=35 // pred_fallthru
          _
      $region36: #{tpu_custom_call.1} parent=5 // pred_fallthru
        _
      %p8738 = scmp.le.s32.totalorder 2, %s13
      // Predicated region
      $region41: #{tpu_custom_call.1} parent=5 // pred_check
        %p8739 = pneg %p8738
      $region42: #{tpu_custom_call.1} parent=5 // pred_check_branch
        %8741 = sbr.rel (%p8739) target = $region44
      $region43: #{tpu_custom_call.1} parent=5 // pred_region
        %s8742 = ssub.s32 %s13, 2
        // Predicated region
        $region45: #{tpu_custom_call.1} parent=43 // pred_check
          %p8743 = pneg %p136
        $region46: #{tpu_custom_call.1} parent=43 // pred_check_branch
          %8745 = sbr.rel (%p8743) target = $region48
        $region47: #{tpu_custom_call.1} parent=43 // pred_region
          %s8746 = sand.u32 %s121, 1
          %s8747 = scalar_lea.sflag [#allocation3], %s8746
          %s8748 = sand.u32 %s121, 1
          %s8749 = smul.addr %s8748, 32
          %s8750 = scalar_lea.vmem [#allocation2], %s8749
          %8751 = dma.done %s8747, 512
        $region48: #{tpu_custom_call.1} parent=43 // pred_fallthru
          _
      $region44: #{tpu_custom_call.1} parent=5 // pred_fallthru
        _
    $region6: #{tpu_custom_call.1} parent=1 // loop_footer
      %s17 = sadd.s32 1, %s13
    $region7: #{tpu_custom_call.1} parent=1 // loop_footer_branch
      %12 = sbr.rel target = $region3
    $region8: #{tpu_custom_call.1} parent=1 // loop_exit
      _
    %8752 = vsyncpa [#allocation3], 1
    %s8753 = scalar_lea.sflag [#allocation3], 1
    %8754 = vsyncpa %s8753, 1

</llo_original>
